<compile_context>
chip_gen: v7x
topology: tpu7x:2x2x1
jax: 0.10.0
libtpu: 0.0.40
codegen_flags: <defaults>
</compile_context>

<pallas_src>
import functools
import math

import jax
import jax.numpy as jnp
from jax.experimental import pallas as pl
from jax.experimental.pallas import tpu as pltpu


# ------------------------------ fused kernel --------------------------------

def _fused_forward_kernel(
    x_ref,                      # (N*S, input_dim) f32, rows ordered n*S + s
    mask_ref,                   # (N*S, N*S) f32 block-diagonal additive mask
    ifc_w_ref, ifc_b_ref,       # (In, E) bf16, (1, E) f32
    inp_w_ref, inp_b_ref,       # (L, E, 3E) bf16 (q cols pre-scaled), (L,1,3E)
    outp_w_ref, outp_b_ref,     # (L, E, E) bf16, (L, 1, E)
    ln1_g_ref, ln1_b_ref,       # (L, 1, E)
    ff1_w_ref, ff1_b_ref,       # (L, E, F) bf16, (L, 1, F) f32
    ff2_w_ref, ff2_b_ref,       # (L, F, E) bf16, (L, 1, E) f32
    ln2_g_ref, ln2_b_ref,       # (L, 1, E)
    fc_w_ref, fc_b_ref,         # (E, O) bf16, (1, O) f32
    o_ref,                      # (S, O)
    ctx_ref,                    # VMEM scratch (N*S, E) f32 — per-head context
    *, S, N, H, n_layers, eps, ff_chunk,
):
    E = ifc_w_ref.shape[1]
    F = ff1_w_ref.shape[2]
    Dh = E // H
    NS = N * S

    def layer_norm(z, g, b):
        mu = jnp.mean(z, axis=-1, keepdims=True)
        zc = z - mu
        var = jnp.mean(zc * zc, axis=-1, keepdims=True)
        return zc * jax.lax.rsqrt(var + eps) * g + b

    mask = mask_ref[...]                                       # (NS, NS)

    # ---- input_fc (bf16 weights, f32 accumulate) ----
    x = x_ref[...]
    h = jnp.dot(x.astype(jnp.bfloat16), ifc_w_ref[...],
                preferred_element_type=jnp.float32) + ifc_b_ref[...]   # (NS, E)

    for l in range(n_layers):
        # ---- self-attention: H matmuls over full (NS, Dh) slabs + mask ----
        h_b = h.astype(jnp.bfloat16)
        qkv = jnp.dot(h_b, inp_w_ref[l],
                      preferred_element_type=jnp.float32) + inp_b_ref[l]  # (NS,3E)
        for hh in range(H):                                    # static, H=4
            c0 = hh * Dh
            qh = qkv[:, c0:c0 + Dh]                            # 1/sqrt(Dh) folded in
            kh = qkv[:, E + c0:E + c0 + Dh]
            vh = qkv[:, 2 * E + c0:2 * E + c0 + Dh]
            s = jax.lax.dot_general(
                qh, kh, (((1,), (1,)), ((), ())),
                preferred_element_type=jnp.float32)            # (NS, NS)
            s = s + mask                                       # kill cross-batch blocks
            m = jnp.max(s, axis=-1, keepdims=True)
            e = jnp.exp(s - m)                                 # masked cols -> 0 exactly
            p = e * pl.reciprocal(jnp.sum(e, axis=-1, keepdims=True), approx=True)
            ctx_ref[:, c0:c0 + Dh] = jnp.dot(
                p, vh, preferred_element_type=jnp.float32)     # static-offset store

        ctx = ctx_ref[...]                                     # (NS, E)
        attn = jnp.dot(ctx.astype(jnp.bfloat16), outp_w_ref[l],
                       preferred_element_type=jnp.float32) + outp_b_ref[l]
        h = layer_norm(h + attn, ln1_g_ref[l], ln1_b_ref[l])

        # ---- feed-forward, chunk-fused over F (lane-dense chunks) ----
        h_b = h.astype(jnp.bfloat16)
        ff_out = h + ff2_b_ref[l]            # residual + lin2 bias folded into acc
        for c in range(F // ff_chunk):                         # static, 4 chunks
            f0 = c * ff_chunk
            t = jnp.dot(h_b, ff1_w_ref[l, :, f0:f0 + ff_chunk],
                        preferred_element_type=jnp.float32)
            t = t + ff1_b_ref[l, :, f0:f0 + ff_chunk]
            t = jnp.maximum(t, 0.0)
            ff_out = ff_out + jnp.dot(
                t.astype(jnp.bfloat16), ff2_w_ref[l, f0:f0 + ff_chunk, :],
                preferred_element_type=jnp.float32)
        h = layer_norm(ff_out, ln2_g_ref[l], ln2_b_ref[l])

    # ---- mean over transformer batch axis N (rows are batch-major) ----
    pooled = h[0:S, :]
    for n in range(1, N):
        pooled = pooled + h[n * S:(n + 1) * S, :]
    pooled = pooled * (1.0 / N)                                # (S, E)

    # ---- final fc ----
    out = jnp.dot(pooled.astype(jnp.bfloat16), fc_w_ref[...],
                  preferred_element_type=jnp.float32)
    o_ref[...] = (out + fc_b_ref[...]).astype(o_ref.dtype)


# ---------------------------- wrapper / weight prep --------------------------

_VMEM = pl.BlockSpec(memory_space=pltpu.MemorySpace.VMEM)


def prepare_params(params, n_heads):
    """One-time weight re-layout: transpose to (in,out), stack per-layer,
    cast all matmul weights to bf16, fold 1/sqrt(Dh) into q proj."""
    layers = params["layers"]
    L = len(layers)
    E = params["input_fc_w"].shape[0]
    F = layers[0]["lin1_w"].shape[0]
    O = params["fc_w"].shape[0]
    scale = 1.0 / math.sqrt(E // n_heads)
    bf16 = jnp.bfloat16

    def stk(name):
        return jnp.stack([lp[name] for lp in layers])

    # Fold the attention scale into the q columns of in_proj (weights + bias).
    inp_w = jnp.stack([lp["in_proj_w"].T for lp in layers])    # (L, E, 3E)
    inp_w = inp_w.at[:, :, :E].multiply(scale)
    inp_b = stk("in_proj_b").reshape(L, 1, 3 * E)
    inp_b = inp_b.at[:, :, :E].multiply(scale)

    return {
        "ifc_w": params["input_fc_w"].T.astype(bf16),          # (In, E)
        "ifc_b": params["input_fc_b"].reshape(1, E),
        "inp_w": inp_w.astype(bf16),                           # (L, E, 3E)
        "inp_b": inp_b,
        "outp_w": jnp.stack([lp["out_proj_w"].T for lp in layers]).astype(bf16),
        "outp_b": stk("out_proj_b").reshape(L, 1, E),
        "ln1_g": stk("ln1_g").reshape(L, 1, E),
        "ln1_b": stk("ln1_b").reshape(L, 1, E),
        "ff1_w": jnp.stack([lp["lin1_w"].T for lp in layers]).astype(bf16),
        "ff1_b": stk("lin1_b").reshape(L, 1, F),
        "ff2_w": jnp.stack([lp["lin2_w"].T for lp in layers]).astype(bf16),
        "ff2_b": stk("lin2_b").reshape(L, 1, E),
        "ln2_g": stk("ln2_g").reshape(L, 1, E),
        "ln2_b": stk("ln2_b").reshape(L, 1, E),
        "fc_w": params["fc_w"].T.astype(bf16),                 # (E, O)
        "fc_b": params["fc_b"].reshape(1, O),
    }


def transformer_traffic_forward(x, prepared, *, n_heads):
    """x: (S, N, input_dim) -> (S, output_dim). Single fused pallas_call."""
    S, N, In = x.shape
    E = prepared["ifc_w"].shape[1]
    O = prepared["fc_w"].shape[1]
    L = prepared["inp_w"].shape[0]
    F = prepared["ff1_w"].shape[2]
    assert E % n_heads == 0

    # Batch-major row ordering: each transformer-batch n occupies a contiguous
    # block of S rows; cross-batch attention is removed with an additive
    # block-diagonal mask applied before the softmax max-subtraction (exact).
    x2 = x.transpose(1, 0, 2).reshape(N * S, In)
    row_batch = jnp.arange(N * S, dtype=jnp.int32) // S
    attn_mask = jnp.where(row_batch[:, None] == row_batch[None, :],
                          jnp.float32(0.0), jnp.float32(-1e9))

    ff_chunk = min(512, F)
    assert F % ff_chunk == 0

    kernel = functools.partial(
        _fused_forward_kernel, S=S, N=N, H=n_heads, n_layers=L, eps=1e-5,
        ff_chunk=ff_chunk)

    return pl.pallas_call(
        kernel,
        out_shape=jax.ShapeDtypeStruct((S, O), jnp.float32),
        in_specs=[_VMEM] * 18,
        out_specs=_VMEM,
        scratch_shapes=[pltpu.VMEM((N * S, E), jnp.float32)],
    )(x2, attn_mask,
      prepared["ifc_w"], prepared["ifc_b"],
      prepared["inp_w"], prepared["inp_b"],
      prepared["outp_w"], prepared["outp_b"],
      prepared["ln1_g"], prepared["ln1_b"],
      prepared["ff1_w"], prepared["ff1_b"],
      prepared["ff2_w"], prepared["ff2_b"],
      prepared["ln2_g"], prepared["ln2_b"],
      prepared["fc_w"], prepared["fc_b"])


# ------------------------------ params / reference ---------------------------

def init_params(key, input_dim, d_model, n_layers, output_dim, dim_ff):
    def nrm(k, shape, s=0.05):
        return s * jax.random.normal(k, shape, dtype=jnp.float32)

    keys = iter(jax.random.split(key, 4 + 12 * n_layers))
    params = {
        "input_fc_w": nrm(next(keys), (d_model, input_dim)),
        "input_fc_b": nrm(next(keys), (d_model,)),
        "fc_w": nrm(next(keys), (output_dim, d_model)),
        "fc_b": nrm(next(keys), (output_dim,)),
        "layers": [],
    }
    for _ in range(n_layers):
        params["layers"].append({
            "in_proj_w": nrm(next(keys), (3 * d_model, d_model)),
            "in_proj_b": nrm(next(keys), (3 * d_model,)),
            "out_proj_w": nrm(next(keys), (d_model, d_model)),
            "out_proj_b": nrm(next(keys), (d_model,)),
            "lin1_w": nrm(next(keys), (dim_ff, d_model)),
            "lin1_b": nrm(next(keys), (dim_ff,)),
            "lin2_w": nrm(next(keys), (d_model, dim_ff)),
            "lin2_b": nrm(next(keys), (d_model,)),
            "ln1_g": 1.0 + nrm(next(keys), (d_model,), 0.1),
            "ln1_b": nrm(next(keys), (d_model,), 0.1),
            "ln2_g": 1.0 + nrm(next(keys), (d_model,), 0.1),
            "ln2_b": nrm(next(keys), (d_model,), 0.1),
        })
    return params


def reference_forward(x, params, *, n_heads, eps=1e-5):
    """Pure-JAX f32 reference mirroring PyTorch eval-mode semantics."""
    S, N, _ = x.shape
    E = params["input_fc_w"].shape[0]
    H = n_heads
    Dh = E // H
    hi = jax.lax.Precision.HIGHEST

    def lin(t, w, b):
        return jnp.einsum("...k,ok->...o", t, w, precision=hi) + b

    def ln(t, g, b):
        mu = t.mean(-1, keepdims=True)
        var = ((t - mu) ** 2).mean(-1, keepdims=True)
        return (t - mu) / jnp.sqrt(var + eps) * g + b

    h = lin(x, params["input_fc_w"], params["input_fc_b"])       # (S, N, E)
    for lp in params["layers"]:
        qkv = lin(h, lp["in_proj_w"], lp["in_proj_b"])
        q, k, v = jnp.split(qkv, 3, axis=-1)

        def heads(t):
            return t.reshape(S, N, H, Dh).transpose(1, 2, 0, 3)  # (N,H,S,Dh)

        qh, kh, vh = heads(q), heads(k), heads(v)
        scores = jnp.einsum("nhsd,nhtd->nhst", qh, kh, precision=hi) / jnp.sqrt(
            jnp.float32(Dh))
        probs = jax.nn.softmax(scores, axis=-1)
        ctx = jnp.einsum("nhst,nhtd->nhsd", probs, vh, precision=hi)
        ctx = ctx.transpose(2, 0, 1, 3).reshape(S, N, E)
        h = ln(h + lin(ctx, lp["out_proj_w"], lp["out_proj_b"]),
               lp["ln1_g"], lp["ln1_b"])
        ff = jax.nn.relu(lin(h, lp["lin1_w"], lp["lin1_b"]))
        ff = lin(ff, lp["lin2_w"], lp["lin2_b"])
        h = ln(h + ff, lp["ln2_g"], lp["ln2_b"])
    pooled = h.mean(axis=1)                                       # (S, E)
    return lin(pooled, params["fc_w"], params["fc_b"])


# ------------------------------------ main ------------------------------------

if __name__ == "__main__":
    S, N = 8, 2
    input_dim, d_model, n_heads, n_layers, output_dim = 16, 32, 4, 2, 4
    dim_ff = 2048  # nn.TransformerEncoderLayer default dim_feedforward
    # TODO(synk): dropout layers (p=0.1) are train-time stochastic; implemented
    # here as identity (eval-mode semantics).

    key = jax.random.PRNGKey(0)
    kx, kp = jax.random.split(key)
    x = jax.random.normal(kx, (S, N, input_dim), dtype=jnp.float32)
    params = init_params(kp, input_dim, d_model, n_layers, output_dim, dim_ff)

    prepared = prepare_params(params, n_heads=n_heads)   # one-time re-layout/bf16

    fwd = jax.jit(functools.partial(transformer_traffic_forward, n_heads=n_heads))
    out = jax.block_until_ready(fwd(x, prepared))

    assert out.shape == (S, output_dim)
    assert bool(jnp.all(jnp.isfinite(out)))

    # bf16 matmul weights + EUP approx-reciprocal softmax deviate slightly from
    # the pure-f32 reference (documented per review); typical max-abs error is
    # well below 1e-2, gated here at 2e-2.
    ref = reference_forward(x, params, n_heads=n_heads)
    err = float(jnp.max(jnp.abs(out - ref)))
    assert bool(jnp.allclose(out, ref, rtol=2e-2, atol=2e-2)), f"max err {err}"

    print("KERNEL_OK")
</pallas_src>

<mosaic_0001>
module attributes {stable_mosaic.version = 11 : i64} {
  func.func @_fused_forward_kernel(%arg0: memref<16x16xf32, #tpu.memory_space<vmem>>, %arg1: memref<16x16xf32, #tpu.memory_space<vmem>>, %arg2: memref<16x32xbf16, #tpu.memory_space<vmem>>, %arg3: memref<1x32xf32, #tpu.memory_space<vmem>>, %arg4: memref<2x32x96xbf16, #tpu.memory_space<vmem>>, %arg5: memref<2x1x96xf32, #tpu.memory_space<vmem>>, %arg6: memref<2x32x32xbf16, #tpu.memory_space<vmem>>, %arg7: memref<2x1x32xf32, #tpu.memory_space<vmem>>, %arg8: memref<2x1x32xf32, #tpu.memory_space<vmem>>, %arg9: memref<2x1x32xf32, #tpu.memory_space<vmem>>, %arg10: memref<2x32x2048xbf16, #tpu.memory_space<vmem>>, %arg11: memref<2x1x2048xf32, #tpu.memory_space<vmem>>, %arg12: memref<2x2048x32xbf16, #tpu.memory_space<vmem>>, %arg13: memref<2x1x32xf32, #tpu.memory_space<vmem>>, %arg14: memref<2x1x32xf32, #tpu.memory_space<vmem>>, %arg15: memref<2x1x32xf32, #tpu.memory_space<vmem>>, %arg16: memref<32x4xbf16, #tpu.memory_space<vmem>>, %arg17: memref<1x4xf32, #tpu.memory_space<vmem>>, %arg18: memref<8x4xf32, #tpu.memory_space<vmem>>, %arg19: memref<16x32xf32, #tpu.memory_space<vmem>>) attributes {dimension_semantics = [], scalar_prefetch = 0 : i64, scratch_operands = 1 : i64, tpu.core_type = #tpu.core_type<tc>} {
    %c0 = arith.constant 0 : index
    %c0_0 = arith.constant 0 : index
    %0 = vector.load %arg1[%c0, %c0_0] : memref<16x16xf32, #tpu.memory_space<vmem>>, vector<16x16xf32>
    %c0_1 = arith.constant 0 : index
    %c0_2 = arith.constant 0 : index
    %1 = vector.load %arg0[%c0_1, %c0_2] : memref<16x16xf32, #tpu.memory_space<vmem>>, vector<16x16xf32>
    %2 = arith.truncf %1 : vector<16x16xf32> to vector<16x16xbf16>
    %c0_3 = arith.constant 0 : index
    %c0_4 = arith.constant 0 : index
    %3 = vector.load %arg2[%c0_3, %c0_4] : memref<16x32xbf16, #tpu.memory_space<vmem>>, vector<16x32xbf16>
    %cst = arith.constant dense<0.000000e+00> : vector<16x32xf32>
    %4 = tpu.matmul %2, %3, %cst {dimension_numbers = #tpu.dot_dimension_numbers<[1], [0], [0], [1], [0, 0, 1, 1], [], []>} : vector<16x16xbf16>, vector<16x32xbf16>, vector<16x32xf32> -> vector<16x32xf32>
    %c0_5 = arith.constant 0 : index
    %c0_6 = arith.constant 0 : index
    %5 = vector.load %arg3[%c0_5, %c0_6] : memref<1x32xf32, #tpu.memory_space<vmem>>, vector<1x32xf32>
    %6 = vector.broadcast %5 : vector<1x32xf32> to vector<16x32xf32>
    %7 = arith.addf %4, %6 : vector<16x32xf32>
    %8 = arith.truncf %7 : vector<16x32xf32> to vector<16x32xbf16>
    %c0_7 = arith.constant 0 : index
    %c0_8 = arith.constant 0 : index
    %c0_9 = arith.constant 0 : index
    %9 = vector.load %arg4[%c0_7, %c0_8, %c0_9] : memref<2x32x96xbf16, #tpu.memory_space<vmem>>, vector<1x32x96xbf16>
    %10 = vector.shape_cast %9 : vector<1x32x96xbf16> to vector<32x96xbf16>
    %cst_10 = arith.constant dense<0.000000e+00> : vector<16x96xf32>
    %11 = tpu.matmul %8, %10, %cst_10 {dimension_numbers = #tpu.dot_dimension_numbers<[1], [0], [0], [1], [0, 0, 1, 1], [], []>} : vector<16x32xbf16>, vector<32x96xbf16>, vector<16x96xf32> -> vector<16x96xf32>
    %c0_11 = arith.constant 0 : index
    %c0_12 = arith.constant 0 : index
    %c0_13 = arith.constant 0 : index
    %12 = vector.load %arg5[%c0_11, %c0_12, %c0_13] : memref<2x1x96xf32, #tpu.memory_space<vmem>>, vector<1x1x96xf32>
    %13 = vector.shape_cast %12 : vector<1x1x96xf32> to vector<1x96xf32>
    %14 = vector.broadcast %13 : vector<1x96xf32> to vector<16x96xf32>
    %15 = arith.addf %11, %14 : vector<16x96xf32>
    %16 = vector.extract_strided_slice %15 {offsets = [0, 0], sizes = [16, 8], strides = [1, 1]} : vector<16x96xf32> to vector<16x8xf32>
    %17 = vector.extract_strided_slice %15 {offsets = [0, 32], sizes = [16, 8], strides = [1, 1]} : vector<16x96xf32> to vector<16x8xf32>
    %18 = vector.extract_strided_slice %15 {offsets = [0, 64], sizes = [16, 8], strides = [1, 1]} : vector<16x96xf32> to vector<16x8xf32>
    %cst_14 = arith.constant dense<0.000000e+00> : vector<16x16xf32>
    %19 = tpu.matmul %16, %17, %cst_14 {dimension_numbers = #tpu.dot_dimension_numbers<[1], [1], [0], [0], [0, 0, 1, 0], [], []>} : vector<16x8xf32>, vector<16x8xf32>, vector<16x16xf32> -> vector<16x16xf32>
    %20 = arith.addf %19, %0 : vector<16x16xf32>
    %cst_15 = arith.constant dense<0xFF800000> : vector<16xf32>
    %21 = vector.multi_reduction <maximumf>, %20, %cst_15 [1] : vector<16x16xf32> to vector<16xf32>
    %22 = vector.shape_cast %21 : vector<16xf32> to vector<16x1xf32>
    %23 = vector.broadcast %22 : vector<16x1xf32> to vector<16x16xf32>
    %24 = arith.subf %20, %23 : vector<16x16xf32>
    %25 = math.exp %24 : vector<16x16xf32>
    %cst_16 = arith.constant dense<0.000000e+00> : vector<16xf32>
    %26 = vector.multi_reduction <add>, %25, %cst_16 [1] : vector<16x16xf32> to vector<16xf32>
    %27 = vector.shape_cast %26 : vector<16xf32> to vector<16x1xf32>
    %28 = tpu.reciprocal %27 {approx = true} : vector<16x1xf32> -> vector<16x1xf32>
    %29 = vector.broadcast %28 : vector<16x1xf32> to vector<16x16xf32>
    %30 = arith.mulf %25, %29 : vector<16x16xf32>
    %cst_17 = arith.constant dense<0.000000e+00> : vector<16x8xf32>
    %31 = tpu.matmul %30, %18, %cst_17 {dimension_numbers = #tpu.dot_dimension_numbers<[1], [0], [0], [1], [0, 0, 1, 1], [], []>} : vector<16x16xf32>, vector<16x8xf32>, vector<16x8xf32> -> vector<16x8xf32>
    %c0_18 = arith.constant 0 : index
    %c0_19 = arith.constant 0 : index
    %32 = vector.load %arg19[%c0_18, %c0_19] : memref<16x32xf32, #tpu.memory_space<vmem>>, vector<16x8xf32>
    tpu.vector_store %arg19[%c0_18, %c0_19], %31 {strides = array<i32>} : memref<16x32xf32, #tpu.memory_space<vmem>>, vector<16x8xf32>,
    %33 = vector.extract_strided_slice %15 {offsets = [0, 8], sizes = [16, 8], strides = [1, 1]} : vector<16x96xf32> to vector<16x8xf32>
    %34 = vector.extract_strided_slice %15 {offsets = [0, 40], sizes = [16, 8], strides = [1, 1]} : vector<16x96xf32> to vector<16x8xf32>
    %35 = vector.extract_strided_slice %15 {offsets = [0, 72], sizes = [16, 8], strides = [1, 1]} : vector<16x96xf32> to vector<16x8xf32>
    %cst_20 = arith.constant dense<0.000000e+00> : vector<16x16xf32>
    %36 = tpu.matmul %33, %34, %cst_20 {dimension_numbers = #tpu.dot_dimension_numbers<[1], [1], [0], [0], [0, 0, 1, 0], [], []>} : vector<16x8xf32>, vector<16x8xf32>, vector<16x16xf32> -> vector<16x16xf32>
    %37 = arith.addf %36, %0 : vector<16x16xf32>
    %cst_21 = arith.constant dense<0xFF800000> : vector<16xf32>
    %38 = vector.multi_reduction <maximumf>, %37, %cst_21 [1] : vector<16x16xf32> to vector<16xf32>
    %39 = vector.shape_cast %38 : vector<16xf32> to vector<16x1xf32>
    %40 = vector.broadcast %39 : vector<16x1xf32> to vector<16x16xf32>
    %41 = arith.subf %37, %40 : vector<16x16xf32>
    %42 = math.exp %41 : vector<16x16xf32>
    %cst_22 = arith.constant dense<0.000000e+00> : vector<16xf32>
    %43 = vector.multi_reduction <add>, %42, %cst_22 [1] : vector<16x16xf32> to vector<16xf32>
    %44 = vector.shape_cast %43 : vector<16xf32> to vector<16x1xf32>
    %45 = tpu.reciprocal %44 {approx = true} : vector<16x1xf32> -> vector<16x1xf32>
    %46 = vector.broadcast %45 : vector<16x1xf32> to vector<16x16xf32>
    %47 = arith.mulf %42, %46 : vector<16x16xf32>
    %cst_23 = arith.constant dense<0.000000e+00> : vector<16x8xf32>
    %48 = tpu.matmul %47, %35, %cst_23 {dimension_numbers = #tpu.dot_dimension_numbers<[1], [0], [0], [1], [0, 0, 1, 1], [], []>} : vector<16x16xf32>, vector<16x8xf32>, vector<16x8xf32> -> vector<16x8xf32>
    %c0_24 = arith.constant 0 : index
    %c8 = arith.constant 8 : index
    %49 = vector.load %arg19[%c0_24, %c8] : memref<16x32xf32, #tpu.memory_space<vmem>>, vector<16x8xf32>
    tpu.vector_store %arg19[%c0_24, %c8], %48 {strides = array<i32>} : memref<16x32xf32, #tpu.memory_space<vmem>>, vector<16x8xf32>,
    %50 = vector.extract_strided_slice %15 {offsets = [0, 16], sizes = [16, 8], strides = [1, 1]} : vector<16x96xf32> to vector<16x8xf32>
    %51 = vector.extract_strided_slice %15 {offsets = [0, 48], sizes = [16, 8], strides = [1, 1]} : vector<16x96xf32> to vector<16x8xf32>
    %52 = vector.extract_strided_slice %15 {offsets = [0, 80], sizes = [16, 8], strides = [1, 1]} : vector<16x96xf32> to vector<16x8xf32>
    %cst_25 = arith.constant dense<0.000000e+00> : vector<16x16xf32>
    %53 = tpu.matmul %50, %51, %cst_25 {dimension_numbers = #tpu.dot_dimension_numbers<[1], [1], [0], [0], [0, 0, 1, 0], [], []>} : vector<16x8xf32>, vector<16x8xf32>, vector<16x16xf32> -> vector<16x16xf32>
    %54 = arith.addf %53, %0 : vector<16x16xf32>
    %cst_26 = arith.constant dense<0xFF800000> : vector<16xf32>
    %55 = vector.multi_reduction <maximumf>, %54, %cst_26 [1] : vector<16x16xf32> to vector<16xf32>
    %56 = vector.shape_cast %55 : vector<16xf32> to vector<16x1xf32>
    %57 = vector.broadcast %56 : vector<16x1xf32> to vector<16x16xf32>
    %58 = arith.subf %54, %57 : vector<16x16xf32>
    %59 = math.exp %58 : vector<16x16xf32>
    %cst_27 = arith.constant dense<0.000000e+00> : vector<16xf32>
    %60 = vector.multi_reduction <add>, %59, %cst_27 [1] : vector<16x16xf32> to vector<16xf32>
    %61 = vector.shape_cast %60 : vector<16xf32> to vector<16x1xf32>
    %62 = tpu.reciprocal %61 {approx = true} : vector<16x1xf32> -> vector<16x1xf32>
    %63 = vector.broadcast %62 : vector<16x1xf32> to vector<16x16xf32>
    %64 = arith.mulf %59, %63 : vector<16x16xf32>
    %cst_28 = arith.constant dense<0.000000e+00> : vector<16x8xf32>
    %65 = tpu.matmul %64, %52, %cst_28 {dimension_numbers = #tpu.dot_dimension_numbers<[1], [0], [0], [1], [0, 0, 1, 1], [], []>} : vector<16x16xf32>, vector<16x8xf32>, vector<16x8xf32> -> vector<16x8xf32>
    %c0_29 = arith.constant 0 : index
    %c16 = arith.constant 16 : index
    %66 = vector.load %arg19[%c0_29, %c16] : memref<16x32xf32, #tpu.memory_space<vmem>>, vector<16x8xf32>
    tpu.vector_store %arg19[%c0_29, %c16], %65 {strides = array<i32>} : memref<16x32xf32, #tpu.memory_space<vmem>>, vector<16x8xf32>,
    %67 = vector.extract_strided_slice %15 {offsets = [0, 24], sizes = [16, 8], strides = [1, 1]} : vector<16x96xf32> to vector<16x8xf32>
    %68 = vector.extract_strided_slice %15 {offsets = [0, 56], sizes = [16, 8], strides = [1, 1]} : vector<16x96xf32> to vector<16x8xf32>
    %69 = vector.extract_strided_slice %15 {offsets = [0, 88], sizes = [16, 8], strides = [1, 1]} : vector<16x96xf32> to vector<16x8xf32>
    %cst_30 = arith.constant dense<0.000000e+00> : vector<16x16xf32>
    %70 = tpu.matmul %67, %68, %cst_30 {dimension_numbers = #tpu.dot_dimension_numbers<[1], [1], [0], [0], [0, 0, 1, 0], [], []>} : vector<16x8xf32>, vector<16x8xf32>, vector<16x16xf32> -> vector<16x16xf32>
    %71 = arith.addf %70, %0 : vector<16x16xf32>
    %cst_31 = arith.constant dense<0xFF800000> : vector<16xf32>
    %72 = vector.multi_reduction <maximumf>, %71, %cst_31 [1] : vector<16x16xf32> to vector<16xf32>
    %73 = vector.shape_cast %72 : vector<16xf32> to vector<16x1xf32>
    %74 = vector.broadcast %73 : vector<16x1xf32> to vector<16x16xf32>
    %75 = arith.subf %71, %74 : vector<16x16xf32>
    %76 = math.exp %75 : vector<16x16xf32>
    %cst_32 = arith.constant dense<0.000000e+00> : vector<16xf32>
    %77 = vector.multi_reduction <add>, %76, %cst_32 [1] : vector<16x16xf32> to vector<16xf32>
    %78 = vector.shape_cast %77 : vector<16xf32> to vector<16x1xf32>
    %79 = tpu.reciprocal %78 {approx = true} : vector<16x1xf32> -> vector<16x1xf32>
    %80 = vector.broadcast %79 : vector<16x1xf32> to vector<16x16xf32>
    %81 = arith.mulf %76, %80 : vector<16x16xf32>
    %cst_33 = arith.constant dense<0.000000e+00> : vector<16x8xf32>
    %82 = tpu.matmul %81, %69, %cst_33 {dimension_numbers = #tpu.dot_dimension_numbers<[1], [0], [0], [1], [0, 0, 1, 1], [], []>} : vector<16x16xf32>, vector<16x8xf32>, vector<16x8xf32> -> vector<16x8xf32>
    %c0_34 = arith.constant 0 : index
    %c24 = arith.constant 24 : index
    %83 = vector.load %arg19[%c0_34, %c24] : memref<16x32xf32, #tpu.memory_space<vmem>>, vector<16x8xf32>
    tpu.vector_store %arg19[%c0_34, %c24], %82 {strides = array<i32>} : memref<16x32xf32, #tpu.memory_space<vmem>>, vector<16x8xf32>,
    %c0_35 = arith.constant 0 : index
    %c0_36 = arith.constant 0 : index
    %84 = vector.load %arg19[%c0_35, %c0_36] : memref<16x32xf32, #tpu.memory_space<vmem>>, vector<16x32xf32>
    %85 = arith.truncf %84 : vector<16x32xf32> to vector<16x32xbf16>
    %c0_37 = arith.constant 0 : index
    %c0_38 = arith.constant 0 : index
    %c0_39 = arith.constant 0 : index
    %86 = vector.load %arg6[%c0_37, %c0_38, %c0_39] : memref<2x32x32xbf16, #tpu.memory_space<vmem>>, vector<1x32x32xbf16>
    %87 = vector.shape_cast %86 : vector<1x32x32xbf16> to vector<32x32xbf16>
    %cst_40 = arith.constant dense<0.000000e+00> : vector<16x32xf32>
    %88 = tpu.matmul %85, %87, %cst_40 {dimension_numbers = #tpu.dot_dimension_numbers<[1], [0], [0], [1], [0, 0, 1, 1], [], []>} : vector<16x32xbf16>, vector<32x32xbf16>, vector<16x32xf32> -> vector<16x32xf32>
    %c0_41 = arith.constant 0 : index
    %c0_42 = arith.constant 0 : index
    %c0_43 = arith.constant 0 : index
    %89 = vector.load %arg7[%c0_41, %c0_42, %c0_43] : memref<2x1x32xf32, #tpu.memory_space<vmem>>, vector<1x1x32xf32>
    %90 = vector.shape_cast %89 : vector<1x1x32xf32> to vector<1x32xf32>
    %91 = vector.broadcast %90 : vector<1x32xf32> to vector<16x32xf32>
    %92 = arith.addf %88, %91 : vector<16x32xf32>
    %93 = arith.addf %7, %92 : vector<16x32xf32>
    %c0_44 = arith.constant 0 : index
    %c0_45 = arith.constant 0 : index
    %c0_46 = arith.constant 0 : index
    %94 = vector.load %arg8[%c0_44, %c0_45, %c0_46] : memref<2x1x32xf32, #tpu.memory_space<vmem>>, vector<1x1x32xf32>
    %95 = vector.shape_cast %94 : vector<1x1x32xf32> to vector<1x32xf32>
    %c0_47 = arith.constant 0 : index
    %c0_48 = arith.constant 0 : index
    %c0_49 = arith.constant 0 : index
    %96 = vector.load %arg9[%c0_47, %c0_48, %c0_49] : memref<2x1x32xf32, #tpu.memory_space<vmem>>, vector<1x1x32xf32>
    %97 = vector.shape_cast %96 : vector<1x1x32xf32> to vector<1x32xf32>
    %cst_50 = arith.constant dense<0.000000e+00> : vector<16xf32>
    %98 = vector.multi_reduction <add>, %93, %cst_50 [1] : vector<16x32xf32> to vector<16xf32>
    %99 = vector.shape_cast %98 : vector<16xf32> to vector<16x1xf32>
    %cst_51 = arith.constant 3.200000e+01 : f32
    %100 = vector.broadcast %cst_51 : f32 to vector<16x1xf32>
    %101 = arith.divf %99, %100 : vector<16x1xf32>
    %102 = vector.broadcast %101 : vector<16x1xf32> to vector<16x32xf32>
    %103 = arith.subf %93, %102 : vector<16x32xf32>
    %104 = arith.mulf %103, %103 : vector<16x32xf32>
    %cst_52 = arith.constant dense<0.000000e+00> : vector<16xf32>
    %105 = vector.multi_reduction <add>, %104, %cst_52 [1] : vector<16x32xf32> to vector<16xf32>
    %106 = vector.shape_cast %105 : vector<16xf32> to vector<16x1xf32>
    %cst_53 = arith.constant 3.200000e+01 : f32
    %107 = vector.broadcast %cst_53 : f32 to vector<16x1xf32>
    %108 = arith.divf %106, %107 : vector<16x1xf32>
    %cst_54 = arith.constant 9.99999974E-6 : f32
    %109 = vector.broadcast %cst_54 : f32 to vector<16x1xf32>
    %110 = arith.addf %108, %109 : vector<16x1xf32>
    %111 = math.rsqrt %110 : vector<16x1xf32>
    %112 = vector.broadcast %111 : vector<16x1xf32> to vector<16x32xf32>
    %113 = arith.mulf %103, %112 : vector<16x32xf32>
    %114 = vector.broadcast %95 : vector<1x32xf32> to vector<16x32xf32>
    %115 = arith.mulf %113, %114 : vector<16x32xf32>
    %116 = vector.broadcast %97 : vector<1x32xf32> to vector<16x32xf32>
    %117 = arith.addf %115, %116 : vector<16x32xf32>
    %118 = arith.truncf %117 : vector<16x32xf32> to vector<16x32xbf16>
    %c0_55 = arith.constant 0 : index
    %c0_56 = arith.constant 0 : index
    %c0_57 = arith.constant 0 : index
    %119 = vector.load %arg13[%c0_55, %c0_56, %c0_57] : memref<2x1x32xf32, #tpu.memory_space<vmem>>, vector<1x1x32xf32>
    %120 = vector.shape_cast %119 : vector<1x1x32xf32> to vector<1x32xf32>
    %121 = vector.broadcast %120 : vector<1x32xf32> to vector<16x32xf32>
    %122 = arith.addf %117, %121 : vector<16x32xf32>
    %c0_58 = arith.constant 0 : index
    %c0_59 = arith.constant 0 : index
    %c0_60 = arith.constant 0 : index
    %123 = vector.load %arg10[%c0_58, %c0_59, %c0_60] : memref<2x32x2048xbf16, #tpu.memory_space<vmem>>, vector<1x32x512xbf16>
    %124 = vector.shape_cast %123 : vector<1x32x512xbf16> to vector<32x512xbf16>
    %cst_61 = arith.constant dense<0.000000e+00> : vector<16x512xf32>
    %125 = tpu.matmul %118, %124, %cst_61 {dimension_numbers = #tpu.dot_dimension_numbers<[1], [0], [0], [1], [0, 0, 1, 1], [], []>} : vector<16x32xbf16>, vector<32x512xbf16>, vector<16x512xf32> -> vector<16x512xf32>
    %c0_62 = arith.constant 0 : index
    %c0_63 = arith.constant 0 : index
    %c0_64 = arith.constant 0 : index
    %126 = vector.load %arg11[%c0_62, %c0_63, %c0_64] : memref<2x1x2048xf32, #tpu.memory_space<vmem>>, vector<1x1x512xf32>
    %127 = vector.shape_cast %126 : vector<1x1x512xf32> to vector<1x512xf32>
    %128 = vector.broadcast %127 : vector<1x512xf32> to vector<16x512xf32>
    %129 = arith.addf %125, %128 : vector<16x512xf32>
    %cst_65 = arith.constant 0.000000e+00 : f32
    %130 = vector.broadcast %cst_65 : f32 to vector<16x512xf32>
    %131 = arith.maximumf %129, %130 : vector<16x512xf32>
    %132 = arith.truncf %131 : vector<16x512xf32> to vector<16x512xbf16>
    %c0_66 = arith.constant 0 : index
    %c0_67 = arith.constant 0 : index
    %c0_68 = arith.constant 0 : index
    %133 = vector.load %arg12[%c0_66, %c0_67, %c0_68] : memref<2x2048x32xbf16, #tpu.memory_space<vmem>>, vector<1x512x32xbf16>
    %134 = vector.shape_cast %133 : vector<1x512x32xbf16> to vector<512x32xbf16>
    %cst_69 = arith.constant dense<0.000000e+00> : vector<16x32xf32>
    %135 = tpu.matmul %132, %134, %cst_69 {dimension_numbers = #tpu.dot_dimension_numbers<[1], [0], [0], [1], [0, 0, 1, 1], [], []>} : vector<16x512xbf16>, vector<512x32xbf16>, vector<16x32xf32> -> vector<16x32xf32>
    %136 = arith.addf %122, %135 : vector<16x32xf32>
    %c0_70 = arith.constant 0 : index
    %c0_71 = arith.constant 0 : index
    %c512 = arith.constant 512 : index
    %137 = vector.load %arg10[%c0_70, %c0_71, %c512] : memref<2x32x2048xbf16, #tpu.memory_space<vmem>>, vector<1x32x512xbf16>
    %138 = vector.shape_cast %137 : vector<1x32x512xbf16> to vector<32x512xbf16>
    %cst_72 = arith.constant dense<0.000000e+00> : vector<16x512xf32>
    %139 = tpu.matmul %118, %138, %cst_72 {dimension_numbers = #tpu.dot_dimension_numbers<[1], [0], [0], [1], [0, 0, 1, 1], [], []>} : vector<16x32xbf16>, vector<32x512xbf16>, vector<16x512xf32> -> vector<16x512xf32>
    %c0_73 = arith.constant 0 : index
    %c0_74 = arith.constant 0 : index
    %c512_75 = arith.constant 512 : index
    %140 = vector.load %arg11[%c0_73, %c0_74, %c512_75] : memref<2x1x2048xf32, #tpu.memory_space<vmem>>, vector<1x1x512xf32>
    %141 = vector.shape_cast %140 : vector<1x1x512xf32> to vector<1x512xf32>
    %142 = vector.broadcast %141 : vector<1x512xf32> to vector<16x512xf32>
    %143 = arith.addf %139, %142 : vector<16x512xf32>
    %cst_76 = arith.constant 0.000000e+00 : f32
    %144 = vector.broadcast %cst_76 : f32 to vector<16x512xf32>
    %145 = arith.maximumf %143, %144 : vector<16x512xf32>
    %146 = arith.truncf %145 : vector<16x512xf32> to vector<16x512xbf16>
    %c0_77 = arith.constant 0 : index
    %c512_78 = arith.constant 512 : index
    %c0_79 = arith.constant 0 : index
    %147 = vector.load %arg12[%c0_77, %c512_78, %c0_79] : memref<2x2048x32xbf16, #tpu.memory_space<vmem>>, vector<1x512x32xbf16>
    %148 = vector.shape_cast %147 : vector<1x512x32xbf16> to vector<512x32xbf16>
    %cst_80 = arith.constant dense<0.000000e+00> : vector<16x32xf32>
    %149 = tpu.matmul %146, %148, %cst_80 {dimension_numbers = #tpu.dot_dimension_numbers<[1], [0], [0], [1], [0, 0, 1, 1], [], []>} : vector<16x512xbf16>, vector<512x32xbf16>, vector<16x32xf32> -> vector<16x32xf32>
    %150 = arith.addf %136, %149 : vector<16x32xf32>
    %c0_81 = arith.constant 0 : index
    %c0_82 = arith.constant 0 : index
    %c1024 = arith.constant 1024 : index
    %151 = vector.load %arg10[%c0_81, %c0_82, %c1024] : memref<2x32x2048xbf16, #tpu.memory_space<vmem>>, vector<1x32x512xbf16>
    %152 = vector.shape_cast %151 : vector<1x32x512xbf16> to vector<32x512xbf16>
    %cst_83 = arith.constant dense<0.000000e+00> : vector<16x512xf32>
    %153 = tpu.matmul %118, %152, %cst_83 {dimension_numbers = #tpu.dot_dimension_numbers<[1], [0], [0], [1], [0, 0, 1, 1], [], []>} : vector<16x32xbf16>, vector<32x512xbf16>, vector<16x512xf32> -> vector<16x512xf32>
    %c0_84 = arith.constant 0 : index
    %c0_85 = arith.constant 0 : index
    %c1024_86 = arith.constant 1024 : index
    %154 = vector.load %arg11[%c0_84, %c0_85, %c1024_86] : memref<2x1x2048xf32, #tpu.memory_space<vmem>>, vector<1x1x512xf32>
    %155 = vector.shape_cast %154 : vector<1x1x512xf32> to vector<1x512xf32>
    %156 = vector.broadcast %155 : vector<1x512xf32> to vector<16x512xf32>
    %157 = arith.addf %153, %156 : vector<16x512xf32>
    %cst_87 = arith.constant 0.000000e+00 : f32
    %158 = vector.broadcast %cst_87 : f32 to vector<16x512xf32>
    %159 = arith.maximumf %157, %158 : vector<16x512xf32>
    %160 = arith.truncf %159 : vector<16x512xf32> to vector<16x512xbf16>
    %c0_88 = arith.constant 0 : index
    %c1024_89 = arith.constant 1024 : index
    %c0_90 = arith.constant 0 : index
    %161 = vector.load %arg12[%c0_88, %c1024_89, %c0_90] : memref<2x2048x32xbf16, #tpu.memory_space<vmem>>, vector<1x512x32xbf16>
    %162 = vector.shape_cast %161 : vector<1x512x32xbf16> to vector<512x32xbf16>
    %cst_91 = arith.constant dense<0.000000e+00> : vector<16x32xf32>
    %163 = tpu.matmul %160, %162, %cst_91 {dimension_numbers = #tpu.dot_dimension_numbers<[1], [0], [0], [1], [0, 0, 1, 1], [], []>} : vector<16x512xbf16>, vector<512x32xbf16>, vector<16x32xf32> -> vector<16x32xf32>
    %164 = arith.addf %150, %163 : vector<16x32xf32>
    %c0_92 = arith.constant 0 : index
    %c0_93 = arith.constant 0 : index
    %c1536 = arith.constant 1536 : index
    %165 = vector.load %arg10[%c0_92, %c0_93, %c1536] : memref<2x32x2048xbf16, #tpu.memory_space<vmem>>, vector<1x32x512xbf16>
    %166 = vector.shape_cast %165 : vector<1x32x512xbf16> to vector<32x512xbf16>
    %cst_94 = arith.constant dense<0.000000e+00> : vector<16x512xf32>
    %167 = tpu.matmul %118, %166, %cst_94 {dimension_numbers = #tpu.dot_dimension_numbers<[1], [0], [0], [1], [0, 0, 1, 1], [], []>} : vector<16x32xbf16>, vector<32x512xbf16>, vector<16x512xf32> -> vector<16x512xf32>
    %c0_95 = arith.constant 0 : index
    %c0_96 = arith.constant 0 : index
    %c1536_97 = arith.constant 1536 : index
    %168 = vector.load %arg11[%c0_95, %c0_96, %c1536_97] : memref<2x1x2048xf32, #tpu.memory_space<vmem>>, vector<1x1x512xf32>
    %169 = vector.shape_cast %168 : vector<1x1x512xf32> to vector<1x512xf32>
    %170 = vector.broadcast %169 : vector<1x512xf32> to vector<16x512xf32>
    %171 = arith.addf %167, %170 : vector<16x512xf32>
    %cst_98 = arith.constant 0.000000e+00 : f32
    %172 = vector.broadcast %cst_98 : f32 to vector<16x512xf32>
    %173 = arith.maximumf %171, %172 : vector<16x512xf32>
    %174 = arith.truncf %173 : vector<16x512xf32> to vector<16x512xbf16>
    %c0_99 = arith.constant 0 : index
    %c1536_100 = arith.constant 1536 : index
    %c0_101 = arith.constant 0 : index
    %175 = vector.load %arg12[%c0_99, %c1536_100, %c0_101] : memref<2x2048x32xbf16, #tpu.memory_space<vmem>>, vector<1x512x32xbf16>
    %176 = vector.shape_cast %175 : vector<1x512x32xbf16> to vector<512x32xbf16>
    %cst_102 = arith.constant dense<0.000000e+00> : vector<16x32xf32>
    %177 = tpu.matmul %174, %176, %cst_102 {dimension_numbers = #tpu.dot_dimension_numbers<[1], [0], [0], [1], [0, 0, 1, 1], [], []>} : vector<16x512xbf16>, vector<512x32xbf16>, vector<16x32xf32> -> vector<16x32xf32>
    %178 = arith.addf %164, %177 : vector<16x32xf32>
    %c0_103 = arith.constant 0 : index
    %c0_104 = arith.constant 0 : index
    %c0_105 = arith.constant 0 : index
    %179 = vector.load %arg14[%c0_103, %c0_104, %c0_105] : memref<2x1x32xf32, #tpu.memory_space<vmem>>, vector<1x1x32xf32>
    %180 = vector.shape_cast %179 : vector<1x1x32xf32> to vector<1x32xf32>
    %c0_106 = arith.constant 0 : index
    %c0_107 = arith.constant 0 : index
    %c0_108 = arith.constant 0 : index
    %181 = vector.load %arg15[%c0_106, %c0_107, %c0_108] : memref<2x1x32xf32, #tpu.memory_space<vmem>>, vector<1x1x32xf32>
    %182 = vector.shape_cast %181 : vector<1x1x32xf32> to vector<1x32xf32>
    %cst_109 = arith.constant dense<0.000000e+00> : vector<16xf32>
    %183 = vector.multi_reduction <add>, %178, %cst_109 [1] : vector<16x32xf32> to vector<16xf32>
    %184 = vector.shape_cast %183 : vector<16xf32> to vector<16x1xf32>
    %cst_110 = arith.constant 3.200000e+01 : f32
    %185 = vector.broadcast %cst_110 : f32 to vector<16x1xf32>
    %186 = arith.divf %184, %185 : vector<16x1xf32>
    %187 = vector.broadcast %186 : vector<16x1xf32> to vector<16x32xf32>
    %188 = arith.subf %178, %187 : vector<16x32xf32>
    %189 = arith.mulf %188, %188 : vector<16x32xf32>
    %cst_111 = arith.constant dense<0.000000e+00> : vector<16xf32>
    %190 = vector.multi_reduction <add>, %189, %cst_111 [1] : vector<16x32xf32> to vector<16xf32>
    %191 = vector.shape_cast %190 : vector<16xf32> to vector<16x1xf32>
    %cst_112 = arith.constant 3.200000e+01 : f32
    %192 = vector.broadcast %cst_112 : f32 to vector<16x1xf32>
    %193 = arith.divf %191, %192 : vector<16x1xf32>
    %cst_113 = arith.constant 9.99999974E-6 : f32
    %194 = vector.broadcast %cst_113 : f32 to vector<16x1xf32>
    %195 = arith.addf %193, %194 : vector<16x1xf32>
    %196 = math.rsqrt %195 : vector<16x1xf32>
    %197 = vector.broadcast %196 : vector<16x1xf32> to vector<16x32xf32>
    %198 = arith.mulf %188, %197 : vector<16x32xf32>
    %199 = vector.broadcast %180 : vector<1x32xf32> to vector<16x32xf32>
    %200 = arith.mulf %198, %199 : vector<16x32xf32>
    %201 = vector.broadcast %182 : vector<1x32xf32> to vector<16x32xf32>
    %202 = arith.addf %200, %201 : vector<16x32xf32>
    %203 = arith.truncf %202 : vector<16x32xf32> to vector<16x32xbf16>
    %c1 = arith.constant 1 : index
    %c0_114 = arith.constant 0 : index
    %c0_115 = arith.constant 0 : index
    %204 = vector.load %arg4[%c1, %c0_114, %c0_115] : memref<2x32x96xbf16, #tpu.memory_space<vmem>>, vector<1x32x96xbf16>
    %205 = vector.shape_cast %204 : vector<1x32x96xbf16> to vector<32x96xbf16>
    %cst_116 = arith.constant dense<0.000000e+00> : vector<16x96xf32>
    %206 = tpu.matmul %203, %205, %cst_116 {dimension_numbers = #tpu.dot_dimension_numbers<[1], [0], [0], [1], [0, 0, 1, 1], [], []>} : vector<16x32xbf16>, vector<32x96xbf16>, vector<16x96xf32> -> vector<16x96xf32>
    %c1_117 = arith.constant 1 : index
    %c0_118 = arith.constant 0 : index
    %c0_119 = arith.constant 0 : index
    %207 = vector.load %arg5[%c1_117, %c0_118, %c0_119] : memref<2x1x96xf32, #tpu.memory_space<vmem>>, vector<1x1x96xf32>
    %208 = vector.shape_cast %207 : vector<1x1x96xf32> to vector<1x96xf32>
    %209 = vector.broadcast %208 : vector<1x96xf32> to vector<16x96xf32>
    %210 = arith.addf %206, %209 : vector<16x96xf32>
    %211 = vector.extract_strided_slice %210 {offsets = [0, 0], sizes = [16, 8], strides = [1, 1]} : vector<16x96xf32> to vector<16x8xf32>
    %212 = vector.extract_strided_slice %210 {offsets = [0, 32], sizes = [16, 8], strides = [1, 1]} : vector<16x96xf32> to vector<16x8xf32>
    %213 = vector.extract_strided_slice %210 {offsets = [0, 64], sizes = [16, 8], strides = [1, 1]} : vector<16x96xf32> to vector<16x8xf32>
    %cst_120 = arith.constant dense<0.000000e+00> : vector<16x16xf32>
    %214 = tpu.matmul %211, %212, %cst_120 {dimension_numbers = #tpu.dot_dimension_numbers<[1], [1], [0], [0], [0, 0, 1, 0], [], []>} : vector<16x8xf32>, vector<16x8xf32>, vector<16x16xf32> -> vector<16x16xf32>
    %215 = arith.addf %214, %0 : vector<16x16xf32>
    %cst_121 = arith.constant dense<0xFF800000> : vector<16xf32>
    %216 = vector.multi_reduction <maximumf>, %215, %cst_121 [1] : vector<16x16xf32> to vector<16xf32>
    %217 = vector.shape_cast %216 : vector<16xf32> to vector<16x1xf32>
    %218 = vector.broadcast %217 : vector<16x1xf32> to vector<16x16xf32>
    %219 = arith.subf %215, %218 : vector<16x16xf32>
    %220 = math.exp %219 : vector<16x16xf32>
    %cst_122 = arith.constant dense<0.000000e+00> : vector<16xf32>
    %221 = vector.multi_reduction <add>, %220, %cst_122 [1] : vector<16x16xf32> to vector<16xf32>
    %222 = vector.shape_cast %221 : vector<16xf32> to vector<16x1xf32>
    %223 = tpu.reciprocal %222 {approx = true} : vector<16x1xf32> -> vector<16x1xf32>
    %224 = vector.broadcast %223 : vector<16x1xf32> to vector<16x16xf32>
    %225 = arith.mulf %220, %224 : vector<16x16xf32>
    %cst_123 = arith.constant dense<0.000000e+00> : vector<16x8xf32>
    %226 = tpu.matmul %225, %213, %cst_123 {dimension_numbers = #tpu.dot_dimension_numbers<[1], [0], [0], [1], [0, 0, 1, 1], [], []>} : vector<16x16xf32>, vector<16x8xf32>, vector<16x8xf32> -> vector<16x8xf32>
    %c0_124 = arith.constant 0 : index
    %c0_125 = arith.constant 0 : index
    %227 = vector.load %arg19[%c0_124, %c0_125] : memref<16x32xf32, #tpu.memory_space<vmem>>, vector<16x8xf32>
    tpu.vector_store %arg19[%c0_124, %c0_125], %226 {strides = array<i32>} : memref<16x32xf32, #tpu.memory_space<vmem>>, vector<16x8xf32>,
    %228 = vector.extract_strided_slice %210 {offsets = [0, 8], sizes = [16, 8], strides = [1, 1]} : vector<16x96xf32> to vector<16x8xf32>
    %229 = vector.extract_strided_slice %210 {offsets = [0, 40], sizes = [16, 8], strides = [1, 1]} : vector<16x96xf32> to vector<16x8xf32>
    %230 = vector.extract_strided_slice %210 {offsets = [0, 72], sizes = [16, 8], strides = [1, 1]} : vector<16x96xf32> to vector<16x8xf32>
    %cst_126 = arith.constant dense<0.000000e+00> : vector<16x16xf32>
    %231 = tpu.matmul %228, %229, %cst_126 {dimension_numbers = #tpu.dot_dimension_numbers<[1], [1], [0], [0], [0, 0, 1, 0], [], []>} : vector<16x8xf32>, vector<16x8xf32>, vector<16x16xf32> -> vector<16x16xf32>
    %232 = arith.addf %231, %0 : vector<16x16xf32>
    %cst_127 = arith.constant dense<0xFF800000> : vector<16xf32>
    %233 = vector.multi_reduction <maximumf>, %232, %cst_127 [1] : vector<16x16xf32> to vector<16xf32>
    %234 = vector.shape_cast %233 : vector<16xf32> to vector<16x1xf32>
    %235 = vector.broadcast %234 : vector<16x1xf32> to vector<16x16xf32>
    %236 = arith.subf %232, %235 : vector<16x16xf32>
    %237 = math.exp %236 : vector<16x16xf32>
    %cst_128 = arith.constant dense<0.000000e+00> : vector<16xf32>
    %238 = vector.multi_reduction <add>, %237, %cst_128 [1] : vector<16x16xf32> to vector<16xf32>
    %239 = vector.shape_cast %238 : vector<16xf32> to vector<16x1xf32>
    %240 = tpu.reciprocal %239 {approx = true} : vector<16x1xf32> -> vector<16x1xf32>
    %241 = vector.broadcast %240 : vector<16x1xf32> to vector<16x16xf32>
    %242 = arith.mulf %237, %241 : vector<16x16xf32>
    %cst_129 = arith.constant dense<0.000000e+00> : vector<16x8xf32>
    %243 = tpu.matmul %242, %230, %cst_129 {dimension_numbers = #tpu.dot_dimension_numbers<[1], [0], [0], [1], [0, 0, 1, 1], [], []>} : vector<16x16xf32>, vector<16x8xf32>, vector<16x8xf32> -> vector<16x8xf32>
    %c0_130 = arith.constant 0 : index
    %c8_131 = arith.constant 8 : index
    %244 = vector.load %arg19[%c0_130, %c8_131] : memref<16x32xf32, #tpu.memory_space<vmem>>, vector<16x8xf32>
    tpu.vector_store %arg19[%c0_130, %c8_131], %243 {strides = array<i32>} : memref<16x32xf32, #tpu.memory_space<vmem>>, vector<16x8xf32>,
    %245 = vector.extract_strided_slice %210 {offsets = [0, 16], sizes = [16, 8], strides = [1, 1]} : vector<16x96xf32> to vector<16x8xf32>
    %246 = vector.extract_strided_slice %210 {offsets = [0, 48], sizes = [16, 8], strides = [1, 1]} : vector<16x96xf32> to vector<16x8xf32>
    %247 = vector.extract_strided_slice %210 {offsets = [0, 80], sizes = [16, 8], strides = [1, 1]} : vector<16x96xf32> to vector<16x8xf32>
    %cst_132 = arith.constant dense<0.000000e+00> : vector<16x16xf32>
    %248 = tpu.matmul %245, %246, %cst_132 {dimension_numbers = #tpu.dot_dimension_numbers<[1], [1], [0], [0], [0, 0, 1, 0], [], []>} : vector<16x8xf32>, vector<16x8xf32>, vector<16x16xf32> -> vector<16x16xf32>
    %249 = arith.addf %248, %0 : vector<16x16xf32>
    %cst_133 = arith.constant dense<0xFF800000> : vector<16xf32>
    %250 = vector.multi_reduction <maximumf>, %249, %cst_133 [1] : vector<16x16xf32> to vector<16xf32>
    %251 = vector.shape_cast %250 : vector<16xf32> to vector<16x1xf32>
    %252 = vector.broadcast %251 : vector<16x1xf32> to vector<16x16xf32>
    %253 = arith.subf %249, %252 : vector<16x16xf32>
    %254 = math.exp %253 : vector<16x16xf32>
    %cst_134 = arith.constant dense<0.000000e+00> : vector<16xf32>
    %255 = vector.multi_reduction <add>, %254, %cst_134 [1] : vector<16x16xf32> to vector<16xf32>
    %256 = vector.shape_cast %255 : vector<16xf32> to vector<16x1xf32>
    %257 = tpu.reciprocal %256 {approx = true} : vector<16x1xf32> -> vector<16x1xf32>
    %258 = vector.broadcast %257 : vector<16x1xf32> to vector<16x16xf32>
    %259 = arith.mulf %254, %258 : vector<16x16xf32>
    %cst_135 = arith.constant dense<0.000000e+00> : vector<16x8xf32>
    %260 = tpu.matmul %259, %247, %cst_135 {dimension_numbers = #tpu.dot_dimension_numbers<[1], [0], [0], [1], [0, 0, 1, 1], [], []>} : vector<16x16xf32>, vector<16x8xf32>, vector<16x8xf32> -> vector<16x8xf32>
    %c0_136 = arith.constant 0 : index
    %c16_137 = arith.constant 16 : index
    %261 = vector.load %arg19[%c0_136, %c16_137] : memref<16x32xf32, #tpu.memory_space<vmem>>, vector<16x8xf32>
    tpu.vector_store %arg19[%c0_136, %c16_137], %260 {strides = array<i32>} : memref<16x32xf32, #tpu.memory_space<vmem>>, vector<16x8xf32>,
    %262 = vector.extract_strided_slice %210 {offsets = [0, 24], sizes = [16, 8], strides = [1, 1]} : vector<16x96xf32> to vector<16x8xf32>
    %263 = vector.extract_strided_slice %210 {offsets = [0, 56], sizes = [16, 8], strides = [1, 1]} : vector<16x96xf32> to vector<16x8xf32>
    %264 = vector.extract_strided_slice %210 {offsets = [0, 88], sizes = [16, 8], strides = [1, 1]} : vector<16x96xf32> to vector<16x8xf32>
    %cst_138 = arith.constant dense<0.000000e+00> : vector<16x16xf32>
    %265 = tpu.matmul %262, %263, %cst_138 {dimension_numbers = #tpu.dot_dimension_numbers<[1], [1], [0], [0], [0, 0, 1, 0], [], []>} : vector<16x8xf32>, vector<16x8xf32>, vector<16x16xf32> -> vector<16x16xf32>
    %266 = arith.addf %265, %0 : vector<16x16xf32>
    %cst_139 = arith.constant dense<0xFF800000> : vector<16xf32>
    %267 = vector.multi_reduction <maximumf>, %266, %cst_139 [1] : vector<16x16xf32> to vector<16xf32>
    %268 = vector.shape_cast %267 : vector<16xf32> to vector<16x1xf32>
    %269 = vector.broadcast %268 : vector<16x1xf32> to vector<16x16xf32>
    %270 = arith.subf %266, %269 : vector<16x16xf32>
    %271 = math.exp %270 : vector<16x16xf32>
    %cst_140 = arith.constant dense<0.000000e+00> : vector<16xf32>
    %272 = vector.multi_reduction <add>, %271, %cst_140 [1] : vector<16x16xf32> to vector<16xf32>
    %273 = vector.shape_cast %272 : vector<16xf32> to vector<16x1xf32>
    %274 = tpu.reciprocal %273 {approx = true} : vector<16x1xf32> -> vector<16x1xf32>
    %275 = vector.broadcast %274 : vector<16x1xf32> to vector<16x16xf32>
    %276 = arith.mulf %271, %275 : vector<16x16xf32>
    %cst_141 = arith.constant dense<0.000000e+00> : vector<16x8xf32>
    %277 = tpu.matmul %276, %264, %cst_141 {dimension_numbers = #tpu.dot_dimension_numbers<[1], [0], [0], [1], [0, 0, 1, 1], [], []>} : vector<16x16xf32>, vector<16x8xf32>, vector<16x8xf32> -> vector<16x8xf32>
    %c0_142 = arith.constant 0 : index
    %c24_143 = arith.constant 24 : index
    %278 = vector.load %arg19[%c0_142, %c24_143] : memref<16x32xf32, #tpu.memory_space<vmem>>, vector<16x8xf32>
    tpu.vector_store %arg19[%c0_142, %c24_143], %277 {strides = array<i32>} : memref<16x32xf32, #tpu.memory_space<vmem>>, vector<16x8xf32>,
    %c0_144 = arith.constant 0 : index
    %c0_145 = arith.constant 0 : index
    %279 = vector.load %arg19[%c0_144, %c0_145] : memref<16x32xf32, #tpu.memory_space<vmem>>, vector<16x32xf32>
    %280 = arith.truncf %279 : vector<16x32xf32> to vector<16x32xbf16>
    %c1_146 = arith.constant 1 : index
    %c0_147 = arith.constant 0 : index
    %c0_148 = arith.constant 0 : index
    %281 = vector.load %arg6[%c1_146, %c0_147, %c0_148] : memref<2x32x32xbf16, #tpu.memory_space<vmem>>, vector<1x32x32xbf16>
    %282 = vector.shape_cast %281 : vector<1x32x32xbf16> to vector<32x32xbf16>
    %cst_149 = arith.constant dense<0.000000e+00> : vector<16x32xf32>
    %283 = tpu.matmul %280, %282, %cst_149 {dimension_numbers = #tpu.dot_dimension_numbers<[1], [0], [0], [1], [0, 0, 1, 1], [], []>} : vector<16x32xbf16>, vector<32x32xbf16>, vector<16x32xf32> -> vector<16x32xf32>
    %c1_150 = arith.constant 1 : index
    %c0_151 = arith.constant 0 : index
    %c0_152 = arith.constant 0 : index
    %284 = vector.load %arg7[%c1_150, %c0_151, %c0_152] : memref<2x1x32xf32, #tpu.memory_space<vmem>>, vector<1x1x32xf32>
    %285 = vector.shape_cast %284 : vector<1x1x32xf32> to vector<1x32xf32>
    %286 = vector.broadcast %285 : vector<1x32xf32> to vector<16x32xf32>
    %287 = arith.addf %283, %286 : vector<16x32xf32>
    %288 = arith.addf %202, %287 : vector<16x32xf32>
    %c1_153 = arith.constant 1 : index
    %c0_154 = arith.constant 0 : index
    %c0_155 = arith.constant 0 : index
    %289 = vector.load %arg8[%c1_153, %c0_154, %c0_155] : memref<2x1x32xf32, #tpu.memory_space<vmem>>, vector<1x1x32xf32>
    %290 = vector.shape_cast %289 : vector<1x1x32xf32> to vector<1x32xf32>
    %c1_156 = arith.constant 1 : index
    %c0_157 = arith.constant 0 : index
    %c0_158 = arith.constant 0 : index
    %291 = vector.load %arg9[%c1_156, %c0_157, %c0_158] : memref<2x1x32xf32, #tpu.memory_space<vmem>>, vector<1x1x32xf32>
    %292 = vector.shape_cast %291 : vector<1x1x32xf32> to vector<1x32xf32>
    %cst_159 = arith.constant dense<0.000000e+00> : vector<16xf32>
    %293 = vector.multi_reduction <add>, %288, %cst_159 [1] : vector<16x32xf32> to vector<16xf32>
    %294 = vector.shape_cast %293 : vector<16xf32> to vector<16x1xf32>
    %cst_160 = arith.constant 3.200000e+01 : f32
    %295 = vector.broadcast %cst_160 : f32 to vector<16x1xf32>
    %296 = arith.divf %294, %295 : vector<16x1xf32>
    %297 = vector.broadcast %296 : vector<16x1xf32> to vector<16x32xf32>
    %298 = arith.subf %288, %297 : vector<16x32xf32>
    %299 = arith.mulf %298, %298 : vector<16x32xf32>
    %cst_161 = arith.constant dense<0.000000e+00> : vector<16xf32>
    %300 = vector.multi_reduction <add>, %299, %cst_161 [1] : vector<16x32xf32> to vector<16xf32>
    %301 = vector.shape_cast %300 : vector<16xf32> to vector<16x1xf32>
    %cst_162 = arith.constant 3.200000e+01 : f32
    %302 = vector.broadcast %cst_162 : f32 to vector<16x1xf32>
    %303 = arith.divf %301, %302 : vector<16x1xf32>
    %cst_163 = arith.constant 9.99999974E-6 : f32
    %304 = vector.broadcast %cst_163 : f32 to vector<16x1xf32>
    %305 = arith.addf %303, %304 : vector<16x1xf32>
    %306 = math.rsqrt %305 : vector<16x1xf32>
    %307 = vector.broadcast %306 : vector<16x1xf32> to vector<16x32xf32>
    %308 = arith.mulf %298, %307 : vector<16x32xf32>
    %309 = vector.broadcast %290 : vector<1x32xf32> to vector<16x32xf32>
    %310 = arith.mulf %308, %309 : vector<16x32xf32>
    %311 = vector.broadcast %292 : vector<1x32xf32> to vector<16x32xf32>
    %312 = arith.addf %310, %311 : vector<16x32xf32>
    %313 = arith.truncf %312 : vector<16x32xf32> to vector<16x32xbf16>
    %c1_164 = arith.constant 1 : index
    %c0_165 = arith.constant 0 : index
    %c0_166 = arith.constant 0 : index
    %314 = vector.load %arg13[%c1_164, %c0_165, %c0_166] : memref<2x1x32xf32, #tpu.memory_space<vmem>>, vector<1x1x32xf32>
    %315 = vector.shape_cast %314 : vector<1x1x32xf32> to vector<1x32xf32>
    %316 = vector.broadcast %315 : vector<1x32xf32> to vector<16x32xf32>
    %317 = arith.addf %312, %316 : vector<16x32xf32>
    %c1_167 = arith.constant 1 : index
    %c0_168 = arith.constant 0 : index
    %c0_169 = arith.constant 0 : index
    %318 = vector.load %arg10[%c1_167, %c0_168, %c0_169] : memref<2x32x2048xbf16, #tpu.memory_space<vmem>>, vector<1x32x512xbf16>
    %319 = vector.shape_cast %318 : vector<1x32x512xbf16> to vector<32x512xbf16>
    %cst_170 = arith.constant dense<0.000000e+00> : vector<16x512xf32>
    %320 = tpu.matmul %313, %319, %cst_170 {dimension_numbers = #tpu.dot_dimension_numbers<[1], [0], [0], [1], [0, 0, 1, 1], [], []>} : vector<16x32xbf16>, vector<32x512xbf16>, vector<16x512xf32> -> vector<16x512xf32>
    %c1_171 = arith.constant 1 : index
    %c0_172 = arith.constant 0 : index
    %c0_173 = arith.constant 0 : index
    %321 = vector.load %arg11[%c1_171, %c0_172, %c0_173] : memref<2x1x2048xf32, #tpu.memory_space<vmem>>, vector<1x1x512xf32>
    %322 = vector.shape_cast %321 : vector<1x1x512xf32> to vector<1x512xf32>
    %323 = vector.broadcast %322 : vector<1x512xf32> to vector<16x512xf32>
    %324 = arith.addf %320, %323 : vector<16x512xf32>
    %cst_174 = arith.constant 0.000000e+00 : f32
    %325 = vector.broadcast %cst_174 : f32 to vector<16x512xf32>
    %326 = arith.maximumf %324, %325 : vector<16x512xf32>
    %327 = arith.truncf %326 : vector<16x512xf32> to vector<16x512xbf16>
    %c1_175 = arith.constant 1 : index
    %c0_176 = arith.constant 0 : index
    %c0_177 = arith.constant 0 : index
    %328 = vector.load %arg12[%c1_175, %c0_176, %c0_177] : memref<2x2048x32xbf16, #tpu.memory_space<vmem>>, vector<1x512x32xbf16>
    %329 = vector.shape_cast %328 : vector<1x512x32xbf16> to vector<512x32xbf16>
    %cst_178 = arith.constant dense<0.000000e+00> : vector<16x32xf32>
    %330 = tpu.matmul %327, %329, %cst_178 {dimension_numbers = #tpu.dot_dimension_numbers<[1], [0], [0], [1], [0, 0, 1, 1], [], []>} : vector<16x512xbf16>, vector<512x32xbf16>, vector<16x32xf32> -> vector<16x32xf32>
    %331 = arith.addf %317, %330 : vector<16x32xf32>
    %c1_179 = arith.constant 1 : index
    %c0_180 = arith.constant 0 : index
    %c512_181 = arith.constant 512 : index
    %332 = vector.load %arg10[%c1_179, %c0_180, %c512_181] : memref<2x32x2048xbf16, #tpu.memory_space<vmem>>, vector<1x32x512xbf16>
    %333 = vector.shape_cast %332 : vector<1x32x512xbf16> to vector<32x512xbf16>
    %cst_182 = arith.constant dense<0.000000e+00> : vector<16x512xf32>
    %334 = tpu.matmul %313, %333, %cst_182 {dimension_numbers = #tpu.dot_dimension_numbers<[1], [0], [0], [1], [0, 0, 1, 1], [], []>} : vector<16x32xbf16>, vector<32x512xbf16>, vector<16x512xf32> -> vector<16x512xf32>
    %c1_183 = arith.constant 1 : index
    %c0_184 = arith.constant 0 : index
    %c512_185 = arith.constant 512 : index
    %335 = vector.load %arg11[%c1_183, %c0_184, %c512_185] : memref<2x1x2048xf32, #tpu.memory_space<vmem>>, vector<1x1x512xf32>
    %336 = vector.shape_cast %335 : vector<1x1x512xf32> to vector<1x512xf32>
    %337 = vector.broadcast %336 : vector<1x512xf32> to vector<16x512xf32>
    %338 = arith.addf %334, %337 : vector<16x512xf32>
    %cst_186 = arith.constant 0.000000e+00 : f32
    %339 = vector.broadcast %cst_186 : f32 to vector<16x512xf32>
    %340 = arith.maximumf %338, %339 : vector<16x512xf32>
    %341 = arith.truncf %340 : vector<16x512xf32> to vector<16x512xbf16>
    %c1_187 = arith.constant 1 : index
    %c512_188 = arith.constant 512 : index
    %c0_189 = arith.constant 0 : index
    %342 = vector.load %arg12[%c1_187, %c512_188, %c0_189] : memref<2x2048x32xbf16, #tpu.memory_space<vmem>>, vector<1x512x32xbf16>
    %343 = vector.shape_cast %342 : vector<1x512x32xbf16> to vector<512x32xbf16>
    %cst_190 = arith.constant dense<0.000000e+00> : vector<16x32xf32>
    %344 = tpu.matmul %341, %343, %cst_190 {dimension_numbers = #tpu.dot_dimension_numbers<[1], [0], [0], [1], [0, 0, 1, 1], [], []>} : vector<16x512xbf16>, vector<512x32xbf16>, vector<16x32xf32> -> vector<16x32xf32>
    %345 = arith.addf %331, %344 : vector<16x32xf32>
    %c1_191 = arith.constant 1 : index
    %c0_192 = arith.constant 0 : index
    %c1024_193 = arith.constant 1024 : index
    %346 = vector.load %arg10[%c1_191, %c0_192, %c1024_193] : memref<2x32x2048xbf16, #tpu.memory_space<vmem>>, vector<1x32x512xbf16>
    %347 = vector.shape_cast %346 : vector<1x32x512xbf16> to vector<32x512xbf16>
    %cst_194 = arith.constant dense<0.000000e+00> : vector<16x512xf32>
    %348 = tpu.matmul %313, %347, %cst_194 {dimension_numbers = #tpu.dot_dimension_numbers<[1], [0], [0], [1], [0, 0, 1, 1], [], []>} : vector<16x32xbf16>, vector<32x512xbf16>, vector<16x512xf32> -> vector<16x512xf32>
    %c1_195 = arith.constant 1 : index
    %c0_196 = arith.constant 0 : index
    %c1024_197 = arith.constant 1024 : index
    %349 = vector.load %arg11[%c1_195, %c0_196, %c1024_197] : memref<2x1x2048xf32, #tpu.memory_space<vmem>>, vector<1x1x512xf32>
    %350 = vector.shape_cast %349 : vector<1x1x512xf32> to vector<1x512xf32>
    %351 = vector.broadcast %350 : vector<1x512xf32> to vector<16x512xf32>
    %352 = arith.addf %348, %351 : vector<16x512xf32>
    %cst_198 = arith.constant 0.000000e+00 : f32
    %353 = vector.broadcast %cst_198 : f32 to vector<16x512xf32>
    %354 = arith.maximumf %352, %353 : vector<16x512xf32>
    %355 = arith.truncf %354 : vector<16x512xf32> to vector<16x512xbf16>
    %c1_199 = arith.constant 1 : index
    %c1024_200 = arith.constant 1024 : index
    %c0_201 = arith.constant 0 : index
    %356 = vector.load %arg12[%c1_199, %c1024_200, %c0_201] : memref<2x2048x32xbf16, #tpu.memory_space<vmem>>, vector<1x512x32xbf16>
    %357 = vector.shape_cast %356 : vector<1x512x32xbf16> to vector<512x32xbf16>
    %cst_202 = arith.constant dense<0.000000e+00> : vector<16x32xf32>
    %358 = tpu.matmul %355, %357, %cst_202 {dimension_numbers = #tpu.dot_dimension_numbers<[1], [0], [0], [1], [0, 0, 1, 1], [], []>} : vector<16x512xbf16>, vector<512x32xbf16>, vector<16x32xf32> -> vector<16x32xf32>
    %359 = arith.addf %345, %358 : vector<16x32xf32>
    %c1_203 = arith.constant 1 : index
    %c0_204 = arith.constant 0 : index
    %c1536_205 = arith.constant 1536 : index
    %360 = vector.load %arg10[%c1_203, %c0_204, %c1536_205] : memref<2x32x2048xbf16, #tpu.memory_space<vmem>>, vector<1x32x512xbf16>
    %361 = vector.shape_cast %360 : vector<1x32x512xbf16> to vector<32x512xbf16>
    %cst_206 = arith.constant dense<0.000000e+00> : vector<16x512xf32>
    %362 = tpu.matmul %313, %361, %cst_206 {dimension_numbers = #tpu.dot_dimension_numbers<[1], [0], [0], [1], [0, 0, 1, 1], [], []>} : vector<16x32xbf16>, vector<32x512xbf16>, vector<16x512xf32> -> vector<16x512xf32>
    %c1_207 = arith.constant 1 : index
    %c0_208 = arith.constant 0 : index
    %c1536_209 = arith.constant 1536 : index
    %363 = vector.load %arg11[%c1_207, %c0_208, %c1536_209] : memref<2x1x2048xf32, #tpu.memory_space<vmem>>, vector<1x1x512xf32>
    %364 = vector.shape_cast %363 : vector<1x1x512xf32> to vector<1x512xf32>
    %365 = vector.broadcast %364 : vector<1x512xf32> to vector<16x512xf32>
    %366 = arith.addf %362, %365 : vector<16x512xf32>
    %cst_210 = arith.constant 0.000000e+00 : f32
    %367 = vector.broadcast %cst_210 : f32 to vector<16x512xf32>
    %368 = arith.maximumf %366, %367 : vector<16x512xf32>
    %369 = arith.truncf %368 : vector<16x512xf32> to vector<16x512xbf16>
    %c1_211 = arith.constant 1 : index
    %c1536_212 = arith.constant 1536 : index
    %c0_213 = arith.constant 0 : index
    %370 = vector.load %arg12[%c1_211, %c1536_212, %c0_213] : memref<2x2048x32xbf16, #tpu.memory_space<vmem>>, vector<1x512x32xbf16>
    %371 = vector.shape_cast %370 : vector<1x512x32xbf16> to vector<512x32xbf16>
    %cst_214 = arith.constant dense<0.000000e+00> : vector<16x32xf32>
    %372 = tpu.matmul %369, %371, %cst_214 {dimension_numbers = #tpu.dot_dimension_numbers<[1], [0], [0], [1], [0, 0, 1, 1], [], []>} : vector<16x512xbf16>, vector<512x32xbf16>, vector<16x32xf32> -> vector<16x32xf32>
    %373 = arith.addf %359, %372 : vector<16x32xf32>
    %c1_215 = arith.constant 1 : index
    %c0_216 = arith.constant 0 : index
    %c0_217 = arith.constant 0 : index
    %374 = vector.load %arg14[%c1_215, %c0_216, %c0_217] : memref<2x1x32xf32, #tpu.memory_space<vmem>>, vector<1x1x32xf32>
    %375 = vector.shape_cast %374 : vector<1x1x32xf32> to vector<1x32xf32>
    %c1_218 = arith.constant 1 : index
    %c0_219 = arith.constant 0 : index
    %c0_220 = arith.constant 0 : index
    %376 = vector.load %arg15[%c1_218, %c0_219, %c0_220] : memref<2x1x32xf32, #tpu.memory_space<vmem>>, vector<1x1x32xf32>
    %377 = vector.shape_cast %376 : vector<1x1x32xf32> to vector<1x32xf32>
    %cst_221 = arith.constant dense<0.000000e+00> : vector<16xf32>
    %378 = vector.multi_reduction <add>, %373, %cst_221 [1] : vector<16x32xf32> to vector<16xf32>
    %379 = vector.shape_cast %378 : vector<16xf32> to vector<16x1xf32>
    %cst_222 = arith.constant 3.200000e+01 : f32
    %380 = vector.broadcast %cst_222 : f32 to vector<16x1xf32>
    %381 = arith.divf %379, %380 : vector<16x1xf32>
    %382 = vector.broadcast %381 : vector<16x1xf32> to vector<16x32xf32>
    %383 = arith.subf %373, %382 : vector<16x32xf32>
    %384 = arith.mulf %383, %383 : vector<16x32xf32>
    %cst_223 = arith.constant dense<0.000000e+00> : vector<16xf32>
    %385 = vector.multi_reduction <add>, %384, %cst_223 [1] : vector<16x32xf32> to vector<16xf32>
    %386 = vector.shape_cast %385 : vector<16xf32> to vector<16x1xf32>
    %cst_224 = arith.constant 3.200000e+01 : f32
    %387 = vector.broadcast %cst_224 : f32 to vector<16x1xf32>
    %388 = arith.divf %386, %387 : vector<16x1xf32>
    %cst_225 = arith.constant 9.99999974E-6 : f32
    %389 = vector.broadcast %cst_225 : f32 to vector<16x1xf32>
    %390 = arith.addf %388, %389 : vector<16x1xf32>
    %391 = math.rsqrt %390 : vector<16x1xf32>
    %392 = vector.broadcast %391 : vector<16x1xf32> to vector<16x32xf32>
    %393 = arith.mulf %383, %392 : vector<16x32xf32>
    %394 = vector.broadcast %375 : vector<1x32xf32> to vector<16x32xf32>
    %395 = arith.mulf %393, %394 : vector<16x32xf32>
    %396 = vector.broadcast %377 : vector<1x32xf32> to vector<16x32xf32>
    %397 = arith.addf %395, %396 : vector<16x32xf32>
    %398 = vector.extract_strided_slice %397 {offsets = [0, 0], sizes = [8, 32], strides = [1, 1]} : vector<16x32xf32> to vector<8x32xf32>
    %399 = vector.extract_strided_slice %397 {offsets = [8, 0], sizes = [8, 32], strides = [1, 1]} : vector<16x32xf32> to vector<8x32xf32>
    %400 = arith.addf %398, %399 : vector<8x32xf32>
    %cst_226 = arith.constant 5.000000e-01 : f32
    %401 = vector.broadcast %cst_226 : f32 to vector<8x32xf32>
    %402 = arith.mulf %400, %401 : vector<8x32xf32>
    %403 = arith.truncf %402 : vector<8x32xf32> to vector<8x32xbf16>
    %c0_227 = arith.constant 0 : index
    %c0_228 = arith.constant 0 : index
    %404 = vector.load %arg16[%c0_227, %c0_228] : memref<32x4xbf16, #tpu.memory_space<vmem>>, vector<32x4xbf16>
    %cst_229 = arith.constant dense<0.000000e+00> : vector<8x4xf32>
    %405 = tpu.matmul %403, %404, %cst_229 {dimension_numbers = #tpu.dot_dimension_numbers<[1], [0], [0], [1], [0, 0, 1, 1], [], []>} : vector<8x32xbf16>, vector<32x4xbf16>, vector<8x4xf32> -> vector<8x4xf32>
    %c0_230 = arith.constant 0 : index
    %c0_231 = arith.constant 0 : index
    %406 = vector.load %arg17[%c0_230, %c0_231] : memref<1x4xf32, #tpu.memory_space<vmem>>, vector<1x4xf32>
    %407 = vector.broadcast %406 : vector<1x4xf32> to vector<8x4xf32>
    %408 = arith.addf %405, %407 : vector<8x4xf32>
    %c0_232 = arith.constant 0 : index
    %c0_233 = arith.constant 0 : index
    %409 = vector.load %arg18[%c0_232, %c0_233] : memref<8x4xf32, #tpu.memory_space<vmem>>, vector<8x4xf32>
    tpu.vector_store %arg18[%c0_232, %c0_233], %408 {strides = array<i32>} : memref<8x4xf32, #tpu.memory_space<vmem>>, vector<8x4xf32>,
    return
  }
}

</mosaic_0001>

<llo_original>
// kernel: transformer_traffic_forward.1
$region0: #{transformer_traffic_forward.1}
  #allocation0 [shape = 'u32[]', space=smem, size = 0x4, offset = 0x4, fixed_abs, tag = 'smem constant byte address 0x4 - core index']
  #allocation1 [shape = 'u32[144,128]{1,0:T(1,128)}', space=vmem, size = 0x12000, scoped, tag = 'internal scratch']
  #allocation2 [shape = 'f32[16,32]{1,0:T(8,128)}', space=vmem, size = 0x2000, scoped, tag = 'scratch operand']
  %s0 = inlined_call_operand.vmem [shape: f32[16,16], index: 0, kind: input, shape index: {}]
  %s1 = inlined_call_operand.vmem [shape: f32[16,16], index: 1, kind: input, shape index: {}]
  %s2 = inlined_call_operand.vmem [shape: bf16[16,32], index: 2, kind: input, shape index: {}]
  %s3 = inlined_call_operand.vmem [shape: f32[1,32], index: 3, kind: input, shape index: {}]
  %s4 = inlined_call_operand.vmem [shape: bf16[2,32,96], index: 4, kind: input, shape index: {}]
  %s5 = inlined_call_operand.vmem [shape: f32[2,1,96], index: 5, kind: input, shape index: {}]
  %s6 = inlined_call_operand.vmem [shape: bf16[2,32,32], index: 6, kind: input, shape index: {}]
  %s7 = inlined_call_operand.vmem [shape: f32[2,1,32], index: 7, kind: input, shape index: {}]
  %s8 = inlined_call_operand.vmem [shape: f32[2,1,32], index: 8, kind: input, shape index: {}]
  %s9 = inlined_call_operand.vmem [shape: f32[2,1,32], index: 9, kind: input, shape index: {}]
  %s10 = inlined_call_operand.vmem [shape: bf16[2,32,2048], index: 10, kind: input, shape index: {}]
  %s11 = inlined_call_operand.vmem [shape: f32[2,1,2048], index: 11, kind: input, shape index: {}]
  %s12 = inlined_call_operand.vmem [shape: bf16[2,2048,32], index: 12, kind: input, shape index: {}]
  %s13 = inlined_call_operand.vmem [shape: f32[2,1,32], index: 13, kind: input, shape index: {}]
  %s14 = inlined_call_operand.vmem [shape: f32[2,1,32], index: 14, kind: input, shape index: {}]
  %s15 = inlined_call_operand.vmem [shape: f32[2,1,32], index: 15, kind: input, shape index: {}]
  %s16 = inlined_call_operand.vmem [shape: bf16[32,4], index: 16, kind: input, shape index: {}]
  %s17 = inlined_call_operand.vmem [shape: f32[1,4], index: 17, kind: input, shape index: {}]
  %s18 = inlined_call_operand.vmem [shape: f32[8,4], index: 18, kind: output, shape index: {}]
  %s19 = sld [smem:[#allocation0]]
  $region82: #{transformer_traffic_forward.1} parent=0
    _
  %s21 = ssub.s32 1, %s19
  %s22 = scalar_select 0, %s21, %s19
  // Predicated region
  $region2: #{transformer_traffic_forward.1} parent=0 // pred_check
    _
  $region3: #{transformer_traffic_forward.1} parent=0 // pred_check_branch
    %24 = sbr.rel (0) target = $region5
  $region4: #{transformer_traffic_forward.1} parent=0 // pred_region
    _
  $region5: #{transformer_traffic_forward.1} parent=0 // pred_fallthru
    _
  // Predicated region
  $region6: #{transformer_traffic_forward.1} parent=0 // pred_check
    _
  $region7: #{transformer_traffic_forward.1} parent=0 // pred_check_branch
    %26 = sbr.rel (0) target = $region9
  $region8: #{transformer_traffic_forward.1} parent=0 // pred_region
    _
  $region9: #{transformer_traffic_forward.1} parent=0 // pred_fallthru
    _
  // Predicated region
  $region10: #{transformer_traffic_forward.1} parent=0 // pred_check
    _
  $region11: #{transformer_traffic_forward.1} parent=0 // pred_check_branch
    %28 = sbr.rel (0) target = $region13
  $region12: #{transformer_traffic_forward.1} parent=0 // pred_region
    _
  $region13: #{transformer_traffic_forward.1} parent=0 // pred_fallthru
    _
  // Predicated region
  $region14: #{transformer_traffic_forward.1} parent=0 // pred_check
    _
  $region15: #{transformer_traffic_forward.1} parent=0 // pred_check_branch
    %30 = sbr.rel (0) target = $region17
  $region16: #{transformer_traffic_forward.1} parent=0 // pred_region
    _
  $region17: #{transformer_traffic_forward.1} parent=0 // pred_fallthru
    _
  // Predicated region
  $region18: #{transformer_traffic_forward.1} parent=0 // pred_check
    _
  $region19: #{transformer_traffic_forward.1} parent=0 // pred_check_branch
    %32 = sbr.rel (0) target = $region21
  $region20: #{transformer_traffic_forward.1} parent=0 // pred_region
    _
  $region21: #{transformer_traffic_forward.1} parent=0 // pred_fallthru
    _
  // Predicated region
  $region22: #{transformer_traffic_forward.1} parent=0 // pred_check
    _
  $region23: #{transformer_traffic_forward.1} parent=0 // pred_check_branch
    %34 = sbr.rel (0) target = $region25
  $region24: #{transformer_traffic_forward.1} parent=0 // pred_region
    _
  $region25: #{transformer_traffic_forward.1} parent=0 // pred_fallthru
    _
  // Predicated region
  $region26: #{transformer_traffic_forward.1} parent=0 // pred_check
    _
  $region27: #{transformer_traffic_forward.1} parent=0 // pred_check_branch
    %36 = sbr.rel (0) target = $region29
  $region28: #{transformer_traffic_forward.1} parent=0 // pred_region
    _
  $region29: #{transformer_traffic_forward.1} parent=0 // pred_fallthru
    _
  // Predicated region
  $region30: #{transformer_traffic_forward.1} parent=0 // pred_check
    _
  $region31: #{transformer_traffic_forward.1} parent=0 // pred_check_branch
    %38 = sbr.rel (0) target = $region33
  $region32: #{transformer_traffic_forward.1} parent=0 // pred_region
    _
  $region33: #{transformer_traffic_forward.1} parent=0 // pred_fallthru
    _
  // Predicated region
  $region34: #{transformer_traffic_forward.1} parent=0 // pred_check
    _
  $region35: #{transformer_traffic_forward.1} parent=0 // pred_check_branch
    %40 = sbr.rel (0) target = $region37
  $region36: #{transformer_traffic_forward.1} parent=0 // pred_region
    _
  $region37: #{transformer_traffic_forward.1} parent=0 // pred_fallthru
    _
  // Predicated region
  $region38: #{transformer_traffic_forward.1} parent=0 // pred_check
    _
  $region39: #{transformer_traffic_forward.1} parent=0 // pred_check_branch
    %42 = sbr.rel (0) target = $region41
  $region40: #{transformer_traffic_forward.1} parent=0 // pred_region
    _
  $region41: #{transformer_traffic_forward.1} parent=0 // pred_fallthru
    _
  // Predicated region
  $region42: #{transformer_traffic_forward.1} parent=0 // pred_check
    _
  $region43: #{transformer_traffic_forward.1} parent=0 // pred_check_branch
    %44 = sbr.rel (0) target = $region45
  $region44: #{transformer_traffic_forward.1} parent=0 // pred_region
    _
  $region45: #{transformer_traffic_forward.1} parent=0 // pred_fallthru
    _
  // Predicated region
  $region46: #{transformer_traffic_forward.1} parent=0 // pred_check
    _
  $region47: #{transformer_traffic_forward.1} parent=0 // pred_check_branch
    %46 = sbr.rel (0) target = $region49
  $region48: #{transformer_traffic_forward.1} parent=0 // pred_region
    _
  $region49: #{transformer_traffic_forward.1} parent=0 // pred_fallthru
    _
  // Predicated region
  $region50: #{transformer_traffic_forward.1} parent=0 // pred_check
    _
  $region51: #{transformer_traffic_forward.1} parent=0 // pred_check_branch
    %48 = sbr.rel (0) target = $region53
  $region52: #{transformer_traffic_forward.1} parent=0 // pred_region
    _
  $region53: #{transformer_traffic_forward.1} parent=0 // pred_fallthru
    _
  // Predicated region
  $region54: #{transformer_traffic_forward.1} parent=0 // pred_check
    _
  $region55: #{transformer_traffic_forward.1} parent=0 // pred_check_branch
    %50 = sbr.rel (0) target = $region57
  $region56: #{transformer_traffic_forward.1} parent=0 // pred_region
    _
  $region57: #{transformer_traffic_forward.1} parent=0 // pred_fallthru
    _
  // Predicated region
  $region58: #{transformer_traffic_forward.1} parent=0 // pred_check
    _
  $region59: #{transformer_traffic_forward.1} parent=0 // pred_check_branch
    %52 = sbr.rel (0) target = $region61
  $region60: #{transformer_traffic_forward.1} parent=0 // pred_region
    _
  $region61: #{transformer_traffic_forward.1} parent=0 // pred_fallthru
    _
  // Predicated region
  $region62: #{transformer_traffic_forward.1} parent=0 // pred_check
    _
  $region63: #{transformer_traffic_forward.1} parent=0 // pred_check_branch
    %54 = sbr.rel (0) target = $region65
  $region64: #{transformer_traffic_forward.1} parent=0 // pred_region
    _
  $region65: #{transformer_traffic_forward.1} parent=0 // pred_fallthru
    _
  // Predicated region
  $region66: #{transformer_traffic_forward.1} parent=0 // pred_check
    _
  $region67: #{transformer_traffic_forward.1} parent=0 // pred_check_branch
    %56 = sbr.rel (0) target = $region69
  $region68: #{transformer_traffic_forward.1} parent=0 // pred_region
    _
  $region69: #{transformer_traffic_forward.1} parent=0 // pred_fallthru
    _
  // Predicated region
  $region70: #{transformer_traffic_forward.1} parent=0 // pred_check
    _
  $region71: #{transformer_traffic_forward.1} parent=0 // pred_check_branch
    %58 = sbr.rel (0) target = $region73
  $region72: #{transformer_traffic_forward.1} parent=0 // pred_region
    _
  $region73: #{transformer_traffic_forward.1} parent=0 // pred_fallthru
    _
  %v60 = vld [vmem:[%s1] sm:$0xff]
  %v61 = vld [vmem:[%s1 + $0x8] sm:$0xff]
  %v62 = vld [vmem:[%s0] sm:$0xff]
  %v63 = vld [vmem:[%s0 + $0x8] sm:$0xff]
  %v64 = vpack.c.bf16 %v63, %v62
  %v65 = vld [vmem:[%s2] sm:$0xf]
  %v66 = vld [vmem:[%s2 + $0x4] sm:$0xf]
  %v67 = vld [vmem:[%s3] sm:$0x1]
  %v69 = vlaneseq
  %v70 = vshrl.u32 %v69, 7
  %v71 = vsub.s32 0, %v70
  %v72 = vrot.slane %v67, %v71
  %v76 = vunpack.c.l.b16 %v65
  %v77 = vunpack.c.l.b16 %v66
  %v78 = vpack.c.b16 %v77, %v76
  %vm80 = vcmask 130048
  %v82 = vsel %vm80, %v64, 0
  %84 = vmatprep.subr.bf16.mxu0 0
  %85 = vmatpush1.bf16.msra.mxu0 %v78
  %86 = vmatprep.subr.bf16.mxu0 0
  %87 = vmatpush1.bf16.msra.mxu0 0
  %88 = vmatprep.subr.bf16.mxu0 0
  %89 = vmatpush1.bf16.msra.mxu0 0
  %90 = vmatprep.subr.bf16.mxu0 0
  %91 = vmatpush1.bf16.msra.mxu0 0
  %92 = vmatprep.subr.bf16.mxu0 0
  %93 = vmatpush1.bf16.msra.mxu0 0
  %94 = vmatprep.subr.bf16.mxu0 0
  %95 = vmatpush1.bf16.msra.mxu0 0
  %96 = vmatprep.subr.bf16.mxu0 0
  %97 = vmatpush1.bf16.msra.mxu0 0
  %98 = vmatprep.subr.bf16.mxu0 0
  %99 = vmatpush1.bf16.msra.mxu0 0
  %100 = vmatprep.subr.bf16.mxu0 0
  %101 = vmatpush1.bf16.msra.mxu0 0
  %102 = vmatprep.subr.bf16.mxu0 0
  %103 = vmatpush1.bf16.msra.mxu0 0
  %104 = vmatprep.subr.bf16.mxu0 0
  %105 = vmatpush1.bf16.msra.mxu0 0
  %106 = vmatprep.subr.bf16.mxu0 0
  %107 = vmatpush1.bf16.msra.mxu0 0
  %108 = vmatprep.subr.bf16.mxu0 0
  %109 = vmatpush1.bf16.msra.mxu0 0
  %110 = vmatprep.subr.bf16.mxu0 0
  %111 = vmatpush1.bf16.msra.mxu0 0
  %112 = vmatprep.subr.bf16.mxu0 0
  %113 = vmatpush1.bf16.msra.mxu0 0
  %114 = vmatprep.subr.bf16.mxu0 0
  %115 = vmatpush1.bf16.msra.mxu0 0
  %116 = vmatprep.mubr.bf16.mxu0 0
  %117 = vmatmul.mubr.bf16.gmra.mrb[0].mxu0 %v82
  %v118 = vpop.f32.mrb[0].mxu0
  %v119 = vadd.f32 %v72, %v118
  %v120 = vpop.f32.mrb[0].mxu0
  %v121 = vpop.f32.mrb[0].mxu0
  %v122 = vadd.f32 %v72, %v121
  %v123 = vpop.f32.mrb[0].mxu0
  %124 = vdwg.mxu0
  %v125 = vpack.c.bf16 %v122, %v119
  %v126 = vld [vmem:[%s4] sm:$0xf]
  %v127 = vld [vmem:[%s4 + $0x4] sm:$0xf]
  %v128 = vld [vmem:[%s4 + $0x8] sm:$0xf]
  %v129 = vld [vmem:[%s4 + $0xc] sm:$0xf]
  %v130 = vld [vmem:[%s5] sm:$0x1]
  %v132 = vlaneseq
  %v133 = vshrl.u32 %v132, 7
  %v134 = vsub.s32 0, %v133
  %v135 = vrot.slane %v130, %v134
  %v141 = vunpack.c.l.b16 %v126
  %v142 = vunpack.c.l.b16 %v127
  %v143 = vunpack.c.l.b16 %v128
  %v144 = vunpack.c.l.b16 %v129
  %v145 = vpack.c.b16 %v142, %v141
  %v146 = vpack.c.b16 %v144, %v143
  %vm149 = vcmask 261120
  %v151 = vsel %vm149, %v125, 0
  %153 = vmatprep.subr.bf16.mxu0 0
  %154 = vmatpush1.bf16.msra.mxu0 %v145
  %155 = vmatprep.subr.bf16.mxu0 0
  %156 = vmatpush1.bf16.msra.mxu0 %v146
  %157 = vmatprep.subr.bf16.mxu0 0
  %158 = vmatpush1.bf16.msra.mxu0 0
  %159 = vmatprep.subr.bf16.mxu0 0
  %160 = vmatpush1.bf16.msra.mxu0 0
  %161 = vmatprep.subr.bf16.mxu0 0
  %162 = vmatpush1.bf16.msra.mxu0 0
  %163 = vmatprep.subr.bf16.mxu0 0
  %164 = vmatpush1.bf16.msra.mxu0 0
  %165 = vmatprep.subr.bf16.mxu0 0
  %166 = vmatpush1.bf16.msra.mxu0 0
  %167 = vmatprep.subr.bf16.mxu0 0
  %168 = vmatpush1.bf16.msra.mxu0 0
  %169 = vmatprep.subr.bf16.mxu0 0
  %170 = vmatpush1.bf16.msra.mxu0 0
  %171 = vmatprep.subr.bf16.mxu0 0
  %172 = vmatpush1.bf16.msra.mxu0 0
  %173 = vmatprep.subr.bf16.mxu0 0
  %174 = vmatpush1.bf16.msra.mxu0 0
  %175 = vmatprep.subr.bf16.mxu0 0
  %176 = vmatpush1.bf16.msra.mxu0 0
  %177 = vmatprep.subr.bf16.mxu0 0
  %178 = vmatpush1.bf16.msra.mxu0 0
  %179 = vmatprep.subr.bf16.mxu0 0
  %180 = vmatpush1.bf16.msra.mxu0 0
  %181 = vmatprep.subr.bf16.mxu0 0
  %182 = vmatpush1.bf16.msra.mxu0 0
  %183 = vmatprep.subr.bf16.mxu0 0
  %184 = vmatpush1.bf16.msra.mxu0 0
  %185 = vmatprep.mubr.bf16.mxu0 0
  %186 = vmatmul.mubr.bf16.gmra.mrb[0].mxu0 %v151
  %v187 = vpop.f32.mrb[0].mxu0
  %v188 = vadd.f32 %v135, %v187
  %v189 = vpop.f32.mrb[0].mxu0
  %v190 = vpop.f32.mrb[0].mxu0
  %v191 = vadd.f32 %v135, %v190
  %v192 = vpop.f32.mrb[0].mxu0
  %193 = vdwg.mxu0
  %196 = vrot.lane.b32.xlu0 %v188, 96
  %v197 = vpop.permute.xlu0 %196
  %198 = vrot.lane.b32.xlu0 %v191, 96
  %v199 = vpop.permute.xlu0 %198
  %vm200 = vcmask 64512
  %v201 = vsel %vm200, %v188, 0
  %v203 = vsel %vm200, %v191, 0
  %v205 = vsel %vm200, %v197, 0
  %v207 = vsel %vm200, %v199, 0
  %209 = vmatprep.subr.mxu0 0.0
  %210 = vmatpush1.xpose.msra.mxu0 %v205
  %211 = vmatprep.subr.mxu0 0.0
  %212 = vmatpush1.xpose.msra.mxu0 %v207
  %213 = vmatprep.subr.mxu0 0.0
  %214 = vmatpush1.xpose.msra.mxu0 0.0
  %215 = vmatprep.subr.mxu0 0.0
  %216 = vmatpush1.xpose.msra.mxu0 0.0
  %217 = vmatprep.subr.mxu0 0.0
  %218 = vmatpush1.xpose.msra.mxu0 0.0
  %219 = vmatprep.subr.mxu0 0.0
  %220 = vmatpush1.xpose.msra.mxu0 0.0
  %221 = vmatprep.subr.mxu0 0.0
  %222 = vmatpush1.xpose.msra.mxu0 0.0
  %223 = vmatprep.subr.mxu0 0.0
  %224 = vmatpush1.xpose.msra.mxu0 0.0
  %225 = vmatprep.subr.mxu0 0.0
  %226 = vmatpush1.xpose.msra.mxu0 0.0
  %227 = vmatprep.subr.mxu0 0.0
  %228 = vmatpush1.xpose.msra.mxu0 0.0
  %229 = vmatprep.subr.mxu0 0.0
  %230 = vmatpush1.xpose.msra.mxu0 0.0
  %231 = vmatprep.subr.mxu0 0.0
  %232 = vmatpush1.xpose.msra.mxu0 0.0
  %233 = vmatprep.subr.mxu0 0.0
  %234 = vmatpush1.xpose.msra.mxu0 0.0
  %235 = vmatprep.subr.mxu0 0.0
  %236 = vmatpush1.xpose.msra.mxu0 0.0
  %237 = vmatprep.subr.mxu0 0.0
  %238 = vmatpush1.xpose.msra.mxu0 0.0
  %239 = vmatprep.subr.mxu0 0.0
  %240 = vmatpush1.xpose.msra.mxu0 0.0
  %241 = vmatprep.subr.mxu0 0.0
  %242 = vmatpush1.xpose.msra.mxu0 0.0
  %243 = vmatprep.subr.mxu0 0.0
  %244 = vmatpush1.xpose.msra.mxu0 0.0
  %245 = vmatprep.subr.mxu0 0.0
  %246 = vmatpush1.xpose.msra.mxu0 0.0
  %247 = vmatprep.subr.mxu0 0.0
  %248 = vmatpush1.xpose.msra.mxu0 0.0
  %249 = vmatprep.subr.mxu0 0.0
  %250 = vmatpush1.xpose.msra.mxu0 0.0
  %251 = vmatprep.subr.mxu0 0.0
  %252 = vmatpush1.xpose.msra.mxu0 0.0
  %253 = vmatprep.subr.mxu0 0.0
  %254 = vmatpush1.xpose.msra.mxu0 0.0
  %255 = vmatprep.subr.mxu0 0.0
  %256 = vmatpush1.xpose.msra.mxu0 0.0
  %257 = vmatprep.subr.mxu0 0.0
  %258 = vmatpush1.xpose.msra.mxu0 0.0
  %259 = vmatprep.subr.mxu0 0.0
  %260 = vmatpush1.xpose.msra.mxu0 0.0
  %261 = vmatprep.subr.mxu0 0.0
  %262 = vmatpush1.xpose.msra.mxu0 0.0
  %263 = vmatprep.subr.mxu0 0.0
  %264 = vmatpush1.xpose.msra.mxu0 0.0
  %265 = vmatprep.subr.mxu0 0.0
  %266 = vmatpush1.xpose.msra.mxu0 0.0
  %267 = vmatprep.subr.mxu0 0.0
  %268 = vmatpush1.xpose.msra.mxu0 0.0
  %269 = vmatprep.subr.mxu0 0.0
  %270 = vmatpush1.xpose.msra.mxu0 0.0
  %271 = vmatprep.subr.mxu0 0.0
  %272 = vmatpush1.xpose.msra.mxu0 0.0
  %273 = vmatprep.mubr.f32.mxu0 0.0
  %274 = vmatmul.mubr.f32.gmra.mrb[0].mxu0 %v201
  %v275 = vpop.f32.mrb[0].mxu0
  %v276 = vadd.f32 %v60, %v275
  %v277 = vpop.f32.mrb[0].mxu0
  %278 = vmatprep.mubr.f32.mxu0 0.0
  %279 = vmatmul.mubr.f32.gmra.mrb[0].mxu0 %v203
  %v280 = vpop.f32.mrb[0].mxu0
  %v281 = vadd.f32 %v61, %v280
  %v282 = vpop.f32.mrb[0].mxu0
  %283 = vdwg.mxu0
  %v284 = vsel %vm80, %v276, -inf
  %285 = vmax.xlane.f32.xlu0 %v284
  %v286 = vpop.xlane.xlu0 %285
  %v287 = vsel %vm80, %v281, -inf
  %288 = vmax.xlane.f32.xlu0 %v287
  %v289 = vpop.xlane.xlu0 %288
  %v290 = vsub.f32 %v276, %v286
  %v291 = vsub.f32 %v281, %v289
  %v292 = vmul.f32 %v290, 1.442695
  %v293 = vpow.pop %v292
  %v294 = vmul.f32 %v291, 1.442695
  %v295 = vpow.pop %v294
  %v296 = vsel %vm80, %v293, 0.0
  %297 = vadd.xlane.f32.xlu0 %v296
  %v298 = vpop.xlane.xlu0 %297
  %v299 = vsel %vm80, %v295, 0.0
  %300 = vadd.xlane.f32.xlu0 %v299
  %v301 = vpop.xlane.xlu0 %300
  %v302 = vrcp.pop %v298
  %v303 = vrcp.pop %v301
  %v304 = vmul.f32 %v293, %v302
  %v305 = vmul.f32 %v295, %v303
  %306 = vrot.lane.b32.xlu0 %v188, 64
  %v307 = vpop.permute.xlu0 %306
  %308 = vrot.lane.b32.xlu0 %v191, 64
  %v309 = vpop.permute.xlu0 %308
  %v313 = vsel %vm80, %v304, 0
  %v316 = vsel %vm80, %v305, 0
  %318 = vmatprep.subr.mxu0 0.0
  %319 = vmatpush1.msra.mxu0 %v307
  %320 = vmatprep.subr.mxu0 0.0
  %321 = vmatpush1.msra.mxu0 %v309
  %322 = vmatprep.subr.mxu0 0.0
  %323 = vmatpush1.msra.mxu0 0.0
  %324 = vmatprep.subr.mxu0 0.0
  %325 = vmatpush1.msra.mxu0 0.0
  %326 = vmatprep.subr.mxu0 0.0
  %327 = vmatpush1.msra.mxu0 0.0
  %328 = vmatprep.subr.mxu0 0.0
  %329 = vmatpush1.msra.mxu0 0.0
  %330 = vmatprep.subr.mxu0 0.0
  %331 = vmatpush1.msra.mxu0 0.0
  %332 = vmatprep.subr.mxu0 0.0
  %333 = vmatpush1.msra.mxu0 0.0
  %334 = vmatprep.subr.mxu0 0.0
  %335 = vmatpush1.msra.mxu0 0.0
  %336 = vmatprep.subr.mxu0 0.0
  %337 = vmatpush1.msra.mxu0 0.0
  %338 = vmatprep.subr.mxu0 0.0
  %339 = vmatpush1.msra.mxu0 0.0
  %340 = vmatprep.subr.mxu0 0.0
  %341 = vmatpush1.msra.mxu0 0.0
  %342 = vmatprep.subr.mxu0 0.0
  %343 = vmatpush1.msra.mxu0 0.0
  %344 = vmatprep.subr.mxu0 0.0
  %345 = vmatpush1.msra.mxu0 0.0
  %346 = vmatprep.subr.mxu0 0.0
  %347 = vmatpush1.msra.mxu0 0.0
  %348 = vmatprep.subr.mxu0 0.0
  %349 = vmatpush1.msra.mxu0 0.0
  %350 = vmatprep.subr.mxu0 0.0
  %351 = vmatpush1.msra.mxu0 0.0
  %352 = vmatprep.subr.mxu0 0.0
  %353 = vmatpush1.msra.mxu0 0.0
  %354 = vmatprep.subr.mxu0 0.0
  %355 = vmatpush1.msra.mxu0 0.0
  %356 = vmatprep.subr.mxu0 0.0
  %357 = vmatpush1.msra.mxu0 0.0
  %358 = vmatprep.subr.mxu0 0.0
  %359 = vmatpush1.msra.mxu0 0.0
  %360 = vmatprep.subr.mxu0 0.0
  %361 = vmatpush1.msra.mxu0 0.0
  %362 = vmatprep.subr.mxu0 0.0
  %363 = vmatpush1.msra.mxu0 0.0
  %364 = vmatprep.subr.mxu0 0.0
  %365 = vmatpush1.msra.mxu0 0.0
  %366 = vmatprep.subr.mxu0 0.0
  %367 = vmatpush1.msra.mxu0 0.0
  %368 = vmatprep.subr.mxu0 0.0
  %369 = vmatpush1.msra.mxu0 0.0
  %370 = vmatprep.subr.mxu0 0.0
  %371 = vmatpush1.msra.mxu0 0.0
  %372 = vmatprep.subr.mxu0 0.0
  %373 = vmatpush1.msra.mxu0 0.0
  %374 = vmatprep.subr.mxu0 0.0
  %375 = vmatpush1.msra.mxu0 0.0
  %376 = vmatprep.subr.mxu0 0.0
  %377 = vmatpush1.msra.mxu0 0.0
  %378 = vmatprep.subr.mxu0 0.0
  %379 = vmatpush1.msra.mxu0 0.0
  %380 = vmatprep.subr.mxu0 0.0
  %381 = vmatpush1.msra.mxu0 0.0
  %382 = vmatprep.mubr.f32.mxu0 0.0
  %383 = vmatmul.mubr.f32.gmra.mrb[0].mxu0 %v313
  %v384 = vpop.f32.mrb[0].mxu0
  %v385 = vadd.f32 0.0, %v384
  %v386 = vpop.f32.mrb[0].mxu0
  %387 = vmatprep.mubr.f32.mxu0 0.0
  %388 = vmatmul.mubr.f32.gmra.mrb[0].mxu0 %v316
  %v389 = vpop.f32.mrb[0].mxu0
  %v390 = vadd.f32 0.0, %v389
  %v391 = vpop.f32.mrb[0].mxu0
  %392 = vdwg.mxu0
  %393 = vst.msk [vmem:[#allocation2] sm:$0xff] %vm200, %v385
  %394 = vst.msk [vmem:[#allocation2 + $0x8] sm:$0xff] %vm200, %v390
  %395 = vrot.lane.b32.xlu0 %v188, 120
  %v396 = vpop.permute.xlu0 %395
  %397 = vrot.lane.b32.xlu0 %v191, 120
  %v398 = vpop.permute.xlu0 %397
  %399 = vrot.lane.b32.xlu0 %v188, 88
  %v400 = vpop.permute.xlu0 %399
  %401 = vrot.lane.b32.xlu0 %v191, 88
  %v402 = vpop.permute.xlu0 %401
  %v403 = vsel %vm200, %v396, 0
  %v405 = vsel %vm200, %v398, 0
  %v407 = vsel %vm200, %v400, 0
  %v409 = vsel %vm200, %v402, 0
  %411 = vmatprep.subr.mxu0 0.0
  %412 = vmatpush1.xpose.msra.mxu0 %v407
  %413 = vmatprep.subr.mxu0 0.0
  %414 = vmatpush1.xpose.msra.mxu0 %v409
  %415 = vmatprep.subr.mxu0 0.0
  %416 = vmatpush1.xpose.msra.mxu0 0.0
  %417 = vmatprep.subr.mxu0 0.0
  %418 = vmatpush1.xpose.msra.mxu0 0.0
  %419 = vmatprep.subr.mxu0 0.0
  %420 = vmatpush1.xpose.msra.mxu0 0.0
  %421 = vmatprep.subr.mxu0 0.0
  %422 = vmatpush1.xpose.msra.mxu0 0.0
  %423 = vmatprep.subr.mxu0 0.0
  %424 = vmatpush1.xpose.msra.mxu0 0.0
  %425 = vmatprep.subr.mxu0 0.0
  %426 = vmatpush1.xpose.msra.mxu0 0.0
  %427 = vmatprep.subr.mxu0 0.0
  %428 = vmatpush1.xpose.msra.mxu0 0.0
  %429 = vmatprep.subr.mxu0 0.0
  %430 = vmatpush1.xpose.msra.mxu0 0.0
  %431 = vmatprep.subr.mxu0 0.0
  %432 = vmatpush1.xpose.msra.mxu0 0.0
  %433 = vmatprep.subr.mxu0 0.0
  %434 = vmatpush1.xpose.msra.mxu0 0.0
  %435 = vmatprep.subr.mxu0 0.0
  %436 = vmatpush1.xpose.msra.mxu0 0.0
  %437 = vmatprep.subr.mxu0 0.0
  %438 = vmatpush1.xpose.msra.mxu0 0.0
  %439 = vmatprep.subr.mxu0 0.0
  %440 = vmatpush1.xpose.msra.mxu0 0.0
  %441 = vmatprep.subr.mxu0 0.0
  %442 = vmatpush1.xpose.msra.mxu0 0.0
  %443 = vmatprep.subr.mxu0 0.0
  %444 = vmatpush1.xpose.msra.mxu0 0.0
  %445 = vmatprep.subr.mxu0 0.0
  %446 = vmatpush1.xpose.msra.mxu0 0.0
  %447 = vmatprep.subr.mxu0 0.0
  %448 = vmatpush1.xpose.msra.mxu0 0.0
  %449 = vmatprep.subr.mxu0 0.0
  %450 = vmatpush1.xpose.msra.mxu0 0.0
  %451 = vmatprep.subr.mxu0 0.0
  %452 = vmatpush1.xpose.msra.mxu0 0.0
  %453 = vmatprep.subr.mxu0 0.0
  %454 = vmatpush1.xpose.msra.mxu0 0.0
  %455 = vmatprep.subr.mxu0 0.0
  %456 = vmatpush1.xpose.msra.mxu0 0.0
  %457 = vmatprep.subr.mxu0 0.0
  %458 = vmatpush1.xpose.msra.mxu0 0.0
  %459 = vmatprep.subr.mxu0 0.0
  %460 = vmatpush1.xpose.msra.mxu0 0.0
  %461 = vmatprep.subr.mxu0 0.0
  %462 = vmatpush1.xpose.msra.mxu0 0.0
  %463 = vmatprep.subr.mxu0 0.0
  %464 = vmatpush1.xpose.msra.mxu0 0.0
  %465 = vmatprep.subr.mxu0 0.0
  %466 = vmatpush1.xpose.msra.mxu0 0.0
  %467 = vmatprep.subr.mxu0 0.0
  %468 = vmatpush1.xpose.msra.mxu0 0.0
  %469 = vmatprep.subr.mxu0 0.0
  %470 = vmatpush1.xpose.msra.mxu0 0.0
  %471 = vmatprep.subr.mxu0 0.0
  %472 = vmatpush1.xpose.msra.mxu0 0.0
  %473 = vmatprep.subr.mxu0 0.0
  %474 = vmatpush1.xpose.msra.mxu0 0.0
  %475 = vmatprep.mubr.f32.mxu0 0.0
  %476 = vmatmul.mubr.f32.gmra.mrb[0].mxu0 %v403
  %v477 = vpop.f32.mrb[0].mxu0
  %v478 = vadd.f32 %v60, %v477
  %v479 = vpop.f32.mrb[0].mxu0
  %480 = vmatprep.mubr.f32.mxu0 0.0
  %481 = vmatmul.mubr.f32.gmra.mrb[0].mxu0 %v405
  %v482 = vpop.f32.mrb[0].mxu0
  %v483 = vadd.f32 %v61, %v482
  %v484 = vpop.f32.mrb[0].mxu0
  %485 = vdwg.mxu0
  %v486 = vsel %vm80, %v478, -inf
  %487 = vmax.xlane.f32.xlu0 %v486
  %v488 = vpop.xlane.xlu0 %487
  %v489 = vsel %vm80, %v483, -inf
  %490 = vmax.xlane.f32.xlu0 %v489
  %v491 = vpop.xlane.xlu0 %490
  %v492 = vsub.f32 %v478, %v488
  %v493 = vsub.f32 %v483, %v491
  %v494 = vmul.f32 %v492, 1.442695
  %v495 = vpow.pop %v494
  %v496 = vmul.f32 %v493, 1.442695
  %v497 = vpow.pop %v496
  %v498 = vsel %vm80, %v495, 0.0
  %499 = vadd.xlane.f32.xlu0 %v498
  %v500 = vpop.xlane.xlu0 %499
  %v501 = vsel %vm80, %v497, 0.0
  %502 = vadd.xlane.f32.xlu0 %v501
  %v503 = vpop.xlane.xlu0 %502
  %v504 = vrcp.pop %v500
  %v505 = vrcp.pop %v503
  %v506 = vmul.f32 %v495, %v504
  %v507 = vmul.f32 %v497, %v505
  %508 = vrot.lane.b32.xlu0 %v188, 56
  %v509 = vpop.permute.xlu0 %508
  %510 = vrot.lane.b32.xlu0 %v191, 56
  %v511 = vpop.permute.xlu0 %510
  %v515 = vsel %vm80, %v506, 0
  %v518 = vsel %vm80, %v507, 0
  %520 = vmatprep.subr.mxu0 0.0
  %521 = vmatpush1.msra.mxu0 %v509
  %522 = vmatprep.subr.mxu0 0.0
  %523 = vmatpush1.msra.mxu0 %v511
  %524 = vmatprep.subr.mxu0 0.0
  %525 = vmatpush1.msra.mxu0 0.0
  %526 = vmatprep.subr.mxu0 0.0
  %527 = vmatpush1.msra.mxu0 0.0
  %528 = vmatprep.subr.mxu0 0.0
  %529 = vmatpush1.msra.mxu0 0.0
  %530 = vmatprep.subr.mxu0 0.0
  %531 = vmatpush1.msra.mxu0 0.0
  %532 = vmatprep.subr.mxu0 0.0
  %533 = vmatpush1.msra.mxu0 0.0
  %534 = vmatprep.subr.mxu0 0.0
  %535 = vmatpush1.msra.mxu0 0.0
  %536 = vmatprep.subr.mxu0 0.0
  %537 = vmatpush1.msra.mxu0 0.0
  %538 = vmatprep.subr.mxu0 0.0
  %539 = vmatpush1.msra.mxu0 0.0
  %540 = vmatprep.subr.mxu0 0.0
  %541 = vmatpush1.msra.mxu0 0.0
  %542 = vmatprep.subr.mxu0 0.0
  %543 = vmatpush1.msra.mxu0 0.0
  %544 = vmatprep.subr.mxu0 0.0
  %545 = vmatpush1.msra.mxu0 0.0
  %546 = vmatprep.subr.mxu0 0.0
  %547 = vmatpush1.msra.mxu0 0.0
  %548 = vmatprep.subr.mxu0 0.0
  %549 = vmatpush1.msra.mxu0 0.0
  %550 = vmatprep.subr.mxu0 0.0
  %551 = vmatpush1.msra.mxu0 0.0
  %552 = vmatprep.subr.mxu0 0.0
  %553 = vmatpush1.msra.mxu0 0.0
  %554 = vmatprep.subr.mxu0 0.0
  %555 = vmatpush1.msra.mxu0 0.0
  %556 = vmatprep.subr.mxu0 0.0
  %557 = vmatpush1.msra.mxu0 0.0
  %558 = vmatprep.subr.mxu0 0.0
  %559 = vmatpush1.msra.mxu0 0.0
  %560 = vmatprep.subr.mxu0 0.0
  %561 = vmatpush1.msra.mxu0 0.0
  %562 = vmatprep.subr.mxu0 0.0
  %563 = vmatpush1.msra.mxu0 0.0
  %564 = vmatprep.subr.mxu0 0.0
  %565 = vmatpush1.msra.mxu0 0.0
  %566 = vmatprep.subr.mxu0 0.0
  %567 = vmatpush1.msra.mxu0 0.0
  %568 = vmatprep.subr.mxu0 0.0
  %569 = vmatpush1.msra.mxu0 0.0
  %570 = vmatprep.subr.mxu0 0.0
  %571 = vmatpush1.msra.mxu0 0.0
  %572 = vmatprep.subr.mxu0 0.0
  %573 = vmatpush1.msra.mxu0 0.0
  %574 = vmatprep.subr.mxu0 0.0
  %575 = vmatpush1.msra.mxu0 0.0
  %576 = vmatprep.subr.mxu0 0.0
  %577 = vmatpush1.msra.mxu0 0.0
  %578 = vmatprep.subr.mxu0 0.0
  %579 = vmatpush1.msra.mxu0 0.0
  %580 = vmatprep.subr.mxu0 0.0
  %581 = vmatpush1.msra.mxu0 0.0
  %582 = vmatprep.subr.mxu0 0.0
  %583 = vmatpush1.msra.mxu0 0.0
  %584 = vmatprep.mubr.f32.mxu0 0.0
  %585 = vmatmul.mubr.f32.gmra.mrb[0].mxu0 %v515
  %v586 = vpop.f32.mrb[0].mxu0
  %v587 = vadd.f32 0.0, %v586
  %v588 = vpop.f32.mrb[0].mxu0
  %589 = vmatprep.mubr.f32.mxu0 0.0
  %590 = vmatmul.mubr.f32.gmra.mrb[0].mxu0 %v518
  %v591 = vpop.f32.mrb[0].mxu0
  %v592 = vadd.f32 0.0, %v591
  %v593 = vpop.f32.mrb[0].mxu0
  %594 = vdwg.mxu0
  %597 = vrot.lane.b32.xlu0 %v587, 8
  %v598 = vpop.permute.xlu0 %597
  %599 = vrot.lane.b32.xlu0 %v592, 8
  %v600 = vpop.permute.xlu0 %599
  %vm603 = vcmask 130112
  %604 = vst.msk [vmem:[#allocation2] sm:$0xff] %vm603, %v598
  %605 = vst.msk [vmem:[#allocation2 + $0x8] sm:$0xff] %vm603, %v600
  %606 = vrot.lane.b32.xlu0 %v188, 112
  %v607 = vpop.permute.xlu0 %606
  %608 = vrot.lane.b32.xlu0 %v191, 112
  %v609 = vpop.permute.xlu0 %608
  %610 = vrot.lane.b32.xlu0 %v188, 80
  %v611 = vpop.permute.xlu0 %610
  %612 = vrot.lane.b32.xlu0 %v191, 80
  %v613 = vpop.permute.xlu0 %612
  %v614 = vsel %vm200, %v607, 0
  %v616 = vsel %vm200, %v609, 0
  %v618 = vsel %vm200, %v611, 0
  %v620 = vsel %vm200, %v613, 0
  %622 = vmatprep.subr.mxu0 0.0
  %623 = vmatpush1.xpose.msra.mxu0 %v618
  %624 = vmatprep.subr.mxu0 0.0
  %625 = vmatpush1.xpose.msra.mxu0 %v620
  %626 = vmatprep.subr.mxu0 0.0
  %627 = vmatpush1.xpose.msra.mxu0 0.0
  %628 = vmatprep.subr.mxu0 0.0
  %629 = vmatpush1.xpose.msra.mxu0 0.0
  %630 = vmatprep.subr.mxu0 0.0
  %631 = vmatpush1.xpose.msra.mxu0 0.0
  %632 = vmatprep.subr.mxu0 0.0
  %633 = vmatpush1.xpose.msra.mxu0 0.0
  %634 = vmatprep.subr.mxu0 0.0
  %635 = vmatpush1.xpose.msra.mxu0 0.0
  %636 = vmatprep.subr.mxu0 0.0
  %637 = vmatpush1.xpose.msra.mxu0 0.0
  %638 = vmatprep.subr.mxu0 0.0
  %639 = vmatpush1.xpose.msra.mxu0 0.0
  %640 = vmatprep.subr.mxu0 0.0
  %641 = vmatpush1.xpose.msra.mxu0 0.0
  %642 = vmatprep.subr.mxu0 0.0
  %643 = vmatpush1.xpose.msra.mxu0 0.0
  %644 = vmatprep.subr.mxu0 0.0
  %645 = vmatpush1.xpose.msra.mxu0 0.0
  %646 = vmatprep.subr.mxu0 0.0
  %647 = vmatpush1.xpose.msra.mxu0 0.0
  %648 = vmatprep.subr.mxu0 0.0
  %649 = vmatpush1.xpose.msra.mxu0 0.0
  %650 = vmatprep.subr.mxu0 0.0
  %651 = vmatpush1.xpose.msra.mxu0 0.0
  %652 = vmatprep.subr.mxu0 0.0
  %653 = vmatpush1.xpose.msra.mxu0 0.0
  %654 = vmatprep.subr.mxu0 0.0
  %655 = vmatpush1.xpose.msra.mxu0 0.0
  %656 = vmatprep.subr.mxu0 0.0
  %657 = vmatpush1.xpose.msra.mxu0 0.0
  %658 = vmatprep.subr.mxu0 0.0
  %659 = vmatpush1.xpose.msra.mxu0 0.0
  %660 = vmatprep.subr.mxu0 0.0
  %661 = vmatpush1.xpose.msra.mxu0 0.0
  %662 = vmatprep.subr.mxu0 0.0
  %663 = vmatpush1.xpose.msra.mxu0 0.0
  %664 = vmatprep.subr.mxu0 0.0
  %665 = vmatpush1.xpose.msra.mxu0 0.0
  %666 = vmatprep.subr.mxu0 0.0
  %667 = vmatpush1.xpose.msra.mxu0 0.0
  %668 = vmatprep.subr.mxu0 0.0
  %669 = vmatpush1.xpose.msra.mxu0 0.0
  %670 = vmatprep.subr.mxu0 0.0
  %671 = vmatpush1.xpose.msra.mxu0 0.0
  %672 = vmatprep.subr.mxu0 0.0
  %673 = vmatpush1.xpose.msra.mxu0 0.0
  %674 = vmatprep.subr.mxu0 0.0
  %675 = vmatpush1.xpose.msra.mxu0 0.0
  %676 = vmatprep.subr.mxu0 0.0
  %677 = vmatpush1.xpose.msra.mxu0 0.0
  %678 = vmatprep.subr.mxu0 0.0
  %679 = vmatpush1.xpose.msra.mxu0 0.0
  %680 = vmatprep.subr.mxu0 0.0
  %681 = vmatpush1.xpose.msra.mxu0 0.0
  %682 = vmatprep.subr.mxu0 0.0
  %683 = vmatpush1.xpose.msra.mxu0 0.0
  %684 = vmatprep.subr.mxu0 0.0
  %685 = vmatpush1.xpose.msra.mxu0 0.0
  %686 = vmatprep.mubr.f32.mxu0 0.0
  %687 = vmatmul.mubr.f32.gmra.mrb[0].mxu0 %v614
  %v688 = vpop.f32.mrb[0].mxu0
  %v689 = vadd.f32 %v60, %v688
  %v690 = vpop.f32.mrb[0].mxu0
  %691 = vmatprep.mubr.f32.mxu0 0.0
  %692 = vmatmul.mubr.f32.gmra.mrb[0].mxu0 %v616
  %v693 = vpop.f32.mrb[0].mxu0
  %v694 = vadd.f32 %v61, %v693
  %v695 = vpop.f32.mrb[0].mxu0
  %696 = vdwg.mxu0
  %v697 = vsel %vm80, %v689, -inf
  %698 = vmax.xlane.f32.xlu0 %v697
  %v699 = vpop.xlane.xlu0 %698
  %v700 = vsel %vm80, %v694, -inf
  %701 = vmax.xlane.f32.xlu0 %v700
  %v702 = vpop.xlane.xlu0 %701
  %v703 = vsub.f32 %v689, %v699
  %v704 = vsub.f32 %v694, %v702
  %v705 = vmul.f32 %v703, 1.442695
  %v706 = vpow.pop %v705
  %v707 = vmul.f32 %v704, 1.442695
  %v708 = vpow.pop %v707
  %v709 = vsel %vm80, %v706, 0.0
  %710 = vadd.xlane.f32.xlu0 %v709
  %v711 = vpop.xlane.xlu0 %710
  %v712 = vsel %vm80, %v708, 0.0
  %713 = vadd.xlane.f32.xlu0 %v712
  %v714 = vpop.xlane.xlu0 %713
  %v715 = vrcp.pop %v711
  %v716 = vrcp.pop %v714
  %v717 = vmul.f32 %v706, %v715
  %v718 = vmul.f32 %v708, %v716
  %719 = vrot.lane.b32.xlu0 %v188, 48
  %v720 = vpop.permute.xlu0 %719
  %721 = vrot.lane.b32.xlu0 %v191, 48
  %v722 = vpop.permute.xlu0 %721
  %v726 = vsel %vm80, %v717, 0
  %v729 = vsel %vm80, %v718, 0
  %731 = vmatprep.subr.mxu0 0.0
  %732 = vmatpush1.msra.mxu0 %v720
  %733 = vmatprep.subr.mxu0 0.0
  %734 = vmatpush1.msra.mxu0 %v722
  %735 = vmatprep.subr.mxu0 0.0
  %736 = vmatpush1.msra.mxu0 0.0
  %737 = vmatprep.subr.mxu0 0.0
  %738 = vmatpush1.msra.mxu0 0.0
  %739 = vmatprep.subr.mxu0 0.0
  %740 = vmatpush1.msra.mxu0 0.0
  %741 = vmatprep.subr.mxu0 0.0
  %742 = vmatpush1.msra.mxu0 0.0
  %743 = vmatprep.subr.mxu0 0.0
  %744 = vmatpush1.msra.mxu0 0.0
  %745 = vmatprep.subr.mxu0 0.0
  %746 = vmatpush1.msra.mxu0 0.0
  %747 = vmatprep.subr.mxu0 0.0
  %748 = vmatpush1.msra.mxu0 0.0
  %749 = vmatprep.subr.mxu0 0.0
  %750 = vmatpush1.msra.mxu0 0.0
  %751 = vmatprep.subr.mxu0 0.0
  %752 = vmatpush1.msra.mxu0 0.0
  %753 = vmatprep.subr.mxu0 0.0
  %754 = vmatpush1.msra.mxu0 0.0
  %755 = vmatprep.subr.mxu0 0.0
  %756 = vmatpush1.msra.mxu0 0.0
  %757 = vmatprep.subr.mxu0 0.0
  %758 = vmatpush1.msra.mxu0 0.0
  %759 = vmatprep.subr.mxu0 0.0
  %760 = vmatpush1.msra.mxu0 0.0
  %761 = vmatprep.subr.mxu0 0.0
  %762 = vmatpush1.msra.mxu0 0.0
  %763 = vmatprep.subr.mxu0 0.0
  %764 = vmatpush1.msra.mxu0 0.0
  %765 = vmatprep.subr.mxu0 0.0
  %766 = vmatpush1.msra.mxu0 0.0
  %767 = vmatprep.subr.mxu0 0.0
  %768 = vmatpush1.msra.mxu0 0.0
  %769 = vmatprep.subr.mxu0 0.0
  %770 = vmatpush1.msra.mxu0 0.0
  %771 = vmatprep.subr.mxu0 0.0
  %772 = vmatpush1.msra.mxu0 0.0
  %773 = vmatprep.subr.mxu0 0.0
  %774 = vmatpush1.msra.mxu0 0.0
  %775 = vmatprep.subr.mxu0 0.0
  %776 = vmatpush1.msra.mxu0 0.0
  %777 = vmatprep.subr.mxu0 0.0
  %778 = vmatpush1.msra.mxu0 0.0
  %779 = vmatprep.subr.mxu0 0.0
  %780 = vmatpush1.msra.mxu0 0.0
  %781 = vmatprep.subr.mxu0 0.0
  %782 = vmatpush1.msra.mxu0 0.0
  %783 = vmatprep.subr.mxu0 0.0
  %784 = vmatpush1.msra.mxu0 0.0
  %785 = vmatprep.subr.mxu0 0.0
  %786 = vmatpush1.msra.mxu0 0.0
  %787 = vmatprep.subr.mxu0 0.0
  %788 = vmatpush1.msra.mxu0 0.0
  %789 = vmatprep.subr.mxu0 0.0
  %790 = vmatpush1.msra.mxu0 0.0
  %791 = vmatprep.subr.mxu0 0.0
  %792 = vmatpush1.msra.mxu0 0.0
  %793 = vmatprep.subr.mxu0 0.0
  %794 = vmatpush1.msra.mxu0 0.0
  %795 = vmatprep.mubr.f32.mxu0 0.0
  %796 = vmatmul.mubr.f32.gmra.mrb[0].mxu0 %v726
  %v797 = vpop.f32.mrb[0].mxu0
  %v798 = vadd.f32 0.0, %v797
  %v799 = vpop.f32.mrb[0].mxu0
  %800 = vmatprep.mubr.f32.mxu0 0.0
  %801 = vmatmul.mubr.f32.gmra.mrb[0].mxu0 %v729
  %v802 = vpop.f32.mrb[0].mxu0
  %v803 = vadd.f32 0.0, %v802
  %v804 = vpop.f32.mrb[0].mxu0
  %805 = vdwg.mxu0
  %808 = vrot.lane.b32.xlu0 %v798, 16
  %v809 = vpop.permute.xlu0 %808
  %810 = vrot.lane.b32.xlu0 %v803, 16
  %v811 = vpop.permute.xlu0 %810
  %vm814 = vcmask 195712
  %815 = vst.msk [vmem:[#allocation2] sm:$0xff] %vm814, %v809
  %816 = vst.msk [vmem:[#allocation2 + $0x8] sm:$0xff] %vm814, %v811
  %817 = vrot.lane.b32.xlu0 %v188, 104
  %v818 = vpop.permute.xlu0 %817
  %819 = vrot.lane.b32.xlu0 %v191, 104
  %v820 = vpop.permute.xlu0 %819
  %821 = vrot.lane.b32.xlu0 %v188, 72
  %v822 = vpop.permute.xlu0 %821
  %823 = vrot.lane.b32.xlu0 %v191, 72
  %v824 = vpop.permute.xlu0 %823
  %v825 = vsel %vm200, %v818, 0
  %v827 = vsel %vm200, %v820, 0
  %v829 = vsel %vm200, %v822, 0
  %v831 = vsel %vm200, %v824, 0
  %833 = vmatprep.subr.mxu0 0.0
  %834 = vmatpush1.xpose.msra.mxu0 %v829
  %835 = vmatprep.subr.mxu0 0.0
  %836 = vmatpush1.xpose.msra.mxu0 %v831
  %837 = vmatprep.subr.mxu0 0.0
  %838 = vmatpush1.xpose.msra.mxu0 0.0
  %839 = vmatprep.subr.mxu0 0.0
  %840 = vmatpush1.xpose.msra.mxu0 0.0
  %841 = vmatprep.subr.mxu0 0.0
  %842 = vmatpush1.xpose.msra.mxu0 0.0
  %843 = vmatprep.subr.mxu0 0.0
  %844 = vmatpush1.xpose.msra.mxu0 0.0
  %845 = vmatprep.subr.mxu0 0.0
  %846 = vmatpush1.xpose.msra.mxu0 0.0
  %847 = vmatprep.subr.mxu0 0.0
  %848 = vmatpush1.xpose.msra.mxu0 0.0
  %849 = vmatprep.subr.mxu0 0.0
  %850 = vmatpush1.xpose.msra.mxu0 0.0
  %851 = vmatprep.subr.mxu0 0.0
  %852 = vmatpush1.xpose.msra.mxu0 0.0
  %853 = vmatprep.subr.mxu0 0.0
  %854 = vmatpush1.xpose.msra.mxu0 0.0
  %855 = vmatprep.subr.mxu0 0.0
  %856 = vmatpush1.xpose.msra.mxu0 0.0
  %857 = vmatprep.subr.mxu0 0.0
  %858 = vmatpush1.xpose.msra.mxu0 0.0
  %859 = vmatprep.subr.mxu0 0.0
  %860 = vmatpush1.xpose.msra.mxu0 0.0
  %861 = vmatprep.subr.mxu0 0.0
  %862 = vmatpush1.xpose.msra.mxu0 0.0
  %863 = vmatprep.subr.mxu0 0.0
  %864 = vmatpush1.xpose.msra.mxu0 0.0
  %865 = vmatprep.subr.mxu0 0.0
  %866 = vmatpush1.xpose.msra.mxu0 0.0
  %867 = vmatprep.subr.mxu0 0.0
  %868 = vmatpush1.xpose.msra.mxu0 0.0
  %869 = vmatprep.subr.mxu0 0.0
  %870 = vmatpush1.xpose.msra.mxu0 0.0
  %871 = vmatprep.subr.mxu0 0.0
  %872 = vmatpush1.xpose.msra.mxu0 0.0
  %873 = vmatprep.subr.mxu0 0.0
  %874 = vmatpush1.xpose.msra.mxu0 0.0
  %875 = vmatprep.subr.mxu0 0.0
  %876 = vmatpush1.xpose.msra.mxu0 0.0
  %877 = vmatprep.subr.mxu0 0.0
  %878 = vmatpush1.xpose.msra.mxu0 0.0
  %879 = vmatprep.subr.mxu0 0.0
  %880 = vmatpush1.xpose.msra.mxu0 0.0
  %881 = vmatprep.subr.mxu0 0.0
  %882 = vmatpush1.xpose.msra.mxu0 0.0
  %883 = vmatprep.subr.mxu0 0.0
  %884 = vmatpush1.xpose.msra.mxu0 0.0
  %885 = vmatprep.subr.mxu0 0.0
  %886 = vmatpush1.xpose.msra.mxu0 0.0
  %887 = vmatprep.subr.mxu0 0.0
  %888 = vmatpush1.xpose.msra.mxu0 0.0
  %889 = vmatprep.subr.mxu0 0.0
  %890 = vmatpush1.xpose.msra.mxu0 0.0
  %891 = vmatprep.subr.mxu0 0.0
  %892 = vmatpush1.xpose.msra.mxu0 0.0
  %893 = vmatprep.subr.mxu0 0.0
  %894 = vmatpush1.xpose.msra.mxu0 0.0
  %895 = vmatprep.subr.mxu0 0.0
  %896 = vmatpush1.xpose.msra.mxu0 0.0
  %897 = vmatprep.mubr.f32.mxu0 0.0
  %898 = vmatmul.mubr.f32.gmra.mrb[0].mxu0 %v825
  %v899 = vpop.f32.mrb[0].mxu0
  %v900 = vadd.f32 %v60, %v899
  %v901 = vpop.f32.mrb[0].mxu0
  %902 = vmatprep.mubr.f32.mxu0 0.0
  %903 = vmatmul.mubr.f32.gmra.mrb[0].mxu0 %v827
  %v904 = vpop.f32.mrb[0].mxu0
  %v905 = vadd.f32 %v61, %v904
  %v906 = vpop.f32.mrb[0].mxu0
  %907 = vdwg.mxu0
  %v908 = vsel %vm80, %v900, -inf
  %909 = vmax.xlane.f32.xlu0 %v908
  %v910 = vpop.xlane.xlu0 %909
  %v911 = vsel %vm80, %v905, -inf
  %912 = vmax.xlane.f32.xlu0 %v911
  %v913 = vpop.xlane.xlu0 %912
  %v914 = vsub.f32 %v900, %v910
  %v915 = vsub.f32 %v905, %v913
  %v916 = vmul.f32 %v914, 1.442695
  %v917 = vpow.pop %v916
  %v918 = vmul.f32 %v915, 1.442695
  %v919 = vpow.pop %v918
  %v920 = vsel %vm80, %v917, 0.0
  %921 = vadd.xlane.f32.xlu0 %v920
  %v922 = vpop.xlane.xlu0 %921
  %v923 = vsel %vm80, %v919, 0.0
  %924 = vadd.xlane.f32.xlu0 %v923
  %v925 = vpop.xlane.xlu0 %924
  %v926 = vrcp.pop %v922
  %v927 = vrcp.pop %v925
  %v928 = vmul.f32 %v917, %v926
  %v929 = vmul.f32 %v919, %v927
  %930 = vrot.lane.b32.xlu0 %v188, 40
  %v931 = vpop.permute.xlu0 %930
  %932 = vrot.lane.b32.xlu0 %v191, 40
  %v933 = vpop.permute.xlu0 %932
  %v937 = vsel %vm80, %v928, 0
  %v940 = vsel %vm80, %v929, 0
  %942 = vmatprep.subr.mxu0 0.0
  %943 = vmatpush1.msra.mxu0 %v931
  %944 = vmatprep.subr.mxu0 0.0
  %945 = vmatpush1.msra.mxu0 %v933
  %946 = vmatprep.subr.mxu0 0.0
  %947 = vmatpush1.msra.mxu0 0.0
  %948 = vmatprep.subr.mxu0 0.0
  %949 = vmatpush1.msra.mxu0 0.0
  %950 = vmatprep.subr.mxu0 0.0
  %951 = vmatpush1.msra.mxu0 0.0
  %952 = vmatprep.subr.mxu0 0.0
  %953 = vmatpush1.msra.mxu0 0.0
  %954 = vmatprep.subr.mxu0 0.0
  %955 = vmatpush1.msra.mxu0 0.0
  %956 = vmatprep.subr.mxu0 0.0
  %957 = vmatpush1.msra.mxu0 0.0
  %958 = vmatprep.subr.mxu0 0.0
  %959 = vmatpush1.msra.mxu0 0.0
  %960 = vmatprep.subr.mxu0 0.0
  %961 = vmatpush1.msra.mxu0 0.0
  %962 = vmatprep.subr.mxu0 0.0
  %963 = vmatpush1.msra.mxu0 0.0
  %964 = vmatprep.subr.mxu0 0.0
  %965 = vmatpush1.msra.mxu0 0.0
  %966 = vmatprep.subr.mxu0 0.0
  %967 = vmatpush1.msra.mxu0 0.0
  %968 = vmatprep.subr.mxu0 0.0
  %969 = vmatpush1.msra.mxu0 0.0
  %970 = vmatprep.subr.mxu0 0.0
  %971 = vmatpush1.msra.mxu0 0.0
  %972 = vmatprep.subr.mxu0 0.0
  %973 = vmatpush1.msra.mxu0 0.0
  %974 = vmatprep.subr.mxu0 0.0
  %975 = vmatpush1.msra.mxu0 0.0
  %976 = vmatprep.subr.mxu0 0.0
  %977 = vmatpush1.msra.mxu0 0.0
  %978 = vmatprep.subr.mxu0 0.0
  %979 = vmatpush1.msra.mxu0 0.0
  %980 = vmatprep.subr.mxu0 0.0
  %981 = vmatpush1.msra.mxu0 0.0
  %982 = vmatprep.subr.mxu0 0.0
  %983 = vmatpush1.msra.mxu0 0.0
  %984 = vmatprep.subr.mxu0 0.0
  %985 = vmatpush1.msra.mxu0 0.0
  %986 = vmatprep.subr.mxu0 0.0
  %987 = vmatpush1.msra.mxu0 0.0
  %988 = vmatprep.subr.mxu0 0.0
  %989 = vmatpush1.msra.mxu0 0.0
  %990 = vmatprep.subr.mxu0 0.0
  %991 = vmatpush1.msra.mxu0 0.0
  %992 = vmatprep.subr.mxu0 0.0
  %993 = vmatpush1.msra.mxu0 0.0
  %994 = vmatprep.subr.mxu0 0.0
  %995 = vmatpush1.msra.mxu0 0.0
  %996 = vmatprep.subr.mxu0 0.0
  %997 = vmatpush1.msra.mxu0 0.0
  %998 = vmatprep.subr.mxu0 0.0
  %999 = vmatpush1.msra.mxu0 0.0
  %1000 = vmatprep.subr.mxu0 0.0
  %1001 = vmatpush1.msra.mxu0 0.0
  %1002 = vmatprep.subr.mxu0 0.0
  %1003 = vmatpush1.msra.mxu0 0.0
  %1004 = vmatprep.subr.mxu0 0.0
  %1005 = vmatpush1.msra.mxu0 0.0
  %1006 = vmatprep.mubr.f32.mxu0 0.0
  %1007 = vmatmul.mubr.f32.gmra.mrb[0].mxu0 %v937
  %v1008 = vpop.f32.mrb[0].mxu0
  %v1009 = vadd.f32 0.0, %v1008
  %v1010 = vpop.f32.mrb[0].mxu0
  %1011 = vmatprep.mubr.f32.mxu0 0.0
  %1012 = vmatmul.mubr.f32.gmra.mrb[0].mxu0 %v940
  %v1013 = vpop.f32.mrb[0].mxu0
  %v1014 = vadd.f32 0.0, %v1013
  %v1015 = vpop.f32.mrb[0].mxu0
  %1016 = vdwg.mxu0
  %1019 = vrot.lane.b32.xlu0 %v1009, 24
  %v1020 = vpop.permute.xlu0 %1019
  %1021 = vrot.lane.b32.xlu0 %v1014, 24
  %v1022 = vpop.permute.xlu0 %1021
  %vm1025 = vcmask 261312
  %1026 = vst.msk [vmem:[#allocation2] sm:$0xff] %vm1025, %v1020
  %1027 = vst.msk [vmem:[#allocation2 + $0x8] sm:$0xff] %vm1025, %v1022
  %v1028 = vld [vmem:[#allocation2] sm:$0xff]
  %v1029 = vld [vmem:[#allocation2 + $0x8] sm:$0xff]
  %v1030 = vpack.c.bf16 %v1029, %v1028
  %v1031 = vld [vmem:[%s6] sm:$0xf]
  %v1032 = vld [vmem:[%s6 + $0x4] sm:$0xf]
  %v1033 = vld [vmem:[%s6 + $0x8] sm:$0xf]
  %v1034 = vld [vmem:[%s6 + $0xc] sm:$0xf]
  %v1035 = vld [vmem:[%s7] sm:$0x1]
  %v1037 = vlaneseq
  %v1038 = vshrl.u32 %v1037, 7
  %v1039 = vsub.s32 0, %v1038
  %v1040 = vrot.slane %v1035, %v1039
  %v1046 = vunpack.c.l.b16 %v1031
  %v1047 = vunpack.c.l.b16 %v1032
  %v1048 = vunpack.c.l.b16 %v1033
  %v1049 = vunpack.c.l.b16 %v1034
  %v1050 = vpack.c.b16 %v1047, %v1046
  %v1051 = vpack.c.b16 %v1049, %v1048
  %v1055 = vsel %vm149, %v1030, 0
  %1057 = vmatprep.subr.bf16.mxu0 0
  %1058 = vmatpush1.bf16.msra.mxu0 %v1050
  %1059 = vmatprep.subr.bf16.mxu0 0
  %1060 = vmatpush1.bf16.msra.mxu0 %v1051
  %1061 = vmatprep.subr.bf16.mxu0 0
  %1062 = vmatpush1.bf16.msra.mxu0 0
  %1063 = vmatprep.subr.bf16.mxu0 0
  %1064 = vmatpush1.bf16.msra.mxu0 0
  %1065 = vmatprep.subr.bf16.mxu0 0
  %1066 = vmatpush1.bf16.msra.mxu0 0
  %1067 = vmatprep.subr.bf16.mxu0 0
  %1068 = vmatpush1.bf16.msra.mxu0 0
  %1069 = vmatprep.subr.bf16.mxu0 0
  %1070 = vmatpush1.bf16.msra.mxu0 0
  %1071 = vmatprep.subr.bf16.mxu0 0
  %1072 = vmatpush1.bf16.msra.mxu0 0
  %1073 = vmatprep.subr.bf16.mxu0 0
  %1074 = vmatpush1.bf16.msra.mxu0 0
  %1075 = vmatprep.subr.bf16.mxu0 0
  %1076 = vmatpush1.bf16.msra.mxu0 0
  %1077 = vmatprep.subr.bf16.mxu0 0
  %1078 = vmatpush1.bf16.msra.mxu0 0
  %1079 = vmatprep.subr.bf16.mxu0 0
  %1080 = vmatpush1.bf16.msra.mxu0 0
  %1081 = vmatprep.subr.bf16.mxu0 0
  %1082 = vmatpush1.bf16.msra.mxu0 0
  %1083 = vmatprep.subr.bf16.mxu0 0
  %1084 = vmatpush1.bf16.msra.mxu0 0
  %1085 = vmatprep.subr.bf16.mxu0 0
  %1086 = vmatpush1.bf16.msra.mxu0 0
  %1087 = vmatprep.subr.bf16.mxu0 0
  %1088 = vmatpush1.bf16.msra.mxu0 0
  %1089 = vmatprep.mubr.bf16.mxu0 0
  %1090 = vmatmul.mubr.bf16.gmra.mrb[0].mxu0 %v1055
  %v1091 = vpop.f32.mrb[0].mxu0
  %v1092 = vadd.f32 %v1040, %v1091
  %v1093 = vpop.f32.mrb[0].mxu0
  %v1094 = vpop.f32.mrb[0].mxu0
  %v1095 = vadd.f32 %v1040, %v1094
  %v1096 = vpop.f32.mrb[0].mxu0
  %1097 = vdwg.mxu0
  %v1098 = vadd.f32 %v119, %v1092
  %v1099 = vadd.f32 %v122, %v1095
  %v1100 = vld [vmem:[%s8] sm:$0x1]
  %v1101 = vld [vmem:[%s9] sm:$0x1]
  %v1102 = vsel %vm149, %v1098, 0.0
  %1103 = vadd.xlane.f32.xlu0 %v1102
  %v1104 = vpop.xlane.xlu0 %1103
  %v1105 = vsel %vm149, %v1099, 0.0
  %1106 = vadd.xlane.f32.xlu0 %v1105
  %v1107 = vpop.xlane.xlu0 %1106
  %v1108 = vrcp.pop 32.0
  %v1109 = vmul.f32 %v1104, %v1108
  %v1110 = vmul.f32 %v1107, %v1108
  %v1111 = vsub.f32 %v1098, %v1109
  %v1112 = vsub.f32 %v1099, %v1110
  %v1113 = vmul.f32 %v1111, %v1111
  %v1114 = vmul.f32 %v1112, %v1112
  %v1115 = vsel %vm149, %v1113, 0.0
  %1116 = vadd.xlane.f32.xlu0 %v1115
  %v1117 = vpop.xlane.xlu0 %1116
  %v1118 = vsel %vm149, %v1114, 0.0
  %1119 = vadd.xlane.f32.xlu0 %v1118
  %v1120 = vpop.xlane.xlu0 %1119
  %v1121 = vmul.f32 %v1117, %v1108
  %v1122 = vmul.f32 %v1120, %v1108
  %v1123 = vadd.f32 %v1121, 1e-05
  %v1124 = vadd.f32 %v1122, 1e-05
  %v1125 = vrsqrt.pop %v1123
  %v1126 = vrsqrt.pop %v1124
  %v1127 = vmul.f32 %v1111, %v1125
  %v1128 = vmul.f32 %v1112, %v1126
  %v1130 = vlaneseq
  %v1131 = vshrl.u32 %v1130, 7
  %v1132 = vsub.s32 0, %v1131
  %v1133 = vrot.slane %v1100, %v1132
  %v1135 = vmul.f32 %v1127, %v1133
  %v1136 = vmul.f32 %v1128, %v1133
  %v1138 = vlaneseq
  %v1139 = vshrl.u32 %v1138, 7
  %v1140 = vsub.s32 0, %v1139
  %v1141 = vrot.slane %v1101, %v1140
  %v1143 = vadd.f32 %v1135, %v1141
  %v1144 = vadd.f32 %v1136, %v1141
  %v1145 = vpack.c.bf16 %v1144, %v1143
  %v1146 = vld [vmem:[%s13] sm:$0x1]
  %v1148 = vlaneseq
  %v1149 = vshrl.u32 %v1148, 7
  %v1150 = vsub.s32 0, %v1149
  %v1151 = vrot.slane %v1146, %v1150
  %v1153 = vadd.f32 %v1143, %v1151
  %v1154 = vadd.f32 %v1144, %v1151
  %v1155 = vld [vmem:[%s10] sm:$0xff]
  %v1156 = vld [vmem:[%s10 + $0x8] sm:$0xff]
  %v1157 = vld [vmem:[%s10 + $0x40] sm:$0xff]
  %v1158 = vld [vmem:[%s10 + $0x48] sm:$0xff]
  %v1159 = vld [vmem:[%s10 + $0x80] sm:$0xff]
  %v1160 = vld [vmem:[%s10 + $0x88] sm:$0xff]
  %v1161 = vld [vmem:[%s10 + $0xc0] sm:$0xff]
  %v1162 = vld [vmem:[%s10 + $0xc8] sm:$0xff]
  %v1163 = vld [vmem:[%s11] sm:$0xf]
  %v1165 = vlaneseq
  %v1166 = vshrl.u32 %v1165, 7
  %v1167 = vsub.s32 0, %v1166
  %v1168 = vrot.slane %v1163, %v1167
  %v1169 = vlaneseq
  %v1170 = vshrl.u32 %v1169, 7
  %v1171 = vsub.s32 1, %v1170
  %v1172 = vrot.slane %v1163, %v1171
  %v1173 = vlaneseq
  %v1174 = vshrl.u32 %v1173, 7
  %v1175 = vsub.s32 2, %v1174
  %v1176 = vrot.slane %v1163, %v1175
  %v1177 = vlaneseq
  %v1178 = vshrl.u32 %v1177, 7
  %v1179 = vsub.s32 3, %v1178
  %v1180 = vrot.slane %v1163, %v1179
  %v1193 = vunpack.c.l.b16 %v1155
  %v1194 = vunpack.c.h.b16 %v1155
  %v1195 = vunpack.c.l.b16 %v1156
  %v1196 = vunpack.c.h.b16 %v1156
  %v1197 = vunpack.c.l.b16 %v1157
  %v1198 = vunpack.c.h.b16 %v1157
  %v1199 = vunpack.c.l.b16 %v1158
  %v1200 = vunpack.c.h.b16 %v1158
  %v1201 = vunpack.c.l.b16 %v1159
  %v1202 = vunpack.c.h.b16 %v1159
  %v1203 = vunpack.c.l.b16 %v1160
  %v1204 = vunpack.c.h.b16 %v1160
  %v1205 = vunpack.c.l.b16 %v1161
  %v1206 = vunpack.c.h.b16 %v1161
  %v1207 = vunpack.c.l.b16 %v1162
  %v1208 = vunpack.c.h.b16 %v1162
  %v1209 = vpack.c.b16 %v1197, %v1193
  %v1210 = vpack.c.b16 %v1198, %v1194
  %v1211 = vpack.c.b16 %v1199, %v1195
  %v1212 = vpack.c.b16 %v1200, %v1196
  %v1213 = vpack.c.b16 %v1205, %v1201
  %v1214 = vpack.c.b16 %v1206, %v1202
  %v1215 = vpack.c.b16 %v1207, %v1203
  %v1216 = vpack.c.b16 %v1208, %v1204
  %v1226 = vsel %vm149, %v1145, 0
  %1228 = vmatprep.subr.bf16.mxu0 %v1210
  %1229 = vmatpush1.bf16.msra.mxu0 %v1209
  %1230 = vmatprep.subr.bf16.mxu0 %v1214
  %1231 = vmatpush1.bf16.msra.mxu0 %v1213
  %1232 = vmatprep.subr.bf16.mxu0 0
  %1233 = vmatpush1.bf16.msra.mxu0 0
  %1234 = vmatprep.subr.bf16.mxu0 0
  %1235 = vmatpush1.bf16.msra.mxu0 0
  %1236 = vmatprep.subr.bf16.mxu0 0
  %1237 = vmatpush1.bf16.msra.mxu0 0
  %1238 = vmatprep.subr.bf16.mxu0 0
  %1239 = vmatpush1.bf16.msra.mxu0 0
  %1240 = vmatprep.subr.bf16.mxu0 0
  %1241 = vmatpush1.bf16.msra.mxu0 0
  %1242 = vmatprep.subr.bf16.mxu0 0
  %1243 = vmatpush1.bf16.msra.mxu0 0
  %1244 = vmatprep.subr.bf16.mxu0 0
  %1245 = vmatpush1.bf16.msra.mxu0 0
  %1246 = vmatprep.subr.bf16.mxu0 0
  %1247 = vmatpush1.bf16.msra.mxu0 0
  %1248 = vmatprep.subr.bf16.mxu0 0
  %1249 = vmatpush1.bf16.msra.mxu0 0
  %1250 = vmatprep.subr.bf16.mxu0 0
  %1251 = vmatpush1.bf16.msra.mxu0 0
  %1252 = vmatprep.subr.bf16.mxu0 0
  %1253 = vmatpush1.bf16.msra.mxu0 0
  %1254 = vmatprep.subr.bf16.mxu0 0
  %1255 = vmatpush1.bf16.msra.mxu0 0
  %1256 = vmatprep.subr.bf16.mxu0 0
  %1257 = vmatpush1.bf16.msra.mxu0 0
  %1258 = vmatprep.subr.bf16.mxu0 0
  %1259 = vmatpush1.bf16.msra.mxu0 0
  %1260 = vmatprep.mubr.bf16.mxu0 0
  %1261 = vmatmul.mubr.bf16.gmra.mrb[0].mxu0 %v1226
  %v1262 = vpop.f32.mrb[0].mxu0
  %v1263 = vadd.f32 %v1168, %v1262
  %v1264 = vpop.f32.mrb[0].mxu0
  %v1265 = vadd.f32 %v1172, %v1264
  %v1266 = vpop.f32.mrb[0].mxu0
  %v1267 = vadd.f32 %v1168, %v1266
  %v1268 = vpop.f32.mrb[0].mxu0
  %v1269 = vadd.f32 %v1172, %v1268
  %1270 = vdwg.mxu0
  %1271 = vmatprep.subr.bf16.mxu0 %v1212
  %1272 = vmatpush1.bf16.msra.mxu0 %v1211
  %1273 = vmatprep.subr.bf16.mxu0 %v1216
  %1274 = vmatpush1.bf16.msra.mxu0 %v1215
  %1275 = vmatprep.subr.bf16.mxu0 0
  %1276 = vmatpush1.bf16.msra.mxu0 0
  %1277 = vmatprep.subr.bf16.mxu0 0
  %1278 = vmatpush1.bf16.msra.mxu0 0
  %1279 = vmatprep.subr.bf16.mxu0 0
  %1280 = vmatpush1.bf16.msra.mxu0 0
  %1281 = vmatprep.subr.bf16.mxu0 0
  %1282 = vmatpush1.bf16.msra.mxu0 0
  %1283 = vmatprep.subr.bf16.mxu0 0
  %1284 = vmatpush1.bf16.msra.mxu0 0
  %1285 = vmatprep.subr.bf16.mxu0 0
  %1286 = vmatpush1.bf16.msra.mxu0 0
  %1287 = vmatprep.subr.bf16.mxu0 0
  %1288 = vmatpush1.bf16.msra.mxu0 0
  %1289 = vmatprep.subr.bf16.mxu0 0
  %1290 = vmatpush1.bf16.msra.mxu0 0
  %1291 = vmatprep.subr.bf16.mxu0 0
  %1292 = vmatpush1.bf16.msra.mxu0 0
  %1293 = vmatprep.subr.bf16.mxu0 0
  %1294 = vmatpush1.bf16.msra.mxu0 0
  %1295 = vmatprep.subr.bf16.mxu0 0
  %1296 = vmatpush1.bf16.msra.mxu0 0
  %1297 = vmatprep.subr.bf16.mxu0 0
  %1298 = vmatpush1.bf16.msra.mxu0 0
  %1299 = vmatprep.subr.bf16.mxu0 0
  %1300 = vmatpush1.bf16.msra.mxu0 0
  %1301 = vmatprep.subr.bf16.mxu0 0
  %1302 = vmatpush1.bf16.msra.mxu0 0
  %1303 = vmatprep.mubr.bf16.mxu0 0
  %1304 = vmatmul.mubr.bf16.gmra.mrb[0].mxu0 %v1226
  %v1305 = vpop.f32.mrb[0].mxu0
  %v1306 = vadd.f32 %v1176, %v1305
  %v1307 = vpop.f32.mrb[0].mxu0
  %v1308 = vadd.f32 %v1180, %v1307
  %v1309 = vpop.f32.mrb[0].mxu0
  %v1310 = vadd.f32 %v1176, %v1309
  %v1311 = vpop.f32.mrb[0].mxu0
  %v1312 = vadd.f32 %v1180, %v1311
  %1313 = vdwg.mxu0
  %v1314 = vmax.f32 %v1263, 0.0
  %v1315 = vmax.f32 %v1265, 0.0
  %v1316 = vmax.f32 %v1306, 0.0
  %v1317 = vmax.f32 %v1308, 0.0
  %v1318 = vmax.f32 %v1267, 0.0
  %v1319 = vmax.f32 %v1269, 0.0
  %v1320 = vmax.f32 %v1310, 0.0
  %v1321 = vmax.f32 %v1312, 0.0
  %v1322 = vpack.c.bf16 %v1318, %v1314
  %v1323 = vpack.c.bf16 %v1319, %v1315
  %v1324 = vpack.c.bf16 %v1320, %v1316
  %v1325 = vpack.c.bf16 %v1321, %v1317
  %v1326 = vld [vmem:[%s12] sm:$0xf]
  %v1327 = vld [vmem:[%s12 + $0x4] sm:$0xf]
  %v1328 = vld [vmem:[%s12 + $0x8] sm:$0xf]
  %v1329 = vld [vmem:[%s12 + $0xc] sm:$0xf]
  %v1330 = vld [vmem:[%s12 + $0x10] sm:$0xf]
  %v1331 = vld [vmem:[%s12 + $0x14] sm:$0xf]
  %v1332 = vld [vmem:[%s12 + $0x18] sm:$0xf]
  %v1333 = vld [vmem:[%s12 + $0x1c] sm:$0xf]
  %v1334 = vld [vmem:[%s12 + $0x20] sm:$0xf]
  %v1335 = vld [vmem:[%s12 + $0x24] sm:$0xf]
  %v1336 = vld [vmem:[%s12 + $0x28] sm:$0xf]
  %v1337 = vld [vmem:[%s12 + $0x2c] sm:$0xf]
  %v1338 = vld [vmem:[%s12 + $0x30] sm:$0xf]
  %v1339 = vld [vmem:[%s12 + $0x34] sm:$0xf]
  %v1340 = vld [vmem:[%s12 + $0x38] sm:$0xf]
  %v1341 = vld [vmem:[%s12 + $0x3c] sm:$0xf]
  %v1342 = vld [vmem:[%s12 + $0x40] sm:$0xf]
  %v1343 = vld [vmem:[%s12 + $0x44] sm:$0xf]
  %v1344 = vld [vmem:[%s12 + $0x48] sm:$0xf]
  %v1345 = vld [vmem:[%s12 + $0x4c] sm:$0xf]
  %v1346 = vld [vmem:[%s12 + $0x50] sm:$0xf]
  %v1347 = vld [vmem:[%s12 + $0x54] sm:$0xf]
  %v1348 = vld [vmem:[%s12 + $0x58] sm:$0xf]
  %v1349 = vld [vmem:[%s12 + $0x5c] sm:$0xf]
  %v1350 = vld [vmem:[%s12 + $0x60] sm:$0xf]
  %v1351 = vld [vmem:[%s12 + $0x64] sm:$0xf]
  %v1352 = vld [vmem:[%s12 + $0x68] sm:$0xf]
  %v1353 = vld [vmem:[%s12 + $0x6c] sm:$0xf]
  %v1354 = vld [vmem:[%s12 + $0x70] sm:$0xf]
  %v1355 = vld [vmem:[%s12 + $0x74] sm:$0xf]
  %v1356 = vld [vmem:[%s12 + $0x78] sm:$0xf]
  %v1357 = vld [vmem:[%s12 + $0x7c] sm:$0xf]
  %v1358 = vld [vmem:[%s12 + $0x80] sm:$0xf]
  %v1359 = vld [vmem:[%s12 + $0x84] sm:$0xf]
  %v1360 = vld [vmem:[%s12 + $0x88] sm:$0xf]
  %v1361 = vld [vmem:[%s12 + $0x8c] sm:$0xf]
  %v1362 = vld [vmem:[%s12 + $0x90] sm:$0xf]
  %v1363 = vld [vmem:[%s12 + $0x94] sm:$0xf]
  %v1364 = vld [vmem:[%s12 + $0x98] sm:$0xf]
  %v1365 = vld [vmem:[%s12 + $0x9c] sm:$0xf]
  %v1366 = vld [vmem:[%s12 + $0xa0] sm:$0xf]
  %v1367 = vld [vmem:[%s12 + $0xa4] sm:$0xf]
  %v1368 = vld [vmem:[%s12 + $0xa8] sm:$0xf]
  %v1369 = vld [vmem:[%s12 + $0xac] sm:$0xf]
  %v1370 = vld [vmem:[%s12 + $0xb0] sm:$0xf]
  %v1371 = vld [vmem:[%s12 + $0xb4] sm:$0xf]
  %v1372 = vld [vmem:[%s12 + $0xb8] sm:$0xf]
  %v1373 = vld [vmem:[%s12 + $0xbc] sm:$0xf]
  %v1374 = vld [vmem:[%s12 + $0xc0] sm:$0xf]
  %v1375 = vld [vmem:[%s12 + $0xc4] sm:$0xf]
  %v1376 = vld [vmem:[%s12 + $0xc8] sm:$0xf]
  %v1377 = vld [vmem:[%s12 + $0xcc] sm:$0xf]
  %v1378 = vld [vmem:[%s12 + $0xd0] sm:$0xf]
  %v1379 = vld [vmem:[%s12 + $0xd4] sm:$0xf]
  %v1380 = vld [vmem:[%s12 + $0xd8] sm:$0xf]
  %v1381 = vld [vmem:[%s12 + $0xdc] sm:$0xf]
  %v1382 = vld [vmem:[%s12 + $0xe0] sm:$0xf]
  %v1383 = vld [vmem:[%s12 + $0xe4] sm:$0xf]
  %v1384 = vld [vmem:[%s12 + $0xe8] sm:$0xf]
  %v1385 = vld [vmem:[%s12 + $0xec] sm:$0xf]
  %v1386 = vld [vmem:[%s12 + $0xf0] sm:$0xf]
  %v1387 = vld [vmem:[%s12 + $0xf4] sm:$0xf]
  %v1388 = vld [vmem:[%s12 + $0xf8] sm:$0xf]
  %v1389 = vld [vmem:[%s12 + $0xfc] sm:$0xf]
  %v1454 = vunpack.c.l.b16 %v1326
  %v1455 = vunpack.c.l.b16 %v1327
  %v1456 = vunpack.c.l.b16 %v1328
  %v1457 = vunpack.c.l.b16 %v1329
  %v1458 = vunpack.c.l.b16 %v1330
  %v1459 = vunpack.c.l.b16 %v1331
  %v1460 = vunpack.c.l.b16 %v1332
  %v1461 = vunpack.c.l.b16 %v1333
  %v1462 = vunpack.c.l.b16 %v1334
  %v1463 = vunpack.c.l.b16 %v1335
  %v1464 = vunpack.c.l.b16 %v1336
  %v1465 = vunpack.c.l.b16 %v1337
  %v1466 = vunpack.c.l.b16 %v1338
  %v1467 = vunpack.c.l.b16 %v1339
  %v1468 = vunpack.c.l.b16 %v1340
  %v1469 = vunpack.c.l.b16 %v1341
  %v1470 = vunpack.c.l.b16 %v1342
  %v1471 = vunpack.c.l.b16 %v1343
  %v1472 = vunpack.c.l.b16 %v1344
  %v1473 = vunpack.c.l.b16 %v1345
  %v1474 = vunpack.c.l.b16 %v1346
  %v1475 = vunpack.c.l.b16 %v1347
  %v1476 = vunpack.c.l.b16 %v1348
  %v1477 = vunpack.c.l.b16 %v1349
  %v1478 = vunpack.c.l.b16 %v1350
  %v1479 = vunpack.c.l.b16 %v1351
  %v1480 = vunpack.c.l.b16 %v1352
  %v1481 = vunpack.c.l.b16 %v1353
  %v1482 = vunpack.c.l.b16 %v1354
  %v1483 = vunpack.c.l.b16 %v1355
  %v1484 = vunpack.c.l.b16 %v1356
  %v1485 = vunpack.c.l.b16 %v1357
  %v1486 = vunpack.c.l.b16 %v1358
  %v1487 = vunpack.c.l.b16 %v1359
  %v1488 = vunpack.c.l.b16 %v1360
  %v1489 = vunpack.c.l.b16 %v1361
  %v1490 = vunpack.c.l.b16 %v1362
  %v1491 = vunpack.c.l.b16 %v1363
  %v1492 = vunpack.c.l.b16 %v1364
  %v1493 = vunpack.c.l.b16 %v1365
  %v1494 = vunpack.c.l.b16 %v1366
  %v1495 = vunpack.c.l.b16 %v1367
  %v1496 = vunpack.c.l.b16 %v1368
  %v1497 = vunpack.c.l.b16 %v1369
  %v1498 = vunpack.c.l.b16 %v1370
  %v1499 = vunpack.c.l.b16 %v1371
  %v1500 = vunpack.c.l.b16 %v1372
  %v1501 = vunpack.c.l.b16 %v1373
  %v1502 = vunpack.c.l.b16 %v1374
  %v1503 = vunpack.c.l.b16 %v1375
  %v1504 = vunpack.c.l.b16 %v1376
  %v1505 = vunpack.c.l.b16 %v1377
  %v1506 = vunpack.c.l.b16 %v1378
  %v1507 = vunpack.c.l.b16 %v1379
  %v1508 = vunpack.c.l.b16 %v1380
  %v1509 = vunpack.c.l.b16 %v1381
  %v1510 = vunpack.c.l.b16 %v1382
  %v1511 = vunpack.c.l.b16 %v1383
  %v1512 = vunpack.c.l.b16 %v1384
  %v1513 = vunpack.c.l.b16 %v1385
  %v1514 = vunpack.c.l.b16 %v1386
  %v1515 = vunpack.c.l.b16 %v1387
  %v1516 = vunpack.c.l.b16 %v1388
  %v1517 = vunpack.c.l.b16 %v1389
  %v1518 = vpack.c.b16 %v1455, %v1454
  %v1519 = vpack.c.b16 %v1457, %v1456
  %v1520 = vpack.c.b16 %v1459, %v1458
  %v1521 = vpack.c.b16 %v1461, %v1460
  %v1522 = vpack.c.b16 %v1463, %v1462
  %v1523 = vpack.c.b16 %v1465, %v1464
  %v1524 = vpack.c.b16 %v1467, %v1466
  %v1525 = vpack.c.b16 %v1469, %v1468
  %v1526 = vpack.c.b16 %v1471, %v1470
  %v1527 = vpack.c.b16 %v1473, %v1472
  %v1528 = vpack.c.b16 %v1475, %v1474
  %v1529 = vpack.c.b16 %v1477, %v1476
  %v1530 = vpack.c.b16 %v1479, %v1478
  %v1531 = vpack.c.b16 %v1481, %v1480
  %v1532 = vpack.c.b16 %v1483, %v1482
  %v1533 = vpack.c.b16 %v1485, %v1484
  %v1534 = vpack.c.b16 %v1487, %v1486
  %v1535 = vpack.c.b16 %v1489, %v1488
  %v1536 = vpack.c.b16 %v1491, %v1490
  %v1537 = vpack.c.b16 %v1493, %v1492
  %v1538 = vpack.c.b16 %v1495, %v1494
  %v1539 = vpack.c.b16 %v1497, %v1496
  %v1540 = vpack.c.b16 %v1499, %v1498
  %v1541 = vpack.c.b16 %v1501, %v1500
  %v1542 = vpack.c.b16 %v1503, %v1502
  %v1543 = vpack.c.b16 %v1505, %v1504
  %v1544 = vpack.c.b16 %v1507, %v1506
  %v1545 = vpack.c.b16 %v1509, %v1508
  %v1546 = vpack.c.b16 %v1511, %v1510
  %v1547 = vpack.c.b16 %v1513, %v1512
  %v1548 = vpack.c.b16 %v1515, %v1514
  %v1549 = vpack.c.b16 %v1517, %v1516
  %1582 = vmatprep.subr.bf16.mxu0 0
  %1583 = vmatpush1.bf16.msra.mxu0 %v1518
  %1584 = vmatprep.subr.bf16.mxu0 0
  %1585 = vmatpush1.bf16.msra.mxu0 %v1519
  %1586 = vmatprep.subr.bf16.mxu0 0
  %1587 = vmatpush1.bf16.msra.mxu0 %v1520
  %1588 = vmatprep.subr.bf16.mxu0 0
  %1589 = vmatpush1.bf16.msra.mxu0 %v1521
  %1590 = vmatprep.subr.bf16.mxu0 0
  %1591 = vmatpush1.bf16.msra.mxu0 %v1522
  %1592 = vmatprep.subr.bf16.mxu0 0
  %1593 = vmatpush1.bf16.msra.mxu0 %v1523
  %1594 = vmatprep.subr.bf16.mxu0 0
  %1595 = vmatpush1.bf16.msra.mxu0 %v1524
  %1596 = vmatprep.subr.bf16.mxu0 0
  %1597 = vmatpush1.bf16.msra.mxu0 %v1525
  %1598 = vmatprep.subr.bf16.mxu0 0
  %1599 = vmatpush1.bf16.msra.mxu0 %v1526
  %1600 = vmatprep.subr.bf16.mxu0 0
  %1601 = vmatpush1.bf16.msra.mxu0 %v1527
  %1602 = vmatprep.subr.bf16.mxu0 0
  %1603 = vmatpush1.bf16.msra.mxu0 %v1528
  %1604 = vmatprep.subr.bf16.mxu0 0
  %1605 = vmatpush1.bf16.msra.mxu0 %v1529
  %1606 = vmatprep.subr.bf16.mxu0 0
  %1607 = vmatpush1.bf16.msra.mxu0 %v1530
  %1608 = vmatprep.subr.bf16.mxu0 0
  %1609 = vmatpush1.bf16.msra.mxu0 %v1531
  %1610 = vmatprep.subr.bf16.mxu0 0
  %1611 = vmatpush1.bf16.msra.mxu0 %v1532
  %1612 = vmatprep.subr.bf16.mxu0 0
  %1613 = vmatpush1.bf16.msra.mxu0 %v1533
  %1614 = vmatprep.mubr.bf16.mxu0 %v1323
  %1615 = vmatmul.mubr.bf16.gmra.mrb[0].mxu0 %v1322
  %v1616 = vpop.f32.mrb[0].mxu0
  %v1617 = vadd.f32 0.0, %v1616
  %v1618 = vpop.f32.mrb[0].mxu0
  %v1619 = vpop.f32.mrb[0].mxu0
  %v1620 = vadd.f32 0.0, %v1619
  %v1621 = vpop.f32.mrb[0].mxu0
  %1622 = vdwg.mxu0
  %1623 = vmatprep.subr.bf16.mxu0 0
  %1624 = vmatpush1.bf16.msra.mxu0 %v1534
  %1625 = vmatprep.subr.bf16.mxu0 0
  %1626 = vmatpush1.bf16.msra.mxu0 %v1535
  %1627 = vmatprep.subr.bf16.mxu0 0
  %1628 = vmatpush1.bf16.msra.mxu0 %v1536
  %1629 = vmatprep.subr.bf16.mxu0 0
  %1630 = vmatpush1.bf16.msra.mxu0 %v1537
  %1631 = vmatprep.subr.bf16.mxu0 0
  %1632 = vmatpush1.bf16.msra.mxu0 %v1538
  %1633 = vmatprep.subr.bf16.mxu0 0
  %1634 = vmatpush1.bf16.msra.mxu0 %v1539
  %1635 = vmatprep.subr.bf16.mxu0 0
  %1636 = vmatpush1.bf16.msra.mxu0 %v1540
  %1637 = vmatprep.subr.bf16.mxu0 0
  %1638 = vmatpush1.bf16.msra.mxu0 %v1541
  %1639 = vmatprep.subr.bf16.mxu0 0
  %1640 = vmatpush1.bf16.msra.mxu0 %v1542
  %1641 = vmatprep.subr.bf16.mxu0 0
  %1642 = vmatpush1.bf16.msra.mxu0 %v1543
  %1643 = vmatprep.subr.bf16.mxu0 0
  %1644 = vmatpush1.bf16.msra.mxu0 %v1544
  %1645 = vmatprep.subr.bf16.mxu0 0
  %1646 = vmatpush1.bf16.msra.mxu0 %v1545
  %1647 = vmatprep.subr.bf16.mxu0 0
  %1648 = vmatpush1.bf16.msra.mxu0 %v1546
  %1649 = vmatprep.subr.bf16.mxu0 0
  %1650 = vmatpush1.bf16.msra.mxu0 %v1547
  %1651 = vmatprep.subr.bf16.mxu0 0
  %1652 = vmatpush1.bf16.msra.mxu0 %v1548
  %1653 = vmatprep.subr.bf16.mxu0 0
  %1654 = vmatpush1.bf16.msra.mxu0 %v1549
  %1655 = vmatprep.mubr.bf16.mxu0 %v1325
  %1656 = vmatmul.mubr.bf16.gmra.mrb[0].mxu0 %v1324
  %v1657 = vpop.f32.mrb[0].mxu0
  %v1658 = vadd.f32 %v1617, %v1657
  %v1659 = vpop.f32.mrb[0].mxu0
  %v1660 = vpop.f32.mrb[0].mxu0
  %v1661 = vadd.f32 %v1620, %v1660
  %v1662 = vpop.f32.mrb[0].mxu0
  %1663 = vdwg.mxu0
  %v1664 = vadd.f32 %v1153, %v1658
  %v1665 = vadd.f32 %v1154, %v1661
  %v1666 = vld [vmem:[%s10 + $0x10] sm:$0xff]
  %v1667 = vld [vmem:[%s10 + $0x18] sm:$0xff]
  %v1668 = vld [vmem:[%s10 + $0x50] sm:$0xff]
  %v1669 = vld [vmem:[%s10 + $0x58] sm:$0xff]
  %v1670 = vld [vmem:[%s10 + $0x90] sm:$0xff]
  %v1671 = vld [vmem:[%s10 + $0x98] sm:$0xff]
  %v1672 = vld [vmem:[%s10 + $0xd0] sm:$0xff]
  %v1673 = vld [vmem:[%s10 + $0xd8] sm:$0xff]
  %v1674 = vld [vmem:[%s11 + $0x4] sm:$0xf]
  %v1676 = vlaneseq
  %v1677 = vshrl.u32 %v1676, 7
  %v1678 = vsub.s32 0, %v1677
  %v1679 = vrot.slane %v1674, %v1678
  %v1680 = vlaneseq
  %v1681 = vshrl.u32 %v1680, 7
  %v1682 = vsub.s32 1, %v1681
  %v1683 = vrot.slane %v1674, %v1682
  %v1684 = vlaneseq
  %v1685 = vshrl.u32 %v1684, 7
  %v1686 = vsub.s32 2, %v1685
  %v1687 = vrot.slane %v1674, %v1686
  %v1688 = vlaneseq
  %v1689 = vshrl.u32 %v1688, 7
  %v1690 = vsub.s32 3, %v1689
  %v1691 = vrot.slane %v1674, %v1690
  %v1704 = vunpack.c.l.b16 %v1666
  %v1705 = vunpack.c.h.b16 %v1666
  %v1706 = vunpack.c.l.b16 %v1667
  %v1707 = vunpack.c.h.b16 %v1667
  %v1708 = vunpack.c.l.b16 %v1668
  %v1709 = vunpack.c.h.b16 %v1668
  %v1710 = vunpack.c.l.b16 %v1669
  %v1711 = vunpack.c.h.b16 %v1669
  %v1712 = vunpack.c.l.b16 %v1670
  %v1713 = vunpack.c.h.b16 %v1670
  %v1714 = vunpack.c.l.b16 %v1671
  %v1715 = vunpack.c.h.b16 %v1671
  %v1716 = vunpack.c.l.b16 %v1672
  %v1717 = vunpack.c.h.b16 %v1672
  %v1718 = vunpack.c.l.b16 %v1673
  %v1719 = vunpack.c.h.b16 %v1673
  %v1720 = vpack.c.b16 %v1708, %v1704
  %v1721 = vpack.c.b16 %v1709, %v1705
  %v1722 = vpack.c.b16 %v1710, %v1706
  %v1723 = vpack.c.b16 %v1711, %v1707
  %v1724 = vpack.c.b16 %v1716, %v1712
  %v1725 = vpack.c.b16 %v1717, %v1713
  %v1726 = vpack.c.b16 %v1718, %v1714
  %v1727 = vpack.c.b16 %v1719, %v1715
  %1736 = vmatprep.subr.bf16.mxu0 %v1721
  %1737 = vmatpush1.bf16.msra.mxu0 %v1720
  %1738 = vmatprep.subr.bf16.mxu0 %v1725
  %1739 = vmatpush1.bf16.msra.mxu0 %v1724
  %1740 = vmatprep.subr.bf16.mxu0 0
  %1741 = vmatpush1.bf16.msra.mxu0 0
  %1742 = vmatprep.subr.bf16.mxu0 0
  %1743 = vmatpush1.bf16.msra.mxu0 0
  %1744 = vmatprep.subr.bf16.mxu0 0
  %1745 = vmatpush1.bf16.msra.mxu0 0
  %1746 = vmatprep.subr.bf16.mxu0 0
  %1747 = vmatpush1.bf16.msra.mxu0 0
  %1748 = vmatprep.subr.bf16.mxu0 0
  %1749 = vmatpush1.bf16.msra.mxu0 0
  %1750 = vmatprep.subr.bf16.mxu0 0
  %1751 = vmatpush1.bf16.msra.mxu0 0
  %1752 = vmatprep.subr.bf16.mxu0 0
  %1753 = vmatpush1.bf16.msra.mxu0 0
  %1754 = vmatprep.subr.bf16.mxu0 0
  %1755 = vmatpush1.bf16.msra.mxu0 0
  %1756 = vmatprep.subr.bf16.mxu0 0
  %1757 = vmatpush1.bf16.msra.mxu0 0
  %1758 = vmatprep.subr.bf16.mxu0 0
  %1759 = vmatpush1.bf16.msra.mxu0 0
  %1760 = vmatprep.subr.bf16.mxu0 0
  %1761 = vmatpush1.bf16.msra.mxu0 0
  %1762 = vmatprep.subr.bf16.mxu0 0
  %1763 = vmatpush1.bf16.msra.mxu0 0
  %1764 = vmatprep.subr.bf16.mxu0 0
  %1765 = vmatpush1.bf16.msra.mxu0 0
  %1766 = vmatprep.subr.bf16.mxu0 0
  %1767 = vmatpush1.bf16.msra.mxu0 0
  %1768 = vmatprep.mubr.bf16.mxu0 0
  %1769 = vmatmul.mubr.bf16.gmra.mrb[0].mxu0 %v1226
  %v1770 = vpop.f32.mrb[0].mxu0
  %v1771 = vadd.f32 %v1679, %v1770
  %v1772 = vpop.f32.mrb[0].mxu0
  %v1773 = vadd.f32 %v1683, %v1772
  %v1774 = vpop.f32.mrb[0].mxu0
  %v1775 = vadd.f32 %v1679, %v1774
  %v1776 = vpop.f32.mrb[0].mxu0
  %v1777 = vadd.f32 %v1683, %v1776
  %1778 = vdwg.mxu0
  %1779 = vmatprep.subr.bf16.mxu0 %v1723
  %1780 = vmatpush1.bf16.msra.mxu0 %v1722
  %1781 = vmatprep.subr.bf16.mxu0 %v1727
  %1782 = vmatpush1.bf16.msra.mxu0 %v1726
  %1783 = vmatprep.subr.bf16.mxu0 0
  %1784 = vmatpush1.bf16.msra.mxu0 0
  %1785 = vmatprep.subr.bf16.mxu0 0
  %1786 = vmatpush1.bf16.msra.mxu0 0
  %1787 = vmatprep.subr.bf16.mxu0 0
  %1788 = vmatpush1.bf16.msra.mxu0 0
  %1789 = vmatprep.subr.bf16.mxu0 0
  %1790 = vmatpush1.bf16.msra.mxu0 0
  %1791 = vmatprep.subr.bf16.mxu0 0
  %1792 = vmatpush1.bf16.msra.mxu0 0
  %1793 = vmatprep.subr.bf16.mxu0 0
  %1794 = vmatpush1.bf16.msra.mxu0 0
  %1795 = vmatprep.subr.bf16.mxu0 0
  %1796 = vmatpush1.bf16.msra.mxu0 0
  %1797 = vmatprep.subr.bf16.mxu0 0
  %1798 = vmatpush1.bf16.msra.mxu0 0
  %1799 = vmatprep.subr.bf16.mxu0 0
  %1800 = vmatpush1.bf16.msra.mxu0 0
  %1801 = vmatprep.subr.bf16.mxu0 0
  %1802 = vmatpush1.bf16.msra.mxu0 0
  %1803 = vmatprep.subr.bf16.mxu0 0
  %1804 = vmatpush1.bf16.msra.mxu0 0
  %1805 = vmatprep.subr.bf16.mxu0 0
  %1806 = vmatpush1.bf16.msra.mxu0 0
  %1807 = vmatprep.subr.bf16.mxu0 0
  %1808 = vmatpush1.bf16.msra.mxu0 0
  %1809 = vmatprep.subr.bf16.mxu0 0
  %1810 = vmatpush1.bf16.msra.mxu0 0
  %1811 = vmatprep.mubr.bf16.mxu0 0
  %1812 = vmatmul.mubr.bf16.gmra.mrb[0].mxu0 %v1226
  %v1813 = vpop.f32.mrb[0].mxu0
  %v1814 = vadd.f32 %v1687, %v1813
  %v1815 = vpop.f32.mrb[0].mxu0
  %v1816 = vadd.f32 %v1691, %v1815
  %v1817 = vpop.f32.mrb[0].mxu0
  %v1818 = vadd.f32 %v1687, %v1817
  %v1819 = vpop.f32.mrb[0].mxu0
  %v1820 = vadd.f32 %v1691, %v1819
  %1821 = vdwg.mxu0
  %v1822 = vmax.f32 %v1771, 0.0
  %v1823 = vmax.f32 %v1773, 0.0
  %v1824 = vmax.f32 %v1814, 0.0
  %v1825 = vmax.f32 %v1816, 0.0
  %v1826 = vmax.f32 %v1775, 0.0
  %v1827 = vmax.f32 %v1777, 0.0
  %v1828 = vmax.f32 %v1818, 0.0
  %v1829 = vmax.f32 %v1820, 0.0
  %v1830 = vpack.c.bf16 %v1826, %v1822
  %v1831 = vpack.c.bf16 %v1827, %v1823
  %v1832 = vpack.c.bf16 %v1828, %v1824
  %v1833 = vpack.c.bf16 %v1829, %v1825
  %v1834 = vld [vmem:[%s12 + $0x100] sm:$0xf]
  %v1835 = vld [vmem:[%s12 + $0x104] sm:$0xf]
  %v1836 = vld [vmem:[%s12 + $0x108] sm:$0xf]
  %v1837 = vld [vmem:[%s12 + $0x10c] sm:$0xf]
  %v1838 = vld [vmem:[%s12 + $0x110] sm:$0xf]
  %v1839 = vld [vmem:[%s12 + $0x114] sm:$0xf]
  %v1840 = vld [vmem:[%s12 + $0x118] sm:$0xf]
  %v1841 = vld [vmem:[%s12 + $0x11c] sm:$0xf]
  %v1842 = vld [vmem:[%s12 + $0x120] sm:$0xf]
  %v1843 = vld [vmem:[%s12 + $0x124] sm:$0xf]
  %v1844 = vld [vmem:[%s12 + $0x128] sm:$0xf]
  %v1845 = vld [vmem:[%s12 + $0x12c] sm:$0xf]
  %v1846 = vld [vmem:[%s12 + $0x130] sm:$0xf]
  %v1847 = vld [vmem:[%s12 + $0x134] sm:$0xf]
  %v1848 = vld [vmem:[%s12 + $0x138] sm:$0xf]
  %v1849 = vld [vmem:[%s12 + $0x13c] sm:$0xf]
  %v1850 = vld [vmem:[%s12 + $0x140] sm:$0xf]
  %v1851 = vld [vmem:[%s12 + $0x144] sm:$0xf]
  %v1852 = vld [vmem:[%s12 + $0x148] sm:$0xf]
  %v1853 = vld [vmem:[%s12 + $0x14c] sm:$0xf]
  %v1854 = vld [vmem:[%s12 + $0x150] sm:$0xf]
  %v1855 = vld [vmem:[%s12 + $0x154] sm:$0xf]
  %v1856 = vld [vmem:[%s12 + $0x158] sm:$0xf]
  %v1857 = vld [vmem:[%s12 + $0x15c] sm:$0xf]
  %v1858 = vld [vmem:[%s12 + $0x160] sm:$0xf]
  %v1859 = vld [vmem:[%s12 + $0x164] sm:$0xf]
  %v1860 = vld [vmem:[%s12 + $0x168] sm:$0xf]
  %v1861 = vld [vmem:[%s12 + $0x16c] sm:$0xf]
  %v1862 = vld [vmem:[%s12 + $0x170] sm:$0xf]
  %v1863 = vld [vmem:[%s12 + $0x174] sm:$0xf]
  %v1864 = vld [vmem:[%s12 + $0x178] sm:$0xf]
  %v1865 = vld [vmem:[%s12 + $0x17c] sm:$0xf]
  %v1866 = vld [vmem:[%s12 + $0x180] sm:$0xf]
  %v1867 = vld [vmem:[%s12 + $0x184] sm:$0xf]
  %v1868 = vld [vmem:[%s12 + $0x188] sm:$0xf]
  %v1869 = vld [vmem:[%s12 + $0x18c] sm:$0xf]
  %v1870 = vld [vmem:[%s12 + $0x190] sm:$0xf]
  %v1871 = vld [vmem:[%s12 + $0x194] sm:$0xf]
  %v1872 = vld [vmem:[%s12 + $0x198] sm:$0xf]
  %v1873 = vld [vmem:[%s12 + $0x19c] sm:$0xf]
  %v1874 = vld [vmem:[%s12 + $0x1a0] sm:$0xf]
  %v1875 = vld [vmem:[%s12 + $0x1a4] sm:$0xf]
  %v1876 = vld [vmem:[%s12 + $0x1a8] sm:$0xf]
  %v1877 = vld [vmem:[%s12 + $0x1ac] sm:$0xf]
  %v1878 = vld [vmem:[%s12 + $0x1b0] sm:$0xf]
  %v1879 = vld [vmem:[%s12 + $0x1b4] sm:$0xf]
  %v1880 = vld [vmem:[%s12 + $0x1b8] sm:$0xf]
  %v1881 = vld [vmem:[%s12 + $0x1bc] sm:$0xf]
  %v1882 = vld [vmem:[%s12 + $0x1c0] sm:$0xf]
  %v1883 = vld [vmem:[%s12 + $0x1c4] sm:$0xf]
  %v1884 = vld [vmem:[%s12 + $0x1c8] sm:$0xf]
  %v1885 = vld [vmem:[%s12 + $0x1cc] sm:$0xf]
  %v1886 = vld [vmem:[%s12 + $0x1d0] sm:$0xf]
  %v1887 = vld [vmem:[%s12 + $0x1d4] sm:$0xf]
  %v1888 = vld [vmem:[%s12 + $0x1d8] sm:$0xf]
  %v1889 = vld [vmem:[%s12 + $0x1dc] sm:$0xf]
  %v1890 = vld [vmem:[%s12 + $0x1e0] sm:$0xf]
  %v1891 = vld [vmem:[%s12 + $0x1e4] sm:$0xf]
  %v1892 = vld [vmem:[%s12 + $0x1e8] sm:$0xf]
  %v1893 = vld [vmem:[%s12 + $0x1ec] sm:$0xf]
  %v1894 = vld [vmem:[%s12 + $0x1f0] sm:$0xf]
  %v1895 = vld [vmem:[%s12 + $0x1f4] sm:$0xf]
  %v1896 = vld [vmem:[%s12 + $0x1f8] sm:$0xf]
  %v1897 = vld [vmem:[%s12 + $0x1fc] sm:$0xf]
  %v1962 = vunpack.c.l.b16 %v1834
  %v1963 = vunpack.c.l.b16 %v1835
  %v1964 = vunpack.c.l.b16 %v1836
  %v1965 = vunpack.c.l.b16 %v1837
  %v1966 = vunpack.c.l.b16 %v1838
  %v1967 = vunpack.c.l.b16 %v1839
  %v1968 = vunpack.c.l.b16 %v1840
  %v1969 = vunpack.c.l.b16 %v1841
  %v1970 = vunpack.c.l.b16 %v1842
  %v1971 = vunpack.c.l.b16 %v1843
  %v1972 = vunpack.c.l.b16 %v1844
  %v1973 = vunpack.c.l.b16 %v1845
  %v1974 = vunpack.c.l.b16 %v1846
  %v1975 = vunpack.c.l.b16 %v1847
  %v1976 = vunpack.c.l.b16 %v1848
  %v1977 = vunpack.c.l.b16 %v1849
  %v1978 = vunpack.c.l.b16 %v1850
  %v1979 = vunpack.c.l.b16 %v1851
  %v1980 = vunpack.c.l.b16 %v1852
  %v1981 = vunpack.c.l.b16 %v1853
  %v1982 = vunpack.c.l.b16 %v1854
  %v1983 = vunpack.c.l.b16 %v1855
  %v1984 = vunpack.c.l.b16 %v1856
  %v1985 = vunpack.c.l.b16 %v1857
  %v1986 = vunpack.c.l.b16 %v1858
  %v1987 = vunpack.c.l.b16 %v1859
  %v1988 = vunpack.c.l.b16 %v1860
  %v1989 = vunpack.c.l.b16 %v1861
  %v1990 = vunpack.c.l.b16 %v1862
  %v1991 = vunpack.c.l.b16 %v1863
  %v1992 = vunpack.c.l.b16 %v1864
  %v1993 = vunpack.c.l.b16 %v1865
  %v1994 = vunpack.c.l.b16 %v1866
  %v1995 = vunpack.c.l.b16 %v1867
  %v1996 = vunpack.c.l.b16 %v1868
  %v1997 = vunpack.c.l.b16 %v1869
  %v1998 = vunpack.c.l.b16 %v1870
  %v1999 = vunpack.c.l.b16 %v1871
  %v2000 = vunpack.c.l.b16 %v1872
  %v2001 = vunpack.c.l.b16 %v1873
  %v2002 = vunpack.c.l.b16 %v1874
  %v2003 = vunpack.c.l.b16 %v1875
  %v2004 = vunpack.c.l.b16 %v1876
  %v2005 = vunpack.c.l.b16 %v1877
  %v2006 = vunpack.c.l.b16 %v1878
  %v2007 = vunpack.c.l.b16 %v1879
  %v2008 = vunpack.c.l.b16 %v1880
  %v2009 = vunpack.c.l.b16 %v1881
  %v2010 = vunpack.c.l.b16 %v1882
  %v2011 = vunpack.c.l.b16 %v1883
  %v2012 = vunpack.c.l.b16 %v1884
  %v2013 = vunpack.c.l.b16 %v1885
  %v2014 = vunpack.c.l.b16 %v1886
  %v2015 = vunpack.c.l.b16 %v1887
  %v2016 = vunpack.c.l.b16 %v1888
  %v2017 = vunpack.c.l.b16 %v1889
  %v2018 = vunpack.c.l.b16 %v1890
  %v2019 = vunpack.c.l.b16 %v1891
  %v2020 = vunpack.c.l.b16 %v1892
  %v2021 = vunpack.c.l.b16 %v1893
  %v2022 = vunpack.c.l.b16 %v1894
  %v2023 = vunpack.c.l.b16 %v1895
  %v2024 = vunpack.c.l.b16 %v1896
  %v2025 = vunpack.c.l.b16 %v1897
  %v2026 = vpack.c.b16 %v1963, %v1962
  %v2027 = vpack.c.b16 %v1965, %v1964
  %v2028 = vpack.c.b16 %v1967, %v1966
  %v2029 = vpack.c.b16 %v1969, %v1968
  %v2030 = vpack.c.b16 %v1971, %v1970
  %v2031 = vpack.c.b16 %v1973, %v1972
  %v2032 = vpack.c.b16 %v1975, %v1974
  %v2033 = vpack.c.b16 %v1977, %v1976
  %v2034 = vpack.c.b16 %v1979, %v1978
  %v2035 = vpack.c.b16 %v1981, %v1980
  %v2036 = vpack.c.b16 %v1983, %v1982
  %v2037 = vpack.c.b16 %v1985, %v1984
  %v2038 = vpack.c.b16 %v1987, %v1986
  %v2039 = vpack.c.b16 %v1989, %v1988
  %v2040 = vpack.c.b16 %v1991, %v1990
  %v2041 = vpack.c.b16 %v1993, %v1992
  %v2042 = vpack.c.b16 %v1995, %v1994
  %v2043 = vpack.c.b16 %v1997, %v1996
  %v2044 = vpack.c.b16 %v1999, %v1998
  %v2045 = vpack.c.b16 %v2001, %v2000
  %v2046 = vpack.c.b16 %v2003, %v2002
  %v2047 = vpack.c.b16 %v2005, %v2004
  %v2048 = vpack.c.b16 %v2007, %v2006
  %v2049 = vpack.c.b16 %v2009, %v2008
  %v2050 = vpack.c.b16 %v2011, %v2010
  %v2051 = vpack.c.b16 %v2013, %v2012
  %v2052 = vpack.c.b16 %v2015, %v2014
  %v2053 = vpack.c.b16 %v2017, %v2016
  %v2054 = vpack.c.b16 %v2019, %v2018
  %v2055 = vpack.c.b16 %v2021, %v2020
  %v2056 = vpack.c.b16 %v2023, %v2022
  %v2057 = vpack.c.b16 %v2025, %v2024
  %2090 = vmatprep.subr.bf16.mxu0 0
  %2091 = vmatpush1.bf16.msra.mxu0 %v2026
  %2092 = vmatprep.subr.bf16.mxu0 0
  %2093 = vmatpush1.bf16.msra.mxu0 %v2027
  %2094 = vmatprep.subr.bf16.mxu0 0
  %2095 = vmatpush1.bf16.msra.mxu0 %v2028
  %2096 = vmatprep.subr.bf16.mxu0 0
  %2097 = vmatpush1.bf16.msra.mxu0 %v2029
  %2098 = vmatprep.subr.bf16.mxu0 0
  %2099 = vmatpush1.bf16.msra.mxu0 %v2030
  %2100 = vmatprep.subr.bf16.mxu0 0
  %2101 = vmatpush1.bf16.msra.mxu0 %v2031
  %2102 = vmatprep.subr.bf16.mxu0 0
  %2103 = vmatpush1.bf16.msra.mxu0 %v2032
  %2104 = vmatprep.subr.bf16.mxu0 0
  %2105 = vmatpush1.bf16.msra.mxu0 %v2033
  %2106 = vmatprep.subr.bf16.mxu0 0
  %2107 = vmatpush1.bf16.msra.mxu0 %v2034
  %2108 = vmatprep.subr.bf16.mxu0 0
  %2109 = vmatpush1.bf16.msra.mxu0 %v2035
  %2110 = vmatprep.subr.bf16.mxu0 0
  %2111 = vmatpush1.bf16.msra.mxu0 %v2036
  %2112 = vmatprep.subr.bf16.mxu0 0
  %2113 = vmatpush1.bf16.msra.mxu0 %v2037
  %2114 = vmatprep.subr.bf16.mxu0 0
  %2115 = vmatpush1.bf16.msra.mxu0 %v2038
  %2116 = vmatprep.subr.bf16.mxu0 0
  %2117 = vmatpush1.bf16.msra.mxu0 %v2039
  %2118 = vmatprep.subr.bf16.mxu0 0
  %2119 = vmatpush1.bf16.msra.mxu0 %v2040
  %2120 = vmatprep.subr.bf16.mxu0 0
  %2121 = vmatpush1.bf16.msra.mxu0 %v2041
  %2122 = vmatprep.mubr.bf16.mxu0 %v1831
  %2123 = vmatmul.mubr.bf16.gmra.mrb[0].mxu0 %v1830
  %v2124 = vpop.f32.mrb[0].mxu0
  %v2125 = vadd.f32 0.0, %v2124
  %v2126 = vpop.f32.mrb[0].mxu0
  %v2127 = vpop.f32.mrb[0].mxu0
  %v2128 = vadd.f32 0.0, %v2127
  %v2129 = vpop.f32.mrb[0].mxu0
  %2130 = vdwg.mxu0
  %2131 = vmatprep.subr.bf16.mxu0 0
  %2132 = vmatpush1.bf16.msra.mxu0 %v2042
  %2133 = vmatprep.subr.bf16.mxu0 0
  %2134 = vmatpush1.bf16.msra.mxu0 %v2043
  %2135 = vmatprep.subr.bf16.mxu0 0
  %2136 = vmatpush1.bf16.msra.mxu0 %v2044
  %2137 = vmatprep.subr.bf16.mxu0 0
  %2138 = vmatpush1.bf16.msra.mxu0 %v2045
  %2139 = vmatprep.subr.bf16.mxu0 0
  %2140 = vmatpush1.bf16.msra.mxu0 %v2046
  %2141 = vmatprep.subr.bf16.mxu0 0
  %2142 = vmatpush1.bf16.msra.mxu0 %v2047
  %2143 = vmatprep.subr.bf16.mxu0 0
  %2144 = vmatpush1.bf16.msra.mxu0 %v2048
  %2145 = vmatprep.subr.bf16.mxu0 0
  %2146 = vmatpush1.bf16.msra.mxu0 %v2049
  %2147 = vmatprep.subr.bf16.mxu0 0
  %2148 = vmatpush1.bf16.msra.mxu0 %v2050
  %2149 = vmatprep.subr.bf16.mxu0 0
  %2150 = vmatpush1.bf16.msra.mxu0 %v2051
  %2151 = vmatprep.subr.bf16.mxu0 0
  %2152 = vmatpush1.bf16.msra.mxu0 %v2052
  %2153 = vmatprep.subr.bf16.mxu0 0
  %2154 = vmatpush1.bf16.msra.mxu0 %v2053
  %2155 = vmatprep.subr.bf16.mxu0 0
  %2156 = vmatpush1.bf16.msra.mxu0 %v2054
  %2157 = vmatprep.subr.bf16.mxu0 0
  %2158 = vmatpush1.bf16.msra.mxu0 %v2055
  %2159 = vmatprep.subr.bf16.mxu0 0
  %2160 = vmatpush1.bf16.msra.mxu0 %v2056
  %2161 = vmatprep.subr.bf16.mxu0 0
  %2162 = vmatpush1.bf16.msra.mxu0 %v2057
  %2163 = vmatprep.mubr.bf16.mxu0 %v1833
  %2164 = vmatmul.mubr.bf16.gmra.mrb[0].mxu0 %v1832
  %v2165 = vpop.f32.mrb[0].mxu0
  %v2166 = vadd.f32 %v2125, %v2165
  %v2167 = vpop.f32.mrb[0].mxu0
  %v2168 = vpop.f32.mrb[0].mxu0
  %v2169 = vadd.f32 %v2128, %v2168
  %v2170 = vpop.f32.mrb[0].mxu0
  %2171 = vdwg.mxu0
  %v2172 = vadd.f32 %v1664, %v2166
  %v2173 = vadd.f32 %v1665, %v2169
  %v2174 = vld [vmem:[%s10 + $0x20] sm:$0xff]
  %v2175 = vld [vmem:[%s10 + $0x28] sm:$0xff]
  %v2176 = vld [vmem:[%s10 + $0x60] sm:$0xff]
  %v2177 = vld [vmem:[%s10 + $0x68] sm:$0xff]
  %v2178 = vld [vmem:[%s10 + $0xa0] sm:$0xff]
  %v2179 = vld [vmem:[%s10 + $0xa8] sm:$0xff]
  %v2180 = vld [vmem:[%s10 + $0xe0] sm:$0xff]
  %v2181 = vld [vmem:[%s10 + $0xe8] sm:$0xff]
  %v2182 = vld [vmem:[%s11 + $0x8] sm:$0xf]
  %v2184 = vlaneseq
  %v2185 = vshrl.u32 %v2184, 7
  %v2186 = vsub.s32 0, %v2185
  %v2187 = vrot.slane %v2182, %v2186
  %v2188 = vlaneseq
  %v2189 = vshrl.u32 %v2188, 7
  %v2190 = vsub.s32 1, %v2189
  %v2191 = vrot.slane %v2182, %v2190
  %v2192 = vlaneseq
  %v2193 = vshrl.u32 %v2192, 7
  %v2194 = vsub.s32 2, %v2193
  %v2195 = vrot.slane %v2182, %v2194
  %v2196 = vlaneseq
  %v2197 = vshrl.u32 %v2196, 7
  %v2198 = vsub.s32 3, %v2197
  %v2199 = vrot.slane %v2182, %v2198
  %v2212 = vunpack.c.l.b16 %v2174
  %v2213 = vunpack.c.h.b16 %v2174
  %v2214 = vunpack.c.l.b16 %v2175
  %v2215 = vunpack.c.h.b16 %v2175
  %v2216 = vunpack.c.l.b16 %v2176
  %v2217 = vunpack.c.h.b16 %v2176
  %v2218 = vunpack.c.l.b16 %v2177
  %v2219 = vunpack.c.h.b16 %v2177
  %v2220 = vunpack.c.l.b16 %v2178
  %v2221 = vunpack.c.h.b16 %v2178
  %v2222 = vunpack.c.l.b16 %v2179
  %v2223 = vunpack.c.h.b16 %v2179
  %v2224 = vunpack.c.l.b16 %v2180
  %v2225 = vunpack.c.h.b16 %v2180
  %v2226 = vunpack.c.l.b16 %v2181
  %v2227 = vunpack.c.h.b16 %v2181
  %v2228 = vpack.c.b16 %v2216, %v2212
  %v2229 = vpack.c.b16 %v2217, %v2213
  %v2230 = vpack.c.b16 %v2218, %v2214
  %v2231 = vpack.c.b16 %v2219, %v2215
  %v2232 = vpack.c.b16 %v2224, %v2220
  %v2233 = vpack.c.b16 %v2225, %v2221
  %v2234 = vpack.c.b16 %v2226, %v2222
  %v2235 = vpack.c.b16 %v2227, %v2223
  %2244 = vmatprep.subr.bf16.mxu0 %v2229
  %2245 = vmatpush1.bf16.msra.mxu0 %v2228
  %2246 = vmatprep.subr.bf16.mxu0 %v2233
  %2247 = vmatpush1.bf16.msra.mxu0 %v2232
  %2248 = vmatprep.subr.bf16.mxu0 0
  %2249 = vmatpush1.bf16.msra.mxu0 0
  %2250 = vmatprep.subr.bf16.mxu0 0
  %2251 = vmatpush1.bf16.msra.mxu0 0
  %2252 = vmatprep.subr.bf16.mxu0 0
  %2253 = vmatpush1.bf16.msra.mxu0 0
  %2254 = vmatprep.subr.bf16.mxu0 0
  %2255 = vmatpush1.bf16.msra.mxu0 0
  %2256 = vmatprep.subr.bf16.mxu0 0
  %2257 = vmatpush1.bf16.msra.mxu0 0
  %2258 = vmatprep.subr.bf16.mxu0 0
  %2259 = vmatpush1.bf16.msra.mxu0 0
  %2260 = vmatprep.subr.bf16.mxu0 0
  %2261 = vmatpush1.bf16.msra.mxu0 0
  %2262 = vmatprep.subr.bf16.mxu0 0
  %2263 = vmatpush1.bf16.msra.mxu0 0
  %2264 = vmatprep.subr.bf16.mxu0 0
  %2265 = vmatpush1.bf16.msra.mxu0 0
  %2266 = vmatprep.subr.bf16.mxu0 0
  %2267 = vmatpush1.bf16.msra.mxu0 0
  %2268 = vmatprep.subr.bf16.mxu0 0
  %2269 = vmatpush1.bf16.msra.mxu0 0
  %2270 = vmatprep.subr.bf16.mxu0 0
  %2271 = vmatpush1.bf16.msra.mxu0 0
  %2272 = vmatprep.subr.bf16.mxu0 0
  %2273 = vmatpush1.bf16.msra.mxu0 0
  %2274 = vmatprep.subr.bf16.mxu0 0
  %2275 = vmatpush1.bf16.msra.mxu0 0
  %2276 = vmatprep.mubr.bf16.mxu0 0
  %2277 = vmatmul.mubr.bf16.gmra.mrb[0].mxu0 %v1226
  %v2278 = vpop.f32.mrb[0].mxu0
  %v2279 = vadd.f32 %v2187, %v2278
  %v2280 = vpop.f32.mrb[0].mxu0
  %v2281 = vadd.f32 %v2191, %v2280
  %v2282 = vpop.f32.mrb[0].mxu0
  %v2283 = vadd.f32 %v2187, %v2282
  %v2284 = vpop.f32.mrb[0].mxu0
  %v2285 = vadd.f32 %v2191, %v2284
  %2286 = vdwg.mxu0
  %2287 = vmatprep.subr.bf16.mxu0 %v2231
  %2288 = vmatpush1.bf16.msra.mxu0 %v2230
  %2289 = vmatprep.subr.bf16.mxu0 %v2235
  %2290 = vmatpush1.bf16.msra.mxu0 %v2234
  %2291 = vmatprep.subr.bf16.mxu0 0
  %2292 = vmatpush1.bf16.msra.mxu0 0
  %2293 = vmatprep.subr.bf16.mxu0 0
  %2294 = vmatpush1.bf16.msra.mxu0 0
  %2295 = vmatprep.subr.bf16.mxu0 0
  %2296 = vmatpush1.bf16.msra.mxu0 0
  %2297 = vmatprep.subr.bf16.mxu0 0
  %2298 = vmatpush1.bf16.msra.mxu0 0
  %2299 = vmatprep.subr.bf16.mxu0 0
  %2300 = vmatpush1.bf16.msra.mxu0 0
  %2301 = vmatprep.subr.bf16.mxu0 0
  %2302 = vmatpush1.bf16.msra.mxu0 0
  %2303 = vmatprep.subr.bf16.mxu0 0
  %2304 = vmatpush1.bf16.msra.mxu0 0
  %2305 = vmatprep.subr.bf16.mxu0 0
  %2306 = vmatpush1.bf16.msra.mxu0 0
  %2307 = vmatprep.subr.bf16.mxu0 0
  %2308 = vmatpush1.bf16.msra.mxu0 0
  %2309 = vmatprep.subr.bf16.mxu0 0
  %2310 = vmatpush1.bf16.msra.mxu0 0
  %2311 = vmatprep.subr.bf16.mxu0 0
  %2312 = vmatpush1.bf16.msra.mxu0 0
  %2313 = vmatprep.subr.bf16.mxu0 0
  %2314 = vmatpush1.bf16.msra.mxu0 0
  %2315 = vmatprep.subr.bf16.mxu0 0
  %2316 = vmatpush1.bf16.msra.mxu0 0
  %2317 = vmatprep.subr.bf16.mxu0 0
  %2318 = vmatpush1.bf16.msra.mxu0 0
  %2319 = vmatprep.mubr.bf16.mxu0 0
  %2320 = vmatmul.mubr.bf16.gmra.mrb[0].mxu0 %v1226
  %v2321 = vpop.f32.mrb[0].mxu0
  %v2322 = vadd.f32 %v2195, %v2321
  %v2323 = vpop.f32.mrb[0].mxu0
  %v2324 = vadd.f32 %v2199, %v2323
  %v2325 = vpop.f32.mrb[0].mxu0
  %v2326 = vadd.f32 %v2195, %v2325
  %v2327 = vpop.f32.mrb[0].mxu0
  %v2328 = vadd.f32 %v2199, %v2327
  %2329 = vdwg.mxu0
  %v2330 = vmax.f32 %v2279, 0.0
  %v2331 = vmax.f32 %v2281, 0.0
  %v2332 = vmax.f32 %v2322, 0.0
  %v2333 = vmax.f32 %v2324, 0.0
  %v2334 = vmax.f32 %v2283, 0.0
  %v2335 = vmax.f32 %v2285, 0.0
  %v2336 = vmax.f32 %v2326, 0.0
  %v2337 = vmax.f32 %v2328, 0.0
  %v2338 = vpack.c.bf16 %v2334, %v2330
  %v2339 = vpack.c.bf16 %v2335, %v2331
  %v2340 = vpack.c.bf16 %v2336, %v2332
  %v2341 = vpack.c.bf16 %v2337, %v2333
  %v2342 = vld [vmem:[%s12 + $0x200] sm:$0xf]
  %v2343 = vld [vmem:[%s12 + $0x204] sm:$0xf]
  %v2344 = vld [vmem:[%s12 + $0x208] sm:$0xf]
  %v2345 = vld [vmem:[%s12 + $0x20c] sm:$0xf]
  %v2346 = vld [vmem:[%s12 + $0x210] sm:$0xf]
  %v2347 = vld [vmem:[%s12 + $0x214] sm:$0xf]
  %v2348 = vld [vmem:[%s12 + $0x218] sm:$0xf]
  %v2349 = vld [vmem:[%s12 + $0x21c] sm:$0xf]
  %v2350 = vld [vmem:[%s12 + $0x220] sm:$0xf]
  %v2351 = vld [vmem:[%s12 + $0x224] sm:$0xf]
  %v2352 = vld [vmem:[%s12 + $0x228] sm:$0xf]
  %v2353 = vld [vmem:[%s12 + $0x22c] sm:$0xf]
  %v2354 = vld [vmem:[%s12 + $0x230] sm:$0xf]
  %v2355 = vld [vmem:[%s12 + $0x234] sm:$0xf]
  %v2356 = vld [vmem:[%s12 + $0x238] sm:$0xf]
  %v2357 = vld [vmem:[%s12 + $0x23c] sm:$0xf]
  %v2358 = vld [vmem:[%s12 + $0x240] sm:$0xf]
  %v2359 = vld [vmem:[%s12 + $0x244] sm:$0xf]
  %v2360 = vld [vmem:[%s12 + $0x248] sm:$0xf]
  %v2361 = vld [vmem:[%s12 + $0x24c] sm:$0xf]
  %v2362 = vld [vmem:[%s12 + $0x250] sm:$0xf]
  %v2363 = vld [vmem:[%s12 + $0x254] sm:$0xf]
  %v2364 = vld [vmem:[%s12 + $0x258] sm:$0xf]
  %v2365 = vld [vmem:[%s12 + $0x25c] sm:$0xf]
  %v2366 = vld [vmem:[%s12 + $0x260] sm:$0xf]
  %v2367 = vld [vmem:[%s12 + $0x264] sm:$0xf]
  %v2368 = vld [vmem:[%s12 + $0x268] sm:$0xf]
  %v2369 = vld [vmem:[%s12 + $0x26c] sm:$0xf]
  %v2370 = vld [vmem:[%s12 + $0x270] sm:$0xf]
  %v2371 = vld [vmem:[%s12 + $0x274] sm:$0xf]
  %v2372 = vld [vmem:[%s12 + $0x278] sm:$0xf]
  %v2373 = vld [vmem:[%s12 + $0x27c] sm:$0xf]
  %v2374 = vld [vmem:[%s12 + $0x280] sm:$0xf]
  %v2375 = vld [vmem:[%s12 + $0x284] sm:$0xf]
  %v2376 = vld [vmem:[%s12 + $0x288] sm:$0xf]
  %v2377 = vld [vmem:[%s12 + $0x28c] sm:$0xf]
  %v2378 = vld [vmem:[%s12 + $0x290] sm:$0xf]
  %v2379 = vld [vmem:[%s12 + $0x294] sm:$0xf]
  %v2380 = vld [vmem:[%s12 + $0x298] sm:$0xf]
  %v2381 = vld [vmem:[%s12 + $0x29c] sm:$0xf]
  %v2382 = vld [vmem:[%s12 + $0x2a0] sm:$0xf]
  %v2383 = vld [vmem:[%s12 + $0x2a4] sm:$0xf]
  %v2384 = vld [vmem:[%s12 + $0x2a8] sm:$0xf]
  %v2385 = vld [vmem:[%s12 + $0x2ac] sm:$0xf]
  %v2386 = vld [vmem:[%s12 + $0x2b0] sm:$0xf]
  %v2387 = vld [vmem:[%s12 + $0x2b4] sm:$0xf]
  %v2388 = vld [vmem:[%s12 + $0x2b8] sm:$0xf]
  %v2389 = vld [vmem:[%s12 + $0x2bc] sm:$0xf]
  %v2390 = vld [vmem:[%s12 + $0x2c0] sm:$0xf]
  %v2391 = vld [vmem:[%s12 + $0x2c4] sm:$0xf]
  %v2392 = vld [vmem:[%s12 + $0x2c8] sm:$0xf]
  %v2393 = vld [vmem:[%s12 + $0x2cc] sm:$0xf]
  %v2394 = vld [vmem:[%s12 + $0x2d0] sm:$0xf]
  %v2395 = vld [vmem:[%s12 + $0x2d4] sm:$0xf]
  %v2396 = vld [vmem:[%s12 + $0x2d8] sm:$0xf]
  %v2397 = vld [vmem:[%s12 + $0x2dc] sm:$0xf]
  %v2398 = vld [vmem:[%s12 + $0x2e0] sm:$0xf]
  %v2399 = vld [vmem:[%s12 + $0x2e4] sm:$0xf]
  %v2400 = vld [vmem:[%s12 + $0x2e8] sm:$0xf]
  %v2401 = vld [vmem:[%s12 + $0x2ec] sm:$0xf]
  %v2402 = vld [vmem:[%s12 + $0x2f0] sm:$0xf]
  %v2403 = vld [vmem:[%s12 + $0x2f4] sm:$0xf]
  %v2404 = vld [vmem:[%s12 + $0x2f8] sm:$0xf]
  %v2405 = vld [vmem:[%s12 + $0x2fc] sm:$0xf]
  %v2470 = vunpack.c.l.b16 %v2342
  %v2471 = vunpack.c.l.b16 %v2343
  %v2472 = vunpack.c.l.b16 %v2344
  %v2473 = vunpack.c.l.b16 %v2345
  %v2474 = vunpack.c.l.b16 %v2346
  %v2475 = vunpack.c.l.b16 %v2347
  %v2476 = vunpack.c.l.b16 %v2348
  %v2477 = vunpack.c.l.b16 %v2349
  %v2478 = vunpack.c.l.b16 %v2350
  %v2479 = vunpack.c.l.b16 %v2351
  %v2480 = vunpack.c.l.b16 %v2352
  %v2481 = vunpack.c.l.b16 %v2353
  %v2482 = vunpack.c.l.b16 %v2354
  %v2483 = vunpack.c.l.b16 %v2355
  %v2484 = vunpack.c.l.b16 %v2356
  %v2485 = vunpack.c.l.b16 %v2357
  %v2486 = vunpack.c.l.b16 %v2358
  %v2487 = vunpack.c.l.b16 %v2359
  %v2488 = vunpack.c.l.b16 %v2360
  %v2489 = vunpack.c.l.b16 %v2361
  %v2490 = vunpack.c.l.b16 %v2362
  %v2491 = vunpack.c.l.b16 %v2363
  %v2492 = vunpack.c.l.b16 %v2364
  %v2493 = vunpack.c.l.b16 %v2365
  %v2494 = vunpack.c.l.b16 %v2366
  %v2495 = vunpack.c.l.b16 %v2367
  %v2496 = vunpack.c.l.b16 %v2368
  %v2497 = vunpack.c.l.b16 %v2369
  %v2498 = vunpack.c.l.b16 %v2370
  %v2499 = vunpack.c.l.b16 %v2371
  %v2500 = vunpack.c.l.b16 %v2372
  %v2501 = vunpack.c.l.b16 %v2373
  %v2502 = vunpack.c.l.b16 %v2374
  %v2503 = vunpack.c.l.b16 %v2375
  %v2504 = vunpack.c.l.b16 %v2376
  %v2505 = vunpack.c.l.b16 %v2377
  %v2506 = vunpack.c.l.b16 %v2378
  %v2507 = vunpack.c.l.b16 %v2379
  %v2508 = vunpack.c.l.b16 %v2380
  %v2509 = vunpack.c.l.b16 %v2381
  %v2510 = vunpack.c.l.b16 %v2382
  %v2511 = vunpack.c.l.b16 %v2383
  %v2512 = vunpack.c.l.b16 %v2384
  %v2513 = vunpack.c.l.b16 %v2385
  %v2514 = vunpack.c.l.b16 %v2386
  %v2515 = vunpack.c.l.b16 %v2387
  %v2516 = vunpack.c.l.b16 %v2388
  %v2517 = vunpack.c.l.b16 %v2389
  %v2518 = vunpack.c.l.b16 %v2390
  %v2519 = vunpack.c.l.b16 %v2391
  %v2520 = vunpack.c.l.b16 %v2392
  %v2521 = vunpack.c.l.b16 %v2393
  %v2522 = vunpack.c.l.b16 %v2394
  %v2523 = vunpack.c.l.b16 %v2395
  %v2524 = vunpack.c.l.b16 %v2396
  %v2525 = vunpack.c.l.b16 %v2397
  %v2526 = vunpack.c.l.b16 %v2398
  %v2527 = vunpack.c.l.b16 %v2399
  %v2528 = vunpack.c.l.b16 %v2400
  %v2529 = vunpack.c.l.b16 %v2401
  %v2530 = vunpack.c.l.b16 %v2402
  %v2531 = vunpack.c.l.b16 %v2403
  %v2532 = vunpack.c.l.b16 %v2404
  %v2533 = vunpack.c.l.b16 %v2405
  %v2534 = vpack.c.b16 %v2471, %v2470
  %v2535 = vpack.c.b16 %v2473, %v2472
  %v2536 = vpack.c.b16 %v2475, %v2474
  %v2537 = vpack.c.b16 %v2477, %v2476
  %v2538 = vpack.c.b16 %v2479, %v2478
  %v2539 = vpack.c.b16 %v2481, %v2480
  %v2540 = vpack.c.b16 %v2483, %v2482
  %v2541 = vpack.c.b16 %v2485, %v2484
  %v2542 = vpack.c.b16 %v2487, %v2486
  %v2543 = vpack.c.b16 %v2489, %v2488
  %v2544 = vpack.c.b16 %v2491, %v2490
  %v2545 = vpack.c.b16 %v2493, %v2492
  %v2546 = vpack.c.b16 %v2495, %v2494
  %v2547 = vpack.c.b16 %v2497, %v2496
  %v2548 = vpack.c.b16 %v2499, %v2498
  %v2549 = vpack.c.b16 %v2501, %v2500
  %v2550 = vpack.c.b16 %v2503, %v2502
  %v2551 = vpack.c.b16 %v2505, %v2504
  %v2552 = vpack.c.b16 %v2507, %v2506
  %v2553 = vpack.c.b16 %v2509, %v2508
  %v2554 = vpack.c.b16 %v2511, %v2510
  %v2555 = vpack.c.b16 %v2513, %v2512
  %v2556 = vpack.c.b16 %v2515, %v2514
  %v2557 = vpack.c.b16 %v2517, %v2516
  %v2558 = vpack.c.b16 %v2519, %v2518
  %v2559 = vpack.c.b16 %v2521, %v2520
  %v2560 = vpack.c.b16 %v2523, %v2522
  %v2561 = vpack.c.b16 %v2525, %v2524
  %v2562 = vpack.c.b16 %v2527, %v2526
  %v2563 = vpack.c.b16 %v2529, %v2528
  %v2564 = vpack.c.b16 %v2531, %v2530
  %v2565 = vpack.c.b16 %v2533, %v2532
  %2598 = vmatprep.subr.bf16.mxu0 0
  %2599 = vmatpush1.bf16.msra.mxu0 %v2534
  %2600 = vmatprep.subr.bf16.mxu0 0
  %2601 = vmatpush1.bf16.msra.mxu0 %v2535
  %2602 = vmatprep.subr.bf16.mxu0 0
  %2603 = vmatpush1.bf16.msra.mxu0 %v2536
  %2604 = vmatprep.subr.bf16.mxu0 0
  %2605 = vmatpush1.bf16.msra.mxu0 %v2537
  %2606 = vmatprep.subr.bf16.mxu0 0
  %2607 = vmatpush1.bf16.msra.mxu0 %v2538
  %2608 = vmatprep.subr.bf16.mxu0 0
  %2609 = vmatpush1.bf16.msra.mxu0 %v2539
  %2610 = vmatprep.subr.bf16.mxu0 0
  %2611 = vmatpush1.bf16.msra.mxu0 %v2540
  %2612 = vmatprep.subr.bf16.mxu0 0
  %2613 = vmatpush1.bf16.msra.mxu0 %v2541
  %2614 = vmatprep.subr.bf16.mxu0 0
  %2615 = vmatpush1.bf16.msra.mxu0 %v2542
  %2616 = vmatprep.subr.bf16.mxu0 0
  %2617 = vmatpush1.bf16.msra.mxu0 %v2543
  %2618 = vmatprep.subr.bf16.mxu0 0
  %2619 = vmatpush1.bf16.msra.mxu0 %v2544
  %2620 = vmatprep.subr.bf16.mxu0 0
  %2621 = vmatpush1.bf16.msra.mxu0 %v2545
  %2622 = vmatprep.subr.bf16.mxu0 0
  %2623 = vmatpush1.bf16.msra.mxu0 %v2546
  %2624 = vmatprep.subr.bf16.mxu0 0
  %2625 = vmatpush1.bf16.msra.mxu0 %v2547
  %2626 = vmatprep.subr.bf16.mxu0 0
  %2627 = vmatpush1.bf16.msra.mxu0 %v2548
  %2628 = vmatprep.subr.bf16.mxu0 0
  %2629 = vmatpush1.bf16.msra.mxu0 %v2549
  %2630 = vmatprep.mubr.bf16.mxu0 %v2339
  %2631 = vmatmul.mubr.bf16.gmra.mrb[0].mxu0 %v2338
  %v2632 = vpop.f32.mrb[0].mxu0
  %v2633 = vadd.f32 0.0, %v2632
  %v2634 = vpop.f32.mrb[0].mxu0
  %v2635 = vpop.f32.mrb[0].mxu0
  %v2636 = vadd.f32 0.0, %v2635
  %v2637 = vpop.f32.mrb[0].mxu0
  %2638 = vdwg.mxu0
  %2639 = vmatprep.subr.bf16.mxu0 0
  %2640 = vmatpush1.bf16.msra.mxu0 %v2550
  %2641 = vmatprep.subr.bf16.mxu0 0
  %2642 = vmatpush1.bf16.msra.mxu0 %v2551
  %2643 = vmatprep.subr.bf16.mxu0 0
  %2644 = vmatpush1.bf16.msra.mxu0 %v2552
  %2645 = vmatprep.subr.bf16.mxu0 0
  %2646 = vmatpush1.bf16.msra.mxu0 %v2553
  %2647 = vmatprep.subr.bf16.mxu0 0
  %2648 = vmatpush1.bf16.msra.mxu0 %v2554
  %2649 = vmatprep.subr.bf16.mxu0 0
  %2650 = vmatpush1.bf16.msra.mxu0 %v2555
  %2651 = vmatprep.subr.bf16.mxu0 0
  %2652 = vmatpush1.bf16.msra.mxu0 %v2556
  %2653 = vmatprep.subr.bf16.mxu0 0
  %2654 = vmatpush1.bf16.msra.mxu0 %v2557
  %2655 = vmatprep.subr.bf16.mxu0 0
  %2656 = vmatpush1.bf16.msra.mxu0 %v2558
  %2657 = vmatprep.subr.bf16.mxu0 0
  %2658 = vmatpush1.bf16.msra.mxu0 %v2559
  %2659 = vmatprep.subr.bf16.mxu0 0
  %2660 = vmatpush1.bf16.msra.mxu0 %v2560
  %2661 = vmatprep.subr.bf16.mxu0 0
  %2662 = vmatpush1.bf16.msra.mxu0 %v2561
  %2663 = vmatprep.subr.bf16.mxu0 0
  %2664 = vmatpush1.bf16.msra.mxu0 %v2562
  %2665 = vmatprep.subr.bf16.mxu0 0
  %2666 = vmatpush1.bf16.msra.mxu0 %v2563
  %2667 = vmatprep.subr.bf16.mxu0 0
  %2668 = vmatpush1.bf16.msra.mxu0 %v2564
  %2669 = vmatprep.subr.bf16.mxu0 0
  %2670 = vmatpush1.bf16.msra.mxu0 %v2565
  %2671 = vmatprep.mubr.bf16.mxu0 %v2341
  %2672 = vmatmul.mubr.bf16.gmra.mrb[0].mxu0 %v2340
  %v2673 = vpop.f32.mrb[0].mxu0
  %v2674 = vadd.f32 %v2633, %v2673
  %v2675 = vpop.f32.mrb[0].mxu0
  %v2676 = vpop.f32.mrb[0].mxu0
  %v2677 = vadd.f32 %v2636, %v2676
  %v2678 = vpop.f32.mrb[0].mxu0
  %2679 = vdwg.mxu0
  %v2680 = vadd.f32 %v2172, %v2674
  %v2681 = vadd.f32 %v2173, %v2677
  %v2682 = vld [vmem:[%s10 + $0x30] sm:$0xff]
  %v2683 = vld [vmem:[%s10 + $0x38] sm:$0xff]
  %v2684 = vld [vmem:[%s10 + $0x70] sm:$0xff]
  %v2685 = vld [vmem:[%s10 + $0x78] sm:$0xff]
  %v2686 = vld [vmem:[%s10 + $0xb0] sm:$0xff]
  %v2687 = vld [vmem:[%s10 + $0xb8] sm:$0xff]
  %v2688 = vld [vmem:[%s10 + $0xf0] sm:$0xff]
  %v2689 = vld [vmem:[%s10 + $0xf8] sm:$0xff]
  %v2690 = vld [vmem:[%s11 + $0xc] sm:$0xf]
  %v2692 = vlaneseq
  %v2693 = vshrl.u32 %v2692, 7
  %v2694 = vsub.s32 0, %v2693
  %v2695 = vrot.slane %v2690, %v2694
  %v2696 = vlaneseq
  %v2697 = vshrl.u32 %v2696, 7
  %v2698 = vsub.s32 1, %v2697
  %v2699 = vrot.slane %v2690, %v2698
  %v2700 = vlaneseq
  %v2701 = vshrl.u32 %v2700, 7
  %v2702 = vsub.s32 2, %v2701
  %v2703 = vrot.slane %v2690, %v2702
  %v2704 = vlaneseq
  %v2705 = vshrl.u32 %v2704, 7
  %v2706 = vsub.s32 3, %v2705
  %v2707 = vrot.slane %v2690, %v2706
  %v2720 = vunpack.c.l.b16 %v2682
  %v2721 = vunpack.c.h.b16 %v2682
  %v2722 = vunpack.c.l.b16 %v2683
  %v2723 = vunpack.c.h.b16 %v2683
  %v2724 = vunpack.c.l.b16 %v2684
  %v2725 = vunpack.c.h.b16 %v2684
  %v2726 = vunpack.c.l.b16 %v2685
  %v2727 = vunpack.c.h.b16 %v2685
  %v2728 = vunpack.c.l.b16 %v2686
  %v2729 = vunpack.c.h.b16 %v2686
  %v2730 = vunpack.c.l.b16 %v2687
  %v2731 = vunpack.c.h.b16 %v2687
  %v2732 = vunpack.c.l.b16 %v2688
  %v2733 = vunpack.c.h.b16 %v2688
  %v2734 = vunpack.c.l.b16 %v2689
  %v2735 = vunpack.c.h.b16 %v2689
  %v2736 = vpack.c.b16 %v2724, %v2720
  %v2737 = vpack.c.b16 %v2725, %v2721
  %v2738 = vpack.c.b16 %v2726, %v2722
  %v2739 = vpack.c.b16 %v2727, %v2723
  %v2740 = vpack.c.b16 %v2732, %v2728
  %v2741 = vpack.c.b16 %v2733, %v2729
  %v2742 = vpack.c.b16 %v2734, %v2730
  %v2743 = vpack.c.b16 %v2735, %v2731
  %2752 = vmatprep.subr.bf16.mxu0 %v2737
  %2753 = vmatpush1.bf16.msra.mxu0 %v2736
  %2754 = vmatprep.subr.bf16.mxu0 %v2741
  %2755 = vmatpush1.bf16.msra.mxu0 %v2740
  %2756 = vmatprep.subr.bf16.mxu0 0
  %2757 = vmatpush1.bf16.msra.mxu0 0
  %2758 = vmatprep.subr.bf16.mxu0 0
  %2759 = vmatpush1.bf16.msra.mxu0 0
  %2760 = vmatprep.subr.bf16.mxu0 0
  %2761 = vmatpush1.bf16.msra.mxu0 0
  %2762 = vmatprep.subr.bf16.mxu0 0
  %2763 = vmatpush1.bf16.msra.mxu0 0
  %2764 = vmatprep.subr.bf16.mxu0 0
  %2765 = vmatpush1.bf16.msra.mxu0 0
  %2766 = vmatprep.subr.bf16.mxu0 0
  %2767 = vmatpush1.bf16.msra.mxu0 0
  %2768 = vmatprep.subr.bf16.mxu0 0
  %2769 = vmatpush1.bf16.msra.mxu0 0
  %2770 = vmatprep.subr.bf16.mxu0 0
  %2771 = vmatpush1.bf16.msra.mxu0 0
  %2772 = vmatprep.subr.bf16.mxu0 0
  %2773 = vmatpush1.bf16.msra.mxu0 0
  %2774 = vmatprep.subr.bf16.mxu0 0
  %2775 = vmatpush1.bf16.msra.mxu0 0
  %2776 = vmatprep.subr.bf16.mxu0 0
  %2777 = vmatpush1.bf16.msra.mxu0 0
  %2778 = vmatprep.subr.bf16.mxu0 0
  %2779 = vmatpush1.bf16.msra.mxu0 0
  %2780 = vmatprep.subr.bf16.mxu0 0
  %2781 = vmatpush1.bf16.msra.mxu0 0
  %2782 = vmatprep.subr.bf16.mxu0 0
  %2783 = vmatpush1.bf16.msra.mxu0 0
  %2784 = vmatprep.mubr.bf16.mxu0 0
  %2785 = vmatmul.mubr.bf16.gmra.mrb[0].mxu0 %v1226
  %v2786 = vpop.f32.mrb[0].mxu0
  %v2787 = vadd.f32 %v2695, %v2786
  %v2788 = vpop.f32.mrb[0].mxu0
  %v2789 = vadd.f32 %v2699, %v2788
  %v2790 = vpop.f32.mrb[0].mxu0
  %v2791 = vadd.f32 %v2695, %v2790
  %v2792 = vpop.f32.mrb[0].mxu0
  %v2793 = vadd.f32 %v2699, %v2792
  %2794 = vdwg.mxu0
  %2795 = vmatprep.subr.bf16.mxu0 %v2739
  %2796 = vmatpush1.bf16.msra.mxu0 %v2738
  %2797 = vmatprep.subr.bf16.mxu0 %v2743
  %2798 = vmatpush1.bf16.msra.mxu0 %v2742
  %2799 = vmatprep.subr.bf16.mxu0 0
  %2800 = vmatpush1.bf16.msra.mxu0 0
  %2801 = vmatprep.subr.bf16.mxu0 0
  %2802 = vmatpush1.bf16.msra.mxu0 0
  %2803 = vmatprep.subr.bf16.mxu0 0
  %2804 = vmatpush1.bf16.msra.mxu0 0
  %2805 = vmatprep.subr.bf16.mxu0 0
  %2806 = vmatpush1.bf16.msra.mxu0 0
  %2807 = vmatprep.subr.bf16.mxu0 0
  %2808 = vmatpush1.bf16.msra.mxu0 0
  %2809 = vmatprep.subr.bf16.mxu0 0
  %2810 = vmatpush1.bf16.msra.mxu0 0
  %2811 = vmatprep.subr.bf16.mxu0 0
  %2812 = vmatpush1.bf16.msra.mxu0 0
  %2813 = vmatprep.subr.bf16.mxu0 0
  %2814 = vmatpush1.bf16.msra.mxu0 0
  %2815 = vmatprep.subr.bf16.mxu0 0
  %2816 = vmatpush1.bf16.msra.mxu0 0
  %2817 = vmatprep.subr.bf16.mxu0 0
  %2818 = vmatpush1.bf16.msra.mxu0 0
  %2819 = vmatprep.subr.bf16.mxu0 0
  %2820 = vmatpush1.bf16.msra.mxu0 0
  %2821 = vmatprep.subr.bf16.mxu0 0
  %2822 = vmatpush1.bf16.msra.mxu0 0
  %2823 = vmatprep.subr.bf16.mxu0 0
  %2824 = vmatpush1.bf16.msra.mxu0 0
  %2825 = vmatprep.subr.bf16.mxu0 0
  %2826 = vmatpush1.bf16.msra.mxu0 0
  %2827 = vmatprep.mubr.bf16.mxu0 0
  %2828 = vmatmul.mubr.bf16.gmra.mrb[0].mxu0 %v1226
  %v2829 = vpop.f32.mrb[0].mxu0
  %v2830 = vadd.f32 %v2703, %v2829
  %v2831 = vpop.f32.mrb[0].mxu0
  %v2832 = vadd.f32 %v2707, %v2831
  %v2833 = vpop.f32.mrb[0].mxu0
  %v2834 = vadd.f32 %v2703, %v2833
  %v2835 = vpop.f32.mrb[0].mxu0
  %v2836 = vadd.f32 %v2707, %v2835
  %2837 = vdwg.mxu0
  %v2838 = vmax.f32 %v2787, 0.0
  %v2839 = vmax.f32 %v2789, 0.0
  %v2840 = vmax.f32 %v2830, 0.0
  %v2841 = vmax.f32 %v2832, 0.0
  %v2842 = vmax.f32 %v2791, 0.0
  %v2843 = vmax.f32 %v2793, 0.0
  %v2844 = vmax.f32 %v2834, 0.0
  %v2845 = vmax.f32 %v2836, 0.0
  %v2846 = vpack.c.bf16 %v2842, %v2838
  %v2847 = vpack.c.bf16 %v2843, %v2839
  %v2848 = vpack.c.bf16 %v2844, %v2840
  %v2849 = vpack.c.bf16 %v2845, %v2841
  %v2850 = vld [vmem:[%s12 + $0x300] sm:$0xf]
  %v2851 = vld [vmem:[%s12 + $0x304] sm:$0xf]
  %v2852 = vld [vmem:[%s12 + $0x308] sm:$0xf]
  %v2853 = vld [vmem:[%s12 + $0x30c] sm:$0xf]
  %v2854 = vld [vmem:[%s12 + $0x310] sm:$0xf]
  %v2855 = vld [vmem:[%s12 + $0x314] sm:$0xf]
  %v2856 = vld [vmem:[%s12 + $0x318] sm:$0xf]
  %v2857 = vld [vmem:[%s12 + $0x31c] sm:$0xf]
  %v2858 = vld [vmem:[%s12 + $0x320] sm:$0xf]
  %v2859 = vld [vmem:[%s12 + $0x324] sm:$0xf]
  %v2860 = vld [vmem:[%s12 + $0x328] sm:$0xf]
  %v2861 = vld [vmem:[%s12 + $0x32c] sm:$0xf]
  %v2862 = vld [vmem:[%s12 + $0x330] sm:$0xf]
  %v2863 = vld [vmem:[%s12 + $0x334] sm:$0xf]
  %v2864 = vld [vmem:[%s12 + $0x338] sm:$0xf]
  %v2865 = vld [vmem:[%s12 + $0x33c] sm:$0xf]
  %v2866 = vld [vmem:[%s12 + $0x340] sm:$0xf]
  %v2867 = vld [vmem:[%s12 + $0x344] sm:$0xf]
  %v2868 = vld [vmem:[%s12 + $0x348] sm:$0xf]
  %v2869 = vld [vmem:[%s12 + $0x34c] sm:$0xf]
  %v2870 = vld [vmem:[%s12 + $0x350] sm:$0xf]
  %v2871 = vld [vmem:[%s12 + $0x354] sm:$0xf]
  %v2872 = vld [vmem:[%s12 + $0x358] sm:$0xf]
  %v2873 = vld [vmem:[%s12 + $0x35c] sm:$0xf]
  %v2874 = vld [vmem:[%s12 + $0x360] sm:$0xf]
  %v2875 = vld [vmem:[%s12 + $0x364] sm:$0xf]
  %v2876 = vld [vmem:[%s12 + $0x368] sm:$0xf]
  %v2877 = vld [vmem:[%s12 + $0x36c] sm:$0xf]
  %v2878 = vld [vmem:[%s12 + $0x370] sm:$0xf]
  %v2879 = vld [vmem:[%s12 + $0x374] sm:$0xf]
  %v2880 = vld [vmem:[%s12 + $0x378] sm:$0xf]
  %v2881 = vld [vmem:[%s12 + $0x37c] sm:$0xf]
  %v2882 = vld [vmem:[%s12 + $0x380] sm:$0xf]
  %v2883 = vld [vmem:[%s12 + $0x384] sm:$0xf]
  %v2884 = vld [vmem:[%s12 + $0x388] sm:$0xf]
  %v2885 = vld [vmem:[%s12 + $0x38c] sm:$0xf]
  %v2886 = vld [vmem:[%s12 + $0x390] sm:$0xf]
  %v2887 = vld [vmem:[%s12 + $0x394] sm:$0xf]
  %v2888 = vld [vmem:[%s12 + $0x398] sm:$0xf]
  %v2889 = vld [vmem:[%s12 + $0x39c] sm:$0xf]
  %v2890 = vld [vmem:[%s12 + $0x3a0] sm:$0xf]
  %v2891 = vld [vmem:[%s12 + $0x3a4] sm:$0xf]
  %v2892 = vld [vmem:[%s12 + $0x3a8] sm:$0xf]
  %v2893 = vld [vmem:[%s12 + $0x3ac] sm:$0xf]
  %v2894 = vld [vmem:[%s12 + $0x3b0] sm:$0xf]
  %v2895 = vld [vmem:[%s12 + $0x3b4] sm:$0xf]
  %v2896 = vld [vmem:[%s12 + $0x3b8] sm:$0xf]
  %v2897 = vld [vmem:[%s12 + $0x3bc] sm:$0xf]
  %v2898 = vld [vmem:[%s12 + $0x3c0] sm:$0xf]
  %v2899 = vld [vmem:[%s12 + $0x3c4] sm:$0xf]
  %v2900 = vld [vmem:[%s12 + $0x3c8] sm:$0xf]
  %v2901 = vld [vmem:[%s12 + $0x3cc] sm:$0xf]
  %v2902 = vld [vmem:[%s12 + $0x3d0] sm:$0xf]
  %v2903 = vld [vmem:[%s12 + $0x3d4] sm:$0xf]
  %v2904 = vld [vmem:[%s12 + $0x3d8] sm:$0xf]
  %v2905 = vld [vmem:[%s12 + $0x3dc] sm:$0xf]
  %v2906 = vld [vmem:[%s12 + $0x3e0] sm:$0xf]
  %v2907 = vld [vmem:[%s12 + $0x3e4] sm:$0xf]
  %v2908 = vld [vmem:[%s12 + $0x3e8] sm:$0xf]
  %v2909 = vld [vmem:[%s12 + $0x3ec] sm:$0xf]
  %v2910 = vld [vmem:[%s12 + $0x3f0] sm:$0xf]
  %v2911 = vld [vmem:[%s12 + $0x3f4] sm:$0xf]
  %v2912 = vld [vmem:[%s12 + $0x3f8] sm:$0xf]
  %v2913 = vld [vmem:[%s12 + $0x3fc] sm:$0xf]
  %v2978 = vunpack.c.l.b16 %v2850
  %v2979 = vunpack.c.l.b16 %v2851
  %v2980 = vunpack.c.l.b16 %v2852
  %v2981 = vunpack.c.l.b16 %v2853
  %v2982 = vunpack.c.l.b16 %v2854
  %v2983 = vunpack.c.l.b16 %v2855
  %v2984 = vunpack.c.l.b16 %v2856
  %v2985 = vunpack.c.l.b16 %v2857
  %v2986 = vunpack.c.l.b16 %v2858
  %v2987 = vunpack.c.l.b16 %v2859
  %v2988 = vunpack.c.l.b16 %v2860
  %v2989 = vunpack.c.l.b16 %v2861
  %v2990 = vunpack.c.l.b16 %v2862
  %v2991 = vunpack.c.l.b16 %v2863
  %v2992 = vunpack.c.l.b16 %v2864
  %v2993 = vunpack.c.l.b16 %v2865
  %v2994 = vunpack.c.l.b16 %v2866
  %v2995 = vunpack.c.l.b16 %v2867
  %v2996 = vunpack.c.l.b16 %v2868
  %v2997 = vunpack.c.l.b16 %v2869
  %v2998 = vunpack.c.l.b16 %v2870
  %v2999 = vunpack.c.l.b16 %v2871
  %v3000 = vunpack.c.l.b16 %v2872
  %v3001 = vunpack.c.l.b16 %v2873
  %v3002 = vunpack.c.l.b16 %v2874
  %v3003 = vunpack.c.l.b16 %v2875
  %v3004 = vunpack.c.l.b16 %v2876
  %v3005 = vunpack.c.l.b16 %v2877
  %v3006 = vunpack.c.l.b16 %v2878
  %v3007 = vunpack.c.l.b16 %v2879
  %v3008 = vunpack.c.l.b16 %v2880
  %v3009 = vunpack.c.l.b16 %v2881
  %v3010 = vunpack.c.l.b16 %v2882
  %v3011 = vunpack.c.l.b16 %v2883
  %v3012 = vunpack.c.l.b16 %v2884
  %v3013 = vunpack.c.l.b16 %v2885
  %v3014 = vunpack.c.l.b16 %v2886
  %v3015 = vunpack.c.l.b16 %v2887
  %v3016 = vunpack.c.l.b16 %v2888
  %v3017 = vunpack.c.l.b16 %v2889
  %v3018 = vunpack.c.l.b16 %v2890
  %v3019 = vunpack.c.l.b16 %v2891
  %v3020 = vunpack.c.l.b16 %v2892
  %v3021 = vunpack.c.l.b16 %v2893
  %v3022 = vunpack.c.l.b16 %v2894
  %v3023 = vunpack.c.l.b16 %v2895
  %v3024 = vunpack.c.l.b16 %v2896
  %v3025 = vunpack.c.l.b16 %v2897
  %v3026 = vunpack.c.l.b16 %v2898
  %v3027 = vunpack.c.l.b16 %v2899
  %v3028 = vunpack.c.l.b16 %v2900
  %v3029 = vunpack.c.l.b16 %v2901
  %v3030 = vunpack.c.l.b16 %v2902
  %v3031 = vunpack.c.l.b16 %v2903
  %v3032 = vunpack.c.l.b16 %v2904
  %v3033 = vunpack.c.l.b16 %v2905
  %v3034 = vunpack.c.l.b16 %v2906
  %v3035 = vunpack.c.l.b16 %v2907
  %v3036 = vunpack.c.l.b16 %v2908
  %v3037 = vunpack.c.l.b16 %v2909
  %v3038 = vunpack.c.l.b16 %v2910
  %v3039 = vunpack.c.l.b16 %v2911
  %v3040 = vunpack.c.l.b16 %v2912
  %v3041 = vunpack.c.l.b16 %v2913
  %v3042 = vpack.c.b16 %v2979, %v2978
  %v3043 = vpack.c.b16 %v2981, %v2980
  %v3044 = vpack.c.b16 %v2983, %v2982
  %v3045 = vpack.c.b16 %v2985, %v2984
  %v3046 = vpack.c.b16 %v2987, %v2986
  %v3047 = vpack.c.b16 %v2989, %v2988
  %v3048 = vpack.c.b16 %v2991, %v2990
  %v3049 = vpack.c.b16 %v2993, %v2992
  %v3050 = vpack.c.b16 %v2995, %v2994
  %v3051 = vpack.c.b16 %v2997, %v2996
  %v3052 = vpack.c.b16 %v2999, %v2998
  %v3053 = vpack.c.b16 %v3001, %v3000
  %v3054 = vpack.c.b16 %v3003, %v3002
  %v3055 = vpack.c.b16 %v3005, %v3004
  %v3056 = vpack.c.b16 %v3007, %v3006
  %v3057 = vpack.c.b16 %v3009, %v3008
  %v3058 = vpack.c.b16 %v3011, %v3010
  %v3059 = vpack.c.b16 %v3013, %v3012
  %v3060 = vpack.c.b16 %v3015, %v3014
  %v3061 = vpack.c.b16 %v3017, %v3016
  %v3062 = vpack.c.b16 %v3019, %v3018
  %v3063 = vpack.c.b16 %v3021, %v3020
  %v3064 = vpack.c.b16 %v3023, %v3022
  %v3065 = vpack.c.b16 %v3025, %v3024
  %v3066 = vpack.c.b16 %v3027, %v3026
  %v3067 = vpack.c.b16 %v3029, %v3028
  %v3068 = vpack.c.b16 %v3031, %v3030
  %v3069 = vpack.c.b16 %v3033, %v3032
  %v3070 = vpack.c.b16 %v3035, %v3034
  %v3071 = vpack.c.b16 %v3037, %v3036
  %v3072 = vpack.c.b16 %v3039, %v3038
  %v3073 = vpack.c.b16 %v3041, %v3040
  %3106 = vmatprep.subr.bf16.mxu0 0
  %3107 = vmatpush1.bf16.msra.mxu0 %v3042
  %3108 = vmatprep.subr.bf16.mxu0 0
  %3109 = vmatpush1.bf16.msra.mxu0 %v3043
  %3110 = vmatprep.subr.bf16.mxu0 0
  %3111 = vmatpush1.bf16.msra.mxu0 %v3044
  %3112 = vmatprep.subr.bf16.mxu0 0
  %3113 = vmatpush1.bf16.msra.mxu0 %v3045
  %3114 = vmatprep.subr.bf16.mxu0 0
  %3115 = vmatpush1.bf16.msra.mxu0 %v3046
  %3116 = vmatprep.subr.bf16.mxu0 0
  %3117 = vmatpush1.bf16.msra.mxu0 %v3047
  %3118 = vmatprep.subr.bf16.mxu0 0
  %3119 = vmatpush1.bf16.msra.mxu0 %v3048
  %3120 = vmatprep.subr.bf16.mxu0 0
  %3121 = vmatpush1.bf16.msra.mxu0 %v3049
  %3122 = vmatprep.subr.bf16.mxu0 0
  %3123 = vmatpush1.bf16.msra.mxu0 %v3050
  %3124 = vmatprep.subr.bf16.mxu0 0
  %3125 = vmatpush1.bf16.msra.mxu0 %v3051
  %3126 = vmatprep.subr.bf16.mxu0 0
  %3127 = vmatpush1.bf16.msra.mxu0 %v3052
  %3128 = vmatprep.subr.bf16.mxu0 0
  %3129 = vmatpush1.bf16.msra.mxu0 %v3053
  %3130 = vmatprep.subr.bf16.mxu0 0
  %3131 = vmatpush1.bf16.msra.mxu0 %v3054
  %3132 = vmatprep.subr.bf16.mxu0 0
  %3133 = vmatpush1.bf16.msra.mxu0 %v3055
  %3134 = vmatprep.subr.bf16.mxu0 0
  %3135 = vmatpush1.bf16.msra.mxu0 %v3056
  %3136 = vmatprep.subr.bf16.mxu0 0
  %3137 = vmatpush1.bf16.msra.mxu0 %v3057
  %3138 = vmatprep.mubr.bf16.mxu0 %v2847
  %3139 = vmatmul.mubr.bf16.gmra.mrb[0].mxu0 %v2846
  %v3140 = vpop.f32.mrb[0].mxu0
  %v3141 = vadd.f32 0.0, %v3140
  %v3142 = vpop.f32.mrb[0].mxu0
  %v3143 = vpop.f32.mrb[0].mxu0
  %v3144 = vadd.f32 0.0, %v3143
  %v3145 = vpop.f32.mrb[0].mxu0
  %3146 = vdwg.mxu0
  %3147 = vmatprep.subr.bf16.mxu0 0
  %3148 = vmatpush1.bf16.msra.mxu0 %v3058
  %3149 = vmatprep.subr.bf16.mxu0 0
  %3150 = vmatpush1.bf16.msra.mxu0 %v3059
  %3151 = vmatprep.subr.bf16.mxu0 0
  %3152 = vmatpush1.bf16.msra.mxu0 %v3060
  %3153 = vmatprep.subr.bf16.mxu0 0
  %3154 = vmatpush1.bf16.msra.mxu0 %v3061
  %3155 = vmatprep.subr.bf16.mxu0 0
  %3156 = vmatpush1.bf16.msra.mxu0 %v3062
  %3157 = vmatprep.subr.bf16.mxu0 0
  %3158 = vmatpush1.bf16.msra.mxu0 %v3063
  %3159 = vmatprep.subr.bf16.mxu0 0
  %3160 = vmatpush1.bf16.msra.mxu0 %v3064
  %3161 = vmatprep.subr.bf16.mxu0 0
  %3162 = vmatpush1.bf16.msra.mxu0 %v3065
  %3163 = vmatprep.subr.bf16.mxu0 0
  %3164 = vmatpush1.bf16.msra.mxu0 %v3066
  %3165 = vmatprep.subr.bf16.mxu0 0
  %3166 = vmatpush1.bf16.msra.mxu0 %v3067
  %3167 = vmatprep.subr.bf16.mxu0 0
  %3168 = vmatpush1.bf16.msra.mxu0 %v3068
  %3169 = vmatprep.subr.bf16.mxu0 0
  %3170 = vmatpush1.bf16.msra.mxu0 %v3069
  %3171 = vmatprep.subr.bf16.mxu0 0
  %3172 = vmatpush1.bf16.msra.mxu0 %v3070
  %3173 = vmatprep.subr.bf16.mxu0 0
  %3174 = vmatpush1.bf16.msra.mxu0 %v3071
  %3175 = vmatprep.subr.bf16.mxu0 0
  %3176 = vmatpush1.bf16.msra.mxu0 %v3072
  %3177 = vmatprep.subr.bf16.mxu0 0
  %3178 = vmatpush1.bf16.msra.mxu0 %v3073
  %3179 = vmatprep.mubr.bf16.mxu0 %v2849
  %3180 = vmatmul.mubr.bf16.gmra.mrb[0].mxu0 %v2848
  %v3181 = vpop.f32.mrb[0].mxu0
  %v3182 = vadd.f32 %v3141, %v3181
  %v3183 = vpop.f32.mrb[0].mxu0
  %v3184 = vpop.f32.mrb[0].mxu0
  %v3185 = vadd.f32 %v3144, %v3184
  %v3186 = vpop.f32.mrb[0].mxu0
  %3187 = vdwg.mxu0
  %v3188 = vadd.f32 %v2680, %v3182
  %v3189 = vadd.f32 %v2681, %v3185
  %v3190 = vld [vmem:[%s14] sm:$0x1]
  %v3191 = vld [vmem:[%s15] sm:$0x1]
  %v3192 = vsel %vm149, %v3188, 0.0
  %3193 = vadd.xlane.f32.xlu0 %v3192
  %v3194 = vpop.xlane.xlu0 %3193
  %v3195 = vsel %vm149, %v3189, 0.0
  %3196 = vadd.xlane.f32.xlu0 %v3195
  %v3197 = vpop.xlane.xlu0 %3196
  %v3198 = vmul.f32 %v3194, %v1108
  %v3199 = vmul.f32 %v3197, %v1108
  %v3200 = vsub.f32 %v3188, %v3198
  %v3201 = vsub.f32 %v3189, %v3199
  %v3202 = vmul.f32 %v3200, %v3200
  %v3203 = vmul.f32 %v3201, %v3201
  %v3204 = vsel %vm149, %v3202, 0.0
  %3205 = vadd.xlane.f32.xlu0 %v3204
  %v3206 = vpop.xlane.xlu0 %3205
  %v3207 = vsel %vm149, %v3203, 0.0
  %3208 = vadd.xlane.f32.xlu0 %v3207
  %v3209 = vpop.xlane.xlu0 %3208
  %v3210 = vmul.f32 %v3206, %v1108
  %v3211 = vmul.f32 %v3209, %v1108
  %v3212 = vadd.f32 %v3210, 1e-05
  %v3213 = vadd.f32 %v3211, 1e-05
  %v3214 = vrsqrt.pop %v3212
  %v3215 = vrsqrt.pop %v3213
  %v3216 = vmul.f32 %v3200, %v3214
  %v3217 = vmul.f32 %v3201, %v3215
  %v3219 = vlaneseq
  %v3220 = vshrl.u32 %v3219, 7
  %v3221 = vsub.s32 0, %v3220
  %v3222 = vrot.slane %v3190, %v3221
  %v3224 = vmul.f32 %v3216, %v3222
  %v3225 = vmul.f32 %v3217, %v3222
  %v3227 = vlaneseq
  %v3228 = vshrl.u32 %v3227, 7
  %v3229 = vsub.s32 0, %v3228
  %v3230 = vrot.slane %v3191, %v3229
  %v3232 = vadd.f32 %v3224, %v3230
  %v3233 = vadd.f32 %v3225, %v3230
  %v3234 = vpack.c.bf16 %v3233, %v3232
  %s3235 = scalar_lea.vmem %s4, 16
  %v3236 = vld [vmem:[%s3235] sm:$0xf]
  %v3237 = vld [vmem:[%s3235 + $0x4] sm:$0xf]
  %v3238 = vld [vmem:[%s3235 + $0x8] sm:$0xf]
  %v3239 = vld [vmem:[%s3235 + $0xc] sm:$0xf]
  %s3240 = scalar_lea.vmem %s5, 1
  %v3241 = vld [vmem:[%s3240] sm:$0x1]
  %v3243 = vlaneseq
  %v3244 = vshrl.u32 %v3243, 7
  %v3245 = vsub.s32 0, %v3244
  %v3246 = vrot.slane %v3241, %v3245
  %v3252 = vunpack.c.l.b16 %v3236
  %v3253 = vunpack.c.l.b16 %v3237
  %v3254 = vunpack.c.l.b16 %v3238
  %v3255 = vunpack.c.l.b16 %v3239
  %v3256 = vpack.c.b16 %v3253, %v3252
  %v3257 = vpack.c.b16 %v3255, %v3254
  %v3261 = vsel %vm149, %v3234, 0
  %3263 = vmatprep.subr.bf16.mxu0 0
  %3264 = vmatpush1.bf16.msra.mxu0 %v3256
  %3265 = vmatprep.subr.bf16.mxu0 0
  %3266 = vmatpush1.bf16.msra.mxu0 %v3257
  %3267 = vmatprep.subr.bf16.mxu0 0
  %3268 = vmatpush1.bf16.msra.mxu0 0
  %3269 = vmatprep.subr.bf16.mxu0 0
  %3270 = vmatpush1.bf16.msra.mxu0 0
  %3271 = vmatprep.subr.bf16.mxu0 0
  %3272 = vmatpush1.bf16.msra.mxu0 0
  %3273 = vmatprep.subr.bf16.mxu0 0
  %3274 = vmatpush1.bf16.msra.mxu0 0
  %3275 = vmatprep.subr.bf16.mxu0 0
  %3276 = vmatpush1.bf16.msra.mxu0 0
  %3277 = vmatprep.subr.bf16.mxu0 0
  %3278 = vmatpush1.bf16.msra.mxu0 0
  %3279 = vmatprep.subr.bf16.mxu0 0
  %3280 = vmatpush1.bf16.msra.mxu0 0
  %3281 = vmatprep.subr.bf16.mxu0 0
  %3282 = vmatpush1.bf16.msra.mxu0 0
  %3283 = vmatprep.subr.bf16.mxu0 0
  %3284 = vmatpush1.bf16.msra.mxu0 0
  %3285 = vmatprep.subr.bf16.mxu0 0
  %3286 = vmatpush1.bf16.msra.mxu0 0
  %3287 = vmatprep.subr.bf16.mxu0 0
  %3288 = vmatpush1.bf16.msra.mxu0 0
  %3289 = vmatprep.subr.bf16.mxu0 0
  %3290 = vmatpush1.bf16.msra.mxu0 0
  %3291 = vmatprep.subr.bf16.mxu0 0
  %3292 = vmatpush1.bf16.msra.mxu0 0
  %3293 = vmatprep.subr.bf16.mxu0 0
  %3294 = vmatpush1.bf16.msra.mxu0 0
  %3295 = vmatprep.mubr.bf16.mxu0 0
  %3296 = vmatmul.mubr.bf16.gmra.mrb[0].mxu0 %v3261
  %v3297 = vpop.f32.mrb[0].mxu0
  %v3298 = vadd.f32 %v3246, %v3297
  %v3299 = vpop.f32.mrb[0].mxu0
  %v3300 = vpop.f32.mrb[0].mxu0
  %v3301 = vadd.f32 %v3246, %v3300
  %v3302 = vpop.f32.mrb[0].mxu0
  %3303 = vdwg.mxu0
  %3306 = vrot.lane.b32.xlu0 %v3298, 96
  %v3307 = vpop.permute.xlu0 %3306
  %3308 = vrot.lane.b32.xlu0 %v3301, 96
  %v3309 = vpop.permute.xlu0 %3308
  %v3310 = vsel %vm200, %v3298, 0
  %v3312 = vsel %vm200, %v3301, 0
  %v3314 = vsel %vm200, %v3307, 0
  %v3316 = vsel %vm200, %v3309, 0
  %3318 = vmatprep.subr.mxu0 0.0
  %3319 = vmatpush1.xpose.msra.mxu0 %v3314
  %3320 = vmatprep.subr.mxu0 0.0
  %3321 = vmatpush1.xpose.msra.mxu0 %v3316
  %3322 = vmatprep.subr.mxu0 0.0
  %3323 = vmatpush1.xpose.msra.mxu0 0.0
  %3324 = vmatprep.subr.mxu0 0.0
  %3325 = vmatpush1.xpose.msra.mxu0 0.0
  %3326 = vmatprep.subr.mxu0 0.0
  %3327 = vmatpush1.xpose.msra.mxu0 0.0
  %3328 = vmatprep.subr.mxu0 0.0
  %3329 = vmatpush1.xpose.msra.mxu0 0.0
  %3330 = vmatprep.subr.mxu0 0.0
  %3331 = vmatpush1.xpose.msra.mxu0 0.0
  %3332 = vmatprep.subr.mxu0 0.0
  %3333 = vmatpush1.xpose.msra.mxu0 0.0
  %3334 = vmatprep.subr.mxu0 0.0
  %3335 = vmatpush1.xpose.msra.mxu0 0.0
  %3336 = vmatprep.subr.mxu0 0.0
  %3337 = vmatpush1.xpose.msra.mxu0 0.0
  %3338 = vmatprep.subr.mxu0 0.0
  %3339 = vmatpush1.xpose.msra.mxu0 0.0
  %3340 = vmatprep.subr.mxu0 0.0
  %3341 = vmatpush1.xpose.msra.mxu0 0.0
  %3342 = vmatprep.subr.mxu0 0.0
  %3343 = vmatpush1.xpose.msra.mxu0 0.0
  %3344 = vmatprep.subr.mxu0 0.0
  %3345 = vmatpush1.xpose.msra.mxu0 0.0
  %3346 = vmatprep.subr.mxu0 0.0
  %3347 = vmatpush1.xpose.msra.mxu0 0.0
  %3348 = vmatprep.subr.mxu0 0.0
  %3349 = vmatpush1.xpose.msra.mxu0 0.0
  %3350 = vmatprep.subr.mxu0 0.0
  %3351 = vmatpush1.xpose.msra.mxu0 0.0
  %3352 = vmatprep.subr.mxu0 0.0
  %3353 = vmatpush1.xpose.msra.mxu0 0.0
  %3354 = vmatprep.subr.mxu0 0.0
  %3355 = vmatpush1.xpose.msra.mxu0 0.0
  %3356 = vmatprep.subr.mxu0 0.0
  %3357 = vmatpush1.xpose.msra.mxu0 0.0
  %3358 = vmatprep.subr.mxu0 0.0
  %3359 = vmatpush1.xpose.msra.mxu0 0.0
  %3360 = vmatprep.subr.mxu0 0.0
  %3361 = vmatpush1.xpose.msra.mxu0 0.0
  %3362 = vmatprep.subr.mxu0 0.0
  %3363 = vmatpush1.xpose.msra.mxu0 0.0
  %3364 = vmatprep.subr.mxu0 0.0
  %3365 = vmatpush1.xpose.msra.mxu0 0.0
  %3366 = vmatprep.subr.mxu0 0.0
  %3367 = vmatpush1.xpose.msra.mxu0 0.0
  %3368 = vmatprep.subr.mxu0 0.0
  %3369 = vmatpush1.xpose.msra.mxu0 0.0
  %3370 = vmatprep.subr.mxu0 0.0
  %3371 = vmatpush1.xpose.msra.mxu0 0.0
  %3372 = vmatprep.subr.mxu0 0.0
  %3373 = vmatpush1.xpose.msra.mxu0 0.0
  %3374 = vmatprep.subr.mxu0 0.0
  %3375 = vmatpush1.xpose.msra.mxu0 0.0
  %3376 = vmatprep.subr.mxu0 0.0
  %3377 = vmatpush1.xpose.msra.mxu0 0.0
  %3378 = vmatprep.subr.mxu0 0.0
  %3379 = vmatpush1.xpose.msra.mxu0 0.0
  %3380 = vmatprep.subr.mxu0 0.0
  %3381 = vmatpush1.xpose.msra.mxu0 0.0
  %3382 = vmatprep.mubr.f32.mxu0 0.0
  %3383 = vmatmul.mubr.f32.gmra.mrb[0].mxu0 %v3310
  %v3384 = vpop.f32.mrb[0].mxu0
  %v3385 = vadd.f32 %v60, %v3384
  %v3386 = vpop.f32.mrb[0].mxu0
  %3387 = vmatprep.mubr.f32.mxu0 0.0
  %3388 = vmatmul.mubr.f32.gmra.mrb[0].mxu0 %v3312
  %v3389 = vpop.f32.mrb[0].mxu0
  %v3390 = vadd.f32 %v61, %v3389
  %v3391 = vpop.f32.mrb[0].mxu0
  %3392 = vdwg.mxu0
  %v3393 = vsel %vm80, %v3385, -inf
  %3394 = vmax.xlane.f32.xlu0 %v3393
  %v3395 = vpop.xlane.xlu0 %3394
  %v3396 = vsel %vm80, %v3390, -inf
  %3397 = vmax.xlane.f32.xlu0 %v3396
  %v3398 = vpop.xlane.xlu0 %3397
  %v3399 = vsub.f32 %v3385, %v3395
  %v3400 = vsub.f32 %v3390, %v3398
  %v3401 = vmul.f32 %v3399, 1.442695
  %v3402 = vpow.pop %v3401
  %v3403 = vmul.f32 %v3400, 1.442695
  %v3404 = vpow.pop %v3403
  %v3405 = vsel %vm80, %v3402, 0.0
  %3406 = vadd.xlane.f32.xlu0 %v3405
  %v3407 = vpop.xlane.xlu0 %3406
  %v3408 = vsel %vm80, %v3404, 0.0
  %3409 = vadd.xlane.f32.xlu0 %v3408
  %v3410 = vpop.xlane.xlu0 %3409
  %v3411 = vrcp.pop %v3407
  %v3412 = vrcp.pop %v3410
  %v3413 = vmul.f32 %v3402, %v3411
  %v3414 = vmul.f32 %v3404, %v3412
  %3415 = vrot.lane.b32.xlu0 %v3298, 64
  %v3416 = vpop.permute.xlu0 %3415
  %3417 = vrot.lane.b32.xlu0 %v3301, 64
  %v3418 = vpop.permute.xlu0 %3417
  %v3422 = vsel %vm80, %v3413, 0
  %v3425 = vsel %vm80, %v3414, 0
  %3427 = vmatprep.subr.mxu0 0.0
  %3428 = vmatpush1.msra.mxu0 %v3416
  %3429 = vmatprep.subr.mxu0 0.0
  %3430 = vmatpush1.msra.mxu0 %v3418
  %3431 = vmatprep.subr.mxu0 0.0
  %3432 = vmatpush1.msra.mxu0 0.0
  %3433 = vmatprep.subr.mxu0 0.0
  %3434 = vmatpush1.msra.mxu0 0.0
  %3435 = vmatprep.subr.mxu0 0.0
  %3436 = vmatpush1.msra.mxu0 0.0
  %3437 = vmatprep.subr.mxu0 0.0
  %3438 = vmatpush1.msra.mxu0 0.0
  %3439 = vmatprep.subr.mxu0 0.0
  %3440 = vmatpush1.msra.mxu0 0.0
  %3441 = vmatprep.subr.mxu0 0.0
  %3442 = vmatpush1.msra.mxu0 0.0
  %3443 = vmatprep.subr.mxu0 0.0
  %3444 = vmatpush1.msra.mxu0 0.0
  %3445 = vmatprep.subr.mxu0 0.0
  %3446 = vmatpush1.msra.mxu0 0.0
  %3447 = vmatprep.subr.mxu0 0.0
  %3448 = vmatpush1.msra.mxu0 0.0
  %3449 = vmatprep.subr.mxu0 0.0
  %3450 = vmatpush1.msra.mxu0 0.0
  %3451 = vmatprep.subr.mxu0 0.0
  %3452 = vmatpush1.msra.mxu0 0.0
  %3453 = vmatprep.subr.mxu0 0.0
  %3454 = vmatpush1.msra.mxu0 0.0
  %3455 = vmatprep.subr.mxu0 0.0
  %3456 = vmatpush1.msra.mxu0 0.0
  %3457 = vmatprep.subr.mxu0 0.0
  %3458 = vmatpush1.msra.mxu0 0.0
  %3459 = vmatprep.subr.mxu0 0.0
  %3460 = vmatpush1.msra.mxu0 0.0
  %3461 = vmatprep.subr.mxu0 0.0
  %3462 = vmatpush1.msra.mxu0 0.0
  %3463 = vmatprep.subr.mxu0 0.0
  %3464 = vmatpush1.msra.mxu0 0.0
  %3465 = vmatprep.subr.mxu0 0.0
  %3466 = vmatpush1.msra.mxu0 0.0
  %3467 = vmatprep.subr.mxu0 0.0
  %3468 = vmatpush1.msra.mxu0 0.0
  %3469 = vmatprep.subr.mxu0 0.0
  %3470 = vmatpush1.msra.mxu0 0.0
  %3471 = vmatprep.subr.mxu0 0.0
  %3472 = vmatpush1.msra.mxu0 0.0
  %3473 = vmatprep.subr.mxu0 0.0
  %3474 = vmatpush1.msra.mxu0 0.0
  %3475 = vmatprep.subr.mxu0 0.0
  %3476 = vmatpush1.msra.mxu0 0.0
  %3477 = vmatprep.subr.mxu0 0.0
  %3478 = vmatpush1.msra.mxu0 0.0
  %3479 = vmatprep.subr.mxu0 0.0
  %3480 = vmatpush1.msra.mxu0 0.0
  %3481 = vmatprep.subr.mxu0 0.0
  %3482 = vmatpush1.msra.mxu0 0.0
  %3483 = vmatprep.subr.mxu0 0.0
  %3484 = vmatpush1.msra.mxu0 0.0
  %3485 = vmatprep.subr.mxu0 0.0
  %3486 = vmatpush1.msra.mxu0 0.0
  %3487 = vmatprep.subr.mxu0 0.0
  %3488 = vmatpush1.msra.mxu0 0.0
  %3489 = vmatprep.subr.mxu0 0.0
  %3490 = vmatpush1.msra.mxu0 0.0
  %3491 = vmatprep.mubr.f32.mxu0 0.0
  %3492 = vmatmul.mubr.f32.gmra.mrb[0].mxu0 %v3422
  %v3493 = vpop.f32.mrb[0].mxu0
  %v3494 = vadd.f32 0.0, %v3493
  %v3495 = vpop.f32.mrb[0].mxu0
  %3496 = vmatprep.mubr.f32.mxu0 0.0
  %3497 = vmatmul.mubr.f32.gmra.mrb[0].mxu0 %v3425
  %v3498 = vpop.f32.mrb[0].mxu0
  %v3499 = vadd.f32 0.0, %v3498
  %v3500 = vpop.f32.mrb[0].mxu0
  %3501 = vdwg.mxu0
  %3502 = vst.msk [vmem:[#allocation2] sm:$0xff] %vm200, %v3494
  %3503 = vst.msk [vmem:[#allocation2 + $0x8] sm:$0xff] %vm200, %v3499
  %3504 = vrot.lane.b32.xlu0 %v3298, 120
  %v3505 = vpop.permute.xlu0 %3504
  %3506 = vrot.lane.b32.xlu0 %v3301, 120
  %v3507 = vpop.permute.xlu0 %3506
  %3508 = vrot.lane.b32.xlu0 %v3298, 88
  %v3509 = vpop.permute.xlu0 %3508
  %3510 = vrot.lane.b32.xlu0 %v3301, 88
  %v3511 = vpop.permute.xlu0 %3510
  %v3512 = vsel %vm200, %v3505, 0
  %v3514 = vsel %vm200, %v3507, 0
  %v3516 = vsel %vm200, %v3509, 0
  %v3518 = vsel %vm200, %v3511, 0
  %3520 = vmatprep.subr.mxu0 0.0
  %3521 = vmatpush1.xpose.msra.mxu0 %v3516
  %3522 = vmatprep.subr.mxu0 0.0
  %3523 = vmatpush1.xpose.msra.mxu0 %v3518
  %3524 = vmatprep.subr.mxu0 0.0
  %3525 = vmatpush1.xpose.msra.mxu0 0.0
  %3526 = vmatprep.subr.mxu0 0.0
  %3527 = vmatpush1.xpose.msra.mxu0 0.0
  %3528 = vmatprep.subr.mxu0 0.0
  %3529 = vmatpush1.xpose.msra.mxu0 0.0
  %3530 = vmatprep.subr.mxu0 0.0
  %3531 = vmatpush1.xpose.msra.mxu0 0.0
  %3532 = vmatprep.subr.mxu0 0.0
  %3533 = vmatpush1.xpose.msra.mxu0 0.0
  %3534 = vmatprep.subr.mxu0 0.0
  %3535 = vmatpush1.xpose.msra.mxu0 0.0
  %3536 = vmatprep.subr.mxu0 0.0
  %3537 = vmatpush1.xpose.msra.mxu0 0.0
  %3538 = vmatprep.subr.mxu0 0.0
  %3539 = vmatpush1.xpose.msra.mxu0 0.0
  %3540 = vmatprep.subr.mxu0 0.0
  %3541 = vmatpush1.xpose.msra.mxu0 0.0
  %3542 = vmatprep.subr.mxu0 0.0
  %3543 = vmatpush1.xpose.msra.mxu0 0.0
  %3544 = vmatprep.subr.mxu0 0.0
  %3545 = vmatpush1.xpose.msra.mxu0 0.0
  %3546 = vmatprep.subr.mxu0 0.0
  %3547 = vmatpush1.xpose.msra.mxu0 0.0
  %3548 = vmatprep.subr.mxu0 0.0
  %3549 = vmatpush1.xpose.msra.mxu0 0.0
  %3550 = vmatprep.subr.mxu0 0.0
  %3551 = vmatpush1.xpose.msra.mxu0 0.0
  %3552 = vmatprep.subr.mxu0 0.0
  %3553 = vmatpush1.xpose.msra.mxu0 0.0
  %3554 = vmatprep.subr.mxu0 0.0
  %3555 = vmatpush1.xpose.msra.mxu0 0.0
  %3556 = vmatprep.subr.mxu0 0.0
  %3557 = vmatpush1.xpose.msra.mxu0 0.0
  %3558 = vmatprep.subr.mxu0 0.0
  %3559 = vmatpush1.xpose.msra.mxu0 0.0
  %3560 = vmatprep.subr.mxu0 0.0
  %3561 = vmatpush1.xpose.msra.mxu0 0.0
  %3562 = vmatprep.subr.mxu0 0.0
  %3563 = vmatpush1.xpose.msra.mxu0 0.0
  %3564 = vmatprep.subr.mxu0 0.0
  %3565 = vmatpush1.xpose.msra.mxu0 0.0
  %3566 = vmatprep.subr.mxu0 0.0
  %3567 = vmatpush1.xpose.msra.mxu0 0.0
  %3568 = vmatprep.subr.mxu0 0.0
  %3569 = vmatpush1.xpose.msra.mxu0 0.0
  %3570 = vmatprep.subr.mxu0 0.0
  %3571 = vmatpush1.xpose.msra.mxu0 0.0
  %3572 = vmatprep.subr.mxu0 0.0
  %3573 = vmatpush1.xpose.msra.mxu0 0.0
  %3574 = vmatprep.subr.mxu0 0.0
  %3575 = vmatpush1.xpose.msra.mxu0 0.0
  %3576 = vmatprep.subr.mxu0 0.0
  %3577 = vmatpush1.xpose.msra.mxu0 0.0
  %3578 = vmatprep.subr.mxu0 0.0
  %3579 = vmatpush1.xpose.msra.mxu0 0.0
  %3580 = vmatprep.subr.mxu0 0.0
  %3581 = vmatpush1.xpose.msra.mxu0 0.0
  %3582 = vmatprep.subr.mxu0 0.0
  %3583 = vmatpush1.xpose.msra.mxu0 0.0
  %3584 = vmatprep.mubr.f32.mxu0 0.0
  %3585 = vmatmul.mubr.f32.gmra.mrb[0].mxu0 %v3512
  %v3586 = vpop.f32.mrb[0].mxu0
  %v3587 = vadd.f32 %v60, %v3586
  %v3588 = vpop.f32.mrb[0].mxu0
  %3589 = vmatprep.mubr.f32.mxu0 0.0
  %3590 = vmatmul.mubr.f32.gmra.mrb[0].mxu0 %v3514
  %v3591 = vpop.f32.mrb[0].mxu0
  %v3592 = vadd.f32 %v61, %v3591
  %v3593 = vpop.f32.mrb[0].mxu0
  %3594 = vdwg.mxu0
  %v3595 = vsel %vm80, %v3587, -inf
  %3596 = vmax.xlane.f32.xlu0 %v3595
  %v3597 = vpop.xlane.xlu0 %3596
  %v3598 = vsel %vm80, %v3592, -inf
  %3599 = vmax.xlane.f32.xlu0 %v3598
  %v3600 = vpop.xlane.xlu0 %3599
  %v3601 = vsub.f32 %v3587, %v3597
  %v3602 = vsub.f32 %v3592, %v3600
  %v3603 = vmul.f32 %v3601, 1.442695
  %v3604 = vpow.pop %v3603
  %v3605 = vmul.f32 %v3602, 1.442695
  %v3606 = vpow.pop %v3605
  %v3607 = vsel %vm80, %v3604, 0.0
  %3608 = vadd.xlane.f32.xlu0 %v3607
  %v3609 = vpop.xlane.xlu0 %3608
  %v3610 = vsel %vm80, %v3606, 0.0
  %3611 = vadd.xlane.f32.xlu0 %v3610
  %v3612 = vpop.xlane.xlu0 %3611
  %v3613 = vrcp.pop %v3609
  %v3614 = vrcp.pop %v3612
  %v3615 = vmul.f32 %v3604, %v3613
  %v3616 = vmul.f32 %v3606, %v3614
  %3617 = vrot.lane.b32.xlu0 %v3298, 56
  %v3618 = vpop.permute.xlu0 %3617
  %3619 = vrot.lane.b32.xlu0 %v3301, 56
  %v3620 = vpop.permute.xlu0 %3619
  %v3624 = vsel %vm80, %v3615, 0
  %v3627 = vsel %vm80, %v3616, 0
  %3629 = vmatprep.subr.mxu0 0.0
  %3630 = vmatpush1.msra.mxu0 %v3618
  %3631 = vmatprep.subr.mxu0 0.0
  %3632 = vmatpush1.msra.mxu0 %v3620
  %3633 = vmatprep.subr.mxu0 0.0
  %3634 = vmatpush1.msra.mxu0 0.0
  %3635 = vmatprep.subr.mxu0 0.0
  %3636 = vmatpush1.msra.mxu0 0.0
  %3637 = vmatprep.subr.mxu0 0.0
  %3638 = vmatpush1.msra.mxu0 0.0
  %3639 = vmatprep.subr.mxu0 0.0
  %3640 = vmatpush1.msra.mxu0 0.0
  %3641 = vmatprep.subr.mxu0 0.0
  %3642 = vmatpush1.msra.mxu0 0.0
  %3643 = vmatprep.subr.mxu0 0.0
  %3644 = vmatpush1.msra.mxu0 0.0
  %3645 = vmatprep.subr.mxu0 0.0
  %3646 = vmatpush1.msra.mxu0 0.0
  %3647 = vmatprep.subr.mxu0 0.0
  %3648 = vmatpush1.msra.mxu0 0.0
  %3649 = vmatprep.subr.mxu0 0.0
  %3650 = vmatpush1.msra.mxu0 0.0
  %3651 = vmatprep.subr.mxu0 0.0
  %3652 = vmatpush1.msra.mxu0 0.0
  %3653 = vmatprep.subr.mxu0 0.0
  %3654 = vmatpush1.msra.mxu0 0.0
  %3655 = vmatprep.subr.mxu0 0.0
  %3656 = vmatpush1.msra.mxu0 0.0
  %3657 = vmatprep.subr.mxu0 0.0
  %3658 = vmatpush1.msra.mxu0 0.0
  %3659 = vmatprep.subr.mxu0 0.0
  %3660 = vmatpush1.msra.mxu0 0.0
  %3661 = vmatprep.subr.mxu0 0.0
  %3662 = vmatpush1.msra.mxu0 0.0
  %3663 = vmatprep.subr.mxu0 0.0
  %3664 = vmatpush1.msra.mxu0 0.0
  %3665 = vmatprep.subr.mxu0 0.0
  %3666 = vmatpush1.msra.mxu0 0.0
  %3667 = vmatprep.subr.mxu0 0.0
  %3668 = vmatpush1.msra.mxu0 0.0
  %3669 = vmatprep.subr.mxu0 0.0
  %3670 = vmatpush1.msra.mxu0 0.0
  %3671 = vmatprep.subr.mxu0 0.0
  %3672 = vmatpush1.msra.mxu0 0.0
  %3673 = vmatprep.subr.mxu0 0.0
  %3674 = vmatpush1.msra.mxu0 0.0
  %3675 = vmatprep.subr.mxu0 0.0
  %3676 = vmatpush1.msra.mxu0 0.0
  %3677 = vmatprep.subr.mxu0 0.0
  %3678 = vmatpush1.msra.mxu0 0.0
  %3679 = vmatprep.subr.mxu0 0.0
  %3680 = vmatpush1.msra.mxu0 0.0
  %3681 = vmatprep.subr.mxu0 0.0
  %3682 = vmatpush1.msra.mxu0 0.0
  %3683 = vmatprep.subr.mxu0 0.0
  %3684 = vmatpush1.msra.mxu0 0.0
  %3685 = vmatprep.subr.mxu0 0.0
  %3686 = vmatpush1.msra.mxu0 0.0
  %3687 = vmatprep.subr.mxu0 0.0
  %3688 = vmatpush1.msra.mxu0 0.0
  %3689 = vmatprep.subr.mxu0 0.0
  %3690 = vmatpush1.msra.mxu0 0.0
  %3691 = vmatprep.subr.mxu0 0.0
  %3692 = vmatpush1.msra.mxu0 0.0
  %3693 = vmatprep.mubr.f32.mxu0 0.0
  %3694 = vmatmul.mubr.f32.gmra.mrb[0].mxu0 %v3624
  %v3695 = vpop.f32.mrb[0].mxu0
  %v3696 = vadd.f32 0.0, %v3695
  %v3697 = vpop.f32.mrb[0].mxu0
  %3698 = vmatprep.mubr.f32.mxu0 0.0
  %3699 = vmatmul.mubr.f32.gmra.mrb[0].mxu0 %v3627
  %v3700 = vpop.f32.mrb[0].mxu0
  %v3701 = vadd.f32 0.0, %v3700
  %v3702 = vpop.f32.mrb[0].mxu0
  %3703 = vdwg.mxu0
  %3706 = vrot.lane.b32.xlu0 %v3696, 8
  %v3707 = vpop.permute.xlu0 %3706
  %3708 = vrot.lane.b32.xlu0 %v3701, 8
  %v3709 = vpop.permute.xlu0 %3708
  %3712 = vst.msk [vmem:[#allocation2] sm:$0xff] %vm603, %v3707
  %3713 = vst.msk [vmem:[#allocation2 + $0x8] sm:$0xff] %vm603, %v3709
  %3714 = vrot.lane.b32.xlu0 %v3298, 112
  %v3715 = vpop.permute.xlu0 %3714
  %3716 = vrot.lane.b32.xlu0 %v3301, 112
  %v3717 = vpop.permute.xlu0 %3716
  %3718 = vrot.lane.b32.xlu0 %v3298, 80
  %v3719 = vpop.permute.xlu0 %3718
  %3720 = vrot.lane.b32.xlu0 %v3301, 80
  %v3721 = vpop.permute.xlu0 %3720
  %v3722 = vsel %vm200, %v3715, 0
  %v3724 = vsel %vm200, %v3717, 0
  %v3726 = vsel %vm200, %v3719, 0
  %v3728 = vsel %vm200, %v3721, 0
  %3730 = vmatprep.subr.mxu0 0.0
  %3731 = vmatpush1.xpose.msra.mxu0 %v3726
  %3732 = vmatprep.subr.mxu0 0.0
  %3733 = vmatpush1.xpose.msra.mxu0 %v3728
  %3734 = vmatprep.subr.mxu0 0.0
  %3735 = vmatpush1.xpose.msra.mxu0 0.0
  %3736 = vmatprep.subr.mxu0 0.0
  %3737 = vmatpush1.xpose.msra.mxu0 0.0
  %3738 = vmatprep.subr.mxu0 0.0
  %3739 = vmatpush1.xpose.msra.mxu0 0.0
  %3740 = vmatprep.subr.mxu0 0.0
  %3741 = vmatpush1.xpose.msra.mxu0 0.0
  %3742 = vmatprep.subr.mxu0 0.0
  %3743 = vmatpush1.xpose.msra.mxu0 0.0
  %3744 = vmatprep.subr.mxu0 0.0
  %3745 = vmatpush1.xpose.msra.mxu0 0.0
  %3746 = vmatprep.subr.mxu0 0.0
  %3747 = vmatpush1.xpose.msra.mxu0 0.0
  %3748 = vmatprep.subr.mxu0 0.0
  %3749 = vmatpush1.xpose.msra.mxu0 0.0
  %3750 = vmatprep.subr.mxu0 0.0
  %3751 = vmatpush1.xpose.msra.mxu0 0.0
  %3752 = vmatprep.subr.mxu0 0.0
  %3753 = vmatpush1.xpose.msra.mxu0 0.0
  %3754 = vmatprep.subr.mxu0 0.0
  %3755 = vmatpush1.xpose.msra.mxu0 0.0
  %3756 = vmatprep.subr.mxu0 0.0
  %3757 = vmatpush1.xpose.msra.mxu0 0.0
  %3758 = vmatprep.subr.mxu0 0.0
  %3759 = vmatpush1.xpose.msra.mxu0 0.0
  %3760 = vmatprep.subr.mxu0 0.0
  %3761 = vmatpush1.xpose.msra.mxu0 0.0
  %3762 = vmatprep.subr.mxu0 0.0
  %3763 = vmatpush1.xpose.msra.mxu0 0.0
  %3764 = vmatprep.subr.mxu0 0.0
  %3765 = vmatpush1.xpose.msra.mxu0 0.0
  %3766 = vmatprep.subr.mxu0 0.0
  %3767 = vmatpush1.xpose.msra.mxu0 0.0
  %3768 = vmatprep.subr.mxu0 0.0
  %3769 = vmatpush1.xpose.msra.mxu0 0.0
  %3770 = vmatprep.subr.mxu0 0.0
  %3771 = vmatpush1.xpose.msra.mxu0 0.0
  %3772 = vmatprep.subr.mxu0 0.0
  %3773 = vmatpush1.xpose.msra.mxu0 0.0
  %3774 = vmatprep.subr.mxu0 0.0
  %3775 = vmatpush1.xpose.msra.mxu0 0.0
  %3776 = vmatprep.subr.mxu0 0.0
  %3777 = vmatpush1.xpose.msra.mxu0 0.0
  %3778 = vmatprep.subr.mxu0 0.0
  %3779 = vmatpush1.xpose.msra.mxu0 0.0
  %3780 = vmatprep.subr.mxu0 0.0
  %3781 = vmatpush1.xpose.msra.mxu0 0.0
  %3782 = vmatprep.subr.mxu0 0.0
  %3783 = vmatpush1.xpose.msra.mxu0 0.0
  %3784 = vmatprep.subr.mxu0 0.0
  %3785 = vmatpush1.xpose.msra.mxu0 0.0
  %3786 = vmatprep.subr.mxu0 0.0
  %3787 = vmatpush1.xpose.msra.mxu0 0.0
  %3788 = vmatprep.subr.mxu0 0.0
  %3789 = vmatpush1.xpose.msra.mxu0 0.0
  %3790 = vmatprep.subr.mxu0 0.0
  %3791 = vmatpush1.xpose.msra.mxu0 0.0
  %3792 = vmatprep.subr.mxu0 0.0
  %3793 = vmatpush1.xpose.msra.mxu0 0.0
  %3794 = vmatprep.mubr.f32.mxu0 0.0
  %3795 = vmatmul.mubr.f32.gmra.mrb[0].mxu0 %v3722
  %v3796 = vpop.f32.mrb[0].mxu0
  %v3797 = vadd.f32 %v60, %v3796
  %v3798 = vpop.f32.mrb[0].mxu0
  %3799 = vmatprep.mubr.f32.mxu0 0.0
  %3800 = vmatmul.mubr.f32.gmra.mrb[0].mxu0 %v3724
  %v3801 = vpop.f32.mrb[0].mxu0
  %v3802 = vadd.f32 %v61, %v3801
  %v3803 = vpop.f32.mrb[0].mxu0
  %3804 = vdwg.mxu0
  %v3805 = vsel %vm80, %v3797, -inf
  %3806 = vmax.xlane.f32.xlu0 %v3805
  %v3807 = vpop.xlane.xlu0 %3806
  %v3808 = vsel %vm80, %v3802, -inf
  %3809 = vmax.xlane.f32.xlu0 %v3808
  %v3810 = vpop.xlane.xlu0 %3809
  %v3811 = vsub.f32 %v3797, %v3807
  %v3812 = vsub.f32 %v3802, %v3810
  %v3813 = vmul.f32 %v3811, 1.442695
  %v3814 = vpow.pop %v3813
  %v3815 = vmul.f32 %v3812, 1.442695
  %v3816 = vpow.pop %v3815
  %v3817 = vsel %vm80, %v3814, 0.0
  %3818 = vadd.xlane.f32.xlu0 %v3817
  %v3819 = vpop.xlane.xlu0 %3818
  %v3820 = vsel %vm80, %v3816, 0.0
  %3821 = vadd.xlane.f32.xlu0 %v3820
  %v3822 = vpop.xlane.xlu0 %3821
  %v3823 = vrcp.pop %v3819
  %v3824 = vrcp.pop %v3822
  %v3825 = vmul.f32 %v3814, %v3823
  %v3826 = vmul.f32 %v3816, %v3824
  %3827 = vrot.lane.b32.xlu0 %v3298, 48
  %v3828 = vpop.permute.xlu0 %3827
  %3829 = vrot.lane.b32.xlu0 %v3301, 48
  %v3830 = vpop.permute.xlu0 %3829
  %v3834 = vsel %vm80, %v3825, 0
  %v3837 = vsel %vm80, %v3826, 0
  %3839 = vmatprep.subr.mxu0 0.0
  %3840 = vmatpush1.msra.mxu0 %v3828
  %3841 = vmatprep.subr.mxu0 0.0
  %3842 = vmatpush1.msra.mxu0 %v3830
  %3843 = vmatprep.subr.mxu0 0.0
  %3844 = vmatpush1.msra.mxu0 0.0
  %3845 = vmatprep.subr.mxu0 0.0
  %3846 = vmatpush1.msra.mxu0 0.0
  %3847 = vmatprep.subr.mxu0 0.0
  %3848 = vmatpush1.msra.mxu0 0.0
  %3849 = vmatprep.subr.mxu0 0.0
  %3850 = vmatpush1.msra.mxu0 0.0
  %3851 = vmatprep.subr.mxu0 0.0
  %3852 = vmatpush1.msra.mxu0 0.0
  %3853 = vmatprep.subr.mxu0 0.0
  %3854 = vmatpush1.msra.mxu0 0.0
  %3855 = vmatprep.subr.mxu0 0.0
  %3856 = vmatpush1.msra.mxu0 0.0
  %3857 = vmatprep.subr.mxu0 0.0
  %3858 = vmatpush1.msra.mxu0 0.0
  %3859 = vmatprep.subr.mxu0 0.0
  %3860 = vmatpush1.msra.mxu0 0.0
  %3861 = vmatprep.subr.mxu0 0.0
  %3862 = vmatpush1.msra.mxu0 0.0
  %3863 = vmatprep.subr.mxu0 0.0
  %3864 = vmatpush1.msra.mxu0 0.0
  %3865 = vmatprep.subr.mxu0 0.0
  %3866 = vmatpush1.msra.mxu0 0.0
  %3867 = vmatprep.subr.mxu0 0.0
  %3868 = vmatpush1.msra.mxu0 0.0
  %3869 = vmatprep.subr.mxu0 0.0
  %3870 = vmatpush1.msra.mxu0 0.0
  %3871 = vmatprep.subr.mxu0 0.0
  %3872 = vmatpush1.msra.mxu0 0.0
  %3873 = vmatprep.subr.mxu0 0.0
  %3874 = vmatpush1.msra.mxu0 0.0
  %3875 = vmatprep.subr.mxu0 0.0
  %3876 = vmatpush1.msra.mxu0 0.0
  %3877 = vmatprep.subr.mxu0 0.0
  %3878 = vmatpush1.msra.mxu0 0.0
  %3879 = vmatprep.subr.mxu0 0.0
  %3880 = vmatpush1.msra.mxu0 0.0
  %3881 = vmatprep.subr.mxu0 0.0
  %3882 = vmatpush1.msra.mxu0 0.0
  %3883 = vmatprep.subr.mxu0 0.0
  %3884 = vmatpush1.msra.mxu0 0.0
  %3885 = vmatprep.subr.mxu0 0.0
  %3886 = vmatpush1.msra.mxu0 0.0
  %3887 = vmatprep.subr.mxu0 0.0
  %3888 = vmatpush1.msra.mxu0 0.0
  %3889 = vmatprep.subr.mxu0 0.0
  %3890 = vmatpush1.msra.mxu0 0.0
  %3891 = vmatprep.subr.mxu0 0.0
  %3892 = vmatpush1.msra.mxu0 0.0
  %3893 = vmatprep.subr.mxu0 0.0
  %3894 = vmatpush1.msra.mxu0 0.0
  %3895 = vmatprep.subr.mxu0 0.0
  %3896 = vmatpush1.msra.mxu0 0.0
  %3897 = vmatprep.subr.mxu0 0.0
  %3898 = vmatpush1.msra.mxu0 0.0
  %3899 = vmatprep.subr.mxu0 0.0
  %3900 = vmatpush1.msra.mxu0 0.0
  %3901 = vmatprep.subr.mxu0 0.0
  %3902 = vmatpush1.msra.mxu0 0.0
  %3903 = vmatprep.mubr.f32.mxu0 0.0
  %3904 = vmatmul.mubr.f32.gmra.mrb[0].mxu0 %v3834
  %v3905 = vpop.f32.mrb[0].mxu0
  %v3906 = vadd.f32 0.0, %v3905
  %v3907 = vpop.f32.mrb[0].mxu0
  %3908 = vmatprep.mubr.f32.mxu0 0.0
  %3909 = vmatmul.mubr.f32.gmra.mrb[0].mxu0 %v3837
  %v3910 = vpop.f32.mrb[0].mxu0
  %v3911 = vadd.f32 0.0, %v3910
  %v3912 = vpop.f32.mrb[0].mxu0
  %3913 = vdwg.mxu0
  %3916 = vrot.lane.b32.xlu0 %v3906, 16
  %v3917 = vpop.permute.xlu0 %3916
  %3918 = vrot.lane.b32.xlu0 %v3911, 16
  %v3919 = vpop.permute.xlu0 %3918
  %3922 = vst.msk [vmem:[#allocation2] sm:$0xff] %vm814, %v3917
  %3923 = vst.msk [vmem:[#allocation2 + $0x8] sm:$0xff] %vm814, %v3919
  %3924 = vrot.lane.b32.xlu0 %v3298, 104
  %v3925 = vpop.permute.xlu0 %3924
  %3926 = vrot.lane.b32.xlu0 %v3301, 104
  %v3927 = vpop.permute.xlu0 %3926
  %3928 = vrot.lane.b32.xlu0 %v3298, 72
  %v3929 = vpop.permute.xlu0 %3928
  %3930 = vrot.lane.b32.xlu0 %v3301, 72
  %v3931 = vpop.permute.xlu0 %3930
  %v3932 = vsel %vm200, %v3925, 0
  %v3934 = vsel %vm200, %v3927, 0
  %v3936 = vsel %vm200, %v3929, 0
  %v3938 = vsel %vm200, %v3931, 0
  %3940 = vmatprep.subr.mxu0 0.0
  %3941 = vmatpush1.xpose.msra.mxu0 %v3936
  %3942 = vmatprep.subr.mxu0 0.0
  %3943 = vmatpush1.xpose.msra.mxu0 %v3938
  %3944 = vmatprep.subr.mxu0 0.0
  %3945 = vmatpush1.xpose.msra.mxu0 0.0
  %3946 = vmatprep.subr.mxu0 0.0
  %3947 = vmatpush1.xpose.msra.mxu0 0.0
  %3948 = vmatprep.subr.mxu0 0.0
  %3949 = vmatpush1.xpose.msra.mxu0 0.0
  %3950 = vmatprep.subr.mxu0 0.0
  %3951 = vmatpush1.xpose.msra.mxu0 0.0
  %3952 = vmatprep.subr.mxu0 0.0
  %3953 = vmatpush1.xpose.msra.mxu0 0.0
  %3954 = vmatprep.subr.mxu0 0.0
  %3955 = vmatpush1.xpose.msra.mxu0 0.0
  %3956 = vmatprep.subr.mxu0 0.0
  %3957 = vmatpush1.xpose.msra.mxu0 0.0
  %3958 = vmatprep.subr.mxu0 0.0
  %3959 = vmatpush1.xpose.msra.mxu0 0.0
  %3960 = vmatprep.subr.mxu0 0.0
  %3961 = vmatpush1.xpose.msra.mxu0 0.0
  %3962 = vmatprep.subr.mxu0 0.0
  %3963 = vmatpush1.xpose.msra.mxu0 0.0
  %3964 = vmatprep.subr.mxu0 0.0
  %3965 = vmatpush1.xpose.msra.mxu0 0.0
  %3966 = vmatprep.subr.mxu0 0.0
  %3967 = vmatpush1.xpose.msra.mxu0 0.0
  %3968 = vmatprep.subr.mxu0 0.0
  %3969 = vmatpush1.xpose.msra.mxu0 0.0
  %3970 = vmatprep.subr.mxu0 0.0
  %3971 = vmatpush1.xpose.msra.mxu0 0.0
  %3972 = vmatprep.subr.mxu0 0.0
  %3973 = vmatpush1.xpose.msra.mxu0 0.0
  %3974 = vmatprep.subr.mxu0 0.0
  %3975 = vmatpush1.xpose.msra.mxu0 0.0
  %3976 = vmatprep.subr.mxu0 0.0
  %3977 = vmatpush1.xpose.msra.mxu0 0.0
  %3978 = vmatprep.subr.mxu0 0.0
  %3979 = vmatpush1.xpose.msra.mxu0 0.0
  %3980 = vmatprep.subr.mxu0 0.0
  %3981 = vmatpush1.xpose.msra.mxu0 0.0
  %3982 = vmatprep.subr.mxu0 0.0
  %3983 = vmatpush1.xpose.msra.mxu0 0.0
  %3984 = vmatprep.subr.mxu0 0.0
  %3985 = vmatpush1.xpose.msra.mxu0 0.0
  %3986 = vmatprep.subr.mxu0 0.0
  %3987 = vmatpush1.xpose.msra.mxu0 0.0
  %3988 = vmatprep.subr.mxu0 0.0
  %3989 = vmatpush1.xpose.msra.mxu0 0.0
  %3990 = vmatprep.subr.mxu0 0.0
  %3991 = vmatpush1.xpose.msra.mxu0 0.0
  %3992 = vmatprep.subr.mxu0 0.0
  %3993 = vmatpush1.xpose.msra.mxu0 0.0
  %3994 = vmatprep.subr.mxu0 0.0
  %3995 = vmatpush1.xpose.msra.mxu0 0.0
  %3996 = vmatprep.subr.mxu0 0.0
  %3997 = vmatpush1.xpose.msra.mxu0 0.0
  %3998 = vmatprep.subr.mxu0 0.0
  %3999 = vmatpush1.xpose.msra.mxu0 0.0
  %4000 = vmatprep.subr.mxu0 0.0
  %4001 = vmatpush1.xpose.msra.mxu0 0.0
  %4002 = vmatprep.subr.mxu0 0.0
  %4003 = vmatpush1.xpose.msra.mxu0 0.0
  %4004 = vmatprep.mubr.f32.mxu0 0.0
  %4005 = vmatmul.mubr.f32.gmra.mrb[0].mxu0 %v3932
  %v4006 = vpop.f32.mrb[0].mxu0
  %v4007 = vadd.f32 %v60, %v4006
  %v4008 = vpop.f32.mrb[0].mxu0
  %4009 = vmatprep.mubr.f32.mxu0 0.0
  %4010 = vmatmul.mubr.f32.gmra.mrb[0].mxu0 %v3934
  %v4011 = vpop.f32.mrb[0].mxu0
  %v4012 = vadd.f32 %v61, %v4011
  %v4013 = vpop.f32.mrb[0].mxu0
  %4014 = vdwg.mxu0
  %v4015 = vsel %vm80, %v4007, -inf
  %4016 = vmax.xlane.f32.xlu0 %v4015
  %v4017 = vpop.xlane.xlu0 %4016
  %v4018 = vsel %vm80, %v4012, -inf
  %4019 = vmax.xlane.f32.xlu0 %v4018
  %v4020 = vpop.xlane.xlu0 %4019
  %v4021 = vsub.f32 %v4007, %v4017
  %v4022 = vsub.f32 %v4012, %v4020
  %v4023 = vmul.f32 %v4021, 1.442695
  %v4024 = vpow.pop %v4023
  %v4025 = vmul.f32 %v4022, 1.442695
  %v4026 = vpow.pop %v4025
  %v4027 = vsel %vm80, %v4024, 0.0
  %4028 = vadd.xlane.f32.xlu0 %v4027
  %v4029 = vpop.xlane.xlu0 %4028
  %v4030 = vsel %vm80, %v4026, 0.0
  %4031 = vadd.xlane.f32.xlu0 %v4030
  %v4032 = vpop.xlane.xlu0 %4031
  %v4033 = vrcp.pop %v4029
  %v4034 = vrcp.pop %v4032
  %v4035 = vmul.f32 %v4024, %v4033
  %v4036 = vmul.f32 %v4026, %v4034
  %4037 = vrot.lane.b32.xlu0 %v3298, 40
  %v4038 = vpop.permute.xlu0 %4037
  %4039 = vrot.lane.b32.xlu0 %v3301, 40
  %v4040 = vpop.permute.xlu0 %4039
  %v4044 = vsel %vm80, %v4035, 0
  %v4047 = vsel %vm80, %v4036, 0
  %4049 = vmatprep.subr.mxu0 0.0
  %4050 = vmatpush1.msra.mxu0 %v4038
  %4051 = vmatprep.subr.mxu0 0.0
  %4052 = vmatpush1.msra.mxu0 %v4040
  %4053 = vmatprep.subr.mxu0 0.0
  %4054 = vmatpush1.msra.mxu0 0.0
  %4055 = vmatprep.subr.mxu0 0.0
  %4056 = vmatpush1.msra.mxu0 0.0
  %4057 = vmatprep.subr.mxu0 0.0
  %4058 = vmatpush1.msra.mxu0 0.0
  %4059 = vmatprep.subr.mxu0 0.0
  %4060 = vmatpush1.msra.mxu0 0.0
  %4061 = vmatprep.subr.mxu0 0.0
  %4062 = vmatpush1.msra.mxu0 0.0
  %4063 = vmatprep.subr.mxu0 0.0
  %4064 = vmatpush1.msra.mxu0 0.0
  %4065 = vmatprep.subr.mxu0 0.0
  %4066 = vmatpush1.msra.mxu0 0.0
  %4067 = vmatprep.subr.mxu0 0.0
  %4068 = vmatpush1.msra.mxu0 0.0
  %4069 = vmatprep.subr.mxu0 0.0
  %4070 = vmatpush1.msra.mxu0 0.0
  %4071 = vmatprep.subr.mxu0 0.0
  %4072 = vmatpush1.msra.mxu0 0.0
  %4073 = vmatprep.subr.mxu0 0.0
  %4074 = vmatpush1.msra.mxu0 0.0
  %4075 = vmatprep.subr.mxu0 0.0
  %4076 = vmatpush1.msra.mxu0 0.0
  %4077 = vmatprep.subr.mxu0 0.0
  %4078 = vmatpush1.msra.mxu0 0.0
  %4079 = vmatprep.subr.mxu0 0.0
  %4080 = vmatpush1.msra.mxu0 0.0
  %4081 = vmatprep.subr.mxu0 0.0
  %4082 = vmatpush1.msra.mxu0 0.0
  %4083 = vmatprep.subr.mxu0 0.0
  %4084 = vmatpush1.msra.mxu0 0.0
  %4085 = vmatprep.subr.mxu0 0.0
  %4086 = vmatpush1.msra.mxu0 0.0
  %4087 = vmatprep.subr.mxu0 0.0
  %4088 = vmatpush1.msra.mxu0 0.0
  %4089 = vmatprep.subr.mxu0 0.0
  %4090 = vmatpush1.msra.mxu0 0.0
  %4091 = vmatprep.subr.mxu0 0.0
  %4092 = vmatpush1.msra.mxu0 0.0
  %4093 = vmatprep.subr.mxu0 0.0
  %4094 = vmatpush1.msra.mxu0 0.0
  %4095 = vmatprep.subr.mxu0 0.0
  %4096 = vmatpush1.msra.mxu0 0.0
  %4097 = vmatprep.subr.mxu0 0.0
  %4098 = vmatpush1.msra.mxu0 0.0
  %4099 = vmatprep.subr.mxu0 0.0
  %4100 = vmatpush1.msra.mxu0 0.0
  %4101 = vmatprep.subr.mxu0 0.0
  %4102 = vmatpush1.msra.mxu0 0.0
  %4103 = vmatprep.subr.mxu0 0.0
  %4104 = vmatpush1.msra.mxu0 0.0
  %4105 = vmatprep.subr.mxu0 0.0
  %4106 = vmatpush1.msra.mxu0 0.0
  %4107 = vmatprep.subr.mxu0 0.0
  %4108 = vmatpush1.msra.mxu0 0.0
  %4109 = vmatprep.subr.mxu0 0.0
  %4110 = vmatpush1.msra.mxu0 0.0
  %4111 = vmatprep.subr.mxu0 0.0
  %4112 = vmatpush1.msra.mxu0 0.0
  %4113 = vmatprep.mubr.f32.mxu0 0.0
  %4114 = vmatmul.mubr.f32.gmra.mrb[0].mxu0 %v4044
  %v4115 = vpop.f32.mrb[0].mxu0
  %v4116 = vadd.f32 0.0, %v4115
  %v4117 = vpop.f32.mrb[0].mxu0
  %4118 = vmatprep.mubr.f32.mxu0 0.0
  %4119 = vmatmul.mubr.f32.gmra.mrb[0].mxu0 %v4047
  %v4120 = vpop.f32.mrb[0].mxu0
  %v4121 = vadd.f32 0.0, %v4120
  %v4122 = vpop.f32.mrb[0].mxu0
  %4123 = vdwg.mxu0
  %4126 = vrot.lane.b32.xlu0 %v4116, 24
  %v4127 = vpop.permute.xlu0 %4126
  %4128 = vrot.lane.b32.xlu0 %v4121, 24
  %v4129 = vpop.permute.xlu0 %4128
  %4132 = vst.msk [vmem:[#allocation2] sm:$0xff] %vm1025, %v4127
  %4133 = vst.msk [vmem:[#allocation2 + $0x8] sm:$0xff] %vm1025, %v4129
  %v4134 = vld [vmem:[#allocation2] sm:$0xff]
  %v4135 = vld [vmem:[#allocation2 + $0x8] sm:$0xff]
  %v4136 = vpack.c.bf16 %v4135, %v4134
  %s4137 = scalar_lea.vmem %s6, 16
  %v4138 = vld [vmem:[%s4137] sm:$0xf]
  %v4139 = vld [vmem:[%s4137 + $0x4] sm:$0xf]
  %v4140 = vld [vmem:[%s4137 + $0x8] sm:$0xf]
  %v4141 = vld [vmem:[%s4137 + $0xc] sm:$0xf]
  %s4142 = scalar_lea.vmem %s7, 1
  %v4143 = vld [vmem:[%s4142] sm:$0x1]
  %v4145 = vlaneseq
  %v4146 = vshrl.u32 %v4145, 7
  %v4147 = vsub.s32 0, %v4146
  %v4148 = vrot.slane %v4143, %v4147
  %v4154 = vunpack.c.l.b16 %v4138
  %v4155 = vunpack.c.l.b16 %v4139
  %v4156 = vunpack.c.l.b16 %v4140
  %v4157 = vunpack.c.l.b16 %v4141
  %v4158 = vpack.c.b16 %v4155, %v4154
  %v4159 = vpack.c.b16 %v4157, %v4156
  %v4163 = vsel %vm149, %v4136, 0
  %4165 = vmatprep.subr.bf16.mxu0 0
  %4166 = vmatpush1.bf16.msra.mxu0 %v4158
  %4167 = vmatprep.subr.bf16.mxu0 0
  %4168 = vmatpush1.bf16.msra.mxu0 %v4159
  %4169 = vmatprep.subr.bf16.mxu0 0
  %4170 = vmatpush1.bf16.msra.mxu0 0
  %4171 = vmatprep.subr.bf16.mxu0 0
  %4172 = vmatpush1.bf16.msra.mxu0 0
  %4173 = vmatprep.subr.bf16.mxu0 0
  %4174 = vmatpush1.bf16.msra.mxu0 0
  %4175 = vmatprep.subr.bf16.mxu0 0
  %4176 = vmatpush1.bf16.msra.mxu0 0
  %4177 = vmatprep.subr.bf16.mxu0 0
  %4178 = vmatpush1.bf16.msra.mxu0 0
  %4179 = vmatprep.subr.bf16.mxu0 0
  %4180 = vmatpush1.bf16.msra.mxu0 0
  %4181 = vmatprep.subr.bf16.mxu0 0
  %4182 = vmatpush1.bf16.msra.mxu0 0
  %4183 = vmatprep.subr.bf16.mxu0 0
  %4184 = vmatpush1.bf16.msra.mxu0 0
  %4185 = vmatprep.subr.bf16.mxu0 0
  %4186 = vmatpush1.bf16.msra.mxu0 0
  %4187 = vmatprep.subr.bf16.mxu0 0
  %4188 = vmatpush1.bf16.msra.mxu0 0
  %4189 = vmatprep.subr.bf16.mxu0 0
  %4190 = vmatpush1.bf16.msra.mxu0 0
  %4191 = vmatprep.subr.bf16.mxu0 0
  %4192 = vmatpush1.bf16.msra.mxu0 0
  %4193 = vmatprep.subr.bf16.mxu0 0
  %4194 = vmatpush1.bf16.msra.mxu0 0
  %4195 = vmatprep.subr.bf16.mxu0 0
  %4196 = vmatpush1.bf16.msra.mxu0 0
  %4197 = vmatprep.mubr.bf16.mxu0 0
  %4198 = vmatmul.mubr.bf16.gmra.mrb[0].mxu0 %v4163
  %v4199 = vpop.f32.mrb[0].mxu0
  %v4200 = vadd.f32 %v4148, %v4199
  %v4201 = vpop.f32.mrb[0].mxu0
  %v4202 = vpop.f32.mrb[0].mxu0
  %v4203 = vadd.f32 %v4148, %v4202
  %v4204 = vpop.f32.mrb[0].mxu0
  %4205 = vdwg.mxu0
  %v4206 = vadd.f32 %v3232, %v4200
  %v4207 = vadd.f32 %v3233, %v4203
  %s4208 = scalar_lea.vmem %s8, 1
  %v4209 = vld [vmem:[%s4208] sm:$0x1]
  %s4210 = scalar_lea.vmem %s9, 1
  %v4211 = vld [vmem:[%s4210] sm:$0x1]
  %v4212 = vsel %vm149, %v4206, 0.0
  %4213 = vadd.xlane.f32.xlu0 %v4212
  %v4214 = vpop.xlane.xlu0 %4213
  %v4215 = vsel %vm149, %v4207, 0.0
  %4216 = vadd.xlane.f32.xlu0 %v4215
  %v4217 = vpop.xlane.xlu0 %4216
  %v4218 = vmul.f32 %v4214, %v1108
  %v4219 = vmul.f32 %v4217, %v1108
  %v4220 = vsub.f32 %v4206, %v4218
  %v4221 = vsub.f32 %v4207, %v4219
  %v4222 = vmul.f32 %v4220, %v4220
  %v4223 = vmul.f32 %v4221, %v4221
  %v4224 = vsel %vm149, %v4222, 0.0
  %4225 = vadd.xlane.f32.xlu0 %v4224
  %v4226 = vpop.xlane.xlu0 %4225
  %v4227 = vsel %vm149, %v4223, 0.0
  %4228 = vadd.xlane.f32.xlu0 %v4227
  %v4229 = vpop.xlane.xlu0 %4228
  %v4230 = vmul.f32 %v4226, %v1108
  %v4231 = vmul.f32 %v4229, %v1108
  %v4232 = vadd.f32 %v4230, 1e-05
  %v4233 = vadd.f32 %v4231, 1e-05
  %v4234 = vrsqrt.pop %v4232
  %v4235 = vrsqrt.pop %v4233
  %v4236 = vmul.f32 %v4220, %v4234
  %v4237 = vmul.f32 %v4221, %v4235
  %v4239 = vlaneseq
  %v4240 = vshrl.u32 %v4239, 7
  %v4241 = vsub.s32 0, %v4240
  %v4242 = vrot.slane %v4209, %v4241
  %v4244 = vmul.f32 %v4236, %v4242
  %v4245 = vmul.f32 %v4237, %v4242
  %v4247 = vlaneseq
  %v4248 = vshrl.u32 %v4247, 7
  %v4249 = vsub.s32 0, %v4248
  %v4250 = vrot.slane %v4211, %v4249
  %v4252 = vadd.f32 %v4244, %v4250
  %v4253 = vadd.f32 %v4245, %v4250
  %v4254 = vpack.c.bf16 %v4253, %v4252
  %s4255 = scalar_lea.vmem %s13, 1
  %v4256 = vld [vmem:[%s4255] sm:$0x1]
  %v4258 = vlaneseq
  %v4259 = vshrl.u32 %v4258, 7
  %v4260 = vsub.s32 0, %v4259
  %v4261 = vrot.slane %v4256, %v4260
  %v4263 = vadd.f32 %v4252, %v4261
  %v4264 = vadd.f32 %v4253, %v4261
  %s4265 = scalar_lea.vmem %s10, 256
  %v4266 = vld [vmem:[%s4265] sm:$0xff]
  %v4267 = vld [vmem:[%s4265 + $0x8] sm:$0xff]
  %v4268 = vld [vmem:[%s4265 + $0x40] sm:$0xff]
  %v4269 = vld [vmem:[%s4265 + $0x48] sm:$0xff]
  %v4270 = vld [vmem:[%s4265 + $0x80] sm:$0xff]
  %v4271 = vld [vmem:[%s4265 + $0x88] sm:$0xff]
  %v4272 = vld [vmem:[%s4265 + $0xc0] sm:$0xff]
  %v4273 = vld [vmem:[%s4265 + $0xc8] sm:$0xff]
  %s4274 = scalar_lea.vmem %s11, 16
  %v4275 = vld [vmem:[%s4274] sm:$0xf]
  %v4277 = vlaneseq
  %v4278 = vshrl.u32 %v4277, 7
  %v4279 = vsub.s32 0, %v4278
  %v4280 = vrot.slane %v4275, %v4279
  %v4281 = vlaneseq
  %v4282 = vshrl.u32 %v4281, 7
  %v4283 = vsub.s32 1, %v4282
  %v4284 = vrot.slane %v4275, %v4283
  %v4285 = vlaneseq
  %v4286 = vshrl.u32 %v4285, 7
  %v4287 = vsub.s32 2, %v4286
  %v4288 = vrot.slane %v4275, %v4287
  %v4289 = vlaneseq
  %v4290 = vshrl.u32 %v4289, 7
  %v4291 = vsub.s32 3, %v4290
  %v4292 = vrot.slane %v4275, %v4291
  %v4305 = vunpack.c.l.b16 %v4266
  %v4306 = vunpack.c.h.b16 %v4266
  %v4307 = vunpack.c.l.b16 %v4267
  %v4308 = vunpack.c.h.b16 %v4267
  %v4309 = vunpack.c.l.b16 %v4268
  %v4310 = vunpack.c.h.b16 %v4268
  %v4311 = vunpack.c.l.b16 %v4269
  %v4312 = vunpack.c.h.b16 %v4269
  %v4313 = vunpack.c.l.b16 %v4270
  %v4314 = vunpack.c.h.b16 %v4270
  %v4315 = vunpack.c.l.b16 %v4271
  %v4316 = vunpack.c.h.b16 %v4271
  %v4317 = vunpack.c.l.b16 %v4272
  %v4318 = vunpack.c.h.b16 %v4272
  %v4319 = vunpack.c.l.b16 %v4273
  %v4320 = vunpack.c.h.b16 %v4273
  %v4321 = vpack.c.b16 %v4309, %v4305
  %v4322 = vpack.c.b16 %v4310, %v4306
  %v4323 = vpack.c.b16 %v4311, %v4307
  %v4324 = vpack.c.b16 %v4312, %v4308
  %v4325 = vpack.c.b16 %v4317, %v4313
  %v4326 = vpack.c.b16 %v4318, %v4314
  %v4327 = vpack.c.b16 %v4319, %v4315
  %v4328 = vpack.c.b16 %v4320, %v4316
  %v4338 = vsel %vm149, %v4254, 0
  %4340 = vmatprep.subr.bf16.mxu0 %v4322
  %4341 = vmatpush1.bf16.msra.mxu0 %v4321
  %4342 = vmatprep.subr.bf16.mxu0 %v4326
  %4343 = vmatpush1.bf16.msra.mxu0 %v4325
  %4344 = vmatprep.subr.bf16.mxu0 0
  %4345 = vmatpush1.bf16.msra.mxu0 0
  %4346 = vmatprep.subr.bf16.mxu0 0
  %4347 = vmatpush1.bf16.msra.mxu0 0
  %4348 = vmatprep.subr.bf16.mxu0 0
  %4349 = vmatpush1.bf16.msra.mxu0 0
  %4350 = vmatprep.subr.bf16.mxu0 0
  %4351 = vmatpush1.bf16.msra.mxu0 0
  %4352 = vmatprep.subr.bf16.mxu0 0
  %4353 = vmatpush1.bf16.msra.mxu0 0
  %4354 = vmatprep.subr.bf16.mxu0 0
  %4355 = vmatpush1.bf16.msra.mxu0 0
  %4356 = vmatprep.subr.bf16.mxu0 0
  %4357 = vmatpush1.bf16.msra.mxu0 0
  %4358 = vmatprep.subr.bf16.mxu0 0
  %4359 = vmatpush1.bf16.msra.mxu0 0
  %4360 = vmatprep.subr.bf16.mxu0 0
  %4361 = vmatpush1.bf16.msra.mxu0 0
  %4362 = vmatprep.subr.bf16.mxu0 0
  %4363 = vmatpush1.bf16.msra.mxu0 0
  %4364 = vmatprep.subr.bf16.mxu0 0
  %4365 = vmatpush1.bf16.msra.mxu0 0
  %4366 = vmatprep.subr.bf16.mxu0 0
  %4367 = vmatpush1.bf16.msra.mxu0 0
  %4368 = vmatprep.subr.bf16.mxu0 0
  %4369 = vmatpush1.bf16.msra.mxu0 0
  %4370 = vmatprep.subr.bf16.mxu0 0
  %4371 = vmatpush1.bf16.msra.mxu0 0
  %4372 = vmatprep.mubr.bf16.mxu0 0
  %4373 = vmatmul.mubr.bf16.gmra.mrb[0].mxu0 %v4338
  %v4374 = vpop.f32.mrb[0].mxu0
  %v4375 = vadd.f32 %v4280, %v4374
  %v4376 = vpop.f32.mrb[0].mxu0
  %v4377 = vadd.f32 %v4284, %v4376
  %v4378 = vpop.f32.mrb[0].mxu0
  %v4379 = vadd.f32 %v4280, %v4378
  %v4380 = vpop.f32.mrb[0].mxu0
  %v4381 = vadd.f32 %v4284, %v4380
  %4382 = vdwg.mxu0
  %4383 = vmatprep.subr.bf16.mxu0 %v4324
  %4384 = vmatpush1.bf16.msra.mxu0 %v4323
  %4385 = vmatprep.subr.bf16.mxu0 %v4328
  %4386 = vmatpush1.bf16.msra.mxu0 %v4327
  %4387 = vmatprep.subr.bf16.mxu0 0
  %4388 = vmatpush1.bf16.msra.mxu0 0
  %4389 = vmatprep.subr.bf16.mxu0 0
  %4390 = vmatpush1.bf16.msra.mxu0 0
  %4391 = vmatprep.subr.bf16.mxu0 0
  %4392 = vmatpush1.bf16.msra.mxu0 0
  %4393 = vmatprep.subr.bf16.mxu0 0
  %4394 = vmatpush1.bf16.msra.mxu0 0
  %4395 = vmatprep.subr.bf16.mxu0 0
  %4396 = vmatpush1.bf16.msra.mxu0 0
  %4397 = vmatprep.subr.bf16.mxu0 0
  %4398 = vmatpush1.bf16.msra.mxu0 0
  %4399 = vmatprep.subr.bf16.mxu0 0
  %4400 = vmatpush1.bf16.msra.mxu0 0
  %4401 = vmatprep.subr.bf16.mxu0 0
  %4402 = vmatpush1.bf16.msra.mxu0 0
  %4403 = vmatprep.subr.bf16.mxu0 0
  %4404 = vmatpush1.bf16.msra.mxu0 0
  %4405 = vmatprep.subr.bf16.mxu0 0
  %4406 = vmatpush1.bf16.msra.mxu0 0
  %4407 = vmatprep.subr.bf16.mxu0 0
  %4408 = vmatpush1.bf16.msra.mxu0 0
  %4409 = vmatprep.subr.bf16.mxu0 0
  %4410 = vmatpush1.bf16.msra.mxu0 0
  %4411 = vmatprep.subr.bf16.mxu0 0
  %4412 = vmatpush1.bf16.msra.mxu0 0
  %4413 = vmatprep.subr.bf16.mxu0 0
  %4414 = vmatpush1.bf16.msra.mxu0 0
  %4415 = vmatprep.mubr.bf16.mxu0 0
  %4416 = vmatmul.mubr.bf16.gmra.mrb[0].mxu0 %v4338
  %v4417 = vpop.f32.mrb[0].mxu0
  %v4418 = vadd.f32 %v4288, %v4417
  %v4419 = vpop.f32.mrb[0].mxu0
  %v4420 = vadd.f32 %v4292, %v4419
  %v4421 = vpop.f32.mrb[0].mxu0
  %v4422 = vadd.f32 %v4288, %v4421
  %v4423 = vpop.f32.mrb[0].mxu0
  %v4424 = vadd.f32 %v4292, %v4423
  %4425 = vdwg.mxu0
  %v4426 = vmax.f32 %v4375, 0.0
  %v4427 = vmax.f32 %v4377, 0.0
  %v4428 = vmax.f32 %v4418, 0.0
  %v4429 = vmax.f32 %v4420, 0.0
  %v4430 = vmax.f32 %v4379, 0.0
  %v4431 = vmax.f32 %v4381, 0.0
  %v4432 = vmax.f32 %v4422, 0.0
  %v4433 = vmax.f32 %v4424, 0.0
  %v4434 = vpack.c.bf16 %v4430, %v4426
  %v4435 = vpack.c.bf16 %v4431, %v4427
  %v4436 = vpack.c.bf16 %v4432, %v4428
  %v4437 = vpack.c.bf16 %v4433, %v4429
  %s4438 = scalar_lea.vmem %s12, 1024
  %v4439 = vld [vmem:[%s4438] sm:$0xf]
  %v4440 = vld [vmem:[%s4438 + $0x4] sm:$0xf]
  %v4441 = vld [vmem:[%s4438 + $0x8] sm:$0xf]
  %v4442 = vld [vmem:[%s4438 + $0xc] sm:$0xf]
  %v4443 = vld [vmem:[%s4438 + $0x10] sm:$0xf]
  %v4444 = vld [vmem:[%s4438 + $0x14] sm:$0xf]
  %v4445 = vld [vmem:[%s4438 + $0x18] sm:$0xf]
  %v4446 = vld [vmem:[%s4438 + $0x1c] sm:$0xf]
  %v4447 = vld [vmem:[%s4438 + $0x20] sm:$0xf]
  %v4448 = vld [vmem:[%s4438 + $0x24] sm:$0xf]
  %v4449 = vld [vmem:[%s4438 + $0x28] sm:$0xf]
  %v4450 = vld [vmem:[%s4438 + $0x2c] sm:$0xf]
  %v4451 = vld [vmem:[%s4438 + $0x30] sm:$0xf]
  %v4452 = vld [vmem:[%s4438 + $0x34] sm:$0xf]
  %v4453 = vld [vmem:[%s4438 + $0x38] sm:$0xf]
  %v4454 = vld [vmem:[%s4438 + $0x3c] sm:$0xf]
  %v4455 = vld [vmem:[%s4438 + $0x40] sm:$0xf]
  %v4456 = vld [vmem:[%s4438 + $0x44] sm:$0xf]
  %v4457 = vld [vmem:[%s4438 + $0x48] sm:$0xf]
  %v4458 = vld [vmem:[%s4438 + $0x4c] sm:$0xf]
  %v4459 = vld [vmem:[%s4438 + $0x50] sm:$0xf]
  %v4460 = vld [vmem:[%s4438 + $0x54] sm:$0xf]
  %v4461 = vld [vmem:[%s4438 + $0x58] sm:$0xf]
  %v4462 = vld [vmem:[%s4438 + $0x5c] sm:$0xf]
  %v4463 = vld [vmem:[%s4438 + $0x60] sm:$0xf]
  %v4464 = vld [vmem:[%s4438 + $0x64] sm:$0xf]
  %v4465 = vld [vmem:[%s4438 + $0x68] sm:$0xf]
  %v4466 = vld [vmem:[%s4438 + $0x6c] sm:$0xf]
  %v4467 = vld [vmem:[%s4438 + $0x70] sm:$0xf]
  %v4468 = vld [vmem:[%s4438 + $0x74] sm:$0xf]
  %v4469 = vld [vmem:[%s4438 + $0x78] sm:$0xf]
  %v4470 = vld [vmem:[%s4438 + $0x7c] sm:$0xf]
  %v4471 = vld [vmem:[%s4438 + $0x80] sm:$0xf]
  %v4472 = vld [vmem:[%s4438 + $0x84] sm:$0xf]
  %v4473 = vld [vmem:[%s4438 + $0x88] sm:$0xf]
  %v4474 = vld [vmem:[%s4438 + $0x8c] sm:$0xf]
  %v4475 = vld [vmem:[%s4438 + $0x90] sm:$0xf]
  %v4476 = vld [vmem:[%s4438 + $0x94] sm:$0xf]
  %v4477 = vld [vmem:[%s4438 + $0x98] sm:$0xf]
  %v4478 = vld [vmem:[%s4438 + $0x9c] sm:$0xf]
  %v4479 = vld [vmem:[%s4438 + $0xa0] sm:$0xf]
  %v4480 = vld [vmem:[%s4438 + $0xa4] sm:$0xf]
  %v4481 = vld [vmem:[%s4438 + $0xa8] sm:$0xf]
  %v4482 = vld [vmem:[%s4438 + $0xac] sm:$0xf]
  %v4483 = vld [vmem:[%s4438 + $0xb0] sm:$0xf]
  %v4484 = vld [vmem:[%s4438 + $0xb4] sm:$0xf]
  %v4485 = vld [vmem:[%s4438 + $0xb8] sm:$0xf]
  %v4486 = vld [vmem:[%s4438 + $0xbc] sm:$0xf]
  %v4487 = vld [vmem:[%s4438 + $0xc0] sm:$0xf]
  %v4488 = vld [vmem:[%s4438 + $0xc4] sm:$0xf]
  %v4489 = vld [vmem:[%s4438 + $0xc8] sm:$0xf]
  %v4490 = vld [vmem:[%s4438 + $0xcc] sm:$0xf]
  %v4491 = vld [vmem:[%s4438 + $0xd0] sm:$0xf]
  %v4492 = vld [vmem:[%s4438 + $0xd4] sm:$0xf]
  %v4493 = vld [vmem:[%s4438 + $0xd8] sm:$0xf]
  %v4494 = vld [vmem:[%s4438 + $0xdc] sm:$0xf]
  %v4495 = vld [vmem:[%s4438 + $0xe0] sm:$0xf]
  %v4496 = vld [vmem:[%s4438 + $0xe4] sm:$0xf]
  %v4497 = vld [vmem:[%s4438 + $0xe8] sm:$0xf]
  %v4498 = vld [vmem:[%s4438 + $0xec] sm:$0xf]
  %v4499 = vld [vmem:[%s4438 + $0xf0] sm:$0xf]
  %v4500 = vld [vmem:[%s4438 + $0xf4] sm:$0xf]
  %v4501 = vld [vmem:[%s4438 + $0xf8] sm:$0xf]
  %v4502 = vld [vmem:[%s4438 + $0xfc] sm:$0xf]
  %v4567 = vunpack.c.l.b16 %v4439
  %v4568 = vunpack.c.l.b16 %v4440
  %v4569 = vunpack.c.l.b16 %v4441
  %v4570 = vunpack.c.l.b16 %v4442
  %v4571 = vunpack.c.l.b16 %v4443
  %v4572 = vunpack.c.l.b16 %v4444
  %v4573 = vunpack.c.l.b16 %v4445
  %v4574 = vunpack.c.l.b16 %v4446
  %v4575 = vunpack.c.l.b16 %v4447
  %v4576 = vunpack.c.l.b16 %v4448
  %v4577 = vunpack.c.l.b16 %v4449
  %v4578 = vunpack.c.l.b16 %v4450
  %v4579 = vunpack.c.l.b16 %v4451
  %v4580 = vunpack.c.l.b16 %v4452
  %v4581 = vunpack.c.l.b16 %v4453
  %v4582 = vunpack.c.l.b16 %v4454
  %v4583 = vunpack.c.l.b16 %v4455
  %v4584 = vunpack.c.l.b16 %v4456
  %v4585 = vunpack.c.l.b16 %v4457
  %v4586 = vunpack.c.l.b16 %v4458
  %v4587 = vunpack.c.l.b16 %v4459
  %v4588 = vunpack.c.l.b16 %v4460
  %v4589 = vunpack.c.l.b16 %v4461
  %v4590 = vunpack.c.l.b16 %v4462
  %v4591 = vunpack.c.l.b16 %v4463
  %v4592 = vunpack.c.l.b16 %v4464
  %v4593 = vunpack.c.l.b16 %v4465
  %v4594 = vunpack.c.l.b16 %v4466
  %v4595 = vunpack.c.l.b16 %v4467
  %v4596 = vunpack.c.l.b16 %v4468
  %v4597 = vunpack.c.l.b16 %v4469
  %v4598 = vunpack.c.l.b16 %v4470
  %v4599 = vunpack.c.l.b16 %v4471
  %v4600 = vunpack.c.l.b16 %v4472
  %v4601 = vunpack.c.l.b16 %v4473
  %v4602 = vunpack.c.l.b16 %v4474
  %v4603 = vunpack.c.l.b16 %v4475
  %v4604 = vunpack.c.l.b16 %v4476
  %v4605 = vunpack.c.l.b16 %v4477
  %v4606 = vunpack.c.l.b16 %v4478
  %v4607 = vunpack.c.l.b16 %v4479
  %v4608 = vunpack.c.l.b16 %v4480
  %v4609 = vunpack.c.l.b16 %v4481
  %v4610 = vunpack.c.l.b16 %v4482
  %v4611 = vunpack.c.l.b16 %v4483
  %v4612 = vunpack.c.l.b16 %v4484
  %v4613 = vunpack.c.l.b16 %v4485
  %v4614 = vunpack.c.l.b16 %v4486
  %v4615 = vunpack.c.l.b16 %v4487
  %v4616 = vunpack.c.l.b16 %v4488
  %v4617 = vunpack.c.l.b16 %v4489
  %v4618 = vunpack.c.l.b16 %v4490
  %v4619 = vunpack.c.l.b16 %v4491
  %v4620 = vunpack.c.l.b16 %v4492
  %v4621 = vunpack.c.l.b16 %v4493
  %v4622 = vunpack.c.l.b16 %v4494
  %v4623 = vunpack.c.l.b16 %v4495
  %v4624 = vunpack.c.l.b16 %v4496
  %v4625 = vunpack.c.l.b16 %v4497
  %v4626 = vunpack.c.l.b16 %v4498
  %v4627 = vunpack.c.l.b16 %v4499
  %v4628 = vunpack.c.l.b16 %v4500
  %v4629 = vunpack.c.l.b16 %v4501
  %v4630 = vunpack.c.l.b16 %v4502
  %v4631 = vpack.c.b16 %v4568, %v4567
  %v4632 = vpack.c.b16 %v4570, %v4569
  %v4633 = vpack.c.b16 %v4572, %v4571
  %v4634 = vpack.c.b16 %v4574, %v4573
  %v4635 = vpack.c.b16 %v4576, %v4575
  %v4636 = vpack.c.b16 %v4578, %v4577
  %v4637 = vpack.c.b16 %v4580, %v4579
  %v4638 = vpack.c.b16 %v4582, %v4581
  %v4639 = vpack.c.b16 %v4584, %v4583
  %v4640 = vpack.c.b16 %v4586, %v4585
  %v4641 = vpack.c.b16 %v4588, %v4587
  %v4642 = vpack.c.b16 %v4590, %v4589
  %v4643 = vpack.c.b16 %v4592, %v4591
  %v4644 = vpack.c.b16 %v4594, %v4593
  %v4645 = vpack.c.b16 %v4596, %v4595
  %v4646 = vpack.c.b16 %v4598, %v4597
  %v4647 = vpack.c.b16 %v4600, %v4599
  %v4648 = vpack.c.b16 %v4602, %v4601
  %v4649 = vpack.c.b16 %v4604, %v4603
  %v4650 = vpack.c.b16 %v4606, %v4605
  %v4651 = vpack.c.b16 %v4608, %v4607
  %v4652 = vpack.c.b16 %v4610, %v4609
  %v4653 = vpack.c.b16 %v4612, %v4611
  %v4654 = vpack.c.b16 %v4614, %v4613
  %v4655 = vpack.c.b16 %v4616, %v4615
  %v4656 = vpack.c.b16 %v4618, %v4617
  %v4657 = vpack.c.b16 %v4620, %v4619
  %v4658 = vpack.c.b16 %v4622, %v4621
  %v4659 = vpack.c.b16 %v4624, %v4623
  %v4660 = vpack.c.b16 %v4626, %v4625
  %v4661 = vpack.c.b16 %v4628, %v4627
  %v4662 = vpack.c.b16 %v4630, %v4629
  %4695 = vmatprep.subr.bf16.mxu0 0
  %4696 = vmatpush1.bf16.msra.mxu0 %v4631
  %4697 = vmatprep.subr.bf16.mxu0 0
  %4698 = vmatpush1.bf16.msra.mxu0 %v4632
  %4699 = vmatprep.subr.bf16.mxu0 0
  %4700 = vmatpush1.bf16.msra.mxu0 %v4633
  %4701 = vmatprep.subr.bf16.mxu0 0
  %4702 = vmatpush1.bf16.msra.mxu0 %v4634
  %4703 = vmatprep.subr.bf16.mxu0 0
  %4704 = vmatpush1.bf16.msra.mxu0 %v4635
  %4705 = vmatprep.subr.bf16.mxu0 0
  %4706 = vmatpush1.bf16.msra.mxu0 %v4636
  %4707 = vmatprep.subr.bf16.mxu0 0
  %4708 = vmatpush1.bf16.msra.mxu0 %v4637
  %4709 = vmatprep.subr.bf16.mxu0 0
  %4710 = vmatpush1.bf16.msra.mxu0 %v4638
  %4711 = vmatprep.subr.bf16.mxu0 0
  %4712 = vmatpush1.bf16.msra.mxu0 %v4639
  %4713 = vmatprep.subr.bf16.mxu0 0
  %4714 = vmatpush1.bf16.msra.mxu0 %v4640
  %4715 = vmatprep.subr.bf16.mxu0 0
  %4716 = vmatpush1.bf16.msra.mxu0 %v4641
  %4717 = vmatprep.subr.bf16.mxu0 0
  %4718 = vmatpush1.bf16.msra.mxu0 %v4642
  %4719 = vmatprep.subr.bf16.mxu0 0
  %4720 = vmatpush1.bf16.msra.mxu0 %v4643
  %4721 = vmatprep.subr.bf16.mxu0 0
  %4722 = vmatpush1.bf16.msra.mxu0 %v4644
  %4723 = vmatprep.subr.bf16.mxu0 0
  %4724 = vmatpush1.bf16.msra.mxu0 %v4645
  %4725 = vmatprep.subr.bf16.mxu0 0
  %4726 = vmatpush1.bf16.msra.mxu0 %v4646
  %4727 = vmatprep.mubr.bf16.mxu0 %v4435
  %4728 = vmatmul.mubr.bf16.gmra.mrb[0].mxu0 %v4434
  %v4729 = vpop.f32.mrb[0].mxu0
  %v4730 = vadd.f32 0.0, %v4729
  %v4731 = vpop.f32.mrb[0].mxu0
  %v4732 = vpop.f32.mrb[0].mxu0
  %v4733 = vadd.f32 0.0, %v4732
  %v4734 = vpop.f32.mrb[0].mxu0
  %4735 = vdwg.mxu0
  %4736 = vmatprep.subr.bf16.mxu0 0
  %4737 = vmatpush1.bf16.msra.mxu0 %v4647
  %4738 = vmatprep.subr.bf16.mxu0 0
  %4739 = vmatpush1.bf16.msra.mxu0 %v4648
  %4740 = vmatprep.subr.bf16.mxu0 0
  %4741 = vmatpush1.bf16.msra.mxu0 %v4649
  %4742 = vmatprep.subr.bf16.mxu0 0
  %4743 = vmatpush1.bf16.msra.mxu0 %v4650
  %4744 = vmatprep.subr.bf16.mxu0 0
  %4745 = vmatpush1.bf16.msra.mxu0 %v4651
  %4746 = vmatprep.subr.bf16.mxu0 0
  %4747 = vmatpush1.bf16.msra.mxu0 %v4652
  %4748 = vmatprep.subr.bf16.mxu0 0
  %4749 = vmatpush1.bf16.msra.mxu0 %v4653
  %4750 = vmatprep.subr.bf16.mxu0 0
  %4751 = vmatpush1.bf16.msra.mxu0 %v4654
  %4752 = vmatprep.subr.bf16.mxu0 0
  %4753 = vmatpush1.bf16.msra.mxu0 %v4655
  %4754 = vmatprep.subr.bf16.mxu0 0
  %4755 = vmatpush1.bf16.msra.mxu0 %v4656
  %4756 = vmatprep.subr.bf16.mxu0 0
  %4757 = vmatpush1.bf16.msra.mxu0 %v4657
  %4758 = vmatprep.subr.bf16.mxu0 0
  %4759 = vmatpush1.bf16.msra.mxu0 %v4658
  %4760 = vmatprep.subr.bf16.mxu0 0
  %4761 = vmatpush1.bf16.msra.mxu0 %v4659
  %4762 = vmatprep.subr.bf16.mxu0 0
  %4763 = vmatpush1.bf16.msra.mxu0 %v4660
  %4764 = vmatprep.subr.bf16.mxu0 0
  %4765 = vmatpush1.bf16.msra.mxu0 %v4661
  %4766 = vmatprep.subr.bf16.mxu0 0
  %4767 = vmatpush1.bf16.msra.mxu0 %v4662
  %4768 = vmatprep.mubr.bf16.mxu0 %v4437
  %4769 = vmatmul.mubr.bf16.gmra.mrb[0].mxu0 %v4436
  %v4770 = vpop.f32.mrb[0].mxu0
  %v4771 = vadd.f32 %v4730, %v4770
  %v4772 = vpop.f32.mrb[0].mxu0
  %v4773 = vpop.f32.mrb[0].mxu0
  %v4774 = vadd.f32 %v4733, %v4773
  %v4775 = vpop.f32.mrb[0].mxu0
  %4776 = vdwg.mxu0
  %v4777 = vadd.f32 %v4263, %v4771
  %v4778 = vadd.f32 %v4264, %v4774
  %v4779 = vld [vmem:[%s4265 + $0x10] sm:$0xff]
  %v4780 = vld [vmem:[%s4265 + $0x18] sm:$0xff]
  %v4781 = vld [vmem:[%s4265 + $0x50] sm:$0xff]
  %v4782 = vld [vmem:[%s4265 + $0x58] sm:$0xff]
  %v4783 = vld [vmem:[%s4265 + $0x90] sm:$0xff]
  %v4784 = vld [vmem:[%s4265 + $0x98] sm:$0xff]
  %v4785 = vld [vmem:[%s4265 + $0xd0] sm:$0xff]
  %v4786 = vld [vmem:[%s4265 + $0xd8] sm:$0xff]
  %v4787 = vld [vmem:[%s4274 + $0x4] sm:$0xf]
  %v4789 = vlaneseq
  %v4790 = vshrl.u32 %v4789, 7
  %v4791 = vsub.s32 0, %v4790
  %v4792 = vrot.slane %v4787, %v4791
  %v4793 = vlaneseq
  %v4794 = vshrl.u32 %v4793, 7
  %v4795 = vsub.s32 1, %v4794
  %v4796 = vrot.slane %v4787, %v4795
  %v4797 = vlaneseq
  %v4798 = vshrl.u32 %v4797, 7
  %v4799 = vsub.s32 2, %v4798
  %v4800 = vrot.slane %v4787, %v4799
  %v4801 = vlaneseq
  %v4802 = vshrl.u32 %v4801, 7
  %v4803 = vsub.s32 3, %v4802
  %v4804 = vrot.slane %v4787, %v4803
  %v4817 = vunpack.c.l.b16 %v4779
  %v4818 = vunpack.c.h.b16 %v4779
  %v4819 = vunpack.c.l.b16 %v4780
  %v4820 = vunpack.c.h.b16 %v4780
  %v4821 = vunpack.c.l.b16 %v4781
  %v4822 = vunpack.c.h.b16 %v4781
  %v4823 = vunpack.c.l.b16 %v4782
  %v4824 = vunpack.c.h.b16 %v4782
  %v4825 = vunpack.c.l.b16 %v4783
  %v4826 = vunpack.c.h.b16 %v4783
  %v4827 = vunpack.c.l.b16 %v4784
  %v4828 = vunpack.c.h.b16 %v4784
  %v4829 = vunpack.c.l.b16 %v4785
  %v4830 = vunpack.c.h.b16 %v4785
  %v4831 = vunpack.c.l.b16 %v4786
  %v4832 = vunpack.c.h.b16 %v4786
  %v4833 = vpack.c.b16 %v4821, %v4817
  %v4834 = vpack.c.b16 %v4822, %v4818
  %v4835 = vpack.c.b16 %v4823, %v4819
  %v4836 = vpack.c.b16 %v4824, %v4820
  %v4837 = vpack.c.b16 %v4829, %v4825
  %v4838 = vpack.c.b16 %v4830, %v4826
  %v4839 = vpack.c.b16 %v4831, %v4827
  %v4840 = vpack.c.b16 %v4832, %v4828
  %4849 = vmatprep.subr.bf16.mxu0 %v4834
  %4850 = vmatpush1.bf16.msra.mxu0 %v4833
  %4851 = vmatprep.subr.bf16.mxu0 %v4838
  %4852 = vmatpush1.bf16.msra.mxu0 %v4837
  %4853 = vmatprep.subr.bf16.mxu0 0
  %4854 = vmatpush1.bf16.msra.mxu0 0
  %4855 = vmatprep.subr.bf16.mxu0 0
  %4856 = vmatpush1.bf16.msra.mxu0 0
  %4857 = vmatprep.subr.bf16.mxu0 0
  %4858 = vmatpush1.bf16.msra.mxu0 0
  %4859 = vmatprep.subr.bf16.mxu0 0
  %4860 = vmatpush1.bf16.msra.mxu0 0
  %4861 = vmatprep.subr.bf16.mxu0 0
  %4862 = vmatpush1.bf16.msra.mxu0 0
  %4863 = vmatprep.subr.bf16.mxu0 0
  %4864 = vmatpush1.bf16.msra.mxu0 0
  %4865 = vmatprep.subr.bf16.mxu0 0
  %4866 = vmatpush1.bf16.msra.mxu0 0
  %4867 = vmatprep.subr.bf16.mxu0 0
  %4868 = vmatpush1.bf16.msra.mxu0 0
  %4869 = vmatprep.subr.bf16.mxu0 0
  %4870 = vmatpush1.bf16.msra.mxu0 0
  %4871 = vmatprep.subr.bf16.mxu0 0
  %4872 = vmatpush1.bf16.msra.mxu0 0
  %4873 = vmatprep.subr.bf16.mxu0 0
  %4874 = vmatpush1.bf16.msra.mxu0 0
  %4875 = vmatprep.subr.bf16.mxu0 0
  %4876 = vmatpush1.bf16.msra.mxu0 0
  %4877 = vmatprep.subr.bf16.mxu0 0
  %4878 = vmatpush1.bf16.msra.mxu0 0
  %4879 = vmatprep.subr.bf16.mxu0 0
  %4880 = vmatpush1.bf16.msra.mxu0 0
  %4881 = vmatprep.mubr.bf16.mxu0 0
  %4882 = vmatmul.mubr.bf16.gmra.mrb[0].mxu0 %v4338
  %v4883 = vpop.f32.mrb[0].mxu0
  %v4884 = vadd.f32 %v4792, %v4883
  %v4885 = vpop.f32.mrb[0].mxu0
  %v4886 = vadd.f32 %v4796, %v4885
  %v4887 = vpop.f32.mrb[0].mxu0
  %v4888 = vadd.f32 %v4792, %v4887
  %v4889 = vpop.f32.mrb[0].mxu0
  %v4890 = vadd.f32 %v4796, %v4889
  %4891 = vdwg.mxu0
  %4892 = vmatprep.subr.bf16.mxu0 %v4836
  %4893 = vmatpush1.bf16.msra.mxu0 %v4835
  %4894 = vmatprep.subr.bf16.mxu0 %v4840
  %4895 = vmatpush1.bf16.msra.mxu0 %v4839
  %4896 = vmatprep.subr.bf16.mxu0 0
  %4897 = vmatpush1.bf16.msra.mxu0 0
  %4898 = vmatprep.subr.bf16.mxu0 0
  %4899 = vmatpush1.bf16.msra.mxu0 0
  %4900 = vmatprep.subr.bf16.mxu0 0
  %4901 = vmatpush1.bf16.msra.mxu0 0
  %4902 = vmatprep.subr.bf16.mxu0 0
  %4903 = vmatpush1.bf16.msra.mxu0 0
  %4904 = vmatprep.subr.bf16.mxu0 0
  %4905 = vmatpush1.bf16.msra.mxu0 0
  %4906 = vmatprep.subr.bf16.mxu0 0
  %4907 = vmatpush1.bf16.msra.mxu0 0
  %4908 = vmatprep.subr.bf16.mxu0 0
  %4909 = vmatpush1.bf16.msra.mxu0 0
  %4910 = vmatprep.subr.bf16.mxu0 0
  %4911 = vmatpush1.bf16.msra.mxu0 0
  %4912 = vmatprep.subr.bf16.mxu0 0
  %4913 = vmatpush1.bf16.msra.mxu0 0
  %4914 = vmatprep.subr.bf16.mxu0 0
  %4915 = vmatpush1.bf16.msra.mxu0 0
  %4916 = vmatprep.subr.bf16.mxu0 0
  %4917 = vmatpush1.bf16.msra.mxu0 0
  %4918 = vmatprep.subr.bf16.mxu0 0
  %4919 = vmatpush1.bf16.msra.mxu0 0
  %4920 = vmatprep.subr.bf16.mxu0 0
  %4921 = vmatpush1.bf16.msra.mxu0 0
  %4922 = vmatprep.subr.bf16.mxu0 0
  %4923 = vmatpush1.bf16.msra.mxu0 0
  %4924 = vmatprep.mubr.bf16.mxu0 0
  %4925 = vmatmul.mubr.bf16.gmra.mrb[0].mxu0 %v4338
  %v4926 = vpop.f32.mrb[0].mxu0
  %v4927 = vadd.f32 %v4800, %v4926
  %v4928 = vpop.f32.mrb[0].mxu0
  %v4929 = vadd.f32 %v4804, %v4928
  %v4930 = vpop.f32.mrb[0].mxu0
  %v4931 = vadd.f32 %v4800, %v4930
  %v4932 = vpop.f32.mrb[0].mxu0
  %v4933 = vadd.f32 %v4804, %v4932
  %4934 = vdwg.mxu0
  %v4935 = vmax.f32 %v4884, 0.0
  %v4936 = vmax.f32 %v4886, 0.0
  %v4937 = vmax.f32 %v4927, 0.0
  %v4938 = vmax.f32 %v4929, 0.0
  %v4939 = vmax.f32 %v4888, 0.0
  %v4940 = vmax.f32 %v4890, 0.0
  %v4941 = vmax.f32 %v4931, 0.0
  %v4942 = vmax.f32 %v4933, 0.0
  %v4943 = vpack.c.bf16 %v4939, %v4935
  %v4944 = vpack.c.bf16 %v4940, %v4936
  %v4945 = vpack.c.bf16 %v4941, %v4937
  %v4946 = vpack.c.bf16 %v4942, %v4938
  %v4947 = vld [vmem:[%s4438 + $0x100] sm:$0xf]
  %v4948 = vld [vmem:[%s4438 + $0x104] sm:$0xf]
  %v4949 = vld [vmem:[%s4438 + $0x108] sm:$0xf]
  %v4950 = vld [vmem:[%s4438 + $0x10c] sm:$0xf]
  %v4951 = vld [vmem:[%s4438 + $0x110] sm:$0xf]
  %v4952 = vld [vmem:[%s4438 + $0x114] sm:$0xf]
  %v4953 = vld [vmem:[%s4438 + $0x118] sm:$0xf]
  %v4954 = vld [vmem:[%s4438 + $0x11c] sm:$0xf]
  %v4955 = vld [vmem:[%s4438 + $0x120] sm:$0xf]
  %v4956 = vld [vmem:[%s4438 + $0x124] sm:$0xf]
  %v4957 = vld [vmem:[%s4438 + $0x128] sm:$0xf]
  %v4958 = vld [vmem:[%s4438 + $0x12c] sm:$0xf]
  %v4959 = vld [vmem:[%s4438 + $0x130] sm:$0xf]
  %v4960 = vld [vmem:[%s4438 + $0x134] sm:$0xf]
  %v4961 = vld [vmem:[%s4438 + $0x138] sm:$0xf]
  %v4962 = vld [vmem:[%s4438 + $0x13c] sm:$0xf]
  %v4963 = vld [vmem:[%s4438 + $0x140] sm:$0xf]
  %v4964 = vld [vmem:[%s4438 + $0x144] sm:$0xf]
  %v4965 = vld [vmem:[%s4438 + $0x148] sm:$0xf]
  %v4966 = vld [vmem:[%s4438 + $0x14c] sm:$0xf]
  %v4967 = vld [vmem:[%s4438 + $0x150] sm:$0xf]
  %v4968 = vld [vmem:[%s4438 + $0x154] sm:$0xf]
  %v4969 = vld [vmem:[%s4438 + $0x158] sm:$0xf]
  %v4970 = vld [vmem:[%s4438 + $0x15c] sm:$0xf]
  %v4971 = vld [vmem:[%s4438 + $0x160] sm:$0xf]
  %v4972 = vld [vmem:[%s4438 + $0x164] sm:$0xf]
  %v4973 = vld [vmem:[%s4438 + $0x168] sm:$0xf]
  %v4974 = vld [vmem:[%s4438 + $0x16c] sm:$0xf]
  %v4975 = vld [vmem:[%s4438 + $0x170] sm:$0xf]
  %v4976 = vld [vmem:[%s4438 + $0x174] sm:$0xf]
  %v4977 = vld [vmem:[%s4438 + $0x178] sm:$0xf]
  %v4978 = vld [vmem:[%s4438 + $0x17c] sm:$0xf]
  %v4979 = vld [vmem:[%s4438 + $0x180] sm:$0xf]
  %v4980 = vld [vmem:[%s4438 + $0x184] sm:$0xf]
  %v4981 = vld [vmem:[%s4438 + $0x188] sm:$0xf]
  %v4982 = vld [vmem:[%s4438 + $0x18c] sm:$0xf]
  %v4983 = vld [vmem:[%s4438 + $0x190] sm:$0xf]
  %v4984 = vld [vmem:[%s4438 + $0x194] sm:$0xf]
  %v4985 = vld [vmem:[%s4438 + $0x198] sm:$0xf]
  %v4986 = vld [vmem:[%s4438 + $0x19c] sm:$0xf]
  %v4987 = vld [vmem:[%s4438 + $0x1a0] sm:$0xf]
  %v4988 = vld [vmem:[%s4438 + $0x1a4] sm:$0xf]
  %v4989 = vld [vmem:[%s4438 + $0x1a8] sm:$0xf]
  %v4990 = vld [vmem:[%s4438 + $0x1ac] sm:$0xf]
  %v4991 = vld [vmem:[%s4438 + $0x1b0] sm:$0xf]
  %v4992 = vld [vmem:[%s4438 + $0x1b4] sm:$0xf]
  %v4993 = vld [vmem:[%s4438 + $0x1b8] sm:$0xf]
  %v4994 = vld [vmem:[%s4438 + $0x1bc] sm:$0xf]
  %v4995 = vld [vmem:[%s4438 + $0x1c0] sm:$0xf]
  %v4996 = vld [vmem:[%s4438 + $0x1c4] sm:$0xf]
  %v4997 = vld [vmem:[%s4438 + $0x1c8] sm:$0xf]
  %v4998 = vld [vmem:[%s4438 + $0x1cc] sm:$0xf]
  %v4999 = vld [vmem:[%s4438 + $0x1d0] sm:$0xf]
  %v5000 = vld [vmem:[%s4438 + $0x1d4] sm:$0xf]
  %v5001 = vld [vmem:[%s4438 + $0x1d8] sm:$0xf]
  %v5002 = vld [vmem:[%s4438 + $0x1dc] sm:$0xf]
  %v5003 = vld [vmem:[%s4438 + $0x1e0] sm:$0xf]
  %v5004 = vld [vmem:[%s4438 + $0x1e4] sm:$0xf]
  %v5005 = vld [vmem:[%s4438 + $0x1e8] sm:$0xf]
  %v5006 = vld [vmem:[%s4438 + $0x1ec] sm:$0xf]
  %v5007 = vld [vmem:[%s4438 + $0x1f0] sm:$0xf]
  %v5008 = vld [vmem:[%s4438 + $0x1f4] sm:$0xf]
  %v5009 = vld [vmem:[%s4438 + $0x1f8] sm:$0xf]
  %v5010 = vld [vmem:[%s4438 + $0x1fc] sm:$0xf]
  %v5075 = vunpack.c.l.b16 %v4947
  %v5076 = vunpack.c.l.b16 %v4948
  %v5077 = vunpack.c.l.b16 %v4949
  %v5078 = vunpack.c.l.b16 %v4950
  %v5079 = vunpack.c.l.b16 %v4951
  %v5080 = vunpack.c.l.b16 %v4952
  %v5081 = vunpack.c.l.b16 %v4953
  %v5082 = vunpack.c.l.b16 %v4954
  %v5083 = vunpack.c.l.b16 %v4955
  %v5084 = vunpack.c.l.b16 %v4956
  %v5085 = vunpack.c.l.b16 %v4957
  %v5086 = vunpack.c.l.b16 %v4958
  %v5087 = vunpack.c.l.b16 %v4959
  %v5088 = vunpack.c.l.b16 %v4960
  %v5089 = vunpack.c.l.b16 %v4961
  %v5090 = vunpack.c.l.b16 %v4962
  %v5091 = vunpack.c.l.b16 %v4963
  %v5092 = vunpack.c.l.b16 %v4964
  %v5093 = vunpack.c.l.b16 %v4965
  %v5094 = vunpack.c.l.b16 %v4966
  %v5095 = vunpack.c.l.b16 %v4967
  %v5096 = vunpack.c.l.b16 %v4968
  %v5097 = vunpack.c.l.b16 %v4969
  %v5098 = vunpack.c.l.b16 %v4970
  %v5099 = vunpack.c.l.b16 %v4971
  %v5100 = vunpack.c.l.b16 %v4972
  %v5101 = vunpack.c.l.b16 %v4973
  %v5102 = vunpack.c.l.b16 %v4974
  %v5103 = vunpack.c.l.b16 %v4975
  %v5104 = vunpack.c.l.b16 %v4976
  %v5105 = vunpack.c.l.b16 %v4977
  %v5106 = vunpack.c.l.b16 %v4978
  %v5107 = vunpack.c.l.b16 %v4979
  %v5108 = vunpack.c.l.b16 %v4980
  %v5109 = vunpack.c.l.b16 %v4981
  %v5110 = vunpack.c.l.b16 %v4982
  %v5111 = vunpack.c.l.b16 %v4983
  %v5112 = vunpack.c.l.b16 %v4984
  %v5113 = vunpack.c.l.b16 %v4985
  %v5114 = vunpack.c.l.b16 %v4986
  %v5115 = vunpack.c.l.b16 %v4987
  %v5116 = vunpack.c.l.b16 %v4988
  %v5117 = vunpack.c.l.b16 %v4989
  %v5118 = vunpack.c.l.b16 %v4990
  %v5119 = vunpack.c.l.b16 %v4991
  %v5120 = vunpack.c.l.b16 %v4992
  %v5121 = vunpack.c.l.b16 %v4993
  %v5122 = vunpack.c.l.b16 %v4994
  %v5123 = vunpack.c.l.b16 %v4995
  %v5124 = vunpack.c.l.b16 %v4996
  %v5125 = vunpack.c.l.b16 %v4997
  %v5126 = vunpack.c.l.b16 %v4998
  %v5127 = vunpack.c.l.b16 %v4999
  %v5128 = vunpack.c.l.b16 %v5000
  %v5129 = vunpack.c.l.b16 %v5001
  %v5130 = vunpack.c.l.b16 %v5002
  %v5131 = vunpack.c.l.b16 %v5003
  %v5132 = vunpack.c.l.b16 %v5004
  %v5133 = vunpack.c.l.b16 %v5005
  %v5134 = vunpack.c.l.b16 %v5006
  %v5135 = vunpack.c.l.b16 %v5007
  %v5136 = vunpack.c.l.b16 %v5008
  %v5137 = vunpack.c.l.b16 %v5009
  %v5138 = vunpack.c.l.b16 %v5010
  %v5139 = vpack.c.b16 %v5076, %v5075
  %v5140 = vpack.c.b16 %v5078, %v5077
  %v5141 = vpack.c.b16 %v5080, %v5079
  %v5142 = vpack.c.b16 %v5082, %v5081
  %v5143 = vpack.c.b16 %v5084, %v5083
  %v5144 = vpack.c.b16 %v5086, %v5085
  %v5145 = vpack.c.b16 %v5088, %v5087
  %v5146 = vpack.c.b16 %v5090, %v5089
  %v5147 = vpack.c.b16 %v5092, %v5091
  %v5148 = vpack.c.b16 %v5094, %v5093
  %v5149 = vpack.c.b16 %v5096, %v5095
  %v5150 = vpack.c.b16 %v5098, %v5097
  %v5151 = vpack.c.b16 %v5100, %v5099
  %v5152 = vpack.c.b16 %v5102, %v5101
  %v5153 = vpack.c.b16 %v5104, %v5103
  %v5154 = vpack.c.b16 %v5106, %v5105
  %v5155 = vpack.c.b16 %v5108, %v5107
  %v5156 = vpack.c.b16 %v5110, %v5109
  %v5157 = vpack.c.b16 %v5112, %v5111
  %v5158 = vpack.c.b16 %v5114, %v5113
  %v5159 = vpack.c.b16 %v5116, %v5115
  %v5160 = vpack.c.b16 %v5118, %v5117
  %v5161 = vpack.c.b16 %v5120, %v5119
  %v5162 = vpack.c.b16 %v5122, %v5121
  %v5163 = vpack.c.b16 %v5124, %v5123
  %v5164 = vpack.c.b16 %v5126, %v5125
  %v5165 = vpack.c.b16 %v5128, %v5127
  %v5166 = vpack.c.b16 %v5130, %v5129
  %v5167 = vpack.c.b16 %v5132, %v5131
  %v5168 = vpack.c.b16 %v5134, %v5133
  %v5169 = vpack.c.b16 %v5136, %v5135
  %v5170 = vpack.c.b16 %v5138, %v5137
  %5203 = vmatprep.subr.bf16.mxu0 0
  %5204 = vmatpush1.bf16.msra.mxu0 %v5139
  %5205 = vmatprep.subr.bf16.mxu0 0
  %5206 = vmatpush1.bf16.msra.mxu0 %v5140
  %5207 = vmatprep.subr.bf16.mxu0 0
  %5208 = vmatpush1.bf16.msra.mxu0 %v5141
  %5209 = vmatprep.subr.bf16.mxu0 0
  %5210 = vmatpush1.bf16.msra.mxu0 %v5142
  %5211 = vmatprep.subr.bf16.mxu0 0
  %5212 = vmatpush1.bf16.msra.mxu0 %v5143
  %5213 = vmatprep.subr.bf16.mxu0 0
  %5214 = vmatpush1.bf16.msra.mxu0 %v5144
  %5215 = vmatprep.subr.bf16.mxu0 0
  %5216 = vmatpush1.bf16.msra.mxu0 %v5145
  %5217 = vmatprep.subr.bf16.mxu0 0
  %5218 = vmatpush1.bf16.msra.mxu0 %v5146
  %5219 = vmatprep.subr.bf16.mxu0 0
  %5220 = vmatpush1.bf16.msra.mxu0 %v5147
  %5221 = vmatprep.subr.bf16.mxu0 0
  %5222 = vmatpush1.bf16.msra.mxu0 %v5148
  %5223 = vmatprep.subr.bf16.mxu0 0
  %5224 = vmatpush1.bf16.msra.mxu0 %v5149
  %5225 = vmatprep.subr.bf16.mxu0 0
  %5226 = vmatpush1.bf16.msra.mxu0 %v5150
  %5227 = vmatprep.subr.bf16.mxu0 0
  %5228 = vmatpush1.bf16.msra.mxu0 %v5151
  %5229 = vmatprep.subr.bf16.mxu0 0
  %5230 = vmatpush1.bf16.msra.mxu0 %v5152
  %5231 = vmatprep.subr.bf16.mxu0 0
  %5232 = vmatpush1.bf16.msra.mxu0 %v5153
  %5233 = vmatprep.subr.bf16.mxu0 0
  %5234 = vmatpush1.bf16.msra.mxu0 %v5154
  %5235 = vmatprep.mubr.bf16.mxu0 %v4944
  %5236 = vmatmul.mubr.bf16.gmra.mrb[0].mxu0 %v4943
  %v5237 = vpop.f32.mrb[0].mxu0
  %v5238 = vadd.f32 0.0, %v5237
  %v5239 = vpop.f32.mrb[0].mxu0
  %v5240 = vpop.f32.mrb[0].mxu0
  %v5241 = vadd.f32 0.0, %v5240
  %v5242 = vpop.f32.mrb[0].mxu0
  %5243 = vdwg.mxu0
  %5244 = vmatprep.subr.bf16.mxu0 0
  %5245 = vmatpush1.bf16.msra.mxu0 %v5155
  %5246 = vmatprep.subr.bf16.mxu0 0
  %5247 = vmatpush1.bf16.msra.mxu0 %v5156
  %5248 = vmatprep.subr.bf16.mxu0 0
  %5249 = vmatpush1.bf16.msra.mxu0 %v5157
  %5250 = vmatprep.subr.bf16.mxu0 0
  %5251 = vmatpush1.bf16.msra.mxu0 %v5158
  %5252 = vmatprep.subr.bf16.mxu0 0
  %5253 = vmatpush1.bf16.msra.mxu0 %v5159
  %5254 = vmatprep.subr.bf16.mxu0 0
  %5255 = vmatpush1.bf16.msra.mxu0 %v5160
  %5256 = vmatprep.subr.bf16.mxu0 0
  %5257 = vmatpush1.bf16.msra.mxu0 %v5161
  %5258 = vmatprep.subr.bf16.mxu0 0
  %5259 = vmatpush1.bf16.msra.mxu0 %v5162
  %5260 = vmatprep.subr.bf16.mxu0 0
  %5261 = vmatpush1.bf16.msra.mxu0 %v5163
  %5262 = vmatprep.subr.bf16.mxu0 0
  %5263 = vmatpush1.bf16.msra.mxu0 %v5164
  %5264 = vmatprep.subr.bf16.mxu0 0
  %5265 = vmatpush1.bf16.msra.mxu0 %v5165
  %5266 = vmatprep.subr.bf16.mxu0 0
  %5267 = vmatpush1.bf16.msra.mxu0 %v5166
  %5268 = vmatprep.subr.bf16.mxu0 0
  %5269 = vmatpush1.bf16.msra.mxu0 %v5167
  %5270 = vmatprep.subr.bf16.mxu0 0
  %5271 = vmatpush1.bf16.msra.mxu0 %v5168
  %5272 = vmatprep.subr.bf16.mxu0 0
  %5273 = vmatpush1.bf16.msra.mxu0 %v5169
  %5274 = vmatprep.subr.bf16.mxu0 0
  %5275 = vmatpush1.bf16.msra.mxu0 %v5170
  %5276 = vmatprep.mubr.bf16.mxu0 %v4946
  %5277 = vmatmul.mubr.bf16.gmra.mrb[0].mxu0 %v4945
  %v5278 = vpop.f32.mrb[0].mxu0
  %v5279 = vadd.f32 %v5238, %v5278
  %v5280 = vpop.f32.mrb[0].mxu0
  %v5281 = vpop.f32.mrb[0].mxu0
  %v5282 = vadd.f32 %v5241, %v5281
  %v5283 = vpop.f32.mrb[0].mxu0
  %5284 = vdwg.mxu0
  %v5285 = vadd.f32 %v4777, %v5279
  %v5286 = vadd.f32 %v4778, %v5282
  %v5287 = vld [vmem:[%s4265 + $0x20] sm:$0xff]
  %v5288 = vld [vmem:[%s4265 + $0x28] sm:$0xff]
  %v5289 = vld [vmem:[%s4265 + $0x60] sm:$0xff]
  %v5290 = vld [vmem:[%s4265 + $0x68] sm:$0xff]
  %v5291 = vld [vmem:[%s4265 + $0xa0] sm:$0xff]
  %v5292 = vld [vmem:[%s4265 + $0xa8] sm:$0xff]
  %v5293 = vld [vmem:[%s4265 + $0xe0] sm:$0xff]
  %v5294 = vld [vmem:[%s4265 + $0xe8] sm:$0xff]
  %v5295 = vld [vmem:[%s4274 + $0x8] sm:$0xf]
  %v5297 = vlaneseq
  %v5298 = vshrl.u32 %v5297, 7
  %v5299 = vsub.s32 0, %v5298
  %v5300 = vrot.slane %v5295, %v5299
  %v5301 = vlaneseq
  %v5302 = vshrl.u32 %v5301, 7
  %v5303 = vsub.s32 1, %v5302
  %v5304 = vrot.slane %v5295, %v5303
  %v5305 = vlaneseq
  %v5306 = vshrl.u32 %v5305, 7
  %v5307 = vsub.s32 2, %v5306
  %v5308 = vrot.slane %v5295, %v5307
  %v5309 = vlaneseq
  %v5310 = vshrl.u32 %v5309, 7
  %v5311 = vsub.s32 3, %v5310
  %v5312 = vrot.slane %v5295, %v5311
  %v5325 = vunpack.c.l.b16 %v5287
  %v5326 = vunpack.c.h.b16 %v5287
  %v5327 = vunpack.c.l.b16 %v5288
  %v5328 = vunpack.c.h.b16 %v5288
  %v5329 = vunpack.c.l.b16 %v5289
  %v5330 = vunpack.c.h.b16 %v5289
  %v5331 = vunpack.c.l.b16 %v5290
  %v5332 = vunpack.c.h.b16 %v5290
  %v5333 = vunpack.c.l.b16 %v5291
  %v5334 = vunpack.c.h.b16 %v5291
  %v5335 = vunpack.c.l.b16 %v5292
  %v5336 = vunpack.c.h.b16 %v5292
  %v5337 = vunpack.c.l.b16 %v5293
  %v5338 = vunpack.c.h.b16 %v5293
  %v5339 = vunpack.c.l.b16 %v5294
  %v5340 = vunpack.c.h.b16 %v5294
  %v5341 = vpack.c.b16 %v5329, %v5325
  %v5342 = vpack.c.b16 %v5330, %v5326
  %v5343 = vpack.c.b16 %v5331, %v5327
  %v5344 = vpack.c.b16 %v5332, %v5328
  %v5345 = vpack.c.b16 %v5337, %v5333
  %v5346 = vpack.c.b16 %v5338, %v5334
  %v5347 = vpack.c.b16 %v5339, %v5335
  %v5348 = vpack.c.b16 %v5340, %v5336
  %5357 = vmatprep.subr.bf16.mxu0 %v5342
  %5358 = vmatpush1.bf16.msra.mxu0 %v5341
  %5359 = vmatprep.subr.bf16.mxu0 %v5346
  %5360 = vmatpush1.bf16.msra.mxu0 %v5345
  %5361 = vmatprep.subr.bf16.mxu0 0
  %5362 = vmatpush1.bf16.msra.mxu0 0
  %5363 = vmatprep.subr.bf16.mxu0 0
  %5364 = vmatpush1.bf16.msra.mxu0 0
  %5365 = vmatprep.subr.bf16.mxu0 0
  %5366 = vmatpush1.bf16.msra.mxu0 0
  %5367 = vmatprep.subr.bf16.mxu0 0
  %5368 = vmatpush1.bf16.msra.mxu0 0
  %5369 = vmatprep.subr.bf16.mxu0 0
  %5370 = vmatpush1.bf16.msra.mxu0 0
  %5371 = vmatprep.subr.bf16.mxu0 0
  %5372 = vmatpush1.bf16.msra.mxu0 0
  %5373 = vmatprep.subr.bf16.mxu0 0
  %5374 = vmatpush1.bf16.msra.mxu0 0
  %5375 = vmatprep.subr.bf16.mxu0 0
  %5376 = vmatpush1.bf16.msra.mxu0 0
  %5377 = vmatprep.subr.bf16.mxu0 0
  %5378 = vmatpush1.bf16.msra.mxu0 0
  %5379 = vmatprep.subr.bf16.mxu0 0
  %5380 = vmatpush1.bf16.msra.mxu0 0
  %5381 = vmatprep.subr.bf16.mxu0 0
  %5382 = vmatpush1.bf16.msra.mxu0 0
  %5383 = vmatprep.subr.bf16.mxu0 0
  %5384 = vmatpush1.bf16.msra.mxu0 0
  %5385 = vmatprep.subr.bf16.mxu0 0
  %5386 = vmatpush1.bf16.msra.mxu0 0
  %5387 = vmatprep.subr.bf16.mxu0 0
  %5388 = vmatpush1.bf16.msra.mxu0 0
  %5389 = vmatprep.mubr.bf16.mxu0 0
  %5390 = vmatmul.mubr.bf16.gmra.mrb[0].mxu0 %v4338
  %v5391 = vpop.f32.mrb[0].mxu0
  %v5392 = vadd.f32 %v5300, %v5391
  %v5393 = vpop.f32.mrb[0].mxu0
  %v5394 = vadd.f32 %v5304, %v5393
  %v5395 = vpop.f32.mrb[0].mxu0
  %v5396 = vadd.f32 %v5300, %v5395
  %v5397 = vpop.f32.mrb[0].mxu0
  %v5398 = vadd.f32 %v5304, %v5397
  %5399 = vdwg.mxu0
  %5400 = vmatprep.subr.bf16.mxu0 %v5344
  %5401 = vmatpush1.bf16.msra.mxu0 %v5343
  %5402 = vmatprep.subr.bf16.mxu0 %v5348
  %5403 = vmatpush1.bf16.msra.mxu0 %v5347
  %5404 = vmatprep.subr.bf16.mxu0 0
  %5405 = vmatpush1.bf16.msra.mxu0 0
  %5406 = vmatprep.subr.bf16.mxu0 0
  %5407 = vmatpush1.bf16.msra.mxu0 0
  %5408 = vmatprep.subr.bf16.mxu0 0
  %5409 = vmatpush1.bf16.msra.mxu0 0
  %5410 = vmatprep.subr.bf16.mxu0 0
  %5411 = vmatpush1.bf16.msra.mxu0 0
  %5412 = vmatprep.subr.bf16.mxu0 0
  %5413 = vmatpush1.bf16.msra.mxu0 0
  %5414 = vmatprep.subr.bf16.mxu0 0
  %5415 = vmatpush1.bf16.msra.mxu0 0
  %5416 = vmatprep.subr.bf16.mxu0 0
  %5417 = vmatpush1.bf16.msra.mxu0 0
  %5418 = vmatprep.subr.bf16.mxu0 0
  %5419 = vmatpush1.bf16.msra.mxu0 0
  %5420 = vmatprep.subr.bf16.mxu0 0
  %5421 = vmatpush1.bf16.msra.mxu0 0
  %5422 = vmatprep.subr.bf16.mxu0 0
  %5423 = vmatpush1.bf16.msra.mxu0 0
  %5424 = vmatprep.subr.bf16.mxu0 0
  %5425 = vmatpush1.bf16.msra.mxu0 0
  %5426 = vmatprep.subr.bf16.mxu0 0
  %5427 = vmatpush1.bf16.msra.mxu0 0
  %5428 = vmatprep.subr.bf16.mxu0 0
  %5429 = vmatpush1.bf16.msra.mxu0 0
  %5430 = vmatprep.subr.bf16.mxu0 0
  %5431 = vmatpush1.bf16.msra.mxu0 0
  %5432 = vmatprep.mubr.bf16.mxu0 0
  %5433 = vmatmul.mubr.bf16.gmra.mrb[0].mxu0 %v4338
  %v5434 = vpop.f32.mrb[0].mxu0
  %v5435 = vadd.f32 %v5308, %v5434
  %v5436 = vpop.f32.mrb[0].mxu0
  %v5437 = vadd.f32 %v5312, %v5436
  %v5438 = vpop.f32.mrb[0].mxu0
  %v5439 = vadd.f32 %v5308, %v5438
  %v5440 = vpop.f32.mrb[0].mxu0
  %v5441 = vadd.f32 %v5312, %v5440
  %5442 = vdwg.mxu0
  %v5443 = vmax.f32 %v5392, 0.0
  %v5444 = vmax.f32 %v5394, 0.0
  %v5445 = vmax.f32 %v5435, 0.0
  %v5446 = vmax.f32 %v5437, 0.0
  %v5447 = vmax.f32 %v5396, 0.0
  %v5448 = vmax.f32 %v5398, 0.0
  %v5449 = vmax.f32 %v5439, 0.0
  %v5450 = vmax.f32 %v5441, 0.0
  %v5451 = vpack.c.bf16 %v5447, %v5443
  %v5452 = vpack.c.bf16 %v5448, %v5444
  %v5453 = vpack.c.bf16 %v5449, %v5445
  %v5454 = vpack.c.bf16 %v5450, %v5446
  %v5455 = vld [vmem:[%s4438 + $0x200] sm:$0xf]
  %v5456 = vld [vmem:[%s4438 + $0x204] sm:$0xf]
  %v5457 = vld [vmem:[%s4438 + $0x208] sm:$0xf]
  %v5458 = vld [vmem:[%s4438 + $0x20c] sm:$0xf]
  %v5459 = vld [vmem:[%s4438 + $0x210] sm:$0xf]
  %v5460 = vld [vmem:[%s4438 + $0x214] sm:$0xf]
  %v5461 = vld [vmem:[%s4438 + $0x218] sm:$0xf]
  %v5462 = vld [vmem:[%s4438 + $0x21c] sm:$0xf]
  %v5463 = vld [vmem:[%s4438 + $0x220] sm:$0xf]
  %v5464 = vld [vmem:[%s4438 + $0x224] sm:$0xf]
  %v5465 = vld [vmem:[%s4438 + $0x228] sm:$0xf]
  %v5466 = vld [vmem:[%s4438 + $0x22c] sm:$0xf]
  %v5467 = vld [vmem:[%s4438 + $0x230] sm:$0xf]
  %v5468 = vld [vmem:[%s4438 + $0x234] sm:$0xf]
  %v5469 = vld [vmem:[%s4438 + $0x238] sm:$0xf]
  %v5470 = vld [vmem:[%s4438 + $0x23c] sm:$0xf]
  %v5471 = vld [vmem:[%s4438 + $0x240] sm:$0xf]
  %v5472 = vld [vmem:[%s4438 + $0x244] sm:$0xf]
  %v5473 = vld [vmem:[%s4438 + $0x248] sm:$0xf]
  %v5474 = vld [vmem:[%s4438 + $0x24c] sm:$0xf]
  %v5475 = vld [vmem:[%s4438 + $0x250] sm:$0xf]
  %v5476 = vld [vmem:[%s4438 + $0x254] sm:$0xf]
  %v5477 = vld [vmem:[%s4438 + $0x258] sm:$0xf]
  %v5478 = vld [vmem:[%s4438 + $0x25c] sm:$0xf]
  %v5479 = vld [vmem:[%s4438 + $0x260] sm:$0xf]
  %v5480 = vld [vmem:[%s4438 + $0x264] sm:$0xf]
  %v5481 = vld [vmem:[%s4438 + $0x268] sm:$0xf]
  %v5482 = vld [vmem:[%s4438 + $0x26c] sm:$0xf]
  %v5483 = vld [vmem:[%s4438 + $0x270] sm:$0xf]
  %v5484 = vld [vmem:[%s4438 + $0x274] sm:$0xf]
  %v5485 = vld [vmem:[%s4438 + $0x278] sm:$0xf]
  %v5486 = vld [vmem:[%s4438 + $0x27c] sm:$0xf]
  %v5487 = vld [vmem:[%s4438 + $0x280] sm:$0xf]
  %v5488 = vld [vmem:[%s4438 + $0x284] sm:$0xf]
  %v5489 = vld [vmem:[%s4438 + $0x288] sm:$0xf]
  %v5490 = vld [vmem:[%s4438 + $0x28c] sm:$0xf]
  %v5491 = vld [vmem:[%s4438 + $0x290] sm:$0xf]
  %v5492 = vld [vmem:[%s4438 + $0x294] sm:$0xf]
  %v5493 = vld [vmem:[%s4438 + $0x298] sm:$0xf]
  %v5494 = vld [vmem:[%s4438 + $0x29c] sm:$0xf]
  %v5495 = vld [vmem:[%s4438 + $0x2a0] sm:$0xf]
  %v5496 = vld [vmem:[%s4438 + $0x2a4] sm:$0xf]
  %v5497 = vld [vmem:[%s4438 + $0x2a8] sm:$0xf]
  %v5498 = vld [vmem:[%s4438 + $0x2ac] sm:$0xf]
  %v5499 = vld [vmem:[%s4438 + $0x2b0] sm:$0xf]
  %v5500 = vld [vmem:[%s4438 + $0x2b4] sm:$0xf]
  %v5501 = vld [vmem:[%s4438 + $0x2b8] sm:$0xf]
  %v5502 = vld [vmem:[%s4438 + $0x2bc] sm:$0xf]
  %v5503 = vld [vmem:[%s4438 + $0x2c0] sm:$0xf]
  %v5504 = vld [vmem:[%s4438 + $0x2c4] sm:$0xf]
  %v5505 = vld [vmem:[%s4438 + $0x2c8] sm:$0xf]
  %v5506 = vld [vmem:[%s4438 + $0x2cc] sm:$0xf]
  %v5507 = vld [vmem:[%s4438 + $0x2d0] sm:$0xf]
  %v5508 = vld [vmem:[%s4438 + $0x2d4] sm:$0xf]
  %v5509 = vld [vmem:[%s4438 + $0x2d8] sm:$0xf]
  %v5510 = vld [vmem:[%s4438 + $0x2dc] sm:$0xf]
  %v5511 = vld [vmem:[%s4438 + $0x2e0] sm:$0xf]
  %v5512 = vld [vmem:[%s4438 + $0x2e4] sm:$0xf]
  %v5513 = vld [vmem:[%s4438 + $0x2e8] sm:$0xf]
  %v5514 = vld [vmem:[%s4438 + $0x2ec] sm:$0xf]
  %v5515 = vld [vmem:[%s4438 + $0x2f0] sm:$0xf]
  %v5516 = vld [vmem:[%s4438 + $0x2f4] sm:$0xf]
  %v5517 = vld [vmem:[%s4438 + $0x2f8] sm:$0xf]
  %v5518 = vld [vmem:[%s4438 + $0x2fc] sm:$0xf]
  %v5583 = vunpack.c.l.b16 %v5455
  %v5584 = vunpack.c.l.b16 %v5456
  %v5585 = vunpack.c.l.b16 %v5457
  %v5586 = vunpack.c.l.b16 %v5458
  %v5587 = vunpack.c.l.b16 %v5459
  %v5588 = vunpack.c.l.b16 %v5460
  %v5589 = vunpack.c.l.b16 %v5461
  %v5590 = vunpack.c.l.b16 %v5462
  %v5591 = vunpack.c.l.b16 %v5463
  %v5592 = vunpack.c.l.b16 %v5464
  %v5593 = vunpack.c.l.b16 %v5465
  %v5594 = vunpack.c.l.b16 %v5466
  %v5595 = vunpack.c.l.b16 %v5467
  %v5596 = vunpack.c.l.b16 %v5468
  %v5597 = vunpack.c.l.b16 %v5469
  %v5598 = vunpack.c.l.b16 %v5470
  %v5599 = vunpack.c.l.b16 %v5471
  %v5600 = vunpack.c.l.b16 %v5472
  %v5601 = vunpack.c.l.b16 %v5473
  %v5602 = vunpack.c.l.b16 %v5474
  %v5603 = vunpack.c.l.b16 %v5475
  %v5604 = vunpack.c.l.b16 %v5476
  %v5605 = vunpack.c.l.b16 %v5477
  %v5606 = vunpack.c.l.b16 %v5478
  %v5607 = vunpack.c.l.b16 %v5479
  %v5608 = vunpack.c.l.b16 %v5480
  %v5609 = vunpack.c.l.b16 %v5481
  %v5610 = vunpack.c.l.b16 %v5482
  %v5611 = vunpack.c.l.b16 %v5483
  %v5612 = vunpack.c.l.b16 %v5484
  %v5613 = vunpack.c.l.b16 %v5485
  %v5614 = vunpack.c.l.b16 %v5486
  %v5615 = vunpack.c.l.b16 %v5487
  %v5616 = vunpack.c.l.b16 %v5488
  %v5617 = vunpack.c.l.b16 %v5489
  %v5618 = vunpack.c.l.b16 %v5490
  %v5619 = vunpack.c.l.b16 %v5491
  %v5620 = vunpack.c.l.b16 %v5492
  %v5621 = vunpack.c.l.b16 %v5493
  %v5622 = vunpack.c.l.b16 %v5494
  %v5623 = vunpack.c.l.b16 %v5495
  %v5624 = vunpack.c.l.b16 %v5496
  %v5625 = vunpack.c.l.b16 %v5497
  %v5626 = vunpack.c.l.b16 %v5498
  %v5627 = vunpack.c.l.b16 %v5499
  %v5628 = vunpack.c.l.b16 %v5500
  %v5629 = vunpack.c.l.b16 %v5501
  %v5630 = vunpack.c.l.b16 %v5502
  %v5631 = vunpack.c.l.b16 %v5503
  %v5632 = vunpack.c.l.b16 %v5504
  %v5633 = vunpack.c.l.b16 %v5505
  %v5634 = vunpack.c.l.b16 %v5506
  %v5635 = vunpack.c.l.b16 %v5507
  %v5636 = vunpack.c.l.b16 %v5508
  %v5637 = vunpack.c.l.b16 %v5509
  %v5638 = vunpack.c.l.b16 %v5510
  %v5639 = vunpack.c.l.b16 %v5511
  %v5640 = vunpack.c.l.b16 %v5512
  %v5641 = vunpack.c.l.b16 %v5513
  %v5642 = vunpack.c.l.b16 %v5514
  %v5643 = vunpack.c.l.b16 %v5515
  %v5644 = vunpack.c.l.b16 %v5516
  %v5645 = vunpack.c.l.b16 %v5517
  %v5646 = vunpack.c.l.b16 %v5518
  %v5647 = vpack.c.b16 %v5584, %v5583
  %v5648 = vpack.c.b16 %v5586, %v5585
  %v5649 = vpack.c.b16 %v5588, %v5587
  %v5650 = vpack.c.b16 %v5590, %v5589
  %v5651 = vpack.c.b16 %v5592, %v5591
  %v5652 = vpack.c.b16 %v5594, %v5593
  %v5653 = vpack.c.b16 %v5596, %v5595
  %v5654 = vpack.c.b16 %v5598, %v5597
  %v5655 = vpack.c.b16 %v5600, %v5599
  %v5656 = vpack.c.b16 %v5602, %v5601
  %v5657 = vpack.c.b16 %v5604, %v5603
  %v5658 = vpack.c.b16 %v5606, %v5605
  %v5659 = vpack.c.b16 %v5608, %v5607
  %v5660 = vpack.c.b16 %v5610, %v5609
  %v5661 = vpack.c.b16 %v5612, %v5611
  %v5662 = vpack.c.b16 %v5614, %v5613
  %v5663 = vpack.c.b16 %v5616, %v5615
  %v5664 = vpack.c.b16 %v5618, %v5617
  %v5665 = vpack.c.b16 %v5620, %v5619
  %v5666 = vpack.c.b16 %v5622, %v5621
  %v5667 = vpack.c.b16 %v5624, %v5623
  %v5668 = vpack.c.b16 %v5626, %v5625
  %v5669 = vpack.c.b16 %v5628, %v5627
  %v5670 = vpack.c.b16 %v5630, %v5629
  %v5671 = vpack.c.b16 %v5632, %v5631
  %v5672 = vpack.c.b16 %v5634, %v5633
  %v5673 = vpack.c.b16 %v5636, %v5635
  %v5674 = vpack.c.b16 %v5638, %v5637
  %v5675 = vpack.c.b16 %v5640, %v5639
  %v5676 = vpack.c.b16 %v5642, %v5641
  %v5677 = vpack.c.b16 %v5644, %v5643
  %v5678 = vpack.c.b16 %v5646, %v5645
  %5711 = vmatprep.subr.bf16.mxu0 0
  %5712 = vmatpush1.bf16.msra.mxu0 %v5647
  %5713 = vmatprep.subr.bf16.mxu0 0
  %5714 = vmatpush1.bf16.msra.mxu0 %v5648
  %5715 = vmatprep.subr.bf16.mxu0 0
  %5716 = vmatpush1.bf16.msra.mxu0 %v5649
  %5717 = vmatprep.subr.bf16.mxu0 0
  %5718 = vmatpush1.bf16.msra.mxu0 %v5650
  %5719 = vmatprep.subr.bf16.mxu0 0
  %5720 = vmatpush1.bf16.msra.mxu0 %v5651
  %5721 = vmatprep.subr.bf16.mxu0 0
  %5722 = vmatpush1.bf16.msra.mxu0 %v5652
  %5723 = vmatprep.subr.bf16.mxu0 0
  %5724 = vmatpush1.bf16.msra.mxu0 %v5653
  %5725 = vmatprep.subr.bf16.mxu0 0
  %5726 = vmatpush1.bf16.msra.mxu0 %v5654
  %5727 = vmatprep.subr.bf16.mxu0 0
  %5728 = vmatpush1.bf16.msra.mxu0 %v5655
  %5729 = vmatprep.subr.bf16.mxu0 0
  %5730 = vmatpush1.bf16.msra.mxu0 %v5656
  %5731 = vmatprep.subr.bf16.mxu0 0
  %5732 = vmatpush1.bf16.msra.mxu0 %v5657
  %5733 = vmatprep.subr.bf16.mxu0 0
  %5734 = vmatpush1.bf16.msra.mxu0 %v5658
  %5735 = vmatprep.subr.bf16.mxu0 0
  %5736 = vmatpush1.bf16.msra.mxu0 %v5659
  %5737 = vmatprep.subr.bf16.mxu0 0
  %5738 = vmatpush1.bf16.msra.mxu0 %v5660
  %5739 = vmatprep.subr.bf16.mxu0 0
  %5740 = vmatpush1.bf16.msra.mxu0 %v5661
  %5741 = vmatprep.subr.bf16.mxu0 0
  %5742 = vmatpush1.bf16.msra.mxu0 %v5662
  %5743 = vmatprep.mubr.bf16.mxu0 %v5452
  %5744 = vmatmul.mubr.bf16.gmra.mrb[0].mxu0 %v5451
  %v5745 = vpop.f32.mrb[0].mxu0
  %v5746 = vadd.f32 0.0, %v5745
  %v5747 = vpop.f32.mrb[0].mxu0
  %v5748 = vpop.f32.mrb[0].mxu0
  %v5749 = vadd.f32 0.0, %v5748
  %v5750 = vpop.f32.mrb[0].mxu0
  %5751 = vdwg.mxu0
  %5752 = vmatprep.subr.bf16.mxu0 0
  %5753 = vmatpush1.bf16.msra.mxu0 %v5663
  %5754 = vmatprep.subr.bf16.mxu0 0
  %5755 = vmatpush1.bf16.msra.mxu0 %v5664
  %5756 = vmatprep.subr.bf16.mxu0 0
  %5757 = vmatpush1.bf16.msra.mxu0 %v5665
  %5758 = vmatprep.subr.bf16.mxu0 0
  %5759 = vmatpush1.bf16.msra.mxu0 %v5666
  %5760 = vmatprep.subr.bf16.mxu0 0
  %5761 = vmatpush1.bf16.msra.mxu0 %v5667
  %5762 = vmatprep.subr.bf16.mxu0 0
  %5763 = vmatpush1.bf16.msra.mxu0 %v5668
  %5764 = vmatprep.subr.bf16.mxu0 0
  %5765 = vmatpush1.bf16.msra.mxu0 %v5669
  %5766 = vmatprep.subr.bf16.mxu0 0
  %5767 = vmatpush1.bf16.msra.mxu0 %v5670
  %5768 = vmatprep.subr.bf16.mxu0 0
  %5769 = vmatpush1.bf16.msra.mxu0 %v5671
  %5770 = vmatprep.subr.bf16.mxu0 0
  %5771 = vmatpush1.bf16.msra.mxu0 %v5672
  %5772 = vmatprep.subr.bf16.mxu0 0
  %5773 = vmatpush1.bf16.msra.mxu0 %v5673
  %5774 = vmatprep.subr.bf16.mxu0 0
  %5775 = vmatpush1.bf16.msra.mxu0 %v5674
  %5776 = vmatprep.subr.bf16.mxu0 0
  %5777 = vmatpush1.bf16.msra.mxu0 %v5675
  %5778 = vmatprep.subr.bf16.mxu0 0
  %5779 = vmatpush1.bf16.msra.mxu0 %v5676
  %5780 = vmatprep.subr.bf16.mxu0 0
  %5781 = vmatpush1.bf16.msra.mxu0 %v5677
  %5782 = vmatprep.subr.bf16.mxu0 0
  %5783 = vmatpush1.bf16.msra.mxu0 %v5678
  %5784 = vmatprep.mubr.bf16.mxu0 %v5454
  %5785 = vmatmul.mubr.bf16.gmra.mrb[0].mxu0 %v5453
  %v5786 = vpop.f32.mrb[0].mxu0
  %v5787 = vadd.f32 %v5746, %v5786
  %v5788 = vpop.f32.mrb[0].mxu0
  %v5789 = vpop.f32.mrb[0].mxu0
  %v5790 = vadd.f32 %v5749, %v5789
  %v5791 = vpop.f32.mrb[0].mxu0
  %5792 = vdwg.mxu0
  %v5793 = vadd.f32 %v5285, %v5787
  %v5794 = vadd.f32 %v5286, %v5790
  %v5795 = vld [vmem:[%s4265 + $0x30] sm:$0xff]
  %v5796 = vld [vmem:[%s4265 + $0x38] sm:$0xff]
  %v5797 = vld [vmem:[%s4265 + $0x70] sm:$0xff]
  %v5798 = vld [vmem:[%s4265 + $0x78] sm:$0xff]
  %v5799 = vld [vmem:[%s4265 + $0xb0] sm:$0xff]
  %v5800 = vld [vmem:[%s4265 + $0xb8] sm:$0xff]
  %v5801 = vld [vmem:[%s4265 + $0xf0] sm:$0xff]
  %v5802 = vld [vmem:[%s4265 + $0xf8] sm:$0xff]
  %v5803 = vld [vmem:[%s4274 + $0xc] sm:$0xf]
  %v5805 = vlaneseq
  %v5806 = vshrl.u32 %v5805, 7
  %v5807 = vsub.s32 0, %v5806
  %v5808 = vrot.slane %v5803, %v5807
  %v5809 = vlaneseq
  %v5810 = vshrl.u32 %v5809, 7
  %v5811 = vsub.s32 1, %v5810
  %v5812 = vrot.slane %v5803, %v5811
  %v5813 = vlaneseq
  %v5814 = vshrl.u32 %v5813, 7
  %v5815 = vsub.s32 2, %v5814
  %v5816 = vrot.slane %v5803, %v5815
  %v5817 = vlaneseq
  %v5818 = vshrl.u32 %v5817, 7
  %v5819 = vsub.s32 3, %v5818
  %v5820 = vrot.slane %v5803, %v5819
  %v5833 = vunpack.c.l.b16 %v5795
  %v5834 = vunpack.c.h.b16 %v5795
  %v5835 = vunpack.c.l.b16 %v5796
  %v5836 = vunpack.c.h.b16 %v5796
  %v5837 = vunpack.c.l.b16 %v5797
  %v5838 = vunpack.c.h.b16 %v5797
  %v5839 = vunpack.c.l.b16 %v5798
  %v5840 = vunpack.c.h.b16 %v5798
  %v5841 = vunpack.c.l.b16 %v5799
  %v5842 = vunpack.c.h.b16 %v5799
  %v5843 = vunpack.c.l.b16 %v5800
  %v5844 = vunpack.c.h.b16 %v5800
  %v5845 = vunpack.c.l.b16 %v5801
  %v5846 = vunpack.c.h.b16 %v5801
  %v5847 = vunpack.c.l.b16 %v5802
  %v5848 = vunpack.c.h.b16 %v5802
  %v5849 = vpack.c.b16 %v5837, %v5833
  %v5850 = vpack.c.b16 %v5838, %v5834
  %v5851 = vpack.c.b16 %v5839, %v5835
  %v5852 = vpack.c.b16 %v5840, %v5836
  %v5853 = vpack.c.b16 %v5845, %v5841
  %v5854 = vpack.c.b16 %v5846, %v5842
  %v5855 = vpack.c.b16 %v5847, %v5843
  %v5856 = vpack.c.b16 %v5848, %v5844
  %5865 = vmatprep.subr.bf16.mxu0 %v5850
  %5866 = vmatpush1.bf16.msra.mxu0 %v5849
  %5867 = vmatprep.subr.bf16.mxu0 %v5854
  %5868 = vmatpush1.bf16.msra.mxu0 %v5853
  %5869 = vmatprep.subr.bf16.mxu0 0
  %5870 = vmatpush1.bf16.msra.mxu0 0
  %5871 = vmatprep.subr.bf16.mxu0 0
  %5872 = vmatpush1.bf16.msra.mxu0 0
  %5873 = vmatprep.subr.bf16.mxu0 0
  %5874 = vmatpush1.bf16.msra.mxu0 0
  %5875 = vmatprep.subr.bf16.mxu0 0
  %5876 = vmatpush1.bf16.msra.mxu0 0
  %5877 = vmatprep.subr.bf16.mxu0 0
  %5878 = vmatpush1.bf16.msra.mxu0 0
  %5879 = vmatprep.subr.bf16.mxu0 0
  %5880 = vmatpush1.bf16.msra.mxu0 0
  %5881 = vmatprep.subr.bf16.mxu0 0
  %5882 = vmatpush1.bf16.msra.mxu0 0
  %5883 = vmatprep.subr.bf16.mxu0 0
  %5884 = vmatpush1.bf16.msra.mxu0 0
  %5885 = vmatprep.subr.bf16.mxu0 0
  %5886 = vmatpush1.bf16.msra.mxu0 0
  %5887 = vmatprep.subr.bf16.mxu0 0
  %5888 = vmatpush1.bf16.msra.mxu0 0
  %5889 = vmatprep.subr.bf16.mxu0 0
  %5890 = vmatpush1.bf16.msra.mxu0 0
  %5891 = vmatprep.subr.bf16.mxu0 0
  %5892 = vmatpush1.bf16.msra.mxu0 0
  %5893 = vmatprep.subr.bf16.mxu0 0
  %5894 = vmatpush1.bf16.msra.mxu0 0
  %5895 = vmatprep.subr.bf16.mxu0 0
  %5896 = vmatpush1.bf16.msra.mxu0 0
  %5897 = vmatprep.mubr.bf16.mxu0 0
  %5898 = vmatmul.mubr.bf16.gmra.mrb[0].mxu0 %v4338
  %v5899 = vpop.f32.mrb[0].mxu0
  %v5900 = vadd.f32 %v5808, %v5899
  %v5901 = vpop.f32.mrb[0].mxu0
  %v5902 = vadd.f32 %v5812, %v5901
  %v5903 = vpop.f32.mrb[0].mxu0
  %v5904 = vadd.f32 %v5808, %v5903
  %v5905 = vpop.f32.mrb[0].mxu0
  %v5906 = vadd.f32 %v5812, %v5905
  %5907 = vdwg.mxu0
  %5908 = vmatprep.subr.bf16.mxu0 %v5852
  %5909 = vmatpush1.bf16.msra.mxu0 %v5851
  %5910 = vmatprep.subr.bf16.mxu0 %v5856
  %5911 = vmatpush1.bf16.msra.mxu0 %v5855
  %5912 = vmatprep.subr.bf16.mxu0 0
  %5913 = vmatpush1.bf16.msra.mxu0 0
  %5914 = vmatprep.subr.bf16.mxu0 0
  %5915 = vmatpush1.bf16.msra.mxu0 0
  %5916 = vmatprep.subr.bf16.mxu0 0
  %5917 = vmatpush1.bf16.msra.mxu0 0
  %5918 = vmatprep.subr.bf16.mxu0 0
  %5919 = vmatpush1.bf16.msra.mxu0 0
  %5920 = vmatprep.subr.bf16.mxu0 0
  %5921 = vmatpush1.bf16.msra.mxu0 0
  %5922 = vmatprep.subr.bf16.mxu0 0
  %5923 = vmatpush1.bf16.msra.mxu0 0
  %5924 = vmatprep.subr.bf16.mxu0 0
  %5925 = vmatpush1.bf16.msra.mxu0 0
  %5926 = vmatprep.subr.bf16.mxu0 0
  %5927 = vmatpush1.bf16.msra.mxu0 0
  %5928 = vmatprep.subr.bf16.mxu0 0
  %5929 = vmatpush1.bf16.msra.mxu0 0
  %5930 = vmatprep.subr.bf16.mxu0 0
  %5931 = vmatpush1.bf16.msra.mxu0 0
  %5932 = vmatprep.subr.bf16.mxu0 0
  %5933 = vmatpush1.bf16.msra.mxu0 0
  %5934 = vmatprep.subr.bf16.mxu0 0
  %5935 = vmatpush1.bf16.msra.mxu0 0
  %5936 = vmatprep.subr.bf16.mxu0 0
  %5937 = vmatpush1.bf16.msra.mxu0 0
  %5938 = vmatprep.subr.bf16.mxu0 0
  %5939 = vmatpush1.bf16.msra.mxu0 0
  %5940 = vmatprep.mubr.bf16.mxu0 0
  %5941 = vmatmul.mubr.bf16.gmra.mrb[0].mxu0 %v4338
  %v5942 = vpop.f32.mrb[0].mxu0
  %v5943 = vadd.f32 %v5816, %v5942
  %v5944 = vpop.f32.mrb[0].mxu0
  %v5945 = vadd.f32 %v5820, %v5944
  %v5946 = vpop.f32.mrb[0].mxu0
  %v5947 = vadd.f32 %v5816, %v5946
  %v5948 = vpop.f32.mrb[0].mxu0
  %v5949 = vadd.f32 %v5820, %v5948
  %5950 = vdwg.mxu0
  %v5951 = vmax.f32 %v5900, 0.0
  %v5952 = vmax.f32 %v5902, 0.0
  %v5953 = vmax.f32 %v5943, 0.0
  %v5954 = vmax.f32 %v5945, 0.0
  %v5955 = vmax.f32 %v5904, 0.0
  %v5956 = vmax.f32 %v5906, 0.0
  %v5957 = vmax.f32 %v5947, 0.0
  %v5958 = vmax.f32 %v5949, 0.0
  %v5959 = vpack.c.bf16 %v5955, %v5951
  %v5960 = vpack.c.bf16 %v5956, %v5952
  %v5961 = vpack.c.bf16 %v5957, %v5953
  %v5962 = vpack.c.bf16 %v5958, %v5954
  %v5963 = vld [vmem:[%s4438 + $0x300] sm:$0xf]
  %v5964 = vld [vmem:[%s4438 + $0x304] sm:$0xf]
  %v5965 = vld [vmem:[%s4438 + $0x308] sm:$0xf]
  %v5966 = vld [vmem:[%s4438 + $0x30c] sm:$0xf]
  %v5967 = vld [vmem:[%s4438 + $0x310] sm:$0xf]
  %v5968 = vld [vmem:[%s4438 + $0x314] sm:$0xf]
  %v5969 = vld [vmem:[%s4438 + $0x318] sm:$0xf]
  %v5970 = vld [vmem:[%s4438 + $0x31c] sm:$0xf]
  %v5971 = vld [vmem:[%s4438 + $0x320] sm:$0xf]
  %v5972 = vld [vmem:[%s4438 + $0x324] sm:$0xf]
  %v5973 = vld [vmem:[%s4438 + $0x328] sm:$0xf]
  %v5974 = vld [vmem:[%s4438 + $0x32c] sm:$0xf]
  %v5975 = vld [vmem:[%s4438 + $0x330] sm:$0xf]
  %v5976 = vld [vmem:[%s4438 + $0x334] sm:$0xf]
  %v5977 = vld [vmem:[%s4438 + $0x338] sm:$0xf]
  %v5978 = vld [vmem:[%s4438 + $0x33c] sm:$0xf]
  %v5979 = vld [vmem:[%s4438 + $0x340] sm:$0xf]
  %v5980 = vld [vmem:[%s4438 + $0x344] sm:$0xf]
  %v5981 = vld [vmem:[%s4438 + $0x348] sm:$0xf]
  %v5982 = vld [vmem:[%s4438 + $0x34c] sm:$0xf]
  %v5983 = vld [vmem:[%s4438 + $0x350] sm:$0xf]
  %v5984 = vld [vmem:[%s4438 + $0x354] sm:$0xf]
  %v5985 = vld [vmem:[%s4438 + $0x358] sm:$0xf]
  %v5986 = vld [vmem:[%s4438 + $0x35c] sm:$0xf]
  %v5987 = vld [vmem:[%s4438 + $0x360] sm:$0xf]
  %v5988 = vld [vmem:[%s4438 + $0x364] sm:$0xf]
  %v5989 = vld [vmem:[%s4438 + $0x368] sm:$0xf]
  %v5990 = vld [vmem:[%s4438 + $0x36c] sm:$0xf]
  %v5991 = vld [vmem:[%s4438 + $0x370] sm:$0xf]
  %v5992 = vld [vmem:[%s4438 + $0x374] sm:$0xf]
  %v5993 = vld [vmem:[%s4438 + $0x378] sm:$0xf]
  %v5994 = vld [vmem:[%s4438 + $0x37c] sm:$0xf]
  %v5995 = vld [vmem:[%s4438 + $0x380] sm:$0xf]
  %v5996 = vld [vmem:[%s4438 + $0x384] sm:$0xf]
  %v5997 = vld [vmem:[%s4438 + $0x388] sm:$0xf]
  %v5998 = vld [vmem:[%s4438 + $0x38c] sm:$0xf]
  %v5999 = vld [vmem:[%s4438 + $0x390] sm:$0xf]
  %v6000 = vld [vmem:[%s4438 + $0x394] sm:$0xf]
  %v6001 = vld [vmem:[%s4438 + $0x398] sm:$0xf]
  %v6002 = vld [vmem:[%s4438 + $0x39c] sm:$0xf]
  %v6003 = vld [vmem:[%s4438 + $0x3a0] sm:$0xf]
  %v6004 = vld [vmem:[%s4438 + $0x3a4] sm:$0xf]
  %v6005 = vld [vmem:[%s4438 + $0x3a8] sm:$0xf]
  %v6006 = vld [vmem:[%s4438 + $0x3ac] sm:$0xf]
  %v6007 = vld [vmem:[%s4438 + $0x3b0] sm:$0xf]
  %v6008 = vld [vmem:[%s4438 + $0x3b4] sm:$0xf]
  %v6009 = vld [vmem:[%s4438 + $0x3b8] sm:$0xf]
  %v6010 = vld [vmem:[%s4438 + $0x3bc] sm:$0xf]
  %v6011 = vld [vmem:[%s4438 + $0x3c0] sm:$0xf]
  %v6012 = vld [vmem:[%s4438 + $0x3c4] sm:$0xf]
  %v6013 = vld [vmem:[%s4438 + $0x3c8] sm:$0xf]
  %v6014 = vld [vmem:[%s4438 + $0x3cc] sm:$0xf]
  %v6015 = vld [vmem:[%s4438 + $0x3d0] sm:$0xf]
  %v6016 = vld [vmem:[%s4438 + $0x3d4] sm:$0xf]
  %v6017 = vld [vmem:[%s4438 + $0x3d8] sm:$0xf]
  %v6018 = vld [vmem:[%s4438 + $0x3dc] sm:$0xf]
  %v6019 = vld [vmem:[%s4438 + $0x3e0] sm:$0xf]
  %v6020 = vld [vmem:[%s4438 + $0x3e4] sm:$0xf]
  %v6021 = vld [vmem:[%s4438 + $0x3e8] sm:$0xf]
  %v6022 = vld [vmem:[%s4438 + $0x3ec] sm:$0xf]
  %v6023 = vld [vmem:[%s4438 + $0x3f0] sm:$0xf]
  %v6024 = vld [vmem:[%s4438 + $0x3f4] sm:$0xf]
  %v6025 = vld [vmem:[%s4438 + $0x3f8] sm:$0xf]
  %v6026 = vld [vmem:[%s4438 + $0x3fc] sm:$0xf]
  %v6091 = vunpack.c.l.b16 %v5963
  %v6092 = vunpack.c.l.b16 %v5964
  %v6093 = vunpack.c.l.b16 %v5965
  %v6094 = vunpack.c.l.b16 %v5966
  %v6095 = vunpack.c.l.b16 %v5967
  %v6096 = vunpack.c.l.b16 %v5968
  %v6097 = vunpack.c.l.b16 %v5969
  %v6098 = vunpack.c.l.b16 %v5970
  %v6099 = vunpack.c.l.b16 %v5971
  %v6100 = vunpack.c.l.b16 %v5972
  %v6101 = vunpack.c.l.b16 %v5973
  %v6102 = vunpack.c.l.b16 %v5974
  %v6103 = vunpack.c.l.b16 %v5975
  %v6104 = vunpack.c.l.b16 %v5976
  %v6105 = vunpack.c.l.b16 %v5977
  %v6106 = vunpack.c.l.b16 %v5978
  %v6107 = vunpack.c.l.b16 %v5979
  %v6108 = vunpack.c.l.b16 %v5980
  %v6109 = vunpack.c.l.b16 %v5981
  %v6110 = vunpack.c.l.b16 %v5982
  %v6111 = vunpack.c.l.b16 %v5983
  %v6112 = vunpack.c.l.b16 %v5984
  %v6113 = vunpack.c.l.b16 %v5985
  %v6114 = vunpack.c.l.b16 %v5986
  %v6115 = vunpack.c.l.b16 %v5987
  %v6116 = vunpack.c.l.b16 %v5988
  %v6117 = vunpack.c.l.b16 %v5989
  %v6118 = vunpack.c.l.b16 %v5990
  %v6119 = vunpack.c.l.b16 %v5991
  %v6120 = vunpack.c.l.b16 %v5992
  %v6121 = vunpack.c.l.b16 %v5993
  %v6122 = vunpack.c.l.b16 %v5994
  %v6123 = vunpack.c.l.b16 %v5995
  %v6124 = vunpack.c.l.b16 %v5996
  %v6125 = vunpack.c.l.b16 %v5997
  %v6126 = vunpack.c.l.b16 %v5998
  %v6127 = vunpack.c.l.b16 %v5999
  %v6128 = vunpack.c.l.b16 %v6000
  %v6129 = vunpack.c.l.b16 %v6001
  %v6130 = vunpack.c.l.b16 %v6002
  %v6131 = vunpack.c.l.b16 %v6003
  %v6132 = vunpack.c.l.b16 %v6004
  %v6133 = vunpack.c.l.b16 %v6005
  %v6134 = vunpack.c.l.b16 %v6006
  %v6135 = vunpack.c.l.b16 %v6007
  %v6136 = vunpack.c.l.b16 %v6008
  %v6137 = vunpack.c.l.b16 %v6009
  %v6138 = vunpack.c.l.b16 %v6010
  %v6139 = vunpack.c.l.b16 %v6011
  %v6140 = vunpack.c.l.b16 %v6012
  %v6141 = vunpack.c.l.b16 %v6013
  %v6142 = vunpack.c.l.b16 %v6014
  %v6143 = vunpack.c.l.b16 %v6015
  %v6144 = vunpack.c.l.b16 %v6016
  %v6145 = vunpack.c.l.b16 %v6017
  %v6146 = vunpack.c.l.b16 %v6018
  %v6147 = vunpack.c.l.b16 %v6019
  %v6148 = vunpack.c.l.b16 %v6020
  %v6149 = vunpack.c.l.b16 %v6021
  %v6150 = vunpack.c.l.b16 %v6022
  %v6151 = vunpack.c.l.b16 %v6023
  %v6152 = vunpack.c.l.b16 %v6024
  %v6153 = vunpack.c.l.b16 %v6025
  %v6154 = vunpack.c.l.b16 %v6026
  %v6155 = vpack.c.b16 %v6092, %v6091
  %v6156 = vpack.c.b16 %v6094, %v6093
  %v6157 = vpack.c.b16 %v6096, %v6095
  %v6158 = vpack.c.b16 %v6098, %v6097
  %v6159 = vpack.c.b16 %v6100, %v6099
  %v6160 = vpack.c.b16 %v6102, %v6101
  %v6161 = vpack.c.b16 %v6104, %v6103
  %v6162 = vpack.c.b16 %v6106, %v6105
  %v6163 = vpack.c.b16 %v6108, %v6107
  %v6164 = vpack.c.b16 %v6110, %v6109
  %v6165 = vpack.c.b16 %v6112, %v6111
  %v6166 = vpack.c.b16 %v6114, %v6113
  %v6167 = vpack.c.b16 %v6116, %v6115
  %v6168 = vpack.c.b16 %v6118, %v6117
  %v6169 = vpack.c.b16 %v6120, %v6119
  %v6170 = vpack.c.b16 %v6122, %v6121
  %v6171 = vpack.c.b16 %v6124, %v6123
  %v6172 = vpack.c.b16 %v6126, %v6125
  %v6173 = vpack.c.b16 %v6128, %v6127
  %v6174 = vpack.c.b16 %v6130, %v6129
  %v6175 = vpack.c.b16 %v6132, %v6131
  %v6176 = vpack.c.b16 %v6134, %v6133
  %v6177 = vpack.c.b16 %v6136, %v6135
  %v6178 = vpack.c.b16 %v6138, %v6137
  %v6179 = vpack.c.b16 %v6140, %v6139
  %v6180 = vpack.c.b16 %v6142, %v6141
  %v6181 = vpack.c.b16 %v6144, %v6143
  %v6182 = vpack.c.b16 %v6146, %v6145
  %v6183 = vpack.c.b16 %v6148, %v6147
  %v6184 = vpack.c.b16 %v6150, %v6149
  %v6185 = vpack.c.b16 %v6152, %v6151
  %v6186 = vpack.c.b16 %v6154, %v6153
  %6219 = vmatprep.subr.bf16.mxu0 0
  %6220 = vmatpush1.bf16.msra.mxu0 %v6155
  %6221 = vmatprep.subr.bf16.mxu0 0
  %6222 = vmatpush1.bf16.msra.mxu0 %v6156
  %6223 = vmatprep.subr.bf16.mxu0 0
  %6224 = vmatpush1.bf16.msra.mxu0 %v6157
  %6225 = vmatprep.subr.bf16.mxu0 0
  %6226 = vmatpush1.bf16.msra.mxu0 %v6158
  %6227 = vmatprep.subr.bf16.mxu0 0
  %6228 = vmatpush1.bf16.msra.mxu0 %v6159
  %6229 = vmatprep.subr.bf16.mxu0 0
  %6230 = vmatpush1.bf16.msra.mxu0 %v6160
  %6231 = vmatprep.subr.bf16.mxu0 0
  %6232 = vmatpush1.bf16.msra.mxu0 %v6161
  %6233 = vmatprep.subr.bf16.mxu0 0
  %6234 = vmatpush1.bf16.msra.mxu0 %v6162
  %6235 = vmatprep.subr.bf16.mxu0 0
  %6236 = vmatpush1.bf16.msra.mxu0 %v6163
  %6237 = vmatprep.subr.bf16.mxu0 0
  %6238 = vmatpush1.bf16.msra.mxu0 %v6164
  %6239 = vmatprep.subr.bf16.mxu0 0
  %6240 = vmatpush1.bf16.msra.mxu0 %v6165
  %6241 = vmatprep.subr.bf16.mxu0 0
  %6242 = vmatpush1.bf16.msra.mxu0 %v6166
  %6243 = vmatprep.subr.bf16.mxu0 0
  %6244 = vmatpush1.bf16.msra.mxu0 %v6167
  %6245 = vmatprep.subr.bf16.mxu0 0
  %6246 = vmatpush1.bf16.msra.mxu0 %v6168
  %6247 = vmatprep.subr.bf16.mxu0 0
  %6248 = vmatpush1.bf16.msra.mxu0 %v6169
  %6249 = vmatprep.subr.bf16.mxu0 0
  %6250 = vmatpush1.bf16.msra.mxu0 %v6170
  %6251 = vmatprep.mubr.bf16.mxu0 %v5960
  %6252 = vmatmul.mubr.bf16.gmra.mrb[0].mxu0 %v5959
  %v6253 = vpop.f32.mrb[0].mxu0
  %v6254 = vadd.f32 0.0, %v6253
  %v6255 = vpop.f32.mrb[0].mxu0
  %v6256 = vpop.f32.mrb[0].mxu0
  %v6257 = vadd.f32 0.0, %v6256
  %v6258 = vpop.f32.mrb[0].mxu0
  %6259 = vdwg.mxu0
  %6260 = vmatprep.subr.bf16.mxu0 0
  %6261 = vmatpush1.bf16.msra.mxu0 %v6171
  %6262 = vmatprep.subr.bf16.mxu0 0
  %6263 = vmatpush1.bf16.msra.mxu0 %v6172
  %6264 = vmatprep.subr.bf16.mxu0 0
  %6265 = vmatpush1.bf16.msra.mxu0 %v6173
  %6266 = vmatprep.subr.bf16.mxu0 0
  %6267 = vmatpush1.bf16.msra.mxu0 %v6174
  %6268 = vmatprep.subr.bf16.mxu0 0
  %6269 = vmatpush1.bf16.msra.mxu0 %v6175
  %6270 = vmatprep.subr.bf16.mxu0 0
  %6271 = vmatpush1.bf16.msra.mxu0 %v6176
  %6272 = vmatprep.subr.bf16.mxu0 0
  %6273 = vmatpush1.bf16.msra.mxu0 %v6177
  %6274 = vmatprep.subr.bf16.mxu0 0
  %6275 = vmatpush1.bf16.msra.mxu0 %v6178
  %6276 = vmatprep.subr.bf16.mxu0 0
  %6277 = vmatpush1.bf16.msra.mxu0 %v6179
  %6278 = vmatprep.subr.bf16.mxu0 0
  %6279 = vmatpush1.bf16.msra.mxu0 %v6180
  %6280 = vmatprep.subr.bf16.mxu0 0
  %6281 = vmatpush1.bf16.msra.mxu0 %v6181
  %6282 = vmatprep.subr.bf16.mxu0 0
  %6283 = vmatpush1.bf16.msra.mxu0 %v6182
  %6284 = vmatprep.subr.bf16.mxu0 0
  %6285 = vmatpush1.bf16.msra.mxu0 %v6183
  %6286 = vmatprep.subr.bf16.mxu0 0
  %6287 = vmatpush1.bf16.msra.mxu0 %v6184
  %6288 = vmatprep.subr.bf16.mxu0 0
  %6289 = vmatpush1.bf16.msra.mxu0 %v6185
  %6290 = vmatprep.subr.bf16.mxu0 0
  %6291 = vmatpush1.bf16.msra.mxu0 %v6186
  %6292 = vmatprep.mubr.bf16.mxu0 %v5962
  %6293 = vmatmul.mubr.bf16.gmra.mrb[0].mxu0 %v5961
  %v6294 = vpop.f32.mrb[0].mxu0
  %v6295 = vadd.f32 %v6254, %v6294
  %v6296 = vpop.f32.mrb[0].mxu0
  %v6297 = vpop.f32.mrb[0].mxu0
  %v6298 = vadd.f32 %v6257, %v6297
  %v6299 = vpop.f32.mrb[0].mxu0
  %6300 = vdwg.mxu0
  %v6301 = vadd.f32 %v5793, %v6295
  %v6302 = vadd.f32 %v5794, %v6298
  %s6303 = scalar_lea.vmem %s14, 1
  %v6304 = vld [vmem:[%s6303] sm:$0x1]
  %s6305 = scalar_lea.vmem %s15, 1
  %v6306 = vld [vmem:[%s6305] sm:$0x1]
  %v6307 = vsel %vm149, %v6301, 0.0
  %6308 = vadd.xlane.f32.xlu0 %v6307
  %v6309 = vpop.xlane.xlu0 %6308
  %v6310 = vsel %vm149, %v6302, 0.0
  %6311 = vadd.xlane.f32.xlu0 %v6310
  %v6312 = vpop.xlane.xlu0 %6311
  %v6313 = vmul.f32 %v6309, %v1108
  %v6314 = vmul.f32 %v6312, %v1108
  %v6315 = vsub.f32 %v6301, %v6313
  %v6316 = vsub.f32 %v6302, %v6314
  %v6317 = vmul.f32 %v6315, %v6315
  %v6318 = vmul.f32 %v6316, %v6316
  %v6319 = vsel %vm149, %v6317, 0.0
  %6320 = vadd.xlane.f32.xlu0 %v6319
  %v6321 = vpop.xlane.xlu0 %6320
  %v6322 = vsel %vm149, %v6318, 0.0
  %6323 = vadd.xlane.f32.xlu0 %v6322
  %v6324 = vpop.xlane.xlu0 %6323
  %v6325 = vmul.f32 %v6321, %v1108
  %v6326 = vmul.f32 %v6324, %v1108
  %v6327 = vadd.f32 %v6325, 1e-05
  %v6328 = vadd.f32 %v6326, 1e-05
  %v6329 = vrsqrt.pop %v6327
  %v6330 = vrsqrt.pop %v6328
  %v6331 = vmul.f32 %v6315, %v6329
  %v6332 = vmul.f32 %v6316, %v6330
  %v6334 = vlaneseq
  %v6335 = vshrl.u32 %v6334, 7
  %v6336 = vsub.s32 0, %v6335
  %v6337 = vrot.slane %v6304, %v6336
  %v6339 = vmul.f32 %v6331, %v6337
  %v6340 = vmul.f32 %v6332, %v6337
  %v6342 = vlaneseq
  %v6343 = vshrl.u32 %v6342, 7
  %v6344 = vsub.s32 0, %v6343
  %v6345 = vrot.slane %v6306, %v6344
  %v6347 = vadd.f32 %v6339, %v6345
  %v6348 = vadd.f32 %v6340, %v6345
  %v6349 = vadd.f32 %v6347, %v6348
  %v6350 = vmul.f32 %v6349, 0.5
  %v6351 = vpack.c.bf16 %v6350, %v6350
  %v6352 = vld [vmem:[%s16] sm:$0xf]
  %v6353 = vld [vmem:[%s16 + $0x4] sm:$0xf]
  %v6354 = vld [vmem:[%s16 + $0x8] sm:$0xf]
  %v6355 = vld [vmem:[%s16 + $0xc] sm:$0xf]
  %v6356 = vld [vmem:[%s17] sm:$0x1]
  %v6358 = vlaneseq
  %v6359 = vshrl.u32 %v6358, 7
  %v6360 = vsub.s32 0, %v6359
  %v6361 = vrot.slane %v6356, %v6360
  %v6367 = vunpack.c.l.b16 %v6352
  %v6368 = vunpack.c.l.b16 %v6353
  %v6369 = vunpack.c.l.b16 %v6354
  %v6370 = vunpack.c.l.b16 %v6355
  %v6371 = vpack.c.b16 %v6368, %v6367
  %v6372 = vpack.c.b16 %v6370, %v6369
  %v6376 = vsel %vm149, %v6351, 0
  %6378 = vmatprep.subr.bf16.mxu0 0
  %6379 = vmatpush1.bf16.msra.mxu0 %v6371
  %6380 = vmatprep.subr.bf16.mxu0 0
  %6381 = vmatpush1.bf16.msra.mxu0 %v6372
  %6382 = vmatprep.subr.bf16.mxu0 0
  %6383 = vmatpush1.bf16.msra.mxu0 0
  %6384 = vmatprep.subr.bf16.mxu0 0
  %6385 = vmatpush1.bf16.msra.mxu0 0
  %6386 = vmatprep.subr.bf16.mxu0 0
  %6387 = vmatpush1.bf16.msra.mxu0 0
  %6388 = vmatprep.subr.bf16.mxu0 0
  %6389 = vmatpush1.bf16.msra.mxu0 0
  %6390 = vmatprep.subr.bf16.mxu0 0
  %6391 = vmatpush1.bf16.msra.mxu0 0
  %6392 = vmatprep.subr.bf16.mxu0 0
  %6393 = vmatpush1.bf16.msra.mxu0 0
  %6394 = vmatprep.subr.bf16.mxu0 0
  %6395 = vmatpush1.bf16.msra.mxu0 0
  %6396 = vmatprep.subr.bf16.mxu0 0
  %6397 = vmatpush1.bf16.msra.mxu0 0
  %6398 = vmatprep.subr.bf16.mxu0 0
  %6399 = vmatpush1.bf16.msra.mxu0 0
  %6400 = vmatprep.subr.bf16.mxu0 0
  %6401 = vmatpush1.bf16.msra.mxu0 0
  %6402 = vmatprep.subr.bf16.mxu0 0
  %6403 = vmatpush1.bf16.msra.mxu0 0
  %6404 = vmatprep.subr.bf16.mxu0 0
  %6405 = vmatpush1.bf16.msra.mxu0 0
  %6406 = vmatprep.subr.bf16.mxu0 0
  %6407 = vmatpush1.bf16.msra.mxu0 0
  %6408 = vmatprep.subr.bf16.mxu0 0
  %6409 = vmatpush1.bf16.msra.mxu0 0
  %6410 = vmatprep.mubr.bf16.mxu0 0
  %6411 = vmatmul.mubr.bf16.gmra.mrb[0].mxu0 %v6376
  %v6412 = vpop.f32.mrb[0].mxu0
  %v6413 = vadd.f32 %v6361, %v6412
  %v6414 = vpop.f32.mrb[0].mxu0
  %v6415 = vpop.f32.mrb[0].mxu0
  %v6416 = vpop.f32.mrb[0].mxu0
  %6417 = vdwg.mxu0
  %vm6418 = vcmask 31744
  %6419 = vst.msk [vmem:[%s18] sm:$0xff] %vm6418, %v6413
  // Predicated region
  $region74: #{transformer_traffic_forward.1} parent=0 // pred_check
    _
  $region75: #{transformer_traffic_forward.1} parent=0 // pred_check_branch
    %6421 = sbr.rel (0) target = $region77
  $region76: #{transformer_traffic_forward.1} parent=0 // pred_region
    _
  $region77: #{transformer_traffic_forward.1} parent=0 // pred_fallthru
    _
  // Predicated region
  $region78: #{transformer_traffic_forward.1} parent=0 // pred_check
    _
  $region79: #{transformer_traffic_forward.1} parent=0 // pred_check_branch
    %6423 = sbr.rel (0) target = $region81
  $region80: #{transformer_traffic_forward.1} parent=0 // pred_region
    _
  $region81: #{transformer_traffic_forward.1} parent=0 // pred_fallthru
    _

</llo_original>
